<compile_context>
chip_gen: v7x
topology: tpu7x:2x2x1
jax: 0.10.0
libtpu: 0.0.40
codegen_flags: <defaults>
</compile_context>

<pallas_src>
import functools

import jax
import jax.numpy as jnp
from jax.experimental import pallas as pl
from jax.experimental.pallas import tpu as pltpu

_LANE = 128
_HEAD_LANES = 128                 # lane-dense combined head output (cols 0..4 used)
_HEAD_COLS = ((0, 1), (1, 3), (3, 5))   # ctr, offset, size
_HEAD_OUT = (1, 2, 2)


def _round_up(x, m):
    return (x + m - 1) // m * m


def _nbytes(shape, dtype):
    n = 1
    for s in shape:
        n *= int(s)
    return n * jnp.dtype(dtype).itemsize


def _mosaic_params(block_bytes, interm_bytes):
    """Budget every double-buffered block + intermediates; set a generation-aware
    vmem limit (pltpu.get_tpu_info with a conservative 64 MiB fallback)."""
    need = 2 * sum(block_bytes) + interm_bytes
    try:
        cap = int(getattr(pltpu.get_tpu_info(), "vmem_capacity_bytes", 64 << 20))
    except Exception:  # not on TPU / API unavailable
        cap = 64 << 20
    limit = min(cap * 3 // 4, max(32 << 20, need * 2))
    if need > limit:
        raise ValueError(
            f"kernel needs ~{need} bytes of VMEM which exceeds the limit {limit}")
    return pltpu.CompilerParams(dimension_semantics=("parallel",),
                                vmem_limit_bytes=int(limit))


# ----------------------------------------------------------------------------
# Pallas kernels
# ----------------------------------------------------------------------------
def _conv1_kernel(x_ref, w_ref, b_ref, mask_ref, o_ref, *, taps, pcomp, shift):
    """First 3x3 conv for ALL branches (lane-packed / grouped), folded-BN bias,
    ReLU.  The 9 taps are row-offset slices of the flat padded-image block, so
    no im2col ever touches HBM.  The result is written at row offset `shift`
    (= W+3) of the output slab so the next conv can read it as an already
    zero-padded image in the same flat layout."""
    n1 = w_ref.shape[-1]
    acc = jnp.zeros((pcomp, n1), jnp.float32)
    for t, off in enumerate(taps):                       # 9 accumulating matmuls
        acc = acc + jnp.dot(x_ref[off:off + pcomp, :], w_ref[t],
                            preferred_element_type=jnp.float32)
    y = jnp.maximum(acc + b_ref[...], 0.0) * mask_ref[...]   # zero the pad rows
    o_ref[...] = jnp.zeros_like(o_ref)
    o_ref[shift:shift + pcomp, :] = y.astype(o_ref.dtype)


def _conv2_head_kernel(x_ref, w2_ref, b2_ref, w3_ref, b3_ref, o_ref, *,
                       taps, pcomp, n_groups, gw):
    """Second 3x3 conv + folded-BN bias + ReLU (per lane group, 9 in-kernel
    taps), then ONE fused 1x1 head matmul on the concatenated h2 and the
    clamped sigmoid on the ctr/size lanes.  h2 never leaves VMEM."""
    parts = []
    for g in range(n_groups):
        acc = jnp.zeros((pcomp, gw), jnp.float32)
        for t, off in enumerate(taps):
            acc = acc + jnp.dot(x_ref[off:off + pcomp, g * gw:(g + 1) * gw],
                                w2_ref[g * 9 + t],
                                preferred_element_type=jnp.float32)
        h = jnp.maximum(acc + b2_ref[:, g * gw:(g + 1) * gw], 0.0)
        parts.append(h.astype(jnp.bfloat16))
    h2 = parts[0] if n_groups == 1 else jnp.concatenate(parts, axis=-1)
    y = jnp.dot(h2, w3_ref[...], preferred_element_type=jnp.float32) + b3_ref[...]
    # sigmoid via EUP tanh; clamp like the reference _sigmoid.
    sig = jnp.clip(0.5 * (jnp.tanh(0.5 * y) + 1.0), 1e-4, 1.0 - 1e-4)
    lane = jax.lax.broadcasted_iota(jnp.int32, (1, o_ref.shape[-1]), 1)
    m = ((lane == 0) | ((lane >= 3) & (lane < 5))).astype(jnp.float32)
    o_ref[...] = sig * m + y * (1.0 - m)


# ----------------------------------------------------------------------------
# pallas_call wrappers
# ----------------------------------------------------------------------------
def _run_conv1(xflat, w1, b1, row_mask, *, pcomp, taps, w_img):
    B, pb, cin = xflat.shape
    n1 = w1.shape[-1]
    kernel = functools.partial(_conv1_kernel, taps=taps, pcomp=pcomp,
                               shift=w_img + 3)
    cp = _mosaic_params(
        [_nbytes((pb, cin), jnp.bfloat16),
         _nbytes(w1.shape, jnp.bfloat16),
         _nbytes(b1.shape, jnp.float32),
         _nbytes(row_mask.shape, jnp.float32),
         _nbytes((pb, n1), jnp.bfloat16)],
        interm_bytes=2 * pcomp * n1 * 4)
    return pl.pallas_call(
        kernel,
        out_shape=jax.ShapeDtypeStruct((B, pb, n1), jnp.bfloat16),
        grid=(B,),
        in_specs=[
            pl.BlockSpec((None, pb, cin), lambda b: (b, 0, 0)),
            pl.BlockSpec(w1.shape, lambda b: (0, 0, 0)),
            pl.BlockSpec(b1.shape, lambda b: (0, 0)),
            pl.BlockSpec(row_mask.shape, lambda b: (0, 0)),
        ],
        out_specs=pl.BlockSpec((None, pb, n1), lambda b: (b, 0, 0)),
        compiler_params=cp,
    )(xflat, w1, b1, row_mask)


def _run_conv2(h1, w2, b2, w3, b3, *, pcomp, taps):
    B, pb, n1 = h1.shape
    gw = w2.shape[-1]
    n_groups = w2.shape[0] // 9
    kernel = functools.partial(_conv2_head_kernel, taps=taps, pcomp=pcomp,
                               n_groups=n_groups, gw=gw)
    cp = _mosaic_params(
        [_nbytes((pb, n1), jnp.bfloat16),
         _nbytes(w2.shape, jnp.bfloat16),
         _nbytes(b2.shape, jnp.float32),
         _nbytes(w3.shape, jnp.bfloat16),
         _nbytes(b3.shape, jnp.float32),
         _nbytes((pcomp, _HEAD_LANES), jnp.float32)],
        interm_bytes=2 * (pcomp * gw * 4 + pcomp * n1 * 2 + pcomp * _HEAD_LANES * 4))
    return pl.pallas_call(
        kernel,
        out_shape=jax.ShapeDtypeStruct((B, pcomp, _HEAD_LANES), jnp.float32),
        grid=(B,),
        in_specs=[
            pl.BlockSpec((None, pb, n1), lambda b: (b, 0, 0)),
            pl.BlockSpec(w2.shape, lambda b: (0, 0, 0)),
            pl.BlockSpec(b2.shape, lambda b: (0, 0)),
            pl.BlockSpec(w3.shape, lambda b: (0, 0)),
            pl.BlockSpec(b3.shape, lambda b: (0, 0)),
        ],
        out_specs=pl.BlockSpec((None, pcomp, _HEAD_LANES), lambda b: (b, 0, 0)),
        compiler_params=cp,
    )(h1, w2, b2, w3, b3)


# ----------------------------------------------------------------------------
# Parameter initialization (mirrors the PyTorch __init__ shapes; BatchNorm is
# folded into the conv weights/bias using eval-mode running statistics).
# ----------------------------------------------------------------------------
def _xavier_uniform(key, shape, fan_in, fan_out):
    bound = (6.0 / (fan_in + fan_out)) ** 0.5
    return jax.random.uniform(key, shape, jnp.float32, -bound, bound)


def _init_conv_bn_folded(key, cin, cout, k=3):
    kw, kb, kg, kbt, km, kv = jax.random.split(key, 6)
    fan_in, fan_out = cin * k * k, cout * k * k
    w = _xavier_uniform(kw, (cout, cin, k, k), fan_in, fan_out)
    bb = 1.0 / (fan_in ** 0.5)
    b = jax.random.uniform(kb, (cout,), jnp.float32, -bb, bb)
    gamma = jax.random.uniform(kg, (cout,), jnp.float32, 0.5, 1.5)
    beta = jax.random.uniform(kbt, (cout,), jnp.float32, -0.1, 0.1)
    mean = jax.random.uniform(km, (cout,), jnp.float32, -0.1, 0.1)
    var = jax.random.uniform(kv, (cout,), jnp.float32, 0.5, 1.5)
    scale = gamma / jnp.sqrt(var + 1e-5)
    w_f = w * scale[:, None, None, None]              # BN scale folded into conv
    b_f = b * scale + (beta - mean * scale)           # BN shift folded into bias
    return jnp.transpose(w_f, (2, 3, 1, 0)), b_f      # HWIO [kh,kw,Cin,Cout], [Cout]


def _init_conv1x1(key, cin, cout):
    kw, kb = jax.random.split(key)
    w = _xavier_uniform(kw, (cout, cin, 1, 1), cin, cout)
    bb = 1.0 / (cin ** 0.5)
    b = jax.random.uniform(kb, (cout,), jnp.float32, -bb, bb)
    return jnp.transpose(w.reshape(cout, cin), (1, 0)), b    # [Cin, Cout], [Cout]


def init_params(key, inplanes, channel):
    """Fused/packed kernel params + a per-branch f32 copy for the pure-JAX
    reference check.  Lane layout: if 3*channel <= 128 all branches share one
    128-lane group (block-diagonal conv2); otherwise each branch gets its own
    128-aligned group."""
    if 3 * channel <= _LANE:
        n_groups, gw = 1, _LANE
        starts = tuple(b * channel for b in range(3))
    else:
        n_groups, gw = 3, _round_up(channel, _LANE)
        starts = tuple(b * gw for b in range(3))
    n1 = n_groups * gw

    w1 = jnp.zeros((9, inplanes, n1), jnp.float32)
    b1 = jnp.zeros((1, n1), jnp.float32)
    w2 = jnp.zeros((n_groups * 9, gw, gw), jnp.float32)
    b2 = jnp.zeros((1, n1), jnp.float32)
    w3 = jnp.zeros((n1, _HEAD_LANES), jnp.float32)
    b3 = jnp.zeros((1, _HEAD_LANES), jnp.float32)
    ref = {"w1": [], "b1": [], "w2": [], "b2": [], "w3": [], "b3": []}

    for bi in range(3):
        key, ka, kb_, kc = jax.random.split(key, 4)
        s = starts[bi]
        g = 0 if n_groups == 1 else bi
        so = s - g * gw                                  # start within the group

        w1b, b1b = _init_conv_bn_folded(ka, inplanes, channel)
        ref["w1"].append(w1b); ref["b1"].append(b1b)
        w1 = w1.at[:, :, s:s + channel].set(w1b.reshape(9, inplanes, channel))
        b1 = b1.at[0, s:s + channel].set(b1b)

        w2b, b2b = _init_conv_bn_folded(kb_, channel, channel)
        ref["w2"].append(w2b); ref["b2"].append(b2b)
        w2 = w2.at[g * 9:(g + 1) * 9, so:so + channel, so:so + channel].set(
            w2b.reshape(9, channel, channel))
        b2 = b2.at[0, s:s + channel].set(b2b)

        w3b, b3b = _init_conv1x1(kc, channel, _HEAD_OUT[bi])
        ref["w3"].append(w3b); ref["b3"].append(b3b)
        lo, hi = _HEAD_COLS[bi]
        w3 = w3.at[s:s + channel, lo:hi].set(w3b)
        b3 = b3.at[0, lo:hi].set(b3b)

    params = {
        "w1": w1.astype(jnp.bfloat16), "b1": b1,
        "w2": w2.astype(jnp.bfloat16), "b2": b2,
        "w3": w3.astype(jnp.bfloat16), "b3": b3,
    }
    return params, ref


# ----------------------------------------------------------------------------
# Module forward
# ----------------------------------------------------------------------------
def _cal_bbox(score_map_ctr, size_map, offset_map, feat_sz):
    # Tiny data-dependent argmax + gather — plain JAX glue (no Pallas needed).
    B = score_map_ctr.shape[0]
    flat = score_map_ctr.reshape(B, -1)
    idx = jnp.argmax(flat, axis=1)                     # first max, like torch.max
    idx_y = (idx // feat_sz).astype(jnp.float32)
    idx_x = (idx % feat_sz).astype(jnp.float32)
    idx3 = jnp.broadcast_to(idx[:, None, None], (B, 2, 1))
    size = jnp.take_along_axis(size_map.reshape(B, 2, -1), idx3, axis=2)[..., 0]
    offset = jnp.take_along_axis(offset_map.reshape(B, 2, -1), idx3, axis=2)[..., 0]
    bbox = jnp.concatenate(
        [
            (idx_x[:, None] + offset[:, 0:1]) / feat_sz,
            (idx_y[:, None] + offset[:, 1:2]) / feat_sz,
            size,
        ],
        axis=1,
    )
    return bbox


def center_predictor_forward(x_nchw, params, feat_sz):
    """Equivalent of CenterPredictorLiteV2.forward(x) with gt_score_map=None."""
    B, cin, H, W = x_nchw.shape
    wp = W + 2
    pcomp = _round_up(H * wp, 8)                 # computed output rows per image
    pb = _round_up(pcomp + 2 * W + 6, 8)         # flat padded-image rows per image
    taps = tuple(dy * wp + dx for dy in range(3) for dx in range(3))

    # NCHW -> NHWC bf16, spatial zero-pad once, flatten to padded-row layout.
    x = jnp.transpose(x_nchw, (0, 2, 3, 1)).astype(jnp.bfloat16)
    xp = jnp.pad(x, ((0, 0), (1, 1), (1, 1), (0, 0)))
    xflat = xp.reshape(B, (H + 2) * wp, cin)
    xflat = jnp.pad(xflat, ((0, 0), (0, pb - (H + 2) * wp), (0, 0)))

    # Loop-invariant valid-row mask: zero the pad-column / beyond-image rows so
    # conv1's output slab IS the zero-padded input of conv2.
    rows = jnp.arange(pcomp, dtype=jnp.int32)
    row_mask = (((rows % wp) < W) & (rows < H * wp)).astype(jnp.float32)[:, None]

    h1 = _run_conv1(xflat, params["w1"], params["b1"], row_mask,
                    pcomp=pcomp, taps=taps, w_img=W)              # [B, pb, N1] bf16
    head = _run_conv2(h1, params["w2"], params["b2"],
                      params["w3"], params["b3"],
                      pcomp=pcomp, taps=taps)                     # [B, pcomp, 128] f32

    # Keep only valid pixels (pad-column / padded rows are garbage by design)
    # and slice the lane-dense head back into the PyTorch NCHW maps.
    maps = head[:, :H * wp, :5].reshape(B, H, wp, 5)[:, :, :W, :]  # [B,H,W,5]
    score_map_ctr = jnp.transpose(maps[..., 0:1], (0, 3, 1, 2))    # sigmoid
    offset_map = jnp.transpose(maps[..., 1:3], (0, 3, 1, 2))       # raw
    size_map = jnp.transpose(maps[..., 3:5], (0, 3, 1, 2))         # sigmoid

    bbox = _cal_bbox(score_map_ctr, size_map, offset_map, feat_sz)
    return score_map_ctr, bbox, size_map, offset_map


# ----------------------------------------------------------------------------
# Pure-JAX f32 reference (same folded-BN params) for a sanity check.
# ----------------------------------------------------------------------------
def reference_forward(x_nchw, ref):
    x = jnp.transpose(x_nchw, (0, 2, 3, 1)).astype(jnp.float32)

    def conv3x3_relu(inp, w_hwio, b):
        y = jax.lax.conv_general_dilated(
            inp, w_hwio, window_strides=(1, 1), padding=((1, 1), (1, 1)),
            dimension_numbers=("NHWC", "HWIO", "NHWC"))
        return jnp.maximum(y + b, 0.0)

    outs = []
    for bi in range(3):
        h1 = conv3x3_relu(x, ref["w1"][bi], ref["b1"][bi])
        h2 = conv3x3_relu(h1, ref["w2"][bi], ref["b2"][bi])
        outs.append(jnp.einsum("bhwc,co->bhwo", h2, ref["w3"][bi]) + ref["b3"][bi])
    clamp_sig = lambda v: jnp.clip(jax.nn.sigmoid(v), 1e-4, 1.0 - 1e-4)
    ctr = jnp.transpose(clamp_sig(outs[0]), (0, 3, 1, 2))
    off = jnp.transpose(outs[1], (0, 3, 1, 2))
    size = jnp.transpose(clamp_sig(outs[2]), (0, 3, 1, 2))
    return ctr, off, size


if __name__ == "__main__":
    key = jax.random.PRNGKey(0)
    kx, kp = jax.random.split(key)

    B, inplanes, channel, feat_sz = 2, 8, 16, 16
    x = jax.random.normal(kx, (B, inplanes, feat_sz, feat_sz), jnp.float32)
    params, ref_params = init_params(kp, inplanes, channel)

    fwd = jax.jit(functools.partial(center_predictor_forward, feat_sz=feat_sz))
    score_map_ctr, bbox, size_map, offset_map = fwd(x, params)
    jax.block_until_ready((score_map_ctr, bbox, size_map, offset_map))

    assert score_map_ctr.shape == (B, 1, feat_sz, feat_sz)
    assert bbox.shape == (B, 4)
    assert size_map.shape == (B, 2, feat_sz, feat_sz)
    assert offset_map.shape == (B, 2, feat_sz, feat_sz)
    assert bool(jnp.all(jnp.isfinite(bbox)))
    assert bool(jnp.all((score_map_ctr >= 1e-4) & (score_map_ctr <= 1 - 1e-4)))

    # Numeric check vs the pure-JAX f32 reference (kernel path is bf16
    # activations/weights with f32 MXU accumulation -> loose absolute tol).
    ref_ctr, ref_off, ref_size = reference_forward(x, ref_params)
    tol = 0.12

    def _maxdiff(a, b):
        return float(jnp.max(jnp.abs(a.astype(jnp.float32) - b)))

    d_ctr, d_off, d_size = (_maxdiff(score_map_ctr, ref_ctr),
                            _maxdiff(offset_map, ref_off),
                            _maxdiff(size_map, ref_size))
    assert d_ctr < tol, f"ctr map mismatch: {d_ctr}"
    assert d_off < tol, f"offset map mismatch: {d_off}"
    assert d_size < tol, f"size map mismatch: {d_size}"

    print("KERNEL_OK")
</pallas_src>

<mosaic_0001>
module attributes {stable_mosaic.version = 11 : i64} {
  func.func @_conv1_kernel(%arg0: i32, %arg1: memref<1x328x8xbf16, #tpu.memory_space<vmem>>, %arg2: memref<9x8x128xbf16, #tpu.memory_space<vmem>>, %arg3: memref<1x128xf32, #tpu.memory_space<vmem>>, %arg4: memref<288x1xf32, #tpu.memory_space<vmem>>, %arg5: memref<1x328x128xbf16, #tpu.memory_space<vmem>>) attributes {dimension_semantics = [#tpu.dimension_semantics<parallel>], iteration_bounds = array<i64: 2>, scalar_prefetch = 0 : i64, scratch_operands = 0 : i64, tpu.core_type = #tpu.core_type<tc>, window_params = [{transform_indices = @transform_0, window_bounds = array<i64: 1, 328, 8>}, {pipeline_mode = #tpu.pipeline_mode<synchronous>, transform_indices = @transform_1, window_bounds = array<i64: 9, 8, 128>}, {pipeline_mode = #tpu.pipeline_mode<synchronous>, transform_indices = @transform_2, window_bounds = array<i64: 1, 128>}, {pipeline_mode = #tpu.pipeline_mode<synchronous>, transform_indices = @transform_3, window_bounds = array<i64: 288, 1>}, {transform_indices = @transform_4, window_bounds = array<i64: 1, 328, 128>}]} {
    %cst = arith.constant 0.000000e+00 : f32
    %0 = vector.broadcast %cst : f32 to vector<288x128xf32>
    %c0 = arith.constant 0 : index
    %c0_0 = arith.constant 0 : index
    %c0_1 = arith.constant 0 : index
    %1 = vector.load %arg1[%c0, %c0_0, %c0_1] : memref<1x328x8xbf16, #tpu.memory_space<vmem>>, vector<1x288x8xbf16>
    %2 = vector.shape_cast %1 : vector<1x288x8xbf16> to vector<288x8xbf16>
    %c0_2 = arith.constant 0 : index
    %c0_3 = arith.constant 0 : index
    %c0_4 = arith.constant 0 : index
    %3 = vector.load %arg2[%c0_2, %c0_3, %c0_4] : memref<9x8x128xbf16, #tpu.memory_space<vmem>>, vector<1x8x128xbf16>
    %4 = vector.shape_cast %3 : vector<1x8x128xbf16> to vector<8x128xbf16>
    %cst_5 = arith.constant dense<0.000000e+00> : vector<288x128xf32>
    %5 = tpu.matmul %2, %4, %cst_5 {dimension_numbers = #tpu.dot_dimension_numbers<[1], [0], [0], [1], [0, 0, 1, 1], [], []>} : vector<288x8xbf16>, vector<8x128xbf16>, vector<288x128xf32> -> vector<288x128xf32>
    %6 = arith.addf %0, %5 : vector<288x128xf32>
    %c0_6 = arith.constant 0 : index
    %c1 = arith.constant 1 : index
    %c0_7 = arith.constant 0 : index
    %7 = vector.load %arg1[%c0_6, %c1, %c0_7] : memref<1x328x8xbf16, #tpu.memory_space<vmem>>, vector<1x288x8xbf16>
    %8 = vector.shape_cast %7 : vector<1x288x8xbf16> to vector<288x8xbf16>
    %c1_8 = arith.constant 1 : index
    %c0_9 = arith.constant 0 : index
    %c0_10 = arith.constant 0 : index
    %9 = vector.load %arg2[%c1_8, %c0_9, %c0_10] : memref<9x8x128xbf16, #tpu.memory_space<vmem>>, vector<1x8x128xbf16>
    %10 = vector.shape_cast %9 : vector<1x8x128xbf16> to vector<8x128xbf16>
    %cst_11 = arith.constant dense<0.000000e+00> : vector<288x128xf32>
    %11 = tpu.matmul %8, %10, %cst_11 {dimension_numbers = #tpu.dot_dimension_numbers<[1], [0], [0], [1], [0, 0, 1, 1], [], []>} : vector<288x8xbf16>, vector<8x128xbf16>, vector<288x128xf32> -> vector<288x128xf32>
    %12 = arith.addf %6, %11 : vector<288x128xf32>
    %c0_12 = arith.constant 0 : index
    %c2 = arith.constant 2 : index
    %c0_13 = arith.constant 0 : index
    %13 = vector.load %arg1[%c0_12, %c2, %c0_13] : memref<1x328x8xbf16, #tpu.memory_space<vmem>>, vector<1x288x8xbf16>
    %14 = vector.shape_cast %13 : vector<1x288x8xbf16> to vector<288x8xbf16>
    %c2_14 = arith.constant 2 : index
    %c0_15 = arith.constant 0 : index
    %c0_16 = arith.constant 0 : index
    %15 = vector.load %arg2[%c2_14, %c0_15, %c0_16] : memref<9x8x128xbf16, #tpu.memory_space<vmem>>, vector<1x8x128xbf16>
    %16 = vector.shape_cast %15 : vector<1x8x128xbf16> to vector<8x128xbf16>
    %cst_17 = arith.constant dense<0.000000e+00> : vector<288x128xf32>
    %17 = tpu.matmul %14, %16, %cst_17 {dimension_numbers = #tpu.dot_dimension_numbers<[1], [0], [0], [1], [0, 0, 1, 1], [], []>} : vector<288x8xbf16>, vector<8x128xbf16>, vector<288x128xf32> -> vector<288x128xf32>
    %18 = arith.addf %12, %17 : vector<288x128xf32>
    %c0_18 = arith.constant 0 : index
    %c18 = arith.constant 18 : index
    %c0_19 = arith.constant 0 : index
    %19 = vector.load %arg1[%c0_18, %c18, %c0_19] : memref<1x328x8xbf16, #tpu.memory_space<vmem>>, vector<1x288x8xbf16>
    %20 = vector.shape_cast %19 : vector<1x288x8xbf16> to vector<288x8xbf16>
    %c3 = arith.constant 3 : index
    %c0_20 = arith.constant 0 : index
    %c0_21 = arith.constant 0 : index
    %21 = vector.load %arg2[%c3, %c0_20, %c0_21] : memref<9x8x128xbf16, #tpu.memory_space<vmem>>, vector<1x8x128xbf16>
    %22 = vector.shape_cast %21 : vector<1x8x128xbf16> to vector<8x128xbf16>
    %cst_22 = arith.constant dense<0.000000e+00> : vector<288x128xf32>
    %23 = tpu.matmul %20, %22, %cst_22 {dimension_numbers = #tpu.dot_dimension_numbers<[1], [0], [0], [1], [0, 0, 1, 1], [], []>} : vector<288x8xbf16>, vector<8x128xbf16>, vector<288x128xf32> -> vector<288x128xf32>
    %24 = arith.addf %18, %23 : vector<288x128xf32>
    %c0_23 = arith.constant 0 : index
    %c19 = arith.constant 19 : index
    %c0_24 = arith.constant 0 : index
    %25 = vector.load %arg1[%c0_23, %c19, %c0_24] : memref<1x328x8xbf16, #tpu.memory_space<vmem>>, vector<1x288x8xbf16>
    %26 = vector.shape_cast %25 : vector<1x288x8xbf16> to vector<288x8xbf16>
    %c4 = arith.constant 4 : index
    %c0_25 = arith.constant 0 : index
    %c0_26 = arith.constant 0 : index
    %27 = vector.load %arg2[%c4, %c0_25, %c0_26] : memref<9x8x128xbf16, #tpu.memory_space<vmem>>, vector<1x8x128xbf16>
    %28 = vector.shape_cast %27 : vector<1x8x128xbf16> to vector<8x128xbf16>
    %cst_27 = arith.constant dense<0.000000e+00> : vector<288x128xf32>
    %29 = tpu.matmul %26, %28, %cst_27 {dimension_numbers = #tpu.dot_dimension_numbers<[1], [0], [0], [1], [0, 0, 1, 1], [], []>} : vector<288x8xbf16>, vector<8x128xbf16>, vector<288x128xf32> -> vector<288x128xf32>
    %30 = arith.addf %24, %29 : vector<288x128xf32>
    %c0_28 = arith.constant 0 : index
    %c20 = arith.constant 20 : index
    %c0_29 = arith.constant 0 : index
    %31 = vector.load %arg1[%c0_28, %c20, %c0_29] : memref<1x328x8xbf16, #tpu.memory_space<vmem>>, vector<1x288x8xbf16>
    %32 = vector.shape_cast %31 : vector<1x288x8xbf16> to vector<288x8xbf16>
    %c5 = arith.constant 5 : index
    %c0_30 = arith.constant 0 : index
    %c0_31 = arith.constant 0 : index
    %33 = vector.load %arg2[%c5, %c0_30, %c0_31] : memref<9x8x128xbf16, #tpu.memory_space<vmem>>, vector<1x8x128xbf16>
    %34 = vector.shape_cast %33 : vector<1x8x128xbf16> to vector<8x128xbf16>
    %cst_32 = arith.constant dense<0.000000e+00> : vector<288x128xf32>
    %35 = tpu.matmul %32, %34, %cst_32 {dimension_numbers = #tpu.dot_dimension_numbers<[1], [0], [0], [1], [0, 0, 1, 1], [], []>} : vector<288x8xbf16>, vector<8x128xbf16>, vector<288x128xf32> -> vector<288x128xf32>
    %36 = arith.addf %30, %35 : vector<288x128xf32>
    %c0_33 = arith.constant 0 : index
    %c36 = arith.constant 36 : index
    %c0_34 = arith.constant 0 : index
    %37 = vector.load %arg1[%c0_33, %c36, %c0_34] : memref<1x328x8xbf16, #tpu.memory_space<vmem>>, vector<1x288x8xbf16>
    %38 = vector.shape_cast %37 : vector<1x288x8xbf16> to vector<288x8xbf16>
    %c6 = arith.constant 6 : index
    %c0_35 = arith.constant 0 : index
    %c0_36 = arith.constant 0 : index
    %39 = vector.load %arg2[%c6, %c0_35, %c0_36] : memref<9x8x128xbf16, #tpu.memory_space<vmem>>, vector<1x8x128xbf16>
    %40 = vector.shape_cast %39 : vector<1x8x128xbf16> to vector<8x128xbf16>
    %cst_37 = arith.constant dense<0.000000e+00> : vector<288x128xf32>
    %41 = tpu.matmul %38, %40, %cst_37 {dimension_numbers = #tpu.dot_dimension_numbers<[1], [0], [0], [1], [0, 0, 1, 1], [], []>} : vector<288x8xbf16>, vector<8x128xbf16>, vector<288x128xf32> -> vector<288x128xf32>
    %42 = arith.addf %36, %41 : vector<288x128xf32>
    %c0_38 = arith.constant 0 : index
    %c37 = arith.constant 37 : index
    %c0_39 = arith.constant 0 : index
    %43 = vector.load %arg1[%c0_38, %c37, %c0_39] : memref<1x328x8xbf16, #tpu.memory_space<vmem>>, vector<1x288x8xbf16>
    %44 = vector.shape_cast %43 : vector<1x288x8xbf16> to vector<288x8xbf16>
    %c7 = arith.constant 7 : index
    %c0_40 = arith.constant 0 : index
    %c0_41 = arith.constant 0 : index
    %45 = vector.load %arg2[%c7, %c0_40, %c0_41] : memref<9x8x128xbf16, #tpu.memory_space<vmem>>, vector<1x8x128xbf16>
    %46 = vector.shape_cast %45 : vector<1x8x128xbf16> to vector<8x128xbf16>
    %cst_42 = arith.constant dense<0.000000e+00> : vector<288x128xf32>
    %47 = tpu.matmul %44, %46, %cst_42 {dimension_numbers = #tpu.dot_dimension_numbers<[1], [0], [0], [1], [0, 0, 1, 1], [], []>} : vector<288x8xbf16>, vector<8x128xbf16>, vector<288x128xf32> -> vector<288x128xf32>
    %48 = arith.addf %42, %47 : vector<288x128xf32>
    %c0_43 = arith.constant 0 : index
    %c38 = arith.constant 38 : index
    %c0_44 = arith.constant 0 : index
    %49 = vector.load %arg1[%c0_43, %c38, %c0_44] : memref<1x328x8xbf16, #tpu.memory_space<vmem>>, vector<1x288x8xbf16>
    %50 = vector.shape_cast %49 : vector<1x288x8xbf16> to vector<288x8xbf16>
    %c8 = arith.constant 8 : index
    %c0_45 = arith.constant 0 : index
    %c0_46 = arith.constant 0 : index
    %51 = vector.load %arg2[%c8, %c0_45, %c0_46] : memref<9x8x128xbf16, #tpu.memory_space<vmem>>, vector<1x8x128xbf16>
    %52 = vector.shape_cast %51 : vector<1x8x128xbf16> to vector<8x128xbf16>
    %cst_47 = arith.constant dense<0.000000e+00> : vector<288x128xf32>
    %53 = tpu.matmul %50, %52, %cst_47 {dimension_numbers = #tpu.dot_dimension_numbers<[1], [0], [0], [1], [0, 0, 1, 1], [], []>} : vector<288x8xbf16>, vector<8x128xbf16>, vector<288x128xf32> -> vector<288x128xf32>
    %54 = arith.addf %48, %53 : vector<288x128xf32>
    %c0_48 = arith.constant 0 : index
    %c0_49 = arith.constant 0 : index
    %55 = vector.load %arg3[%c0_48, %c0_49] : memref<1x128xf32, #tpu.memory_space<vmem>>, vector<1x128xf32>
    %56 = vector.broadcast %55 : vector<1x128xf32> to vector<288x128xf32>
    %57 = arith.addf %54, %56 : vector<288x128xf32>
    %cst_50 = arith.constant 0.000000e+00 : f32
    %58 = vector.broadcast %cst_50 : f32 to vector<288x128xf32>
    %59 = arith.maximumf %57, %58 : vector<288x128xf32>
    %c0_51 = arith.constant 0 : index
    %c0_52 = arith.constant 0 : index
    %60 = vector.load %arg4[%c0_51, %c0_52] : memref<288x1xf32, #tpu.memory_space<vmem>>, vector<288x1xf32>
    %61 = vector.broadcast %60 : vector<288x1xf32> to vector<288x128xf32>
    %62 = arith.mulf %59, %61 : vector<288x128xf32>
    %cst_53 = arith.constant 0.000000e+00 : bf16
    %63 = vector.broadcast %cst_53 : bf16 to vector<328x128xbf16>
    %c0_54 = arith.constant 0 : index
    %c0_55 = arith.constant 0 : index
    %c0_56 = arith.constant 0 : index
    %64 = vector.load %arg5[%c0_54, %c0_55, %c0_56] : memref<1x328x128xbf16, #tpu.memory_space<vmem>>, vector<1x328x128xbf16>
    %65 = vector.shape_cast %64 : vector<1x328x128xbf16> to vector<328x128xbf16>
    %66 = vector.shape_cast %63 : vector<328x128xbf16> to vector<1x328x128xbf16>
    tpu.vector_store %arg5[%c0_54, %c0_55, %c0_56], %66 {strides = array<i32>} : memref<1x328x128xbf16, #tpu.memory_space<vmem>>, vector<1x328x128xbf16>,
    %67 = arith.truncf %62 : vector<288x128xf32> to vector<288x128xbf16>
    %c0_57 = arith.constant 0 : index
    %c19_58 = arith.constant 19 : index
    %c0_59 = arith.constant 0 : index
    %68 = vector.load %arg5[%c0_57, %c19_58, %c0_59] : memref<1x328x128xbf16, #tpu.memory_space<vmem>>, vector<1x288x128xbf16>
    %69 = vector.shape_cast %68 : vector<1x288x128xbf16> to vector<288x128xbf16>
    %70 = vector.shape_cast %67 : vector<288x128xbf16> to vector<1x288x128xbf16>
    tpu.vector_store %arg5[%c0_57, %c19_58, %c0_59], %70 {strides = array<i32>} : memref<1x328x128xbf16, #tpu.memory_space<vmem>>, vector<1x288x128xbf16>,
    return
  }
  func.func @transform_0(%arg0: i32) -> (i32, i32, i32) {
    %c0_i32 = arith.constant 0 : i32
    %c0_i32_0 = arith.constant 0 : i32
    %c0_i32_1 = arith.constant 0 : i32
    return %arg0, %c0_i32, %c0_i32_0 : i32, i32, i32
  }
  func.func @transform_1(%arg0: i32) -> (i32, i32, i32) {
    %c0_i32 = arith.constant 0 : i32
    %c0_i32_0 = arith.constant 0 : i32
    %c0_i32_1 = arith.constant 0 : i32
    %c0_i32_2 = arith.constant 0 : i32
    return %c0_i32, %c0_i32_0, %c0_i32_1 : i32, i32, i32
  }
  func.func @transform_2(%arg0: i32) -> (i32, i32) {
    %c0_i32 = arith.constant 0 : i32
    %c0_i32_0 = arith.constant 0 : i32
    %c0_i32_1 = arith.constant 0 : i32
    return %c0_i32, %c0_i32_0 : i32, i32
  }
  func.func @transform_3(%arg0: i32) -> (i32, i32) {
    %c0_i32 = arith.constant 0 : i32
    %c0_i32_0 = arith.constant 0 : i32
    %c0_i32_1 = arith.constant 0 : i32
    return %c0_i32, %c0_i32_0 : i32, i32
  }
  func.func @transform_4(%arg0: i32) -> (i32, i32, i32) {
    %c0_i32 = arith.constant 0 : i32
    %c0_i32_0 = arith.constant 0 : i32
    %c0_i32_1 = arith.constant 0 : i32
    return %arg0, %c0_i32, %c0_i32_0 : i32, i32, i32
  }
}

module attributes {stable_mosaic.version = 11 : i64} {
  func.func @_conv2_head_kernel(%arg0: i32, %arg1: memref<1x328x128xbf16, #tpu.memory_space<vmem>>, %arg2: memref<9x128x128xbf16, #tpu.memory_space<vmem>>, %arg3: memref<1x128xf32, #tpu.memory_space<vmem>>, %arg4: memref<128x128xbf16, #tpu.memory_space<vmem>>, %arg5: memref<1x128xf32, #tpu.memory_space<vmem>>, %arg6: memref<1x288x128xf32, #tpu.memory_space<vmem>>) attributes {dimension_semantics = [#tpu.dimension_semantics<parallel>], iteration_bounds = array<i64: 2>, scalar_prefetch = 0 : i64, scratch_operands = 0 : i64, tpu.core_type = #tpu.core_type<tc>, window_params = [{transform_indices = @transform_0, window_bounds = array<i64: 1, 328, 128>}, {pipeline_mode = #tpu.pipeline_mode<synchronous>, transform_indices = @transform_1, window_bounds = array<i64: 9, 128, 128>}, {pipeline_mode = #tpu.pipeline_mode<synchronous>, transform_indices = @transform_2, window_bounds = array<i64: 1, 128>}, {pipeline_mode = #tpu.pipeline_mode<synchronous>, transform_indices = @transform_3, window_bounds = array<i64: 128, 128>}, {pipeline_mode = #tpu.pipeline_mode<synchronous>, transform_indices = @transform_4, window_bounds = array<i64: 1, 128>}, {transform_indices = @transform_5, window_bounds = array<i64: 1, 288, 128>}]} {
    %cst = arith.constant 0.000000e+00 : f32
    %0 = vector.broadcast %cst : f32 to vector<288x128xf32>
    %c0 = arith.constant 0 : index
    %c0_0 = arith.constant 0 : index
    %c0_1 = arith.constant 0 : index
    %1 = vector.load %arg1[%c0, %c0_0, %c0_1] : memref<1x328x128xbf16, #tpu.memory_space<vmem>>, vector<1x288x128xbf16>
    %2 = vector.shape_cast %1 : vector<1x288x128xbf16> to vector<288x128xbf16>
    %c0_2 = arith.constant 0 : index
    %c0_3 = arith.constant 0 : index
    %c0_4 = arith.constant 0 : index
    %3 = vector.load %arg2[%c0_2, %c0_3, %c0_4] : memref<9x128x128xbf16, #tpu.memory_space<vmem>>, vector<1x128x128xbf16>
    %4 = vector.shape_cast %3 : vector<1x128x128xbf16> to vector<128x128xbf16>
    %cst_5 = arith.constant dense<0.000000e+00> : vector<288x128xf32>
    %5 = tpu.matmul %2, %4, %cst_5 {dimension_numbers = #tpu.dot_dimension_numbers<[1], [0], [0], [1], [0, 0, 1, 1], [], []>} : vector<288x128xbf16>, vector<128x128xbf16>, vector<288x128xf32> -> vector<288x128xf32>
    %6 = arith.addf %0, %5 : vector<288x128xf32>
    %c0_6 = arith.constant 0 : index
    %c1 = arith.constant 1 : index
    %c0_7 = arith.constant 0 : index
    %7 = vector.load %arg1[%c0_6, %c1, %c0_7] : memref<1x328x128xbf16, #tpu.memory_space<vmem>>, vector<1x288x128xbf16>
    %8 = vector.shape_cast %7 : vector<1x288x128xbf16> to vector<288x128xbf16>
    %c1_8 = arith.constant 1 : index
    %c0_9 = arith.constant 0 : index
    %c0_10 = arith.constant 0 : index
    %9 = vector.load %arg2[%c1_8, %c0_9, %c0_10] : memref<9x128x128xbf16, #tpu.memory_space<vmem>>, vector<1x128x128xbf16>
    %10 = vector.shape_cast %9 : vector<1x128x128xbf16> to vector<128x128xbf16>
    %cst_11 = arith.constant dense<0.000000e+00> : vector<288x128xf32>
    %11 = tpu.matmul %8, %10, %cst_11 {dimension_numbers = #tpu.dot_dimension_numbers<[1], [0], [0], [1], [0, 0, 1, 1], [], []>} : vector<288x128xbf16>, vector<128x128xbf16>, vector<288x128xf32> -> vector<288x128xf32>
    %12 = arith.addf %6, %11 : vector<288x128xf32>
    %c0_12 = arith.constant 0 : index
    %c2 = arith.constant 2 : index
    %c0_13 = arith.constant 0 : index
    %13 = vector.load %arg1[%c0_12, %c2, %c0_13] : memref<1x328x128xbf16, #tpu.memory_space<vmem>>, vector<1x288x128xbf16>
    %14 = vector.shape_cast %13 : vector<1x288x128xbf16> to vector<288x128xbf16>
    %c2_14 = arith.constant 2 : index
    %c0_15 = arith.constant 0 : index
    %c0_16 = arith.constant 0 : index
    %15 = vector.load %arg2[%c2_14, %c0_15, %c0_16] : memref<9x128x128xbf16, #tpu.memory_space<vmem>>, vector<1x128x128xbf16>
    %16 = vector.shape_cast %15 : vector<1x128x128xbf16> to vector<128x128xbf16>
    %cst_17 = arith.constant dense<0.000000e+00> : vector<288x128xf32>
    %17 = tpu.matmul %14, %16, %cst_17 {dimension_numbers = #tpu.dot_dimension_numbers<[1], [0], [0], [1], [0, 0, 1, 1], [], []>} : vector<288x128xbf16>, vector<128x128xbf16>, vector<288x128xf32> -> vector<288x128xf32>
    %18 = arith.addf %12, %17 : vector<288x128xf32>
    %c0_18 = arith.constant 0 : index
    %c18 = arith.constant 18 : index
    %c0_19 = arith.constant 0 : index
    %19 = vector.load %arg1[%c0_18, %c18, %c0_19] : memref<1x328x128xbf16, #tpu.memory_space<vmem>>, vector<1x288x128xbf16>
    %20 = vector.shape_cast %19 : vector<1x288x128xbf16> to vector<288x128xbf16>
    %c3 = arith.constant 3 : index
    %c0_20 = arith.constant 0 : index
    %c0_21 = arith.constant 0 : index
    %21 = vector.load %arg2[%c3, %c0_20, %c0_21] : memref<9x128x128xbf16, #tpu.memory_space<vmem>>, vector<1x128x128xbf16>
    %22 = vector.shape_cast %21 : vector<1x128x128xbf16> to vector<128x128xbf16>
    %cst_22 = arith.constant dense<0.000000e+00> : vector<288x128xf32>
    %23 = tpu.matmul %20, %22, %cst_22 {dimension_numbers = #tpu.dot_dimension_numbers<[1], [0], [0], [1], [0, 0, 1, 1], [], []>} : vector<288x128xbf16>, vector<128x128xbf16>, vector<288x128xf32> -> vector<288x128xf32>
    %24 = arith.addf %18, %23 : vector<288x128xf32>
    %c0_23 = arith.constant 0 : index
    %c19 = arith.constant 19 : index
    %c0_24 = arith.constant 0 : index
    %25 = vector.load %arg1[%c0_23, %c19, %c0_24] : memref<1x328x128xbf16, #tpu.memory_space<vmem>>, vector<1x288x128xbf16>
    %26 = vector.shape_cast %25 : vector<1x288x128xbf16> to vector<288x128xbf16>
    %c4 = arith.constant 4 : index
    %c0_25 = arith.constant 0 : index
    %c0_26 = arith.constant 0 : index
    %27 = vector.load %arg2[%c4, %c0_25, %c0_26] : memref<9x128x128xbf16, #tpu.memory_space<vmem>>, vector<1x128x128xbf16>
    %28 = vector.shape_cast %27 : vector<1x128x128xbf16> to vector<128x128xbf16>
    %cst_27 = arith.constant dense<0.000000e+00> : vector<288x128xf32>
    %29 = tpu.matmul %26, %28, %cst_27 {dimension_numbers = #tpu.dot_dimension_numbers<[1], [0], [0], [1], [0, 0, 1, 1], [], []>} : vector<288x128xbf16>, vector<128x128xbf16>, vector<288x128xf32> -> vector<288x128xf32>
    %30 = arith.addf %24, %29 : vector<288x128xf32>
    %c0_28 = arith.constant 0 : index
    %c20 = arith.constant 20 : index
    %c0_29 = arith.constant 0 : index
    %31 = vector.load %arg1[%c0_28, %c20, %c0_29] : memref<1x328x128xbf16, #tpu.memory_space<vmem>>, vector<1x288x128xbf16>
    %32 = vector.shape_cast %31 : vector<1x288x128xbf16> to vector<288x128xbf16>
    %c5 = arith.constant 5 : index
    %c0_30 = arith.constant 0 : index
    %c0_31 = arith.constant 0 : index
    %33 = vector.load %arg2[%c5, %c0_30, %c0_31] : memref<9x128x128xbf16, #tpu.memory_space<vmem>>, vector<1x128x128xbf16>
    %34 = vector.shape_cast %33 : vector<1x128x128xbf16> to vector<128x128xbf16>
    %cst_32 = arith.constant dense<0.000000e+00> : vector<288x128xf32>
    %35 = tpu.matmul %32, %34, %cst_32 {dimension_numbers = #tpu.dot_dimension_numbers<[1], [0], [0], [1], [0, 0, 1, 1], [], []>} : vector<288x128xbf16>, vector<128x128xbf16>, vector<288x128xf32> -> vector<288x128xf32>
    %36 = arith.addf %30, %35 : vector<288x128xf32>
    %c0_33 = arith.constant 0 : index
    %c36 = arith.constant 36 : index
    %c0_34 = arith.constant 0 : index
    %37 = vector.load %arg1[%c0_33, %c36, %c0_34] : memref<1x328x128xbf16, #tpu.memory_space<vmem>>, vector<1x288x128xbf16>
    %38 = vector.shape_cast %37 : vector<1x288x128xbf16> to vector<288x128xbf16>
    %c6 = arith.constant 6 : index
    %c0_35 = arith.constant 0 : index
    %c0_36 = arith.constant 0 : index
    %39 = vector.load %arg2[%c6, %c0_35, %c0_36] : memref<9x128x128xbf16, #tpu.memory_space<vmem>>, vector<1x128x128xbf16>
    %40 = vector.shape_cast %39 : vector<1x128x128xbf16> to vector<128x128xbf16>
    %cst_37 = arith.constant dense<0.000000e+00> : vector<288x128xf32>
    %41 = tpu.matmul %38, %40, %cst_37 {dimension_numbers = #tpu.dot_dimension_numbers<[1], [0], [0], [1], [0, 0, 1, 1], [], []>} : vector<288x128xbf16>, vector<128x128xbf16>, vector<288x128xf32> -> vector<288x128xf32>
    %42 = arith.addf %36, %41 : vector<288x128xf32>
    %c0_38 = arith.constant 0 : index
    %c37 = arith.constant 37 : index
    %c0_39 = arith.constant 0 : index
    %43 = vector.load %arg1[%c0_38, %c37, %c0_39] : memref<1x328x128xbf16, #tpu.memory_space<vmem>>, vector<1x288x128xbf16>
    %44 = vector.shape_cast %43 : vector<1x288x128xbf16> to vector<288x128xbf16>
    %c7 = arith.constant 7 : index
    %c0_40 = arith.constant 0 : index
    %c0_41 = arith.constant 0 : index
    %45 = vector.load %arg2[%c7, %c0_40, %c0_41] : memref<9x128x128xbf16, #tpu.memory_space<vmem>>, vector<1x128x128xbf16>
    %46 = vector.shape_cast %45 : vector<1x128x128xbf16> to vector<128x128xbf16>
    %cst_42 = arith.constant dense<0.000000e+00> : vector<288x128xf32>
    %47 = tpu.matmul %44, %46, %cst_42 {dimension_numbers = #tpu.dot_dimension_numbers<[1], [0], [0], [1], [0, 0, 1, 1], [], []>} : vector<288x128xbf16>, vector<128x128xbf16>, vector<288x128xf32> -> vector<288x128xf32>
    %48 = arith.addf %42, %47 : vector<288x128xf32>
    %c0_43 = arith.constant 0 : index
    %c38 = arith.constant 38 : index
    %c0_44 = arith.constant 0 : index
    %49 = vector.load %arg1[%c0_43, %c38, %c0_44] : memref<1x328x128xbf16, #tpu.memory_space<vmem>>, vector<1x288x128xbf16>
    %50 = vector.shape_cast %49 : vector<1x288x128xbf16> to vector<288x128xbf16>
    %c8 = arith.constant 8 : index
    %c0_45 = arith.constant 0 : index
    %c0_46 = arith.constant 0 : index
    %51 = vector.load %arg2[%c8, %c0_45, %c0_46] : memref<9x128x128xbf16, #tpu.memory_space<vmem>>, vector<1x128x128xbf16>
    %52 = vector.shape_cast %51 : vector<1x128x128xbf16> to vector<128x128xbf16>
    %cst_47 = arith.constant dense<0.000000e+00> : vector<288x128xf32>
    %53 = tpu.matmul %50, %52, %cst_47 {dimension_numbers = #tpu.dot_dimension_numbers<[1], [0], [0], [1], [0, 0, 1, 1], [], []>} : vector<288x128xbf16>, vector<128x128xbf16>, vector<288x128xf32> -> vector<288x128xf32>
    %54 = arith.addf %48, %53 : vector<288x128xf32>
    %c0_48 = arith.constant 0 : index
    %c0_49 = arith.constant 0 : index
    %55 = vector.load %arg3[%c0_48, %c0_49] : memref<1x128xf32, #tpu.memory_space<vmem>>, vector<1x128xf32>
    %56 = vector.broadcast %55 : vector<1x128xf32> to vector<288x128xf32>
    %57 = arith.addf %54, %56 : vector<288x128xf32>
    %cst_50 = arith.constant 0.000000e+00 : f32
    %58 = vector.broadcast %cst_50 : f32 to vector<288x128xf32>
    %59 = arith.maximumf %57, %58 : vector<288x128xf32>
    %60 = arith.truncf %59 : vector<288x128xf32> to vector<288x128xbf16>
    %c0_51 = arith.constant 0 : index
    %c0_52 = arith.constant 0 : index
    %61 = vector.load %arg4[%c0_51, %c0_52] : memref<128x128xbf16, #tpu.memory_space<vmem>>, vector<128x128xbf16>
    %cst_53 = arith.constant dense<0.000000e+00> : vector<288x128xf32>
    %62 = tpu.matmul %60, %61, %cst_53 {dimension_numbers = #tpu.dot_dimension_numbers<[1], [0], [0], [1], [0, 0, 1, 1], [], []>} : vector<288x128xbf16>, vector<128x128xbf16>, vector<288x128xf32> -> vector<288x128xf32>
    %c0_54 = arith.constant 0 : index
    %c0_55 = arith.constant 0 : index
    %63 = vector.load %arg5[%c0_54, %c0_55] : memref<1x128xf32, #tpu.memory_space<vmem>>, vector<1x128xf32>
    %64 = vector.broadcast %63 : vector<1x128xf32> to vector<288x128xf32>
    %65 = arith.addf %62, %64 : vector<288x128xf32>
    %cst_56 = arith.constant 5.000000e-01 : f32
    %66 = vector.broadcast %cst_56 : f32 to vector<288x128xf32>
    %67 = arith.mulf %66, %65 : vector<288x128xf32>
    %68 = math.tanh %67 : vector<288x128xf32>
    %cst_57 = arith.constant 1.000000e+00 : f32
    %69 = vector.broadcast %cst_57 : f32 to vector<288x128xf32>
    %70 = arith.addf %68, %69 : vector<288x128xf32>
    %cst_58 = arith.constant 5.000000e-01 : f32
    %71 = vector.broadcast %cst_58 : f32 to vector<288x128xf32>
    %72 = arith.mulf %71, %70 : vector<288x128xf32>
    %cst_59 = arith.constant 9.99999974E-5 : f32
    %cst_60 = arith.constant 0.999899983 : f32
    %73 = vector.broadcast %cst_59 : f32 to vector<288x128xf32>
    %74 = arith.maximumf %73, %72 : vector<288x128xf32>
    %75 = vector.broadcast %cst_60 : f32 to vector<288x128xf32>
    %76 = arith.minimumf %75, %74 : vector<288x128xf32>
    %77 = tpu.iota {dimensions = array<i32: 1>} : vector<1x128xi32>
    %c0_i32 = arith.constant 0 : i32
    %78 = vector.broadcast %c0_i32 : i32 to vector<1x128xi32>
    %79 = arith.cmpi eq, %77, %78 : vector<1x128xi32>
    %c3_i32 = arith.constant 3 : i32
    %80 = vector.broadcast %c3_i32 : i32 to vector<1x128xi32>
    %81 = arith.cmpi sge, %77, %80 : vector<1x128xi32>
    %c5_i32 = arith.constant 5 : i32
    %82 = vector.broadcast %c5_i32 : i32 to vector<1x128xi32>
    %83 = arith.cmpi slt, %77, %82 : vector<1x128xi32>
    %84 = arith.andi %81, %83 : vector<1x128xi1>
    %85 = arith.ori %79, %84 : vector<1x128xi1>
    %86 = arith.extui %85 : vector<1x128xi1> to vector<1x128xi32>
    %87 = arith.sitofp %86 : vector<1x128xi32> to vector<1x128xf32>
    %88 = vector.broadcast %87 : vector<1x128xf32> to vector<288x128xf32>
    %89 = arith.mulf %76, %88 : vector<288x128xf32>
    %cst_61 = arith.constant 1.000000e+00 : f32
    %90 = vector.broadcast %cst_61 : f32 to vector<1x128xf32>
    %91 = arith.subf %90, %87 : vector<1x128xf32>
    %92 = vector.broadcast %91 : vector<1x128xf32> to vector<288x128xf32>
    %93 = arith.mulf %65, %92 : vector<288x128xf32>
    %94 = arith.addf %89, %93 : vector<288x128xf32>
    %c0_62 = arith.constant 0 : index
    %c0_63 = arith.constant 0 : index
    %c0_64 = arith.constant 0 : index
    %95 = vector.load %arg6[%c0_62, %c0_63, %c0_64] : memref<1x288x128xf32, #tpu.memory_space<vmem>>, vector<1x288x128xf32>
    %96 = vector.shape_cast %95 : vector<1x288x128xf32> to vector<288x128xf32>
    %97 = vector.shape_cast %94 : vector<288x128xf32> to vector<1x288x128xf32>
    tpu.vector_store %arg6[%c0_62, %c0_63, %c0_64], %97 {strides = array<i32>} : memref<1x288x128xf32, #tpu.memory_space<vmem>>, vector<1x288x128xf32>,
    return
  }
  func.func @transform_0(%arg0: i32) -> (i32, i32, i32) {
    %c0_i32 = arith.constant 0 : i32
    %c0_i32_0 = arith.constant 0 : i32
    %c0_i32_1 = arith.constant 0 : i32
    return %arg0, %c0_i32, %c0_i32_0 : i32, i32, i32
  }
  func.func @transform_1(%arg0: i32) -> (i32, i32, i32) {
    %c0_i32 = arith.constant 0 : i32
    %c0_i32_0 = arith.constant 0 : i32
    %c0_i32_1 = arith.constant 0 : i32
    %c0_i32_2 = arith.constant 0 : i32
    return %c0_i32, %c0_i32_0, %c0_i32_1 : i32, i32, i32
  }
  func.func @transform_2(%arg0: i32) -> (i32, i32) {
    %c0_i32 = arith.constant 0 : i32
    %c0_i32_0 = arith.constant 0 : i32
    %c0_i32_1 = arith.constant 0 : i32
    return %c0_i32, %c0_i32_0 : i32, i32
  }
  func.func @transform_3(%arg0: i32) -> (i32, i32) {
    %c0_i32 = arith.constant 0 : i32
    %c0_i32_0 = arith.constant 0 : i32
    %c0_i32_1 = arith.constant 0 : i32
    return %c0_i32, %c0_i32_0 : i32, i32
  }
  func.func @transform_4(%arg0: i32) -> (i32, i32) {
    %c0_i32 = arith.constant 0 : i32
    %c0_i32_0 = arith.constant 0 : i32
    %c0_i32_1 = arith.constant 0 : i32
    return %c0_i32, %c0_i32_0 : i32, i32
  }
  func.func @transform_5(%arg0: i32) -> (i32, i32, i32) {
    %c0_i32 = arith.constant 0 : i32
    %c0_i32_0 = arith.constant 0 : i32
    %c0_i32_1 = arith.constant 0 : i32
    return %arg0, %c0_i32, %c0_i32_0 : i32, i32, i32
  }
}

</mosaic_0001>

<llo_original>
// kernel: center_predictor_forward.2
$region0: #{center_predictor_forward.2}
  #allocation0 [shape = 'u32[]', space=smem, size = 0x4, offset = 0x4, fixed_abs, tag = 'smem constant byte address 0x4 - core index']
  #allocation1 [shape = 'u32[144,128]{1,0:T(1,128)}', space=vmem, size = 0x12000, scoped, tag = 'internal scratch']
  %s0 = inlined_call_operand.vmem [shape: bf16[2,328,8], index: 0, kind: input, shape index: {}]
  %s1 = inlined_call_operand.vmem [shape: bf16[9,8,128], index: 1, kind: input, shape index: {}]
  %s2 = inlined_call_operand.vmem [shape: f32[1,128], index: 2, kind: input, shape index: {}]
  %s3 = inlined_call_operand.vmem [shape: f32[288,1], index: 3, kind: input, shape index: {}]
  %s4 = inlined_call_operand.vmem [shape: bf16[2,328,128], index: 4, kind: output, shape index: {}]
  %s5 = sld [smem:[#allocation0]]
  $region49: #{center_predictor_forward.2} parent=0
    _
  %s7 = ssub.s32 1, %s5
  %s8 = scalar_select 0, %s7, %s5
  loop: start=0, step=1, limit=4
  $region2: #{center_predictor_forward.2} parent=0 // loop_pre_header
    _
  $region3: #{center_predictor_forward.2} parent=0 // loop_header
    %s10 = sphi 0, %s14
    %p11 = scmp.ge.s32.totalorder %s10, 4
    %s20 = sphi 0, %s22
    %s23 = sphi 0, %s20
    %s24 = sphi 0, %s23
    %s40 = sphi 0, %s24
    %s44 = sphi 0, %s44
    %s46 = sphi 0, %s44
    %s47 = sphi 0, %s46
    %s61 = sphi 0, %s47
    %s65 = sphi 0, %s65
    %s67 = sphi 0, %s65
    %s68 = sphi 0, %s67
    %s82 = sphi 0, %s68
    %s86 = sphi 0, %s86
    %s88 = sphi 0, %s86
    %s89 = sphi 0, %s88
    %s103 = sphi 0, %s89
    %s109 = sphi 0, %s111
    %s112 = sphi 0, %s109
    %s113 = sphi 0, %s112
    %s129 = sphi 0, %s113
  $region4: #{center_predictor_forward.2} parent=0 // loop_header_branch
    %13 = sbr.rel (%p11) target = $region8
  $region5: #{center_predictor_forward.2} parent=0 // loop_body
    %s15 = ssub.s32 %s10, 1
    %s16 = ssub.s32 %s10, 2
    %s17 = sadd.s32 %s10, 1
    %s18 = ssub.s32 %s10, %s17
    %p19 = scmp.eq.s32.totalorder %s18, 0
    %s21 = sadd.s32 %s20, 1
    %s22 = scalar_select %p19, %s20, %s21
    %p25 = pneg %p19
    %p26 = scmp.eq.s32.totalorder %s10, 1
    %p27 = por %p25, %p26
    %p28 = scmp.ne.s32.totalorder %s20, %s23
    %p29 = scmp.eq.s32.totalorder %s10, 0
    %p30 = por %p28, %p29
    %p31 = scmp.ne.s32.totalorder %s20, %s23
    %p32 = scmp.eq.s32.totalorder %s15, 1
    %p33 = por %p31, %p32
    %p34 = scmp.ne.s32.totalorder %s23, %s24
    %p35 = scmp.eq.s32.totalorder %s15, 0
    %p36 = por %p34, %p35
    %p37 = scmp.ne.s32.totalorder %s23, %s24
    %p38 = scmp.eq.s32.totalorder %s16, 1
    %p39 = por %p37, %p38
    %p41 = scmp.ne.s32.totalorder %s24, %s40
    %p42 = scmp.eq.s32.totalorder %s16, 0
    %p43 = por %p41, %p42
    %s45 = sadd.s32 %s44, 1
    %p48 = scmp.eq.s32.totalorder %s10, 1
    %p49 = scmp.ne.s32.totalorder %s44, %s46
    %p50 = scmp.eq.s32.totalorder %s10, 0
    %p51 = por %p49, %p50
    %p52 = scmp.ne.s32.totalorder %s44, %s46
    %p53 = scmp.eq.s32.totalorder %s15, 1
    %p54 = por %p52, %p53
    %p55 = scmp.ne.s32.totalorder %s46, %s47
    %p56 = scmp.eq.s32.totalorder %s15, 0
    %p57 = por %p55, %p56
    %p58 = scmp.ne.s32.totalorder %s46, %s47
    %p59 = scmp.eq.s32.totalorder %s16, 1
    %p60 = por %p58, %p59
    %p62 = scmp.ne.s32.totalorder %s47, %s61
    %p63 = scmp.eq.s32.totalorder %s16, 0
    %p64 = por %p62, %p63
    %s66 = sadd.s32 %s65, 1
    %p69 = scmp.eq.s32.totalorder %s10, 1
    %p70 = scmp.ne.s32.totalorder %s65, %s67
    %p71 = scmp.eq.s32.totalorder %s10, 0
    %p72 = por %p70, %p71
    %p73 = scmp.ne.s32.totalorder %s65, %s67
    %p74 = scmp.eq.s32.totalorder %s15, 1
    %p75 = por %p73, %p74
    %p76 = scmp.ne.s32.totalorder %s67, %s68
    %p77 = scmp.eq.s32.totalorder %s15, 0
    %p78 = por %p76, %p77
    %p79 = scmp.ne.s32.totalorder %s67, %s68
    %p80 = scmp.eq.s32.totalorder %s16, 1
    %p81 = por %p79, %p80
    %p83 = scmp.ne.s32.totalorder %s68, %s82
    %p84 = scmp.eq.s32.totalorder %s16, 0
    %p85 = por %p83, %p84
    %s87 = sadd.s32 %s86, 1
    %p90 = scmp.eq.s32.totalorder %s10, 1
    %p91 = scmp.ne.s32.totalorder %s86, %s88
    %p92 = scmp.eq.s32.totalorder %s10, 0
    %p93 = por %p91, %p92
    %p94 = scmp.ne.s32.totalorder %s86, %s88
    %p95 = scmp.eq.s32.totalorder %s15, 1
    %p96 = por %p94, %p95
    %p97 = scmp.ne.s32.totalorder %s88, %s89
    %p98 = scmp.eq.s32.totalorder %s15, 0
    %p99 = por %p97, %p98
    %p100 = scmp.ne.s32.totalorder %s88, %s89
    %p101 = scmp.eq.s32.totalorder %s16, 1
    %p102 = por %p100, %p101
    %p104 = scmp.ne.s32.totalorder %s89, %s103
    %p105 = scmp.eq.s32.totalorder %s16, 0
    %p106 = por %p104, %p105
    %s107 = ssub.s32 %s10, %s17
    %p108 = scmp.eq.s32.totalorder %s107, 0
    %s110 = sadd.s32 %s109, 1
    %s111 = scalar_select %p108, %s109, %s110
    %p114 = pneg %p108
    %p115 = scmp.eq.s32.totalorder %s10, 1
    %p116 = por %p114, %p115
    %p117 = scmp.ne.s32.totalorder %s109, %s112
    %p118 = scmp.eq.s32.totalorder %s10, 0
    %p119 = por %p117, %p118
    %p120 = scmp.ne.s32.totalorder %s109, %s112
    %p121 = scmp.eq.s32.totalorder %s15, 1
    %p122 = por %p120, %p121
    %p123 = scmp.ne.s32.totalorder %s112, %s113
    %p124 = scmp.eq.s32.totalorder %s15, 0
    %p125 = por %p123, %p124
    %p126 = scmp.ne.s32.totalorder %s112, %s113
    %p127 = scmp.eq.s32.totalorder %s16, 1
    %p128 = por %p126, %p127
    %p130 = scmp.ne.s32.totalorder %s113, %s129
    %p131 = scmp.eq.s32.totalorder %s16, 0
    %p132 = por %p130, %p131
    %p133 = scmp.le.s32.totalorder 1, %s10
    %p134 = scmp.lt.s32.totalorder %s10, 3
    %p135 = pnand %p133, %p134
    %p136 = pneg %p135
    // Predicated region
    $region9: #{center_predictor_forward.2} parent=5 // pred_check
      _
    $region10: #{center_predictor_forward.2} parent=5 // pred_check_branch
      %138 = sbr.rel (%p135) target = $region12
    $region11: #{center_predictor_forward.2} parent=5 // pred_region
      %s139 = ssub.s32 %s10, 1
      // Predicated region
      $region13: #{center_predictor_forward.2} parent=11 // pred_check
        %p140 = pneg %p57
      $region14: #{center_predictor_forward.2} parent=11 // pred_check_branch
        %142 = sbr.rel (%p140) target = $region16
      $region15: #{center_predictor_forward.2} parent=11 // pred_region
        _
      $region16: #{center_predictor_forward.2} parent=11 // pred_fallthru
        _
      // Predicated region
      $region17: #{center_predictor_forward.2} parent=11 // pred_check
        %p143 = pneg %p78
      $region18: #{center_predictor_forward.2} parent=11 // pred_check_branch
        %145 = sbr.rel (%p143) target = $region20
      $region19: #{center_predictor_forward.2} parent=11 // pred_region
        _
      $region20: #{center_predictor_forward.2} parent=11 // pred_fallthru
        _
      // Predicated region
      $region21: #{center_predictor_forward.2} parent=11 // pred_check
        %p146 = pneg %p99
      $region22: #{center_predictor_forward.2} parent=11 // pred_check_branch
        %148 = sbr.rel (%p146) target = $region24
      $region23: #{center_predictor_forward.2} parent=11 // pred_region
        _
      $region24: #{center_predictor_forward.2} parent=11 // pred_fallthru
        _
    $region12: #{center_predictor_forward.2} parent=5 // pred_fallthru
      _
    %p149 = scmp.lt.s32.totalorder %s10, 2
    // Predicated region
    $region25: #{center_predictor_forward.2} parent=5 // pred_check
      %p150 = pneg %p149
    $region26: #{center_predictor_forward.2} parent=5 // pred_check_branch
      %152 = sbr.rel (%p150) target = $region28
    $region27: #{center_predictor_forward.2} parent=5 // pred_region
      // Predicated region
      $region29: #{center_predictor_forward.2} parent=27 // pred_check
        %p153 = pneg %p30
      $region30: #{center_predictor_forward.2} parent=27 // pred_check_branch
        %155 = sbr.rel (%p153) target = $region32
      $region31: #{center_predictor_forward.2} parent=27 // pred_region
        %p156 = scmp.lt.s32.totalorder %s10, 1
        %s157 = scalar_select %p156, %s10, 1
        %s158 = smul.addr %s157, 41
        %s159 = smul.addr %s158, 4
        %s160 = scalar_lea.vmem %s0, %s159
      $region32: #{center_predictor_forward.2} parent=27 // pred_fallthru
        _
    $region28: #{center_predictor_forward.2} parent=5 // pred_fallthru
      _
    %p161 = scmp.le.s32.totalorder 1, %s10
    %p162 = scmp.lt.s32.totalorder %s10, 3
    %p163 = pnand %p161, %p162
    %p164 = pneg %p163
    // Predicated region
    $region33: #{center_predictor_forward.2} parent=5 // pred_check
      _
    $region34: #{center_predictor_forward.2} parent=5 // pred_check_branch
      %166 = sbr.rel (%p163) target = $region36
    $region35: #{center_predictor_forward.2} parent=5 // pred_region
      %s167 = ssub.s32 %s10, 1
      %p168 = scmp.lt.s32.totalorder %s15, 1
      %s169 = scalar_select %p168, %s15, 1
      %s170 = smul.addr %s169, 41
      %s171 = smul.addr %s170, 4
      %s172 = scalar_lea.vmem %s0, %s171
      %p173 = pneg %p36
      %p174 = pneg %p33
      %p175 = pneg %p57
      %p176 = pneg %p54
      %p177 = pneg %p78
      %p178 = pneg %p75
      %p179 = pneg %p99
      %p180 = pneg %p96
      %p181 = pneg %p125
      %p182 = pneg %p122
      %p183 = scmp.lt.s32.totalorder %s15, 1
      %s184 = scalar_select %p183, %s15, 1
      %s185 = smul.addr %s184, 41
      %s186 = smul.addr %s185, 4
      %s187 = scalar_lea.vmem %s4, %s186
      %p188 = scmp.lt.s32.totalorder %s15, 1
      %s189 = scalar_select %p188, %s15, 1
      %s190 = smul.addr %s189, 41
      %s191 = smul.addr %s190, 4
      %s192 = scalar_lea.vmem %s0, %s191
      %p193 = scmp.lt.s32.totalorder %s15, 1
      %s194 = scalar_select %p193, %s15, 1
      %s195 = smul.addr %s194, 41
      %s196 = smul.addr %s195, 4
      %s197 = scalar_lea.vmem %s4, %s196
      %v199 = vld [vmem:[%s192] sm:$0xf]
      %v200 = vld [vmem:[%s192 + $0x4] sm:$0xf]
      %v201 = vld [vmem:[%s192 + $0x8] sm:$0xf]
      %v202 = vld [vmem:[%s192 + $0xc] sm:$0xf]
      %v203 = vld [vmem:[%s192 + $0x10] sm:$0xf]
      %v204 = vld [vmem:[%s192 + $0x14] sm:$0xf]
      %v205 = vld [vmem:[%s192 + $0x18] sm:$0xf]
      %v206 = vld [vmem:[%s192 + $0x1c] sm:$0xf]
      %v207 = vld [vmem:[%s192 + $0x20] sm:$0xf]
      %v208 = vld [vmem:[%s192 + $0x24] sm:$0xf]
      %v209 = vld [vmem:[%s192 + $0x28] sm:$0xf]
      %v210 = vld [vmem:[%s192 + $0x2c] sm:$0xf]
      %v211 = vld [vmem:[%s192 + $0x30] sm:$0xf]
      %v212 = vld [vmem:[%s192 + $0x34] sm:$0xf]
      %v213 = vld [vmem:[%s192 + $0x38] sm:$0xf]
      %v214 = vld [vmem:[%s192 + $0x3c] sm:$0xf]
      %v215 = vld [vmem:[%s192 + $0x40] sm:$0xf]
      %v216 = vld [vmem:[%s192 + $0x44] sm:$0xf]
      %v217 = vld [vmem:[%s192 + $0x48] sm:$0xf]
      %v218 = vld [vmem:[%s192 + $0x4c] sm:$0xf]
      %v219 = vld [vmem:[%s192 + $0x50] sm:$0xf]
      %v220 = vld [vmem:[%s192 + $0x54] sm:$0xf]
      %v221 = vld [vmem:[%s192 + $0x58] sm:$0xf]
      %v222 = vld [vmem:[%s192 + $0x5c] sm:$0xf]
      %v223 = vld [vmem:[%s192 + $0x60] sm:$0xf]
      %v224 = vld [vmem:[%s192 + $0x64] sm:$0xf]
      %v225 = vld [vmem:[%s192 + $0x68] sm:$0xf]
      %v226 = vld [vmem:[%s192 + $0x6c] sm:$0xf]
      %v227 = vld [vmem:[%s192 + $0x70] sm:$0xf]
      %v228 = vld [vmem:[%s192 + $0x74] sm:$0xf]
      %v229 = vld [vmem:[%s192 + $0x78] sm:$0xf]
      %v230 = vld [vmem:[%s192 + $0x7c] sm:$0xf]
      %v231 = vld [vmem:[%s192 + $0x80] sm:$0xf]
      %v232 = vld [vmem:[%s192 + $0x84] sm:$0xf]
      %v233 = vld [vmem:[%s192 + $0x88] sm:$0xf]
      %v234 = vld [vmem:[%s192 + $0x8c] sm:$0xf]
      %v235 = vld [vmem:[%s1] sm:$0xf]
      %v236 = vld [vmem:[%s192 + $0x90] sm:$0x1]
      %s237 = scalar_lea.vmem %s1, 4
      %v238 = vld [vmem:[%s237] sm:$0xf]
      %v276 = vunpack.c.l.b16 %v199
      %v277 = vunpack.c.l.b16 %v200
      %v278 = vunpack.c.l.b16 %v201
      %v279 = vunpack.c.l.b16 %v202
      %v280 = vunpack.c.l.b16 %v203
      %v281 = vunpack.c.l.b16 %v204
      %v282 = vunpack.c.l.b16 %v205
      %v283 = vunpack.c.l.b16 %v206
      %v284 = vunpack.c.l.b16 %v207
      %v285 = vunpack.c.l.b16 %v208
      %v286 = vunpack.c.l.b16 %v209
      %v287 = vunpack.c.l.b16 %v210
      %v288 = vunpack.c.l.b16 %v211
      %v289 = vunpack.c.l.b16 %v212
      %v290 = vunpack.c.l.b16 %v213
      %v291 = vunpack.c.l.b16 %v214
      %v292 = vunpack.c.l.b16 %v215
      %v293 = vunpack.c.l.b16 %v216
      %v294 = vunpack.c.l.b16 %v217
      %v295 = vunpack.c.l.b16 %v218
      %v296 = vunpack.c.l.b16 %v219
      %v297 = vunpack.c.l.b16 %v220
      %v298 = vunpack.c.l.b16 %v221
      %v299 = vunpack.c.l.b16 %v222
      %v300 = vunpack.c.l.b16 %v223
      %v301 = vunpack.c.l.b16 %v224
      %v302 = vunpack.c.l.b16 %v225
      %v303 = vunpack.c.l.b16 %v226
      %v304 = vunpack.c.l.b16 %v227
      %v305 = vunpack.c.l.b16 %v228
      %v306 = vunpack.c.l.b16 %v229
      %v307 = vunpack.c.l.b16 %v230
      %v308 = vunpack.c.l.b16 %v231
      %v309 = vunpack.c.l.b16 %v232
      %v310 = vunpack.c.l.b16 %v233
      %v311 = vunpack.c.l.b16 %v234
      %v312 = vunpack.c.l.b16 %v236
      %v313 = vpack.c.b16 %v277, %v276
      %v314 = vpack.c.b16 %v279, %v278
      %v315 = vpack.c.b16 %v281, %v280
      %v316 = vpack.c.b16 %v283, %v282
      %v317 = vpack.c.b16 %v285, %v284
      %v318 = vpack.c.b16 %v287, %v286
      %v319 = vpack.c.b16 %v289, %v288
      %v320 = vpack.c.b16 %v291, %v290
      %v321 = vpack.c.b16 %v293, %v292
      %v322 = vpack.c.b16 %v295, %v294
      %v323 = vpack.c.b16 %v297, %v296
      %v324 = vpack.c.b16 %v299, %v298
      %v325 = vpack.c.b16 %v301, %v300
      %v326 = vpack.c.b16 %v303, %v302
      %v327 = vpack.c.b16 %v305, %v304
      %v328 = vpack.c.b16 %v307, %v306
      %v329 = vpack.c.b16 %v309, %v308
      %v330 = vpack.c.b16 %v311, %v310
      %v331 = vpack.c.b16 %v312, %v312
      %vm332 = vsmask.f32 7424
      %v334 = vshrl.u32 %v313, 16
      %v336 = vshll.u32 %v313, 16
      %v338 = vrot.slane %v336, 1
      %v339 = vor.u32 %v334, %v338
      %v341 = vshll.u32 %v314, 16
      %v343 = vrot.slane %v341, 1
      %v344 = vsel %vm332, %v339, %v343
      %v345 = vshrl.u32 %v314, 16
      %v347 = vor.u32 %v345, %v343
      %v349 = vshll.u32 %v315, 16
      %v351 = vrot.slane %v349, 1
      %v352 = vsel %vm332, %v347, %v351
      %v353 = vshrl.u32 %v315, 16
      %v355 = vor.u32 %v353, %v351
      %v357 = vshll.u32 %v316, 16
      %v359 = vrot.slane %v357, 1
      %v360 = vsel %vm332, %v355, %v359
      %v361 = vshrl.u32 %v316, 16
      %v363 = vor.u32 %v361, %v359
      %v365 = vshll.u32 %v317, 16
      %v367 = vrot.slane %v365, 1
      %v368 = vsel %vm332, %v363, %v367
      %v369 = vshrl.u32 %v317, 16
      %v371 = vor.u32 %v369, %v367
      %v373 = vshll.u32 %v318, 16
      %v375 = vrot.slane %v373, 1
      %v376 = vsel %vm332, %v371, %v375
      %v377 = vshrl.u32 %v318, 16
      %v379 = vor.u32 %v377, %v375
      %v381 = vshll.u32 %v319, 16
      %v383 = vrot.slane %v381, 1
      %v384 = vsel %vm332, %v379, %v383
      %v385 = vshrl.u32 %v319, 16
      %v387 = vor.u32 %v385, %v383
      %v389 = vshll.u32 %v320, 16
      %v391 = vrot.slane %v389, 1
      %v392 = vsel %vm332, %v387, %v391
      %v393 = vshrl.u32 %v320, 16
      %v395 = vor.u32 %v393, %v391
      %v397 = vshll.u32 %v321, 16
      %v399 = vrot.slane %v397, 1
      %v400 = vsel %vm332, %v395, %v399
      %v401 = vshrl.u32 %v321, 16
      %v403 = vor.u32 %v401, %v399
      %v405 = vshll.u32 %v322, 16
      %v407 = vrot.slane %v405, 1
      %v408 = vsel %vm332, %v403, %v407
      %v409 = vshrl.u32 %v322, 16
      %v411 = vor.u32 %v409, %v407
      %v413 = vshll.u32 %v323, 16
      %v415 = vrot.slane %v413, 1
      %v416 = vsel %vm332, %v411, %v415
      %v417 = vshrl.u32 %v323, 16
      %v419 = vor.u32 %v417, %v415
      %v421 = vshll.u32 %v324, 16
      %v423 = vrot.slane %v421, 1
      %v424 = vsel %vm332, %v419, %v423
      %v425 = vshrl.u32 %v324, 16
      %v427 = vor.u32 %v425, %v423
      %v429 = vshll.u32 %v325, 16
      %v431 = vrot.slane %v429, 1
      %v432 = vsel %vm332, %v427, %v431
      %v433 = vshrl.u32 %v325, 16
      %v435 = vor.u32 %v433, %v431
      %v437 = vshll.u32 %v326, 16
      %v439 = vrot.slane %v437, 1
      %v440 = vsel %vm332, %v435, %v439
      %v441 = vshrl.u32 %v326, 16
      %v443 = vor.u32 %v441, %v439
      %v445 = vshll.u32 %v327, 16
      %v447 = vrot.slane %v445, 1
      %v448 = vsel %vm332, %v443, %v447
      %v449 = vshrl.u32 %v327, 16
      %v451 = vor.u32 %v449, %v447
      %v453 = vshll.u32 %v328, 16
      %v455 = vrot.slane %v453, 1
      %v456 = vsel %vm332, %v451, %v455
      %v457 = vshrl.u32 %v328, 16
      %v459 = vor.u32 %v457, %v455
      %v461 = vshll.u32 %v329, 16
      %v463 = vrot.slane %v461, 1
      %v464 = vsel %vm332, %v459, %v463
      %v465 = vshrl.u32 %v329, 16
      %v467 = vor.u32 %v465, %v463
      %v469 = vshll.u32 %v330, 16
      %v471 = vrot.slane %v469, 1
      %v472 = vsel %vm332, %v467, %v471
      %v473 = vshrl.u32 %v330, 16
      %v475 = vor.u32 %v473, %v471
      %v477 = vshll.u32 %v331, 16
      %v479 = vrot.slane %v477, 1
      %v480 = vsel %vm332, %v475, %v479
      %vm481 = vcmask 64512
      %v483 = vsel %vm481, %v344, 0
      %v486 = vsel %vm481, %v352, 0
      %v489 = vsel %vm481, %v360, 0
      %v492 = vsel %vm481, %v368, 0
      %v495 = vsel %vm481, %v376, 0
      %v498 = vsel %vm481, %v384, 0
      %v501 = vsel %vm481, %v392, 0
      %v504 = vsel %vm481, %v400, 0
      %v507 = vsel %vm481, %v408, 0
      %v510 = vsel %vm481, %v416, 0
      %v513 = vsel %vm481, %v424, 0
      %v516 = vsel %vm481, %v432, 0
      %v519 = vsel %vm481, %v440, 0
      %v522 = vsel %vm481, %v448, 0
      %v525 = vsel %vm481, %v456, 0
      %v528 = vsel %vm481, %v464, 0
      %v531 = vsel %vm481, %v472, 0
      %v534 = vsel %vm481, %v480, 0
      %vm536 = vcmask 1043456
      %v538 = vsel %vm536, %v238, 0
      %540 = vmatprep.subr.bf16.mxu0 0
      %541 = vmatpush1.bf16.msra.mxu0 %v538
      %542 = vmatprep.subr.bf16.mxu0 0
      %543 = vmatpush1.bf16.msra.mxu0 0
      %544 = vmatprep.subr.bf16.mxu0 0
      %545 = vmatpush1.bf16.msra.mxu0 0
      %546 = vmatprep.subr.bf16.mxu0 0
      %547 = vmatpush1.bf16.msra.mxu0 0
      %548 = vmatprep.subr.bf16.mxu0 0
      %549 = vmatpush1.bf16.msra.mxu0 0
      %550 = vmatprep.subr.bf16.mxu0 0
      %551 = vmatpush1.bf16.msra.mxu0 0
      %552 = vmatprep.subr.bf16.mxu0 0
      %553 = vmatpush1.bf16.msra.mxu0 0
      %554 = vmatprep.subr.bf16.mxu0 0
      %555 = vmatpush1.bf16.msra.mxu0 0
      %556 = vmatprep.subr.bf16.mxu0 0
      %557 = vmatpush1.bf16.msra.mxu0 0
      %558 = vmatprep.subr.bf16.mxu0 0
      %559 = vmatpush1.bf16.msra.mxu0 0
      %560 = vmatprep.subr.bf16.mxu0 0
      %561 = vmatpush1.bf16.msra.mxu0 0
      %562 = vmatprep.subr.bf16.mxu0 0
      %563 = vmatpush1.bf16.msra.mxu0 0
      %564 = vmatprep.subr.bf16.mxu0 0
      %565 = vmatpush1.bf16.msra.mxu0 0
      %566 = vmatprep.subr.bf16.mxu0 0
      %567 = vmatpush1.bf16.msra.mxu0 0
      %568 = vmatprep.subr.bf16.mxu0 0
      %569 = vmatpush1.bf16.msra.mxu0 0
      %570 = vmatprep.subr.bf16.mxu0 0
      %571 = vmatpush1.bf16.msra.mxu0 0
      %572 = vmatprep.mubr.bf16.mxu0 0
      %573 = vmatmul.mubr.bf16.gmra.mrb[0].mxu0 %v483
      %v574 = vpop.f32.mrb[0].mxu0
      %v575 = vadd.f32 0.0, %v574
      %v576 = vpop.f32.mrb[0].mxu0
      %v577 = vpop.f32.mrb[0].mxu0
      %v578 = vadd.f32 0.0, %v577
      %v579 = vpop.f32.mrb[0].mxu0
      %580 = vmatprep.mubr.bf16.mxu0 0
      %581 = vmatmul.mubr.bf16.gmra.mrb[0].mxu0 %v486
      %v582 = vpop.f32.mrb[0].mxu0
      %v583 = vadd.f32 0.0, %v582
      %v584 = vpop.f32.mrb[0].mxu0
      %v585 = vpop.f32.mrb[0].mxu0
      %v586 = vadd.f32 0.0, %v585
      %v587 = vpop.f32.mrb[0].mxu0
      %588 = vmatprep.mubr.bf16.mxu0 0
      %589 = vmatmul.mubr.bf16.gmra.mrb[0].mxu0 %v489
      %v590 = vpop.f32.mrb[0].mxu0
      %v591 = vadd.f32 0.0, %v590
      %v592 = vpop.f32.mrb[0].mxu0
      %v593 = vpop.f32.mrb[0].mxu0
      %v594 = vadd.f32 0.0, %v593
      %v595 = vpop.f32.mrb[0].mxu0
      %596 = vmatprep.mubr.bf16.mxu0 0
      %597 = vmatmul.mubr.bf16.gmra.mrb[0].mxu0 %v492
      %v598 = vpop.f32.mrb[0].mxu0
      %v599 = vadd.f32 0.0, %v598
      %v600 = vpop.f32.mrb[0].mxu0
      %v601 = vpop.f32.mrb[0].mxu0
      %v602 = vadd.f32 0.0, %v601
      %v603 = vpop.f32.mrb[0].mxu0
      %604 = vmatprep.mubr.bf16.mxu0 0
      %605 = vmatmul.mubr.bf16.gmra.mrb[0].mxu0 %v495
      %v606 = vpop.f32.mrb[0].mxu0
      %v607 = vadd.f32 0.0, %v606
      %v608 = vpop.f32.mrb[0].mxu0
      %v609 = vpop.f32.mrb[0].mxu0
      %v610 = vadd.f32 0.0, %v609
      %v611 = vpop.f32.mrb[0].mxu0
      %612 = vmatprep.mubr.bf16.mxu0 0
      %613 = vmatmul.mubr.bf16.gmra.mrb[0].mxu0 %v498
      %v614 = vpop.f32.mrb[0].mxu0
      %v615 = vadd.f32 0.0, %v614
      %v616 = vpop.f32.mrb[0].mxu0
      %v617 = vpop.f32.mrb[0].mxu0
      %v618 = vadd.f32 0.0, %v617
      %v619 = vpop.f32.mrb[0].mxu0
      %620 = vmatprep.mubr.bf16.mxu0 0
      %621 = vmatmul.mubr.bf16.gmra.mrb[0].mxu0 %v501
      %v622 = vpop.f32.mrb[0].mxu0
      %v623 = vadd.f32 0.0, %v622
      %v624 = vpop.f32.mrb[0].mxu0
      %v625 = vpop.f32.mrb[0].mxu0
      %v626 = vadd.f32 0.0, %v625
      %v627 = vpop.f32.mrb[0].mxu0
      %628 = vmatprep.mubr.bf16.mxu0 0
      %629 = vmatmul.mubr.bf16.gmra.mrb[0].mxu0 %v504
      %v630 = vpop.f32.mrb[0].mxu0
      %v631 = vadd.f32 0.0, %v630
      %v632 = vpop.f32.mrb[0].mxu0
      %v633 = vpop.f32.mrb[0].mxu0
      %v634 = vadd.f32 0.0, %v633
      %v635 = vpop.f32.mrb[0].mxu0
      %636 = vmatprep.mubr.bf16.mxu0 0
      %637 = vmatmul.mubr.bf16.gmra.mrb[0].mxu0 %v507
      %v638 = vpop.f32.mrb[0].mxu0
      %v639 = vadd.f32 0.0, %v638
      %v640 = vpop.f32.mrb[0].mxu0
      %v641 = vpop.f32.mrb[0].mxu0
      %v642 = vadd.f32 0.0, %v641
      %v643 = vpop.f32.mrb[0].mxu0
      %644 = vmatprep.mubr.bf16.mxu0 0
      %645 = vmatmul.mubr.bf16.gmra.mrb[0].mxu0 %v510
      %v646 = vpop.f32.mrb[0].mxu0
      %v647 = vadd.f32 0.0, %v646
      %v648 = vpop.f32.mrb[0].mxu0
      %v649 = vpop.f32.mrb[0].mxu0
      %v650 = vadd.f32 0.0, %v649
      %v651 = vpop.f32.mrb[0].mxu0
      %652 = vmatprep.mubr.bf16.mxu0 0
      %653 = vmatmul.mubr.bf16.gmra.mrb[0].mxu0 %v513
      %v654 = vpop.f32.mrb[0].mxu0
      %v655 = vadd.f32 0.0, %v654
      %v656 = vpop.f32.mrb[0].mxu0
      %v657 = vpop.f32.mrb[0].mxu0
      %v658 = vadd.f32 0.0, %v657
      %v659 = vpop.f32.mrb[0].mxu0
      %660 = vmatprep.mubr.bf16.mxu0 0
      %661 = vmatmul.mubr.bf16.gmra.mrb[0].mxu0 %v516
      %v662 = vpop.f32.mrb[0].mxu0
      %v663 = vadd.f32 0.0, %v662
      %v664 = vpop.f32.mrb[0].mxu0
      %v665 = vpop.f32.mrb[0].mxu0
      %v666 = vadd.f32 0.0, %v665
      %v667 = vpop.f32.mrb[0].mxu0
      %668 = vmatprep.mubr.bf16.mxu0 0
      %669 = vmatmul.mubr.bf16.gmra.mrb[0].mxu0 %v519
      %v670 = vpop.f32.mrb[0].mxu0
      %v671 = vadd.f32 0.0, %v670
      %v672 = vpop.f32.mrb[0].mxu0
      %v673 = vpop.f32.mrb[0].mxu0
      %v674 = vadd.f32 0.0, %v673
      %v675 = vpop.f32.mrb[0].mxu0
      %676 = vmatprep.mubr.bf16.mxu0 0
      %677 = vmatmul.mubr.bf16.gmra.mrb[0].mxu0 %v522
      %v678 = vpop.f32.mrb[0].mxu0
      %v679 = vadd.f32 0.0, %v678
      %v680 = vpop.f32.mrb[0].mxu0
      %v681 = vpop.f32.mrb[0].mxu0
      %v682 = vadd.f32 0.0, %v681
      %v683 = vpop.f32.mrb[0].mxu0
      %684 = vmatprep.mubr.bf16.mxu0 0
      %685 = vmatmul.mubr.bf16.gmra.mrb[0].mxu0 %v525
      %v686 = vpop.f32.mrb[0].mxu0
      %v687 = vadd.f32 0.0, %v686
      %v688 = vpop.f32.mrb[0].mxu0
      %v689 = vpop.f32.mrb[0].mxu0
      %v690 = vadd.f32 0.0, %v689
      %v691 = vpop.f32.mrb[0].mxu0
      %692 = vmatprep.mubr.bf16.mxu0 0
      %693 = vmatmul.mubr.bf16.gmra.mrb[0].mxu0 %v528
      %v694 = vpop.f32.mrb[0].mxu0
      %v695 = vadd.f32 0.0, %v694
      %v696 = vpop.f32.mrb[0].mxu0
      %v697 = vpop.f32.mrb[0].mxu0
      %v698 = vadd.f32 0.0, %v697
      %v699 = vpop.f32.mrb[0].mxu0
      %700 = vmatprep.mubr.bf16.mxu0 0
      %701 = vmatmul.mubr.bf16.gmra.mrb[0].mxu0 %v531
      %v702 = vpop.f32.mrb[0].mxu0
      %v703 = vadd.f32 0.0, %v702
      %v704 = vpop.f32.mrb[0].mxu0
      %v705 = vpop.f32.mrb[0].mxu0
      %v706 = vadd.f32 0.0, %v705
      %v707 = vpop.f32.mrb[0].mxu0
      %708 = vmatprep.mubr.bf16.mxu0 0
      %709 = vmatmul.mubr.bf16.gmra.mrb[0].mxu0 %v534
      %v710 = vpop.f32.mrb[0].mxu0
      %v711 = vadd.f32 0.0, %v710
      %v712 = vpop.f32.mrb[0].mxu0
      %v713 = vpop.f32.mrb[0].mxu0
      %v714 = vadd.f32 0.0, %v713
      %v715 = vpop.f32.mrb[0].mxu0
      %716 = vdwg.mxu0
      %v717 = vsel %vm481, %v313, 0
      %v719 = vsel %vm481, %v314, 0
      %v721 = vsel %vm481, %v315, 0
      %v723 = vsel %vm481, %v316, 0
      %v725 = vsel %vm481, %v317, 0
      %v727 = vsel %vm481, %v318, 0
      %v729 = vsel %vm481, %v319, 0
      %v731 = vsel %vm481, %v320, 0
      %v733 = vsel %vm481, %v321, 0
      %v735 = vsel %vm481, %v322, 0
      %v737 = vsel %vm481, %v323, 0
      %v739 = vsel %vm481, %v324, 0
      %v741 = vsel %vm481, %v325, 0
      %v743 = vsel %vm481, %v326, 0
      %v745 = vsel %vm481, %v327, 0
      %v747 = vsel %vm481, %v328, 0
      %v749 = vsel %vm481, %v329, 0
      %v751 = vsel %vm481, %v330, 0
      %v754 = vsel %vm536, %v235, 0
      %756 = vmatprep.subr.bf16.mxu0 0
      %757 = vmatpush1.bf16.msra.mxu0 %v754
      %758 = vmatprep.subr.bf16.mxu0 0
      %759 = vmatpush1.bf16.msra.mxu0 0
      %760 = vmatprep.subr.bf16.mxu0 0
      %761 = vmatpush1.bf16.msra.mxu0 0
      %762 = vmatprep.subr.bf16.mxu0 0
      %763 = vmatpush1.bf16.msra.mxu0 0
      %764 = vmatprep.subr.bf16.mxu0 0
      %765 = vmatpush1.bf16.msra.mxu0 0
      %766 = vmatprep.subr.bf16.mxu0 0
      %767 = vmatpush1.bf16.msra.mxu0 0
      %768 = vmatprep.subr.bf16.mxu0 0
      %769 = vmatpush1.bf16.msra.mxu0 0
      %770 = vmatprep.subr.bf16.mxu0 0
      %771 = vmatpush1.bf16.msra.mxu0 0
      %772 = vmatprep.subr.bf16.mxu0 0
      %773 = vmatpush1.bf16.msra.mxu0 0
      %774 = vmatprep.subr.bf16.mxu0 0
      %775 = vmatpush1.bf16.msra.mxu0 0
      %776 = vmatprep.subr.bf16.mxu0 0
      %777 = vmatpush1.bf16.msra.mxu0 0
      %778 = vmatprep.subr.bf16.mxu0 0
      %779 = vmatpush1.bf16.msra.mxu0 0
      %780 = vmatprep.subr.bf16.mxu0 0
      %781 = vmatpush1.bf16.msra.mxu0 0
      %782 = vmatprep.subr.bf16.mxu0 0
      %783 = vmatpush1.bf16.msra.mxu0 0
      %784 = vmatprep.subr.bf16.mxu0 0
      %785 = vmatpush1.bf16.msra.mxu0 0
      %786 = vmatprep.subr.bf16.mxu0 0
      %787 = vmatpush1.bf16.msra.mxu0 0
      %788 = vmatprep.mubr.bf16.mxu0 0
      %789 = vmatmul.mubr.bf16.gmra.mrb[0].mxu0 %v717
      %v790 = vpop.f32.mrb[0].mxu0
      %v791 = vadd.f32 %v575, %v790
      %v792 = vpop.f32.mrb[0].mxu0
      %v793 = vpop.f32.mrb[0].mxu0
      %v794 = vadd.f32 %v578, %v793
      %v795 = vpop.f32.mrb[0].mxu0
      %796 = vmatprep.mubr.bf16.mxu0 0
      %797 = vmatmul.mubr.bf16.gmra.mrb[0].mxu0 %v719
      %v798 = vpop.f32.mrb[0].mxu0
      %v799 = vadd.f32 %v583, %v798
      %v800 = vpop.f32.mrb[0].mxu0
      %v801 = vpop.f32.mrb[0].mxu0
      %v802 = vadd.f32 %v586, %v801
      %v803 = vpop.f32.mrb[0].mxu0
      %804 = vmatprep.mubr.bf16.mxu0 0
      %805 = vmatmul.mubr.bf16.gmra.mrb[0].mxu0 %v721
      %v806 = vpop.f32.mrb[0].mxu0
      %v807 = vadd.f32 %v591, %v806
      %v808 = vpop.f32.mrb[0].mxu0
      %v809 = vpop.f32.mrb[0].mxu0
      %v810 = vadd.f32 %v594, %v809
      %v811 = vpop.f32.mrb[0].mxu0
      %812 = vmatprep.mubr.bf16.mxu0 0
      %813 = vmatmul.mubr.bf16.gmra.mrb[0].mxu0 %v723
      %v814 = vpop.f32.mrb[0].mxu0
      %v815 = vadd.f32 %v599, %v814
      %v816 = vpop.f32.mrb[0].mxu0
      %v817 = vpop.f32.mrb[0].mxu0
      %v818 = vadd.f32 %v602, %v817
      %v819 = vpop.f32.mrb[0].mxu0
      %820 = vmatprep.mubr.bf16.mxu0 0
      %821 = vmatmul.mubr.bf16.gmra.mrb[0].mxu0 %v725
      %v822 = vpop.f32.mrb[0].mxu0
      %v823 = vadd.f32 %v607, %v822
      %v824 = vpop.f32.mrb[0].mxu0
      %v825 = vpop.f32.mrb[0].mxu0
      %v826 = vadd.f32 %v610, %v825
      %v827 = vpop.f32.mrb[0].mxu0
      %828 = vmatprep.mubr.bf16.mxu0 0
      %829 = vmatmul.mubr.bf16.gmra.mrb[0].mxu0 %v727
      %v830 = vpop.f32.mrb[0].mxu0
      %v831 = vadd.f32 %v615, %v830
      %v832 = vpop.f32.mrb[0].mxu0
      %v833 = vpop.f32.mrb[0].mxu0
      %v834 = vadd.f32 %v618, %v833
      %v835 = vpop.f32.mrb[0].mxu0
      %836 = vmatprep.mubr.bf16.mxu0 0
      %837 = vmatmul.mubr.bf16.gmra.mrb[0].mxu0 %v729
      %v838 = vpop.f32.mrb[0].mxu0
      %v839 = vadd.f32 %v623, %v838
      %v840 = vpop.f32.mrb[0].mxu0
      %v841 = vpop.f32.mrb[0].mxu0
      %v842 = vadd.f32 %v626, %v841
      %v843 = vpop.f32.mrb[0].mxu0
      %844 = vmatprep.mubr.bf16.mxu0 0
      %845 = vmatmul.mubr.bf16.gmra.mrb[0].mxu0 %v731
      %v846 = vpop.f32.mrb[0].mxu0
      %v847 = vadd.f32 %v631, %v846
      %v848 = vpop.f32.mrb[0].mxu0
      %v849 = vpop.f32.mrb[0].mxu0
      %v850 = vadd.f32 %v634, %v849
      %v851 = vpop.f32.mrb[0].mxu0
      %852 = vmatprep.mubr.bf16.mxu0 0
      %853 = vmatmul.mubr.bf16.gmra.mrb[0].mxu0 %v733
      %v854 = vpop.f32.mrb[0].mxu0
      %v855 = vadd.f32 %v639, %v854
      %v856 = vpop.f32.mrb[0].mxu0
      %v857 = vpop.f32.mrb[0].mxu0
      %v858 = vadd.f32 %v642, %v857
      %v859 = vpop.f32.mrb[0].mxu0
      %860 = vmatprep.mubr.bf16.mxu0 0
      %861 = vmatmul.mubr.bf16.gmra.mrb[0].mxu0 %v735
      %v862 = vpop.f32.mrb[0].mxu0
      %v863 = vadd.f32 %v647, %v862
      %v864 = vpop.f32.mrb[0].mxu0
      %v865 = vpop.f32.mrb[0].mxu0
      %v866 = vadd.f32 %v650, %v865
      %v867 = vpop.f32.mrb[0].mxu0
      %868 = vmatprep.mubr.bf16.mxu0 0
      %869 = vmatmul.mubr.bf16.gmra.mrb[0].mxu0 %v737
      %v870 = vpop.f32.mrb[0].mxu0
      %v871 = vadd.f32 %v655, %v870
      %v872 = vpop.f32.mrb[0].mxu0
      %v873 = vpop.f32.mrb[0].mxu0
      %v874 = vadd.f32 %v658, %v873
      %v875 = vpop.f32.mrb[0].mxu0
      %876 = vmatprep.mubr.bf16.mxu0 0
      %877 = vmatmul.mubr.bf16.gmra.mrb[0].mxu0 %v739
      %v878 = vpop.f32.mrb[0].mxu0
      %v879 = vadd.f32 %v663, %v878
      %v880 = vpop.f32.mrb[0].mxu0
      %v881 = vpop.f32.mrb[0].mxu0
      %v882 = vadd.f32 %v666, %v881
      %v883 = vpop.f32.mrb[0].mxu0
      %884 = vmatprep.mubr.bf16.mxu0 0
      %885 = vmatmul.mubr.bf16.gmra.mrb[0].mxu0 %v741
      %v886 = vpop.f32.mrb[0].mxu0
      %v887 = vadd.f32 %v671, %v886
      %v888 = vpop.f32.mrb[0].mxu0
      %v889 = vpop.f32.mrb[0].mxu0
      %v890 = vadd.f32 %v674, %v889
      %v891 = vpop.f32.mrb[0].mxu0
      %892 = vmatprep.mubr.bf16.mxu0 0
      %893 = vmatmul.mubr.bf16.gmra.mrb[0].mxu0 %v743
      %v894 = vpop.f32.mrb[0].mxu0
      %v895 = vadd.f32 %v679, %v894
      %v896 = vpop.f32.mrb[0].mxu0
      %v897 = vpop.f32.mrb[0].mxu0
      %v898 = vadd.f32 %v682, %v897
      %v899 = vpop.f32.mrb[0].mxu0
      %900 = vmatprep.mubr.bf16.mxu0 0
      %901 = vmatmul.mubr.bf16.gmra.mrb[0].mxu0 %v745
      %v902 = vpop.f32.mrb[0].mxu0
      %v903 = vadd.f32 %v687, %v902
      %v904 = vpop.f32.mrb[0].mxu0
      %v905 = vpop.f32.mrb[0].mxu0
      %v906 = vadd.f32 %v690, %v905
      %v907 = vpop.f32.mrb[0].mxu0
      %908 = vmatprep.mubr.bf16.mxu0 0
      %909 = vmatmul.mubr.bf16.gmra.mrb[0].mxu0 %v747
      %v910 = vpop.f32.mrb[0].mxu0
      %v911 = vadd.f32 %v695, %v910
      %v912 = vpop.f32.mrb[0].mxu0
      %v913 = vpop.f32.mrb[0].mxu0
      %v914 = vadd.f32 %v698, %v913
      %v915 = vpop.f32.mrb[0].mxu0
      %916 = vmatprep.mubr.bf16.mxu0 0
      %917 = vmatmul.mubr.bf16.gmra.mrb[0].mxu0 %v749
      %v918 = vpop.f32.mrb[0].mxu0
      %v919 = vadd.f32 %v703, %v918
      %v920 = vpop.f32.mrb[0].mxu0
      %v921 = vpop.f32.mrb[0].mxu0
      %v922 = vadd.f32 %v706, %v921
      %v923 = vpop.f32.mrb[0].mxu0
      %924 = vmatprep.mubr.bf16.mxu0 0
      %925 = vmatmul.mubr.bf16.gmra.mrb[0].mxu0 %v751
      %v926 = vpop.f32.mrb[0].mxu0
      %v927 = vadd.f32 %v711, %v926
      %v928 = vpop.f32.mrb[0].mxu0
      %v929 = vpop.f32.mrb[0].mxu0
      %v930 = vadd.f32 %v714, %v929
      %v931 = vpop.f32.mrb[0].mxu0
      %932 = vdwg.mxu0
      %v933 = vld [vmem:[%s192] sm:$0xe]
      %s934 = scalar_lea.vmem %s1, 8
      %v935 = vld [vmem:[%s934] sm:$0xf]
      %v937 = vunpack.c.l.b16 %v933
      %v938 = vpack.c.b16 %v277, %v937
      %vm939 = vcmask 1046528
      %v940 = vrot.slane %v938, 1
      %v941 = vrot.slane %v314, 1
      %v942 = vsel %vm939, %v940, %v941
      %v943 = vrot.slane %v315, 1
      %v944 = vsel %vm939, %v941, %v943
      %v945 = vrot.slane %v316, 1
      %v946 = vsel %vm939, %v943, %v945
      %v947 = vrot.slane %v317, 1
      %v948 = vsel %vm939, %v945, %v947
      %v949 = vrot.slane %v318, 1
      %v950 = vsel %vm939, %v947, %v949
      %v951 = vrot.slane %v319, 1
      %v952 = vsel %vm939, %v949, %v951
      %v953 = vrot.slane %v320, 1
      %v954 = vsel %vm939, %v951, %v953
      %v955 = vrot.slane %v321, 1
      %v956 = vsel %vm939, %v953, %v955
      %v957 = vrot.slane %v322, 1
      %v958 = vsel %vm939, %v955, %v957
      %v959 = vrot.slane %v323, 1
      %v960 = vsel %vm939, %v957, %v959
      %v961 = vrot.slane %v324, 1
      %v962 = vsel %vm939, %v959, %v961
      %v963 = vrot.slane %v325, 1
      %v964 = vsel %vm939, %v961, %v963
      %v965 = vrot.slane %v326, 1
      %v966 = vsel %vm939, %v963, %v965
      %v967 = vrot.slane %v327, 1
      %v968 = vsel %vm939, %v965, %v967
      %v969 = vrot.slane %v328, 1
      %v970 = vsel %vm939, %v967, %v969
      %v971 = vrot.slane %v329, 1
      %v972 = vsel %vm939, %v969, %v971
      %v973 = vrot.slane %v330, 1
      %v974 = vsel %vm939, %v971, %v973
      %v975 = vrot.slane %v331, 1
      %v976 = vsel %vm939, %v973, %v975
      %v978 = vsel %vm481, %v942, 0
      %v981 = vsel %vm481, %v944, 0
      %v984 = vsel %vm481, %v946, 0
      %v987 = vsel %vm481, %v948, 0
      %v990 = vsel %vm481, %v950, 0
      %v993 = vsel %vm481, %v952, 0
      %v996 = vsel %vm481, %v954, 0
      %v999 = vsel %vm481, %v956, 0
      %v1002 = vsel %vm481, %v958, 0
      %v1005 = vsel %vm481, %v960, 0
      %v1008 = vsel %vm481, %v962, 0
      %v1011 = vsel %vm481, %v964, 0
      %v1014 = vsel %vm481, %v966, 0
      %v1017 = vsel %vm481, %v968, 0
      %v1020 = vsel %vm481, %v970, 0
      %v1023 = vsel %vm481, %v972, 0
      %v1026 = vsel %vm481, %v974, 0
      %v1029 = vsel %vm481, %v976, 0
      %v1032 = vsel %vm536, %v935, 0
      %1034 = vmatprep.subr.bf16.mxu0 0
      %1035 = vmatpush1.bf16.msra.mxu0 %v1032
      %1036 = vmatprep.subr.bf16.mxu0 0
      %1037 = vmatpush1.bf16.msra.mxu0 0
      %1038 = vmatprep.subr.bf16.mxu0 0
      %1039 = vmatpush1.bf16.msra.mxu0 0
      %1040 = vmatprep.subr.bf16.mxu0 0
      %1041 = vmatpush1.bf16.msra.mxu0 0
      %1042 = vmatprep.subr.bf16.mxu0 0
      %1043 = vmatpush1.bf16.msra.mxu0 0
      %1044 = vmatprep.subr.bf16.mxu0 0
      %1045 = vmatpush1.bf16.msra.mxu0 0
      %1046 = vmatprep.subr.bf16.mxu0 0
      %1047 = vmatpush1.bf16.msra.mxu0 0
      %1048 = vmatprep.subr.bf16.mxu0 0
      %1049 = vmatpush1.bf16.msra.mxu0 0
      %1050 = vmatprep.subr.bf16.mxu0 0
      %1051 = vmatpush1.bf16.msra.mxu0 0
      %1052 = vmatprep.subr.bf16.mxu0 0
      %1053 = vmatpush1.bf16.msra.mxu0 0
      %1054 = vmatprep.subr.bf16.mxu0 0
      %1055 = vmatpush1.bf16.msra.mxu0 0
      %1056 = vmatprep.subr.bf16.mxu0 0
      %1057 = vmatpush1.bf16.msra.mxu0 0
      %1058 = vmatprep.subr.bf16.mxu0 0
      %1059 = vmatpush1.bf16.msra.mxu0 0
      %1060 = vmatprep.subr.bf16.mxu0 0
      %1061 = vmatpush1.bf16.msra.mxu0 0
      %1062 = vmatprep.subr.bf16.mxu0 0
      %1063 = vmatpush1.bf16.msra.mxu0 0
      %1064 = vmatprep.subr.bf16.mxu0 0
      %1065 = vmatpush1.bf16.msra.mxu0 0
      %1066 = vmatprep.mubr.bf16.mxu0 0
      %1067 = vmatmul.mubr.bf16.gmra.mrb[0].mxu0 %v978
      %v1068 = vpop.f32.mrb[0].mxu0
      %v1069 = vadd.f32 0.0, %v1068
      %v1070 = vpop.f32.mrb[0].mxu0
      %v1071 = vpop.f32.mrb[0].mxu0
      %v1072 = vadd.f32 0.0, %v1071
      %v1073 = vpop.f32.mrb[0].mxu0
      %1074 = vmatprep.mubr.bf16.mxu0 0
      %1075 = vmatmul.mubr.bf16.gmra.mrb[0].mxu0 %v981
      %v1076 = vpop.f32.mrb[0].mxu0
      %v1077 = vadd.f32 0.0, %v1076
      %v1078 = vpop.f32.mrb[0].mxu0
      %v1079 = vpop.f32.mrb[0].mxu0
      %v1080 = vadd.f32 0.0, %v1079
      %v1081 = vpop.f32.mrb[0].mxu0
      %1082 = vmatprep.mubr.bf16.mxu0 0
      %1083 = vmatmul.mubr.bf16.gmra.mrb[0].mxu0 %v984
      %v1084 = vpop.f32.mrb[0].mxu0
      %v1085 = vadd.f32 0.0, %v1084
      %v1086 = vpop.f32.mrb[0].mxu0
      %v1087 = vpop.f32.mrb[0].mxu0
      %v1088 = vadd.f32 0.0, %v1087
      %v1089 = vpop.f32.mrb[0].mxu0
      %1090 = vmatprep.mubr.bf16.mxu0 0
      %1091 = vmatmul.mubr.bf16.gmra.mrb[0].mxu0 %v987
      %v1092 = vpop.f32.mrb[0].mxu0
      %v1093 = vadd.f32 0.0, %v1092
      %v1094 = vpop.f32.mrb[0].mxu0
      %v1095 = vpop.f32.mrb[0].mxu0
      %v1096 = vadd.f32 0.0, %v1095
      %v1097 = vpop.f32.mrb[0].mxu0
      %1098 = vmatprep.mubr.bf16.mxu0 0
      %1099 = vmatmul.mubr.bf16.gmra.mrb[0].mxu0 %v990
      %v1100 = vpop.f32.mrb[0].mxu0
      %v1101 = vadd.f32 0.0, %v1100
      %v1102 = vpop.f32.mrb[0].mxu0
      %v1103 = vpop.f32.mrb[0].mxu0
      %v1104 = vadd.f32 0.0, %v1103
      %v1105 = vpop.f32.mrb[0].mxu0
      %1106 = vmatprep.mubr.bf16.mxu0 0
      %1107 = vmatmul.mubr.bf16.gmra.mrb[0].mxu0 %v993
      %v1108 = vpop.f32.mrb[0].mxu0
      %v1109 = vadd.f32 0.0, %v1108
      %v1110 = vpop.f32.mrb[0].mxu0
      %v1111 = vpop.f32.mrb[0].mxu0
      %v1112 = vadd.f32 0.0, %v1111
      %v1113 = vpop.f32.mrb[0].mxu0
      %1114 = vmatprep.mubr.bf16.mxu0 0
      %1115 = vmatmul.mubr.bf16.gmra.mrb[0].mxu0 %v996
      %v1116 = vpop.f32.mrb[0].mxu0
      %v1117 = vadd.f32 0.0, %v1116
      %v1118 = vpop.f32.mrb[0].mxu0
      %v1119 = vpop.f32.mrb[0].mxu0
      %v1120 = vadd.f32 0.0, %v1119
      %v1121 = vpop.f32.mrb[0].mxu0
      %1122 = vmatprep.mubr.bf16.mxu0 0
      %1123 = vmatmul.mubr.bf16.gmra.mrb[0].mxu0 %v999
      %v1124 = vpop.f32.mrb[0].mxu0
      %v1125 = vadd.f32 0.0, %v1124
      %v1126 = vpop.f32.mrb[0].mxu0
      %v1127 = vpop.f32.mrb[0].mxu0
      %v1128 = vadd.f32 0.0, %v1127
      %v1129 = vpop.f32.mrb[0].mxu0
      %1130 = vmatprep.mubr.bf16.mxu0 0
      %1131 = vmatmul.mubr.bf16.gmra.mrb[0].mxu0 %v1002
      %v1132 = vpop.f32.mrb[0].mxu0
      %v1133 = vadd.f32 0.0, %v1132
      %v1134 = vpop.f32.mrb[0].mxu0
      %v1135 = vpop.f32.mrb[0].mxu0
      %v1136 = vadd.f32 0.0, %v1135
      %v1137 = vpop.f32.mrb[0].mxu0
      %1138 = vmatprep.mubr.bf16.mxu0 0
      %1139 = vmatmul.mubr.bf16.gmra.mrb[0].mxu0 %v1005
      %v1140 = vpop.f32.mrb[0].mxu0
      %v1141 = vadd.f32 0.0, %v1140
      %v1142 = vpop.f32.mrb[0].mxu0
      %v1143 = vpop.f32.mrb[0].mxu0
      %v1144 = vadd.f32 0.0, %v1143
      %v1145 = vpop.f32.mrb[0].mxu0
      %1146 = vmatprep.mubr.bf16.mxu0 0
      %1147 = vmatmul.mubr.bf16.gmra.mrb[0].mxu0 %v1008
      %v1148 = vpop.f32.mrb[0].mxu0
      %v1149 = vadd.f32 0.0, %v1148
      %v1150 = vpop.f32.mrb[0].mxu0
      %v1151 = vpop.f32.mrb[0].mxu0
      %v1152 = vadd.f32 0.0, %v1151
      %v1153 = vpop.f32.mrb[0].mxu0
      %1154 = vmatprep.mubr.bf16.mxu0 0
      %1155 = vmatmul.mubr.bf16.gmra.mrb[0].mxu0 %v1011
      %v1156 = vpop.f32.mrb[0].mxu0
      %v1157 = vadd.f32 0.0, %v1156
      %v1158 = vpop.f32.mrb[0].mxu0
      %v1159 = vpop.f32.mrb[0].mxu0
      %v1160 = vadd.f32 0.0, %v1159
      %v1161 = vpop.f32.mrb[0].mxu0
      %1162 = vmatprep.mubr.bf16.mxu0 0
      %1163 = vmatmul.mubr.bf16.gmra.mrb[0].mxu0 %v1014
      %v1164 = vpop.f32.mrb[0].mxu0
      %v1165 = vadd.f32 0.0, %v1164
      %v1166 = vpop.f32.mrb[0].mxu0
      %v1167 = vpop.f32.mrb[0].mxu0
      %v1168 = vadd.f32 0.0, %v1167
      %v1169 = vpop.f32.mrb[0].mxu0
      %1170 = vmatprep.mubr.bf16.mxu0 0
      %1171 = vmatmul.mubr.bf16.gmra.mrb[0].mxu0 %v1017
      %v1172 = vpop.f32.mrb[0].mxu0
      %v1173 = vadd.f32 0.0, %v1172
      %v1174 = vpop.f32.mrb[0].mxu0
      %v1175 = vpop.f32.mrb[0].mxu0
      %v1176 = vadd.f32 0.0, %v1175
      %v1177 = vpop.f32.mrb[0].mxu0
      %1178 = vmatprep.mubr.bf16.mxu0 0
      %1179 = vmatmul.mubr.bf16.gmra.mrb[0].mxu0 %v1020
      %v1180 = vpop.f32.mrb[0].mxu0
      %v1181 = vadd.f32 0.0, %v1180
      %v1182 = vpop.f32.mrb[0].mxu0
      %v1183 = vpop.f32.mrb[0].mxu0
      %v1184 = vadd.f32 0.0, %v1183
      %v1185 = vpop.f32.mrb[0].mxu0
      %1186 = vmatprep.mubr.bf16.mxu0 0
      %1187 = vmatmul.mubr.bf16.gmra.mrb[0].mxu0 %v1023
      %v1188 = vpop.f32.mrb[0].mxu0
      %v1189 = vadd.f32 0.0, %v1188
      %v1190 = vpop.f32.mrb[0].mxu0
      %v1191 = vpop.f32.mrb[0].mxu0
      %v1192 = vadd.f32 0.0, %v1191
      %v1193 = vpop.f32.mrb[0].mxu0
      %1194 = vmatprep.mubr.bf16.mxu0 0
      %1195 = vmatmul.mubr.bf16.gmra.mrb[0].mxu0 %v1026
      %v1196 = vpop.f32.mrb[0].mxu0
      %v1197 = vadd.f32 0.0, %v1196
      %v1198 = vpop.f32.mrb[0].mxu0
      %v1199 = vpop.f32.mrb[0].mxu0
      %v1200 = vadd.f32 0.0, %v1199
      %v1201 = vpop.f32.mrb[0].mxu0
      %1202 = vmatprep.mubr.bf16.mxu0 0
      %1203 = vmatmul.mubr.bf16.gmra.mrb[0].mxu0 %v1029
      %v1204 = vpop.f32.mrb[0].mxu0
      %v1205 = vadd.f32 0.0, %v1204
      %v1206 = vpop.f32.mrb[0].mxu0
      %v1207 = vpop.f32.mrb[0].mxu0
      %v1208 = vadd.f32 0.0, %v1207
      %v1209 = vpop.f32.mrb[0].mxu0
      %1210 = vdwg.mxu0
      %v1211 = vadd.f32 %v791, %v1069
      %v1212 = vadd.f32 %v794, %v1072
      %v1213 = vadd.f32 %v799, %v1077
      %v1214 = vadd.f32 %v802, %v1080
      %v1215 = vadd.f32 %v807, %v1085
      %v1216 = vadd.f32 %v810, %v1088
      %v1217 = vadd.f32 %v815, %v1093
      %v1218 = vadd.f32 %v818, %v1096
      %v1219 = vadd.f32 %v823, %v1101
      %v1220 = vadd.f32 %v826, %v1104
      %v1221 = vadd.f32 %v831, %v1109
      %v1222 = vadd.f32 %v834, %v1112
      %v1223 = vadd.f32 %v839, %v1117
      %v1224 = vadd.f32 %v842, %v1120
      %v1225 = vadd.f32 %v847, %v1125
      %v1226 = vadd.f32 %v850, %v1128
      %v1227 = vadd.f32 %v855, %v1133
      %v1228 = vadd.f32 %v858, %v1136
      %v1229 = vadd.f32 %v863, %v1141
      %v1230 = vadd.f32 %v866, %v1144
      %v1231 = vadd.f32 %v871, %v1149
      %v1232 = vadd.f32 %v874, %v1152
      %v1233 = vadd.f32 %v879, %v1157
      %v1234 = vadd.f32 %v882, %v1160
      %v1235 = vadd.f32 %v887, %v1165
      %v1236 = vadd.f32 %v890, %v1168
      %v1237 = vadd.f32 %v895, %v1173
      %v1238 = vadd.f32 %v898, %v1176
      %v1239 = vadd.f32 %v903, %v1181
      %v1240 = vadd.f32 %v906, %v1184
      %v1241 = vadd.f32 %v911, %v1189
      %v1242 = vadd.f32 %v914, %v1192
      %v1243 = vadd.f32 %v919, %v1197
      %v1244 = vadd.f32 %v922, %v1200
      %v1245 = vadd.f32 %v927, %v1205
      %v1246 = vadd.f32 %v930, %v1208
      %v1247 = vld [vmem:[%s192 + $0x8] sm:$0xe]
      %v1248 = vld [vmem:[%s192 + $0xc] sm:$0xf]
      %v1249 = vld [vmem:[%s192 + $0x10] sm:$0xf]
      %v1250 = vld [vmem:[%s192 + $0x14] sm:$0xf]
      %v1251 = vld [vmem:[%s192 + $0x18] sm:$0xf]
      %v1252 = vld [vmem:[%s192 + $0x1c] sm:$0xf]
      %v1253 = vld [vmem:[%s192 + $0x20] sm:$0xf]
      %v1254 = vld [vmem:[%s192 + $0x24] sm:$0xf]
      %v1255 = vld [vmem:[%s192 + $0x28] sm:$0xf]
      %v1256 = vld [vmem:[%s192 + $0x2c] sm:$0xf]
      %v1257 = vld [vmem:[%s192 + $0x30] sm:$0xf]
      %v1258 = vld [vmem:[%s192 + $0x34] sm:$0xf]
      %v1259 = vld [vmem:[%s192 + $0x38] sm:$0xf]
      %v1260 = vld [vmem:[%s192 + $0x3c] sm:$0xf]
      %v1261 = vld [vmem:[%s192 + $0x40] sm:$0xf]
      %v1262 = vld [vmem:[%s192 + $0x44] sm:$0xf]
      %v1263 = vld [vmem:[%s192 + $0x48] sm:$0xf]
      %v1264 = vld [vmem:[%s192 + $0x4c] sm:$0xf]
      %v1265 = vld [vmem:[%s192 + $0x50] sm:$0xf]
      %v1266 = vld [vmem:[%s192 + $0x54] sm:$0xf]
      %v1267 = vld [vmem:[%s192 + $0x58] sm:$0xf]
      %v1268 = vld [vmem:[%s192 + $0x5c] sm:$0xf]
      %v1269 = vld [vmem:[%s192 + $0x60] sm:$0xf]
      %v1270 = vld [vmem:[%s192 + $0x64] sm:$0xf]
      %v1271 = vld [vmem:[%s192 + $0x68] sm:$0xf]
      %v1272 = vld [vmem:[%s192 + $0x6c] sm:$0xf]
      %v1273 = vld [vmem:[%s192 + $0x70] sm:$0xf]
      %v1274 = vld [vmem:[%s192 + $0x74] sm:$0xf]
      %v1275 = vld [vmem:[%s192 + $0x78] sm:$0xf]
      %v1276 = vld [vmem:[%s192 + $0x7c] sm:$0xf]
      %v1277 = vld [vmem:[%s192 + $0x80] sm:$0xf]
      %v1278 = vld [vmem:[%s192 + $0x84] sm:$0xf]
      %v1279 = vld [vmem:[%s192 + $0x88] sm:$0xf]
      %v1280 = vld [vmem:[%s192 + $0x8c] sm:$0xf]
      %v1281 = vld [vmem:[%s192 + $0x90] sm:$0xf]
      %v1282 = vld [vmem:[%s192 + $0x94] sm:$0xf]
      %v1283 = vld [vmem:[%s192 + $0x98] sm:$0x1]
      %s1284 = scalar_lea.vmem %s1, 12
      %v1285 = vld [vmem:[%s1284] sm:$0xf]
      %v1323 = vunpack.c.l.b16 %v1247
      %v1324 = vunpack.c.l.b16 %v1248
      %v1325 = vunpack.c.l.b16 %v1249
      %v1326 = vunpack.c.l.b16 %v1250
      %v1327 = vunpack.c.l.b16 %v1251
      %v1328 = vunpack.c.l.b16 %v1252
      %v1329 = vunpack.c.l.b16 %v1253
      %v1330 = vunpack.c.l.b16 %v1254
      %v1331 = vunpack.c.l.b16 %v1255
      %v1332 = vunpack.c.l.b16 %v1256
      %v1333 = vunpack.c.l.b16 %v1257
      %v1334 = vunpack.c.l.b16 %v1258
      %v1335 = vunpack.c.l.b16 %v1259
      %v1336 = vunpack.c.l.b16 %v1260
      %v1337 = vunpack.c.l.b16 %v1261
      %v1338 = vunpack.c.l.b16 %v1262
      %v1339 = vunpack.c.l.b16 %v1263
      %v1340 = vunpack.c.l.b16 %v1264
      %v1341 = vunpack.c.l.b16 %v1265
      %v1342 = vunpack.c.l.b16 %v1266
      %v1343 = vunpack.c.l.b16 %v1267
      %v1344 = vunpack.c.l.b16 %v1268
      %v1345 = vunpack.c.l.b16 %v1269
      %v1346 = vunpack.c.l.b16 %v1270
      %v1347 = vunpack.c.l.b16 %v1271
      %v1348 = vunpack.c.l.b16 %v1272
      %v1349 = vunpack.c.l.b16 %v1273
      %v1350 = vunpack.c.l.b16 %v1274
      %v1351 = vunpack.c.l.b16 %v1275
      %v1352 = vunpack.c.l.b16 %v1276
      %v1353 = vunpack.c.l.b16 %v1277
      %v1354 = vunpack.c.l.b16 %v1278
      %v1355 = vunpack.c.l.b16 %v1279
      %v1356 = vunpack.c.l.b16 %v1280
      %v1357 = vunpack.c.l.b16 %v1281
      %v1358 = vunpack.c.l.b16 %v1282
      %v1359 = vunpack.c.l.b16 %v1283
      %v1360 = vpack.c.b16 %v1324, %v1323
      %v1361 = vpack.c.b16 %v1326, %v1325
      %v1362 = vpack.c.b16 %v1328, %v1327
      %v1363 = vpack.c.b16 %v1330, %v1329
      %v1364 = vpack.c.b16 %v1332, %v1331
      %v1365 = vpack.c.b16 %v1334, %v1333
      %v1366 = vpack.c.b16 %v1336, %v1335
      %v1367 = vpack.c.b16 %v1338, %v1337
      %v1368 = vpack.c.b16 %v1340, %v1339
      %v1369 = vpack.c.b16 %v1342, %v1341
      %v1370 = vpack.c.b16 %v1344, %v1343
      %v1371 = vpack.c.b16 %v1346, %v1345
      %v1372 = vpack.c.b16 %v1348, %v1347
      %v1373 = vpack.c.b16 %v1350, %v1349
      %v1374 = vpack.c.b16 %v1352, %v1351
      %v1375 = vpack.c.b16 %v1354, %v1353
      %v1376 = vpack.c.b16 %v1356, %v1355
      %v1377 = vpack.c.b16 %v1358, %v1357
      %v1378 = vpack.c.b16 %v1359, %v1359
      %v1379 = vrot.slane %v1360, 1
      %v1380 = vrot.slane %v1361, 1
      %v1381 = vsel %vm939, %v1379, %v1380
      %v1382 = vrot.slane %v1362, 1
      %v1383 = vsel %vm939, %v1380, %v1382
      %v1384 = vrot.slane %v1363, 1
      %v1385 = vsel %vm939, %v1382, %v1384
      %v1386 = vrot.slane %v1364, 1
      %v1387 = vsel %vm939, %v1384, %v1386
      %v1388 = vrot.slane %v1365, 1
      %v1389 = vsel %vm939, %v1386, %v1388
      %v1390 = vrot.slane %v1366, 1
      %v1391 = vsel %vm939, %v1388, %v1390
      %v1392 = vrot.slane %v1367, 1
      %v1393 = vsel %vm939, %v1390, %v1392
      %v1394 = vrot.slane %v1368, 1
      %v1395 = vsel %vm939, %v1392, %v1394
      %v1396 = vrot.slane %v1369, 1
      %v1397 = vsel %vm939, %v1394, %v1396
      %v1398 = vrot.slane %v1370, 1
      %v1399 = vsel %vm939, %v1396, %v1398
      %v1400 = vrot.slane %v1371, 1
      %v1401 = vsel %vm939, %v1398, %v1400
      %v1402 = vrot.slane %v1372, 1
      %v1403 = vsel %vm939, %v1400, %v1402
      %v1404 = vrot.slane %v1373, 1
      %v1405 = vsel %vm939, %v1402, %v1404
      %v1406 = vrot.slane %v1374, 1
      %v1407 = vsel %vm939, %v1404, %v1406
      %v1408 = vrot.slane %v1375, 1
      %v1409 = vsel %vm939, %v1406, %v1408
      %v1410 = vrot.slane %v1376, 1
      %v1411 = vsel %vm939, %v1408, %v1410
      %v1412 = vrot.slane %v1377, 1
      %v1413 = vsel %vm939, %v1410, %v1412
      %v1414 = vrot.slane %v1378, 1
      %v1415 = vsel %vm939, %v1412, %v1414
      %v1417 = vsel %vm481, %v1381, 0
      %v1420 = vsel %vm481, %v1383, 0
      %v1423 = vsel %vm481, %v1385, 0
      %v1426 = vsel %vm481, %v1387, 0
      %v1429 = vsel %vm481, %v1389, 0
      %v1432 = vsel %vm481, %v1391, 0
      %v1435 = vsel %vm481, %v1393, 0
      %v1438 = vsel %vm481, %v1395, 0
      %v1441 = vsel %vm481, %v1397, 0
      %v1444 = vsel %vm481, %v1399, 0
      %v1447 = vsel %vm481, %v1401, 0
      %v1450 = vsel %vm481, %v1403, 0
      %v1453 = vsel %vm481, %v1405, 0
      %v1456 = vsel %vm481, %v1407, 0
      %v1459 = vsel %vm481, %v1409, 0
      %v1462 = vsel %vm481, %v1411, 0
      %v1465 = vsel %vm481, %v1413, 0
      %v1468 = vsel %vm481, %v1415, 0
      %v1471 = vsel %vm536, %v1285, 0
      %1473 = vmatprep.subr.bf16.mxu0 0
      %1474 = vmatpush1.bf16.msra.mxu0 %v1471
      %1475 = vmatprep.subr.bf16.mxu0 0
      %1476 = vmatpush1.bf16.msra.mxu0 0
      %1477 = vmatprep.subr.bf16.mxu0 0
      %1478 = vmatpush1.bf16.msra.mxu0 0
      %1479 = vmatprep.subr.bf16.mxu0 0
      %1480 = vmatpush1.bf16.msra.mxu0 0
      %1481 = vmatprep.subr.bf16.mxu0 0
      %1482 = vmatpush1.bf16.msra.mxu0 0
      %1483 = vmatprep.subr.bf16.mxu0 0
      %1484 = vmatpush1.bf16.msra.mxu0 0
      %1485 = vmatprep.subr.bf16.mxu0 0
      %1486 = vmatpush1.bf16.msra.mxu0 0
      %1487 = vmatprep.subr.bf16.mxu0 0
      %1488 = vmatpush1.bf16.msra.mxu0 0
      %1489 = vmatprep.subr.bf16.mxu0 0
      %1490 = vmatpush1.bf16.msra.mxu0 0
      %1491 = vmatprep.subr.bf16.mxu0 0
      %1492 = vmatpush1.bf16.msra.mxu0 0
      %1493 = vmatprep.subr.bf16.mxu0 0
      %1494 = vmatpush1.bf16.msra.mxu0 0
      %1495 = vmatprep.subr.bf16.mxu0 0
      %1496 = vmatpush1.bf16.msra.mxu0 0
      %1497 = vmatprep.subr.bf16.mxu0 0
      %1498 = vmatpush1.bf16.msra.mxu0 0
      %1499 = vmatprep.subr.bf16.mxu0 0
      %1500 = vmatpush1.bf16.msra.mxu0 0
      %1501 = vmatprep.subr.bf16.mxu0 0
      %1502 = vmatpush1.bf16.msra.mxu0 0
      %1503 = vmatprep.subr.bf16.mxu0 0
      %1504 = vmatpush1.bf16.msra.mxu0 0
      %1505 = vmatprep.mubr.bf16.mxu0 0
      %1506 = vmatmul.mubr.bf16.gmra.mrb[0].mxu0 %v1417
      %v1507 = vpop.f32.mrb[0].mxu0
      %v1508 = vadd.f32 0.0, %v1507
      %v1509 = vpop.f32.mrb[0].mxu0
      %v1510 = vpop.f32.mrb[0].mxu0
      %v1511 = vadd.f32 0.0, %v1510
      %v1512 = vpop.f32.mrb[0].mxu0
      %1513 = vmatprep.mubr.bf16.mxu0 0
      %1514 = vmatmul.mubr.bf16.gmra.mrb[0].mxu0 %v1420
      %v1515 = vpop.f32.mrb[0].mxu0
      %v1516 = vadd.f32 0.0, %v1515
      %v1517 = vpop.f32.mrb[0].mxu0
      %v1518 = vpop.f32.mrb[0].mxu0
      %v1519 = vadd.f32 0.0, %v1518
      %v1520 = vpop.f32.mrb[0].mxu0
      %1521 = vmatprep.mubr.bf16.mxu0 0
      %1522 = vmatmul.mubr.bf16.gmra.mrb[0].mxu0 %v1423
      %v1523 = vpop.f32.mrb[0].mxu0
      %v1524 = vadd.f32 0.0, %v1523
      %v1525 = vpop.f32.mrb[0].mxu0
      %v1526 = vpop.f32.mrb[0].mxu0
      %v1527 = vadd.f32 0.0, %v1526
      %v1528 = vpop.f32.mrb[0].mxu0
      %1529 = vmatprep.mubr.bf16.mxu0 0
      %1530 = vmatmul.mubr.bf16.gmra.mrb[0].mxu0 %v1426
      %v1531 = vpop.f32.mrb[0].mxu0
      %v1532 = vadd.f32 0.0, %v1531
      %v1533 = vpop.f32.mrb[0].mxu0
      %v1534 = vpop.f32.mrb[0].mxu0
      %v1535 = vadd.f32 0.0, %v1534
      %v1536 = vpop.f32.mrb[0].mxu0
      %1537 = vmatprep.mubr.bf16.mxu0 0
      %1538 = vmatmul.mubr.bf16.gmra.mrb[0].mxu0 %v1429
      %v1539 = vpop.f32.mrb[0].mxu0
      %v1540 = vadd.f32 0.0, %v1539
      %v1541 = vpop.f32.mrb[0].mxu0
      %v1542 = vpop.f32.mrb[0].mxu0
      %v1543 = vadd.f32 0.0, %v1542
      %v1544 = vpop.f32.mrb[0].mxu0
      %1545 = vmatprep.mubr.bf16.mxu0 0
      %1546 = vmatmul.mubr.bf16.gmra.mrb[0].mxu0 %v1432
      %v1547 = vpop.f32.mrb[0].mxu0
      %v1548 = vadd.f32 0.0, %v1547
      %v1549 = vpop.f32.mrb[0].mxu0
      %v1550 = vpop.f32.mrb[0].mxu0
      %v1551 = vadd.f32 0.0, %v1550
      %v1552 = vpop.f32.mrb[0].mxu0
      %1553 = vmatprep.mubr.bf16.mxu0 0
      %1554 = vmatmul.mubr.bf16.gmra.mrb[0].mxu0 %v1435
      %v1555 = vpop.f32.mrb[0].mxu0
      %v1556 = vadd.f32 0.0, %v1555
      %v1557 = vpop.f32.mrb[0].mxu0
      %v1558 = vpop.f32.mrb[0].mxu0
      %v1559 = vadd.f32 0.0, %v1558
      %v1560 = vpop.f32.mrb[0].mxu0
      %1561 = vmatprep.mubr.bf16.mxu0 0
      %1562 = vmatmul.mubr.bf16.gmra.mrb[0].mxu0 %v1438
      %v1563 = vpop.f32.mrb[0].mxu0
      %v1564 = vadd.f32 0.0, %v1563
      %v1565 = vpop.f32.mrb[0].mxu0
      %v1566 = vpop.f32.mrb[0].mxu0
      %v1567 = vadd.f32 0.0, %v1566
      %v1568 = vpop.f32.mrb[0].mxu0
      %1569 = vmatprep.mubr.bf16.mxu0 0
      %1570 = vmatmul.mubr.bf16.gmra.mrb[0].mxu0 %v1441
      %v1571 = vpop.f32.mrb[0].mxu0
      %v1572 = vadd.f32 0.0, %v1571
      %v1573 = vpop.f32.mrb[0].mxu0
      %v1574 = vpop.f32.mrb[0].mxu0
      %v1575 = vadd.f32 0.0, %v1574
      %v1576 = vpop.f32.mrb[0].mxu0
      %1577 = vmatprep.mubr.bf16.mxu0 0
      %1578 = vmatmul.mubr.bf16.gmra.mrb[0].mxu0 %v1444
      %v1579 = vpop.f32.mrb[0].mxu0
      %v1580 = vadd.f32 0.0, %v1579
      %v1581 = vpop.f32.mrb[0].mxu0
      %v1582 = vpop.f32.mrb[0].mxu0
      %v1583 = vadd.f32 0.0, %v1582
      %v1584 = vpop.f32.mrb[0].mxu0
      %1585 = vmatprep.mubr.bf16.mxu0 0
      %1586 = vmatmul.mubr.bf16.gmra.mrb[0].mxu0 %v1447
      %v1587 = vpop.f32.mrb[0].mxu0
      %v1588 = vadd.f32 0.0, %v1587
      %v1589 = vpop.f32.mrb[0].mxu0
      %v1590 = vpop.f32.mrb[0].mxu0
      %v1591 = vadd.f32 0.0, %v1590
      %v1592 = vpop.f32.mrb[0].mxu0
      %1593 = vmatprep.mubr.bf16.mxu0 0
      %1594 = vmatmul.mubr.bf16.gmra.mrb[0].mxu0 %v1450
      %v1595 = vpop.f32.mrb[0].mxu0
      %v1596 = vadd.f32 0.0, %v1595
      %v1597 = vpop.f32.mrb[0].mxu0
      %v1598 = vpop.f32.mrb[0].mxu0
      %v1599 = vadd.f32 0.0, %v1598
      %v1600 = vpop.f32.mrb[0].mxu0
      %1601 = vmatprep.mubr.bf16.mxu0 0
      %1602 = vmatmul.mubr.bf16.gmra.mrb[0].mxu0 %v1453
      %v1603 = vpop.f32.mrb[0].mxu0
      %v1604 = vadd.f32 0.0, %v1603
      %v1605 = vpop.f32.mrb[0].mxu0
      %v1606 = vpop.f32.mrb[0].mxu0
      %v1607 = vadd.f32 0.0, %v1606
      %v1608 = vpop.f32.mrb[0].mxu0
      %1609 = vmatprep.mubr.bf16.mxu0 0
      %1610 = vmatmul.mubr.bf16.gmra.mrb[0].mxu0 %v1456
      %v1611 = vpop.f32.mrb[0].mxu0
      %v1612 = vadd.f32 0.0, %v1611
      %v1613 = vpop.f32.mrb[0].mxu0
      %v1614 = vpop.f32.mrb[0].mxu0
      %v1615 = vadd.f32 0.0, %v1614
      %v1616 = vpop.f32.mrb[0].mxu0
      %1617 = vmatprep.mubr.bf16.mxu0 0
      %1618 = vmatmul.mubr.bf16.gmra.mrb[0].mxu0 %v1459
      %v1619 = vpop.f32.mrb[0].mxu0
      %v1620 = vadd.f32 0.0, %v1619
      %v1621 = vpop.f32.mrb[0].mxu0
      %v1622 = vpop.f32.mrb[0].mxu0
      %v1623 = vadd.f32 0.0, %v1622
      %v1624 = vpop.f32.mrb[0].mxu0
      %1625 = vmatprep.mubr.bf16.mxu0 0
      %1626 = vmatmul.mubr.bf16.gmra.mrb[0].mxu0 %v1462
      %v1627 = vpop.f32.mrb[0].mxu0
      %v1628 = vadd.f32 0.0, %v1627
      %v1629 = vpop.f32.mrb[0].mxu0
      %v1630 = vpop.f32.mrb[0].mxu0
      %v1631 = vadd.f32 0.0, %v1630
      %v1632 = vpop.f32.mrb[0].mxu0
      %1633 = vmatprep.mubr.bf16.mxu0 0
      %1634 = vmatmul.mubr.bf16.gmra.mrb[0].mxu0 %v1465
      %v1635 = vpop.f32.mrb[0].mxu0
      %v1636 = vadd.f32 0.0, %v1635
      %v1637 = vpop.f32.mrb[0].mxu0
      %v1638 = vpop.f32.mrb[0].mxu0
      %v1639 = vadd.f32 0.0, %v1638
      %v1640 = vpop.f32.mrb[0].mxu0
      %1641 = vmatprep.mubr.bf16.mxu0 0
      %1642 = vmatmul.mubr.bf16.gmra.mrb[0].mxu0 %v1468
      %v1643 = vpop.f32.mrb[0].mxu0
      %v1644 = vadd.f32 0.0, %v1643
      %v1645 = vpop.f32.mrb[0].mxu0
      %v1646 = vpop.f32.mrb[0].mxu0
      %v1647 = vadd.f32 0.0, %v1646
      %v1648 = vpop.f32.mrb[0].mxu0
      %1649 = vdwg.mxu0
      %v1650 = vadd.f32 %v1211, %v1508
      %v1651 = vadd.f32 %v1212, %v1511
      %v1652 = vadd.f32 %v1213, %v1516
      %v1653 = vadd.f32 %v1214, %v1519
      %v1654 = vadd.f32 %v1215, %v1524
      %v1655 = vadd.f32 %v1216, %v1527
      %v1656 = vadd.f32 %v1217, %v1532
      %v1657 = vadd.f32 %v1218, %v1535
      %v1658 = vadd.f32 %v1219, %v1540
      %v1659 = vadd.f32 %v1220, %v1543
      %v1660 = vadd.f32 %v1221, %v1548
      %v1661 = vadd.f32 %v1222, %v1551
      %v1662 = vadd.f32 %v1223, %v1556
      %v1663 = vadd.f32 %v1224, %v1559
      %v1664 = vadd.f32 %v1225, %v1564
      %v1665 = vadd.f32 %v1226, %v1567
      %v1666 = vadd.f32 %v1227, %v1572
      %v1667 = vadd.f32 %v1228, %v1575
      %v1668 = vadd.f32 %v1229, %v1580
      %v1669 = vadd.f32 %v1230, %v1583
      %v1670 = vadd.f32 %v1231, %v1588
      %v1671 = vadd.f32 %v1232, %v1591
      %v1672 = vadd.f32 %v1233, %v1596
      %v1673 = vadd.f32 %v1234, %v1599
      %v1674 = vadd.f32 %v1235, %v1604
      %v1675 = vadd.f32 %v1236, %v1607
      %v1676 = vadd.f32 %v1237, %v1612
      %v1677 = vadd.f32 %v1238, %v1615
      %v1678 = vadd.f32 %v1239, %v1620
      %v1679 = vadd.f32 %v1240, %v1623
      %v1680 = vadd.f32 %v1241, %v1628
      %v1681 = vadd.f32 %v1242, %v1631
      %v1682 = vadd.f32 %v1243, %v1636
      %v1683 = vadd.f32 %v1244, %v1639
      %v1684 = vadd.f32 %v1245, %v1644
      %v1685 = vadd.f32 %v1246, %v1647
      %v1686 = vld [vmem:[%s192 + $0x98] sm:$0x3]
      %s1687 = scalar_lea.vmem %s1, 16
      %v1688 = vld [vmem:[%s1687] sm:$0xf]
      %v1690 = vunpack.c.l.b16 %v1686
      %v1691 = vpack.c.b16 %v1690, %v1690
      %vm1692 = vsmask.f32 6400
      %v1694 = vshrl.u32 %v1360, 16
      %v1696 = vrot.slane %v1694, 1
      %v1697 = vshll.u32 %v1360, 16
      %v1699 = vrot.slane %v1697, 2
      %v1700 = vor.u32 %v1696, %v1699
      %v1702 = vshrl.u32 %v1361, 16
      %v1704 = vrot.slane %v1702, 1
      %v1705 = vshll.u32 %v1361, 16
      %v1707 = vrot.slane %v1705, 2
      %v1708 = vor.u32 %v1704, %v1707
      %v1709 = vsel %vm1692, %v1700, %v1708
      %v1711 = vshrl.u32 %v1362, 16
      %v1713 = vrot.slane %v1711, 1
      %v1714 = vshll.u32 %v1362, 16
      %v1716 = vrot.slane %v1714, 2
      %v1717 = vor.u32 %v1713, %v1716
      %v1718 = vsel %vm1692, %v1708, %v1717
      %v1720 = vshrl.u32 %v1363, 16
      %v1722 = vrot.slane %v1720, 1
      %v1723 = vshll.u32 %v1363, 16
      %v1725 = vrot.slane %v1723, 2
      %v1726 = vor.u32 %v1722, %v1725
      %v1727 = vsel %vm1692, %v1717, %v1726
      %v1729 = vshrl.u32 %v1364, 16
      %v1731 = vrot.slane %v1729, 1
      %v1732 = vshll.u32 %v1364, 16
      %v1734 = vrot.slane %v1732, 2
      %v1735 = vor.u32 %v1731, %v1734
      %v1736 = vsel %vm1692, %v1726, %v1735
      %v1738 = vshrl.u32 %v1365, 16
      %v1740 = vrot.slane %v1738, 1
      %v1741 = vshll.u32 %v1365, 16
      %v1743 = vrot.slane %v1741, 2
      %v1744 = vor.u32 %v1740, %v1743
      %v1745 = vsel %vm1692, %v1735, %v1744
      %v1747 = vshrl.u32 %v1366, 16
      %v1749 = vrot.slane %v1747, 1
      %v1750 = vshll.u32 %v1366, 16
      %v1752 = vrot.slane %v1750, 2
      %v1753 = vor.u32 %v1749, %v1752
      %v1754 = vsel %vm1692, %v1744, %v1753
      %v1756 = vshrl.u32 %v1367, 16
      %v1758 = vrot.slane %v1756, 1
      %v1759 = vshll.u32 %v1367, 16
      %v1761 = vrot.slane %v1759, 2
      %v1762 = vor.u32 %v1758, %v1761
      %v1763 = vsel %vm1692, %v1753, %v1762
      %v1765 = vshrl.u32 %v1368, 16
      %v1767 = vrot.slane %v1765, 1
      %v1768 = vshll.u32 %v1368, 16
      %v1770 = vrot.slane %v1768, 2
      %v1771 = vor.u32 %v1767, %v1770
      %v1772 = vsel %vm1692, %v1762, %v1771
      %v1774 = vshrl.u32 %v1369, 16
      %v1776 = vrot.slane %v1774, 1
      %v1777 = vshll.u32 %v1369, 16
      %v1779 = vrot.slane %v1777, 2
      %v1780 = vor.u32 %v1776, %v1779
      %v1781 = vsel %vm1692, %v1771, %v1780
      %v1783 = vshrl.u32 %v1370, 16
      %v1785 = vrot.slane %v1783, 1
      %v1786 = vshll.u32 %v1370, 16
      %v1788 = vrot.slane %v1786, 2
      %v1789 = vor.u32 %v1785, %v1788
      %v1790 = vsel %vm1692, %v1780, %v1789
      %v1792 = vshrl.u32 %v1371, 16
      %v1794 = vrot.slane %v1792, 1
      %v1795 = vshll.u32 %v1371, 16
      %v1797 = vrot.slane %v1795, 2
      %v1798 = vor.u32 %v1794, %v1797
      %v1799 = vsel %vm1692, %v1789, %v1798
      %v1801 = vshrl.u32 %v1372, 16
      %v1803 = vrot.slane %v1801, 1
      %v1804 = vshll.u32 %v1372, 16
      %v1806 = vrot.slane %v1804, 2
      %v1807 = vor.u32 %v1803, %v1806
      %v1808 = vsel %vm1692, %v1798, %v1807
      %v1810 = vshrl.u32 %v1373, 16
      %v1812 = vrot.slane %v1810, 1
      %v1813 = vshll.u32 %v1373, 16
      %v1815 = vrot.slane %v1813, 2
      %v1816 = vor.u32 %v1812, %v1815
      %v1817 = vsel %vm1692, %v1807, %v1816
      %v1819 = vshrl.u32 %v1374, 16
      %v1821 = vrot.slane %v1819, 1
      %v1822 = vshll.u32 %v1374, 16
      %v1824 = vrot.slane %v1822, 2
      %v1825 = vor.u32 %v1821, %v1824
      %v1826 = vsel %vm1692, %v1816, %v1825
      %v1828 = vshrl.u32 %v1375, 16
      %v1830 = vrot.slane %v1828, 1
      %v1831 = vshll.u32 %v1375, 16
      %v1833 = vrot.slane %v1831, 2
      %v1834 = vor.u32 %v1830, %v1833
      %v1835 = vsel %vm1692, %v1825, %v1834
      %v1837 = vshrl.u32 %v1376, 16
      %v1839 = vrot.slane %v1837, 1
      %v1840 = vshll.u32 %v1376, 16
      %v1842 = vrot.slane %v1840, 2
      %v1843 = vor.u32 %v1839, %v1842
      %v1844 = vsel %vm1692, %v1834, %v1843
      %v1846 = vshrl.u32 %v1377, 16
      %v1848 = vrot.slane %v1846, 1
      %v1849 = vshll.u32 %v1377, 16
      %v1851 = vrot.slane %v1849, 2
      %v1852 = vor.u32 %v1848, %v1851
      %v1853 = vsel %vm1692, %v1843, %v1852
      %v1855 = vshrl.u32 %v1691, 16
      %v1857 = vrot.slane %v1855, 1
      %v1858 = vshll.u32 %v1691, 16
      %v1860 = vrot.slane %v1858, 2
      %v1861 = vor.u32 %v1857, %v1860
      %v1862 = vsel %vm1692, %v1852, %v1861
      %v1864 = vsel %vm481, %v1709, 0
      %v1867 = vsel %vm481, %v1718, 0
      %v1870 = vsel %vm481, %v1727, 0
      %v1873 = vsel %vm481, %v1736, 0
      %v1876 = vsel %vm481, %v1745, 0
      %v1879 = vsel %vm481, %v1754, 0
      %v1882 = vsel %vm481, %v1763, 0
      %v1885 = vsel %vm481, %v1772, 0
      %v1888 = vsel %vm481, %v1781, 0
      %v1891 = vsel %vm481, %v1790, 0
      %v1894 = vsel %vm481, %v1799, 0
      %v1897 = vsel %vm481, %v1808, 0
      %v1900 = vsel %vm481, %v1817, 0
      %v1903 = vsel %vm481, %v1826, 0
      %v1906 = vsel %vm481, %v1835, 0
      %v1909 = vsel %vm481, %v1844, 0
      %v1912 = vsel %vm481, %v1853, 0
      %v1915 = vsel %vm481, %v1862, 0
      %v1918 = vsel %vm536, %v1688, 0
      %1920 = vmatprep.subr.bf16.mxu0 0
      %1921 = vmatpush1.bf16.msra.mxu0 %v1918
      %1922 = vmatprep.subr.bf16.mxu0 0
      %1923 = vmatpush1.bf16.msra.mxu0 0
      %1924 = vmatprep.subr.bf16.mxu0 0
      %1925 = vmatpush1.bf16.msra.mxu0 0
      %1926 = vmatprep.subr.bf16.mxu0 0
      %1927 = vmatpush1.bf16.msra.mxu0 0
      %1928 = vmatprep.subr.bf16.mxu0 0
      %1929 = vmatpush1.bf16.msra.mxu0 0
      %1930 = vmatprep.subr.bf16.mxu0 0
      %1931 = vmatpush1.bf16.msra.mxu0 0
      %1932 = vmatprep.subr.bf16.mxu0 0
      %1933 = vmatpush1.bf16.msra.mxu0 0
      %1934 = vmatprep.subr.bf16.mxu0 0
      %1935 = vmatpush1.bf16.msra.mxu0 0
      %1936 = vmatprep.subr.bf16.mxu0 0
      %1937 = vmatpush1.bf16.msra.mxu0 0
      %1938 = vmatprep.subr.bf16.mxu0 0
      %1939 = vmatpush1.bf16.msra.mxu0 0
      %1940 = vmatprep.subr.bf16.mxu0 0
      %1941 = vmatpush1.bf16.msra.mxu0 0
      %1942 = vmatprep.subr.bf16.mxu0 0
      %1943 = vmatpush1.bf16.msra.mxu0 0
      %1944 = vmatprep.subr.bf16.mxu0 0
      %1945 = vmatpush1.bf16.msra.mxu0 0
      %1946 = vmatprep.subr.bf16.mxu0 0
      %1947 = vmatpush1.bf16.msra.mxu0 0
      %1948 = vmatprep.subr.bf16.mxu0 0
      %1949 = vmatpush1.bf16.msra.mxu0 0
      %1950 = vmatprep.subr.bf16.mxu0 0
      %1951 = vmatpush1.bf16.msra.mxu0 0
      %1952 = vmatprep.mubr.bf16.mxu0 0
      %1953 = vmatmul.mubr.bf16.gmra.mrb[0].mxu0 %v1864
      %v1954 = vpop.f32.mrb[0].mxu0
      %v1955 = vadd.f32 0.0, %v1954
      %v1956 = vpop.f32.mrb[0].mxu0
      %v1957 = vpop.f32.mrb[0].mxu0
      %v1958 = vadd.f32 0.0, %v1957
      %v1959 = vpop.f32.mrb[0].mxu0
      %1960 = vmatprep.mubr.bf16.mxu0 0
      %1961 = vmatmul.mubr.bf16.gmra.mrb[0].mxu0 %v1867
      %v1962 = vpop.f32.mrb[0].mxu0
      %v1963 = vadd.f32 0.0, %v1962
      %v1964 = vpop.f32.mrb[0].mxu0
      %v1965 = vpop.f32.mrb[0].mxu0
      %v1966 = vadd.f32 0.0, %v1965
      %v1967 = vpop.f32.mrb[0].mxu0
      %1968 = vmatprep.mubr.bf16.mxu0 0
      %1969 = vmatmul.mubr.bf16.gmra.mrb[0].mxu0 %v1870
      %v1970 = vpop.f32.mrb[0].mxu0
      %v1971 = vadd.f32 0.0, %v1970
      %v1972 = vpop.f32.mrb[0].mxu0
      %v1973 = vpop.f32.mrb[0].mxu0
      %v1974 = vadd.f32 0.0, %v1973
      %v1975 = vpop.f32.mrb[0].mxu0
      %1976 = vmatprep.mubr.bf16.mxu0 0
      %1977 = vmatmul.mubr.bf16.gmra.mrb[0].mxu0 %v1873
      %v1978 = vpop.f32.mrb[0].mxu0
      %v1979 = vadd.f32 0.0, %v1978
      %v1980 = vpop.f32.mrb[0].mxu0
      %v1981 = vpop.f32.mrb[0].mxu0
      %v1982 = vadd.f32 0.0, %v1981
      %v1983 = vpop.f32.mrb[0].mxu0
      %1984 = vmatprep.mubr.bf16.mxu0 0
      %1985 = vmatmul.mubr.bf16.gmra.mrb[0].mxu0 %v1876
      %v1986 = vpop.f32.mrb[0].mxu0
      %v1987 = vadd.f32 0.0, %v1986
      %v1988 = vpop.f32.mrb[0].mxu0
      %v1989 = vpop.f32.mrb[0].mxu0
      %v1990 = vadd.f32 0.0, %v1989
      %v1991 = vpop.f32.mrb[0].mxu0
      %1992 = vmatprep.mubr.bf16.mxu0 0
      %1993 = vmatmul.mubr.bf16.gmra.mrb[0].mxu0 %v1879
      %v1994 = vpop.f32.mrb[0].mxu0
      %v1995 = vadd.f32 0.0, %v1994
      %v1996 = vpop.f32.mrb[0].mxu0
      %v1997 = vpop.f32.mrb[0].mxu0
      %v1998 = vadd.f32 0.0, %v1997
      %v1999 = vpop.f32.mrb[0].mxu0
      %2000 = vmatprep.mubr.bf16.mxu0 0
      %2001 = vmatmul.mubr.bf16.gmra.mrb[0].mxu0 %v1882
      %v2002 = vpop.f32.mrb[0].mxu0
      %v2003 = vadd.f32 0.0, %v2002
      %v2004 = vpop.f32.mrb[0].mxu0
      %v2005 = vpop.f32.mrb[0].mxu0
      %v2006 = vadd.f32 0.0, %v2005
      %v2007 = vpop.f32.mrb[0].mxu0
      %2008 = vmatprep.mubr.bf16.mxu0 0
      %2009 = vmatmul.mubr.bf16.gmra.mrb[0].mxu0 %v1885
      %v2010 = vpop.f32.mrb[0].mxu0
      %v2011 = vadd.f32 0.0, %v2010
      %v2012 = vpop.f32.mrb[0].mxu0
      %v2013 = vpop.f32.mrb[0].mxu0
      %v2014 = vadd.f32 0.0, %v2013
      %v2015 = vpop.f32.mrb[0].mxu0
      %2016 = vmatprep.mubr.bf16.mxu0 0
      %2017 = vmatmul.mubr.bf16.gmra.mrb[0].mxu0 %v1888
      %v2018 = vpop.f32.mrb[0].mxu0
      %v2019 = vadd.f32 0.0, %v2018
      %v2020 = vpop.f32.mrb[0].mxu0
      %v2021 = vpop.f32.mrb[0].mxu0
      %v2022 = vadd.f32 0.0, %v2021
      %v2023 = vpop.f32.mrb[0].mxu0
      %2024 = vmatprep.mubr.bf16.mxu0 0
      %2025 = vmatmul.mubr.bf16.gmra.mrb[0].mxu0 %v1891
      %v2026 = vpop.f32.mrb[0].mxu0
      %v2027 = vadd.f32 0.0, %v2026
      %v2028 = vpop.f32.mrb[0].mxu0
      %v2029 = vpop.f32.mrb[0].mxu0
      %v2030 = vadd.f32 0.0, %v2029
      %v2031 = vpop.f32.mrb[0].mxu0
      %2032 = vmatprep.mubr.bf16.mxu0 0
      %2033 = vmatmul.mubr.bf16.gmra.mrb[0].mxu0 %v1894
      %v2034 = vpop.f32.mrb[0].mxu0
      %v2035 = vadd.f32 0.0, %v2034
      %v2036 = vpop.f32.mrb[0].mxu0
      %v2037 = vpop.f32.mrb[0].mxu0
      %v2038 = vadd.f32 0.0, %v2037
      %v2039 = vpop.f32.mrb[0].mxu0
      %2040 = vmatprep.mubr.bf16.mxu0 0
      %2041 = vmatmul.mubr.bf16.gmra.mrb[0].mxu0 %v1897
      %v2042 = vpop.f32.mrb[0].mxu0
      %v2043 = vadd.f32 0.0, %v2042
      %v2044 = vpop.f32.mrb[0].mxu0
      %v2045 = vpop.f32.mrb[0].mxu0
      %v2046 = vadd.f32 0.0, %v2045
      %v2047 = vpop.f32.mrb[0].mxu0
      %2048 = vmatprep.mubr.bf16.mxu0 0
      %2049 = vmatmul.mubr.bf16.gmra.mrb[0].mxu0 %v1900
      %v2050 = vpop.f32.mrb[0].mxu0
      %v2051 = vadd.f32 0.0, %v2050
      %v2052 = vpop.f32.mrb[0].mxu0
      %v2053 = vpop.f32.mrb[0].mxu0
      %v2054 = vadd.f32 0.0, %v2053
      %v2055 = vpop.f32.mrb[0].mxu0
      %2056 = vmatprep.mubr.bf16.mxu0 0
      %2057 = vmatmul.mubr.bf16.gmra.mrb[0].mxu0 %v1903
      %v2058 = vpop.f32.mrb[0].mxu0
      %v2059 = vadd.f32 0.0, %v2058
      %v2060 = vpop.f32.mrb[0].mxu0
      %v2061 = vpop.f32.mrb[0].mxu0
      %v2062 = vadd.f32 0.0, %v2061
      %v2063 = vpop.f32.mrb[0].mxu0
      %2064 = vmatprep.mubr.bf16.mxu0 0
      %2065 = vmatmul.mubr.bf16.gmra.mrb[0].mxu0 %v1906
      %v2066 = vpop.f32.mrb[0].mxu0
      %v2067 = vadd.f32 0.0, %v2066
      %v2068 = vpop.f32.mrb[0].mxu0
      %v2069 = vpop.f32.mrb[0].mxu0
      %v2070 = vadd.f32 0.0, %v2069
      %v2071 = vpop.f32.mrb[0].mxu0
      %2072 = vmatprep.mubr.bf16.mxu0 0
      %2073 = vmatmul.mubr.bf16.gmra.mrb[0].mxu0 %v1909
      %v2074 = vpop.f32.mrb[0].mxu0
      %v2075 = vadd.f32 0.0, %v2074
      %v2076 = vpop.f32.mrb[0].mxu0
      %v2077 = vpop.f32.mrb[0].mxu0
      %v2078 = vadd.f32 0.0, %v2077
      %v2079 = vpop.f32.mrb[0].mxu0
      %2080 = vmatprep.mubr.bf16.mxu0 0
      %2081 = vmatmul.mubr.bf16.gmra.mrb[0].mxu0 %v1912
      %v2082 = vpop.f32.mrb[0].mxu0
      %v2083 = vadd.f32 0.0, %v2082
      %v2084 = vpop.f32.mrb[0].mxu0
      %v2085 = vpop.f32.mrb[0].mxu0
      %v2086 = vadd.f32 0.0, %v2085
      %v2087 = vpop.f32.mrb[0].mxu0
      %2088 = vmatprep.mubr.bf16.mxu0 0
      %2089 = vmatmul.mubr.bf16.gmra.mrb[0].mxu0 %v1915
      %v2090 = vpop.f32.mrb[0].mxu0
      %v2091 = vadd.f32 0.0, %v2090
      %v2092 = vpop.f32.mrb[0].mxu0
      %v2093 = vpop.f32.mrb[0].mxu0
      %v2094 = vadd.f32 0.0, %v2093
      %v2095 = vpop.f32.mrb[0].mxu0
      %2096 = vdwg.mxu0
      %v2097 = vadd.f32 %v1650, %v1955
      %v2098 = vadd.f32 %v1651, %v1958
      %v2099 = vadd.f32 %v1652, %v1963
      %v2100 = vadd.f32 %v1653, %v1966
      %v2101 = vadd.f32 %v1654, %v1971
      %v2102 = vadd.f32 %v1655, %v1974
      %v2103 = vadd.f32 %v1656, %v1979
      %v2104 = vadd.f32 %v1657, %v1982
      %v2105 = vadd.f32 %v1658, %v1987
      %v2106 = vadd.f32 %v1659, %v1990
      %v2107 = vadd.f32 %v1660, %v1995
      %v2108 = vadd.f32 %v1661, %v1998
      %v2109 = vadd.f32 %v1662, %v2003
      %v2110 = vadd.f32 %v1663, %v2006
      %v2111 = vadd.f32 %v1664, %v2011
      %v2112 = vadd.f32 %v1665, %v2014
      %v2113 = vadd.f32 %v1666, %v2019
      %v2114 = vadd.f32 %v1667, %v2022
      %v2115 = vadd.f32 %v1668, %v2027
      %v2116 = vadd.f32 %v1669, %v2030
      %v2117 = vadd.f32 %v1670, %v2035
      %v2118 = vadd.f32 %v1671, %v2038
      %v2119 = vadd.f32 %v1672, %v2043
      %v2120 = vadd.f32 %v1673, %v2046
      %v2121 = vadd.f32 %v1674, %v2051
      %v2122 = vadd.f32 %v1675, %v2054
      %v2123 = vadd.f32 %v1676, %v2059
      %v2124 = vadd.f32 %v1677, %v2062
      %v2125 = vadd.f32 %v1678, %v2067
      %v2126 = vadd.f32 %v1679, %v2070
      %v2127 = vadd.f32 %v1680, %v2075
      %v2128 = vadd.f32 %v1681, %v2078
      %v2129 = vadd.f32 %v1682, %v2083
      %v2130 = vadd.f32 %v1683, %v2086
      %v2131 = vadd.f32 %v1684, %v2091
      %v2132 = vadd.f32 %v1685, %v2094
      %v2133 = vld [vmem:[%s192 + $0x8] sm:$0xc]
      %s2134 = scalar_lea.vmem %s1, 20
      %v2135 = vld [vmem:[%s2134] sm:$0xf]
      %v2137 = vunpack.c.l.b16 %v2133
      %v2138 = vpack.c.b16 %v1324, %v2137
      %vm2139 = vcmask 1045504
      %v2140 = vrot.slane %v2138, 2
      %v2141 = vrot.slane %v1361, 2
      %v2142 = vsel %vm2139, %v2140, %v2141
      %v2143 = vrot.slane %v1362, 2
      %v2144 = vsel %vm2139, %v2141, %v2143
      %v2145 = vrot.slane %v1363, 2
      %v2146 = vsel %vm2139, %v2143, %v2145
      %v2147 = vrot.slane %v1364, 2
      %v2148 = vsel %vm2139, %v2145, %v2147
      %v2149 = vrot.slane %v1365, 2
      %v2150 = vsel %vm2139, %v2147, %v2149
      %v2151 = vrot.slane %v1366, 2
      %v2152 = vsel %vm2139, %v2149, %v2151
      %v2153 = vrot.slane %v1367, 2
      %v2154 = vsel %vm2139, %v2151, %v2153
      %v2155 = vrot.slane %v1368, 2
      %v2156 = vsel %vm2139, %v2153, %v2155
      %v2157 = vrot.slane %v1369, 2
      %v2158 = vsel %vm2139, %v2155, %v2157
      %v2159 = vrot.slane %v1370, 2
      %v2160 = vsel %vm2139, %v2157, %v2159
      %v2161 = vrot.slane %v1371, 2
      %v2162 = vsel %vm2139, %v2159, %v2161
      %v2163 = vrot.slane %v1372, 2
      %v2164 = vsel %vm2139, %v2161, %v2163
      %v2165 = vrot.slane %v1373, 2
      %v2166 = vsel %vm2139, %v2163, %v2165
      %v2167 = vrot.slane %v1374, 2
      %v2168 = vsel %vm2139, %v2165, %v2167
      %v2169 = vrot.slane %v1375, 2
      %v2170 = vsel %vm2139, %v2167, %v2169
      %v2171 = vrot.slane %v1376, 2
      %v2172 = vsel %vm2139, %v2169, %v2171
      %v2173 = vrot.slane %v1377, 2
      %v2174 = vsel %vm2139, %v2171, %v2173
      %v2175 = vrot.slane %v1691, 2
      %v2176 = vsel %vm2139, %v2173, %v2175
      %v2178 = vsel %vm481, %v2142, 0
      %v2181 = vsel %vm481, %v2144, 0
      %v2184 = vsel %vm481, %v2146, 0
      %v2187 = vsel %vm481, %v2148, 0
      %v2190 = vsel %vm481, %v2150, 0
      %v2193 = vsel %vm481, %v2152, 0
      %v2196 = vsel %vm481, %v2154, 0
      %v2199 = vsel %vm481, %v2156, 0
      %v2202 = vsel %vm481, %v2158, 0
      %v2205 = vsel %vm481, %v2160, 0
      %v2208 = vsel %vm481, %v2162, 0
      %v2211 = vsel %vm481, %v2164, 0
      %v2214 = vsel %vm481, %v2166, 0
      %v2217 = vsel %vm481, %v2168, 0
      %v2220 = vsel %vm481, %v2170, 0
      %v2223 = vsel %vm481, %v2172, 0
      %v2226 = vsel %vm481, %v2174, 0
      %v2229 = vsel %vm481, %v2176, 0
      %v2232 = vsel %vm536, %v2135, 0
      %2234 = vmatprep.subr.bf16.mxu0 0
      %2235 = vmatpush1.bf16.msra.mxu0 %v2232
      %2236 = vmatprep.subr.bf16.mxu0 0
      %2237 = vmatpush1.bf16.msra.mxu0 0
      %2238 = vmatprep.subr.bf16.mxu0 0
      %2239 = vmatpush1.bf16.msra.mxu0 0
      %2240 = vmatprep.subr.bf16.mxu0 0
      %2241 = vmatpush1.bf16.msra.mxu0 0
      %2242 = vmatprep.subr.bf16.mxu0 0
      %2243 = vmatpush1.bf16.msra.mxu0 0
      %2244 = vmatprep.subr.bf16.mxu0 0
      %2245 = vmatpush1.bf16.msra.mxu0 0
      %2246 = vmatprep.subr.bf16.mxu0 0
      %2247 = vmatpush1.bf16.msra.mxu0 0
      %2248 = vmatprep.subr.bf16.mxu0 0
      %2249 = vmatpush1.bf16.msra.mxu0 0
      %2250 = vmatprep.subr.bf16.mxu0 0
      %2251 = vmatpush1.bf16.msra.mxu0 0
      %2252 = vmatprep.subr.bf16.mxu0 0
      %2253 = vmatpush1.bf16.msra.mxu0 0
      %2254 = vmatprep.subr.bf16.mxu0 0
      %2255 = vmatpush1.bf16.msra.mxu0 0
      %2256 = vmatprep.subr.bf16.mxu0 0
      %2257 = vmatpush1.bf16.msra.mxu0 0
      %2258 = vmatprep.subr.bf16.mxu0 0
      %2259 = vmatpush1.bf16.msra.mxu0 0
      %2260 = vmatprep.subr.bf16.mxu0 0
      %2261 = vmatpush1.bf16.msra.mxu0 0
      %2262 = vmatprep.subr.bf16.mxu0 0
      %2263 = vmatpush1.bf16.msra.mxu0 0
      %2264 = vmatprep.subr.bf16.mxu0 0
      %2265 = vmatpush1.bf16.msra.mxu0 0
      %2266 = vmatprep.mubr.bf16.mxu0 0
      %2267 = vmatmul.mubr.bf16.gmra.mrb[0].mxu0 %v2178
      %v2268 = vpop.f32.mrb[0].mxu0
      %v2269 = vadd.f32 0.0, %v2268
      %v2270 = vpop.f32.mrb[0].mxu0
      %v2271 = vpop.f32.mrb[0].mxu0
      %v2272 = vadd.f32 0.0, %v2271
      %v2273 = vpop.f32.mrb[0].mxu0
      %2274 = vmatprep.mubr.bf16.mxu0 0
      %2275 = vmatmul.mubr.bf16.gmra.mrb[0].mxu0 %v2181
      %v2276 = vpop.f32.mrb[0].mxu0
      %v2277 = vadd.f32 0.0, %v2276
      %v2278 = vpop.f32.mrb[0].mxu0
      %v2279 = vpop.f32.mrb[0].mxu0
      %v2280 = vadd.f32 0.0, %v2279
      %v2281 = vpop.f32.mrb[0].mxu0
      %2282 = vmatprep.mubr.bf16.mxu0 0
      %2283 = vmatmul.mubr.bf16.gmra.mrb[0].mxu0 %v2184
      %v2284 = vpop.f32.mrb[0].mxu0
      %v2285 = vadd.f32 0.0, %v2284
      %v2286 = vpop.f32.mrb[0].mxu0
      %v2287 = vpop.f32.mrb[0].mxu0
      %v2288 = vadd.f32 0.0, %v2287
      %v2289 = vpop.f32.mrb[0].mxu0
      %2290 = vmatprep.mubr.bf16.mxu0 0
      %2291 = vmatmul.mubr.bf16.gmra.mrb[0].mxu0 %v2187
      %v2292 = vpop.f32.mrb[0].mxu0
      %v2293 = vadd.f32 0.0, %v2292
      %v2294 = vpop.f32.mrb[0].mxu0
      %v2295 = vpop.f32.mrb[0].mxu0
      %v2296 = vadd.f32 0.0, %v2295
      %v2297 = vpop.f32.mrb[0].mxu0
      %2298 = vmatprep.mubr.bf16.mxu0 0
      %2299 = vmatmul.mubr.bf16.gmra.mrb[0].mxu0 %v2190
      %v2300 = vpop.f32.mrb[0].mxu0
      %v2301 = vadd.f32 0.0, %v2300
      %v2302 = vpop.f32.mrb[0].mxu0
      %v2303 = vpop.f32.mrb[0].mxu0
      %v2304 = vadd.f32 0.0, %v2303
      %v2305 = vpop.f32.mrb[0].mxu0
      %2306 = vmatprep.mubr.bf16.mxu0 0
      %2307 = vmatmul.mubr.bf16.gmra.mrb[0].mxu0 %v2193
      %v2308 = vpop.f32.mrb[0].mxu0
      %v2309 = vadd.f32 0.0, %v2308
      %v2310 = vpop.f32.mrb[0].mxu0
      %v2311 = vpop.f32.mrb[0].mxu0
      %v2312 = vadd.f32 0.0, %v2311
      %v2313 = vpop.f32.mrb[0].mxu0
      %2314 = vmatprep.mubr.bf16.mxu0 0
      %2315 = vmatmul.mubr.bf16.gmra.mrb[0].mxu0 %v2196
      %v2316 = vpop.f32.mrb[0].mxu0
      %v2317 = vadd.f32 0.0, %v2316
      %v2318 = vpop.f32.mrb[0].mxu0
      %v2319 = vpop.f32.mrb[0].mxu0
      %v2320 = vadd.f32 0.0, %v2319
      %v2321 = vpop.f32.mrb[0].mxu0
      %2322 = vmatprep.mubr.bf16.mxu0 0
      %2323 = vmatmul.mubr.bf16.gmra.mrb[0].mxu0 %v2199
      %v2324 = vpop.f32.mrb[0].mxu0
      %v2325 = vadd.f32 0.0, %v2324
      %v2326 = vpop.f32.mrb[0].mxu0
      %v2327 = vpop.f32.mrb[0].mxu0
      %v2328 = vadd.f32 0.0, %v2327
      %v2329 = vpop.f32.mrb[0].mxu0
      %2330 = vmatprep.mubr.bf16.mxu0 0
      %2331 = vmatmul.mubr.bf16.gmra.mrb[0].mxu0 %v2202
      %v2332 = vpop.f32.mrb[0].mxu0
      %v2333 = vadd.f32 0.0, %v2332
      %v2334 = vpop.f32.mrb[0].mxu0
      %v2335 = vpop.f32.mrb[0].mxu0
      %v2336 = vadd.f32 0.0, %v2335
      %v2337 = vpop.f32.mrb[0].mxu0
      %2338 = vmatprep.mubr.bf16.mxu0 0
      %2339 = vmatmul.mubr.bf16.gmra.mrb[0].mxu0 %v2205
      %v2340 = vpop.f32.mrb[0].mxu0
      %v2341 = vadd.f32 0.0, %v2340
      %v2342 = vpop.f32.mrb[0].mxu0
      %v2343 = vpop.f32.mrb[0].mxu0
      %v2344 = vadd.f32 0.0, %v2343
      %v2345 = vpop.f32.mrb[0].mxu0
      %2346 = vmatprep.mubr.bf16.mxu0 0
      %2347 = vmatmul.mubr.bf16.gmra.mrb[0].mxu0 %v2208
      %v2348 = vpop.f32.mrb[0].mxu0
      %v2349 = vadd.f32 0.0, %v2348
      %v2350 = vpop.f32.mrb[0].mxu0
      %v2351 = vpop.f32.mrb[0].mxu0
      %v2352 = vadd.f32 0.0, %v2351
      %v2353 = vpop.f32.mrb[0].mxu0
      %2354 = vmatprep.mubr.bf16.mxu0 0
      %2355 = vmatmul.mubr.bf16.gmra.mrb[0].mxu0 %v2211
      %v2356 = vpop.f32.mrb[0].mxu0
      %v2357 = vadd.f32 0.0, %v2356
      %v2358 = vpop.f32.mrb[0].mxu0
      %v2359 = vpop.f32.mrb[0].mxu0
      %v2360 = vadd.f32 0.0, %v2359
      %v2361 = vpop.f32.mrb[0].mxu0
      %2362 = vmatprep.mubr.bf16.mxu0 0
      %2363 = vmatmul.mubr.bf16.gmra.mrb[0].mxu0 %v2214
      %v2364 = vpop.f32.mrb[0].mxu0
      %v2365 = vadd.f32 0.0, %v2364
      %v2366 = vpop.f32.mrb[0].mxu0
      %v2367 = vpop.f32.mrb[0].mxu0
      %v2368 = vadd.f32 0.0, %v2367
      %v2369 = vpop.f32.mrb[0].mxu0
      %2370 = vmatprep.mubr.bf16.mxu0 0
      %2371 = vmatmul.mubr.bf16.gmra.mrb[0].mxu0 %v2217
      %v2372 = vpop.f32.mrb[0].mxu0
      %v2373 = vadd.f32 0.0, %v2372
      %v2374 = vpop.f32.mrb[0].mxu0
      %v2375 = vpop.f32.mrb[0].mxu0
      %v2376 = vadd.f32 0.0, %v2375
      %v2377 = vpop.f32.mrb[0].mxu0
      %2378 = vmatprep.mubr.bf16.mxu0 0
      %2379 = vmatmul.mubr.bf16.gmra.mrb[0].mxu0 %v2220
      %v2380 = vpop.f32.mrb[0].mxu0
      %v2381 = vadd.f32 0.0, %v2380
      %v2382 = vpop.f32.mrb[0].mxu0
      %v2383 = vpop.f32.mrb[0].mxu0
      %v2384 = vadd.f32 0.0, %v2383
      %v2385 = vpop.f32.mrb[0].mxu0
      %2386 = vmatprep.mubr.bf16.mxu0 0
      %2387 = vmatmul.mubr.bf16.gmra.mrb[0].mxu0 %v2223
      %v2388 = vpop.f32.mrb[0].mxu0
      %v2389 = vadd.f32 0.0, %v2388
      %v2390 = vpop.f32.mrb[0].mxu0
      %v2391 = vpop.f32.mrb[0].mxu0
      %v2392 = vadd.f32 0.0, %v2391
      %v2393 = vpop.f32.mrb[0].mxu0
      %2394 = vmatprep.mubr.bf16.mxu0 0
      %2395 = vmatmul.mubr.bf16.gmra.mrb[0].mxu0 %v2226
      %v2396 = vpop.f32.mrb[0].mxu0
      %v2397 = vadd.f32 0.0, %v2396
      %v2398 = vpop.f32.mrb[0].mxu0
      %v2399 = vpop.f32.mrb[0].mxu0
      %v2400 = vadd.f32 0.0, %v2399
      %v2401 = vpop.f32.mrb[0].mxu0
      %2402 = vmatprep.mubr.bf16.mxu0 0
      %2403 = vmatmul.mubr.bf16.gmra.mrb[0].mxu0 %v2229
      %v2404 = vpop.f32.mrb[0].mxu0
      %v2405 = vadd.f32 0.0, %v2404
      %v2406 = vpop.f32.mrb[0].mxu0
      %v2407 = vpop.f32.mrb[0].mxu0
      %v2408 = vadd.f32 0.0, %v2407
      %v2409 = vpop.f32.mrb[0].mxu0
      %2410 = vdwg.mxu0
      %v2411 = vadd.f32 %v2097, %v2269
      %v2412 = vadd.f32 %v2098, %v2272
      %v2413 = vadd.f32 %v2099, %v2277
      %v2414 = vadd.f32 %v2100, %v2280
      %v2415 = vadd.f32 %v2101, %v2285
      %v2416 = vadd.f32 %v2102, %v2288
      %v2417 = vadd.f32 %v2103, %v2293
      %v2418 = vadd.f32 %v2104, %v2296
      %v2419 = vadd.f32 %v2105, %v2301
      %v2420 = vadd.f32 %v2106, %v2304
      %v2421 = vadd.f32 %v2107, %v2309
      %v2422 = vadd.f32 %v2108, %v2312
      %v2423 = vadd.f32 %v2109, %v2317
      %v2424 = vadd.f32 %v2110, %v2320
      %v2425 = vadd.f32 %v2111, %v2325
      %v2426 = vadd.f32 %v2112, %v2328
      %v2427 = vadd.f32 %v2113, %v2333
      %v2428 = vadd.f32 %v2114, %v2336
      %v2429 = vadd.f32 %v2115, %v2341
      %v2430 = vadd.f32 %v2116, %v2344
      %v2431 = vadd.f32 %v2117, %v2349
      %v2432 = vadd.f32 %v2118, %v2352
      %v2433 = vadd.f32 %v2119, %v2357
      %v2434 = vadd.f32 %v2120, %v2360
      %v2435 = vadd.f32 %v2121, %v2365
      %v2436 = vadd.f32 %v2122, %v2368
      %v2437 = vadd.f32 %v2123, %v2373
      %v2438 = vadd.f32 %v2124, %v2376
      %v2439 = vadd.f32 %v2125, %v2381
      %v2440 = vadd.f32 %v2126, %v2384
      %v2441 = vadd.f32 %v2127, %v2389
      %v2442 = vadd.f32 %v2128, %v2392
      %v2443 = vadd.f32 %v2129, %v2397
      %v2444 = vadd.f32 %v2130, %v2400
      %v2445 = vadd.f32 %v2131, %v2405
      %v2446 = vadd.f32 %v2132, %v2408
      %v2447 = vld [vmem:[%s192 + $0x10] sm:$0xc]
      %v2448 = vld [vmem:[%s192 + $0x14] sm:$0xf]
      %v2449 = vld [vmem:[%s192 + $0x18] sm:$0xf]
      %v2450 = vld [vmem:[%s192 + $0x1c] sm:$0xf]
      %v2451 = vld [vmem:[%s192 + $0x20] sm:$0xf]
      %v2452 = vld [vmem:[%s192 + $0x24] sm:$0xf]
      %v2453 = vld [vmem:[%s192 + $0x28] sm:$0xf]
      %v2454 = vld [vmem:[%s192 + $0x2c] sm:$0xf]
      %v2455 = vld [vmem:[%s192 + $0x30] sm:$0xf]
      %v2456 = vld [vmem:[%s192 + $0x34] sm:$0xf]
      %v2457 = vld [vmem:[%s192 + $0x38] sm:$0xf]
      %v2458 = vld [vmem:[%s192 + $0x3c] sm:$0xf]
      %v2459 = vld [vmem:[%s192 + $0x40] sm:$0xf]
      %v2460 = vld [vmem:[%s192 + $0x44] sm:$0xf]
      %v2461 = vld [vmem:[%s192 + $0x48] sm:$0xf]
      %v2462 = vld [vmem:[%s192 + $0x4c] sm:$0xf]
      %v2463 = vld [vmem:[%s192 + $0x50] sm:$0xf]
      %v2464 = vld [vmem:[%s192 + $0x54] sm:$0xf]
      %v2465 = vld [vmem:[%s192 + $0x58] sm:$0xf]
      %v2466 = vld [vmem:[%s192 + $0x5c] sm:$0xf]
      %v2467 = vld [vmem:[%s192 + $0x60] sm:$0xf]
      %v2468 = vld [vmem:[%s192 + $0x64] sm:$0xf]
      %v2469 = vld [vmem:[%s192 + $0x68] sm:$0xf]
      %v2470 = vld [vmem:[%s192 + $0x6c] sm:$0xf]
      %v2471 = vld [vmem:[%s192 + $0x70] sm:$0xf]
      %v2472 = vld [vmem:[%s192 + $0x74] sm:$0xf]
      %v2473 = vld [vmem:[%s192 + $0x78] sm:$0xf]
      %v2474 = vld [vmem:[%s192 + $0x7c] sm:$0xf]
      %v2475 = vld [vmem:[%s192 + $0x80] sm:$0xf]
      %v2476 = vld [vmem:[%s192 + $0x84] sm:$0xf]
      %v2477 = vld [vmem:[%s192 + $0x88] sm:$0xf]
      %v2478 = vld [vmem:[%s192 + $0x8c] sm:$0xf]
      %v2479 = vld [vmem:[%s192 + $0x90] sm:$0xf]
      %v2480 = vld [vmem:[%s192 + $0x94] sm:$0xf]
      %v2481 = vld [vmem:[%s192 + $0x98] sm:$0xf]
      %v2482 = vld [vmem:[%s192 + $0x9c] sm:$0xf]
      %v2483 = vld [vmem:[%s192 + $0xa0] sm:$0x3]
      %s2484 = scalar_lea.vmem %s1, 24
      %v2485 = vld [vmem:[%s2484] sm:$0xf]
      %v2523 = vunpack.c.l.b16 %v2447
      %v2524 = vunpack.c.l.b16 %v2448
      %v2525 = vunpack.c.l.b16 %v2449
      %v2526 = vunpack.c.l.b16 %v2450
      %v2527 = vunpack.c.l.b16 %v2451
      %v2528 = vunpack.c.l.b16 %v2452
      %v2529 = vunpack.c.l.b16 %v2453
      %v2530 = vunpack.c.l.b16 %v2454
      %v2531 = vunpack.c.l.b16 %v2455
      %v2532 = vunpack.c.l.b16 %v2456
      %v2533 = vunpack.c.l.b16 %v2457
      %v2534 = vunpack.c.l.b16 %v2458
      %v2535 = vunpack.c.l.b16 %v2459
      %v2536 = vunpack.c.l.b16 %v2460
      %v2537 = vunpack.c.l.b16 %v2461
      %v2538 = vunpack.c.l.b16 %v2462
      %v2539 = vunpack.c.l.b16 %v2463
      %v2540 = vunpack.c.l.b16 %v2464
      %v2541 = vunpack.c.l.b16 %v2465
      %v2542 = vunpack.c.l.b16 %v2466
      %v2543 = vunpack.c.l.b16 %v2467
      %v2544 = vunpack.c.l.b16 %v2468
      %v2545 = vunpack.c.l.b16 %v2469
      %v2546 = vunpack.c.l.b16 %v2470
      %v2547 = vunpack.c.l.b16 %v2471
      %v2548 = vunpack.c.l.b16 %v2472
      %v2549 = vunpack.c.l.b16 %v2473
      %v2550 = vunpack.c.l.b16 %v2474
      %v2551 = vunpack.c.l.b16 %v2475
      %v2552 = vunpack.c.l.b16 %v2476
      %v2553 = vunpack.c.l.b16 %v2477
      %v2554 = vunpack.c.l.b16 %v2478
      %v2555 = vunpack.c.l.b16 %v2479
      %v2556 = vunpack.c.l.b16 %v2480
      %v2557 = vunpack.c.l.b16 %v2481
      %v2558 = vunpack.c.l.b16 %v2482
      %v2559 = vunpack.c.l.b16 %v2483
      %v2560 = vpack.c.b16 %v2524, %v2523
      %v2561 = vpack.c.b16 %v2526, %v2525
      %v2562 = vpack.c.b16 %v2528, %v2527
      %v2563 = vpack.c.b16 %v2530, %v2529
      %v2564 = vpack.c.b16 %v2532, %v2531
      %v2565 = vpack.c.b16 %v2534, %v2533
      %v2566 = vpack.c.b16 %v2536, %v2535
      %v2567 = vpack.c.b16 %v2538, %v2537
      %v2568 = vpack.c.b16 %v2540, %v2539
      %v2569 = vpack.c.b16 %v2542, %v2541
      %v2570 = vpack.c.b16 %v2544, %v2543
      %v2571 = vpack.c.b16 %v2546, %v2545
      %v2572 = vpack.c.b16 %v2548, %v2547
      %v2573 = vpack.c.b16 %v2550, %v2549
      %v2574 = vpack.c.b16 %v2552, %v2551
      %v2575 = vpack.c.b16 %v2554, %v2553
      %v2576 = vpack.c.b16 %v2556, %v2555
      %v2577 = vpack.c.b16 %v2558, %v2557
      %v2578 = vpack.c.b16 %v2559, %v2559
      %v2579 = vrot.slane %v2560, 2
      %v2580 = vrot.slane %v2561, 2
      %v2581 = vsel %vm2139, %v2579, %v2580
      %v2582 = vrot.slane %v2562, 2
      %v2583 = vsel %vm2139, %v2580, %v2582
      %v2584 = vrot.slane %v2563, 2
      %v2585 = vsel %vm2139, %v2582, %v2584
      %v2586 = vrot.slane %v2564, 2
      %v2587 = vsel %vm2139, %v2584, %v2586
      %v2588 = vrot.slane %v2565, 2
      %v2589 = vsel %vm2139, %v2586, %v2588
      %v2590 = vrot.slane %v2566, 2
      %v2591 = vsel %vm2139, %v2588, %v2590
      %v2592 = vrot.slane %v2567, 2
      %v2593 = vsel %vm2139, %v2590, %v2592
      %v2594 = vrot.slane %v2568, 2
      %v2595 = vsel %vm2139, %v2592, %v2594
      %v2596 = vrot.slane %v2569, 2
      %v2597 = vsel %vm2139, %v2594, %v2596
      %v2598 = vrot.slane %v2570, 2
      %v2599 = vsel %vm2139, %v2596, %v2598
      %v2600 = vrot.slane %v2571, 2
      %v2601 = vsel %vm2139, %v2598, %v2600
      %v2602 = vrot.slane %v2572, 2
      %v2603 = vsel %vm2139, %v2600, %v2602
      %v2604 = vrot.slane %v2573, 2
      %v2605 = vsel %vm2139, %v2602, %v2604
      %v2606 = vrot.slane %v2574, 2
      %v2607 = vsel %vm2139, %v2604, %v2606
      %v2608 = vrot.slane %v2575, 2
      %v2609 = vsel %vm2139, %v2606, %v2608
      %v2610 = vrot.slane %v2576, 2
      %v2611 = vsel %vm2139, %v2608, %v2610
      %v2612 = vrot.slane %v2577, 2
      %v2613 = vsel %vm2139, %v2610, %v2612
      %v2614 = vrot.slane %v2578, 2
      %v2615 = vsel %vm2139, %v2612, %v2614
      %v2617 = vsel %vm481, %v2581, 0
      %v2620 = vsel %vm481, %v2583, 0
      %v2623 = vsel %vm481, %v2585, 0
      %v2626 = vsel %vm481, %v2587, 0
      %v2629 = vsel %vm481, %v2589, 0
      %v2632 = vsel %vm481, %v2591, 0
      %v2635 = vsel %vm481, %v2593, 0
      %v2638 = vsel %vm481, %v2595, 0
      %v2641 = vsel %vm481, %v2597, 0
      %v2644 = vsel %vm481, %v2599, 0
      %v2647 = vsel %vm481, %v2601, 0
      %v2650 = vsel %vm481, %v2603, 0
      %v2653 = vsel %vm481, %v2605, 0
      %v2656 = vsel %vm481, %v2607, 0
      %v2659 = vsel %vm481, %v2609, 0
      %v2662 = vsel %vm481, %v2611, 0
      %v2665 = vsel %vm481, %v2613, 0
      %v2668 = vsel %vm481, %v2615, 0
      %v2671 = vsel %vm536, %v2485, 0
      %2673 = vmatprep.subr.bf16.mxu0 0
      %2674 = vmatpush1.bf16.msra.mxu0 %v2671
      %2675 = vmatprep.subr.bf16.mxu0 0
      %2676 = vmatpush1.bf16.msra.mxu0 0
      %2677 = vmatprep.subr.bf16.mxu0 0
      %2678 = vmatpush1.bf16.msra.mxu0 0
      %2679 = vmatprep.subr.bf16.mxu0 0
      %2680 = vmatpush1.bf16.msra.mxu0 0
      %2681 = vmatprep.subr.bf16.mxu0 0
      %2682 = vmatpush1.bf16.msra.mxu0 0
      %2683 = vmatprep.subr.bf16.mxu0 0
      %2684 = vmatpush1.bf16.msra.mxu0 0
      %2685 = vmatprep.subr.bf16.mxu0 0
      %2686 = vmatpush1.bf16.msra.mxu0 0
      %2687 = vmatprep.subr.bf16.mxu0 0
      %2688 = vmatpush1.bf16.msra.mxu0 0
      %2689 = vmatprep.subr.bf16.mxu0 0
      %2690 = vmatpush1.bf16.msra.mxu0 0
      %2691 = vmatprep.subr.bf16.mxu0 0
      %2692 = vmatpush1.bf16.msra.mxu0 0
      %2693 = vmatprep.subr.bf16.mxu0 0
      %2694 = vmatpush1.bf16.msra.mxu0 0
      %2695 = vmatprep.subr.bf16.mxu0 0
      %2696 = vmatpush1.bf16.msra.mxu0 0
      %2697 = vmatprep.subr.bf16.mxu0 0
      %2698 = vmatpush1.bf16.msra.mxu0 0
      %2699 = vmatprep.subr.bf16.mxu0 0
      %2700 = vmatpush1.bf16.msra.mxu0 0
      %2701 = vmatprep.subr.bf16.mxu0 0
      %2702 = vmatpush1.bf16.msra.mxu0 0
      %2703 = vmatprep.subr.bf16.mxu0 0
      %2704 = vmatpush1.bf16.msra.mxu0 0
      %2705 = vmatprep.mubr.bf16.mxu0 0
      %2706 = vmatmul.mubr.bf16.gmra.mrb[0].mxu0 %v2617
      %v2707 = vpop.f32.mrb[0].mxu0
      %v2708 = vadd.f32 0.0, %v2707
      %v2709 = vpop.f32.mrb[0].mxu0
      %v2710 = vpop.f32.mrb[0].mxu0
      %v2711 = vadd.f32 0.0, %v2710
      %v2712 = vpop.f32.mrb[0].mxu0
      %2713 = vmatprep.mubr.bf16.mxu0 0
      %2714 = vmatmul.mubr.bf16.gmra.mrb[0].mxu0 %v2620
      %v2715 = vpop.f32.mrb[0].mxu0
      %v2716 = vadd.f32 0.0, %v2715
      %v2717 = vpop.f32.mrb[0].mxu0
      %v2718 = vpop.f32.mrb[0].mxu0
      %v2719 = vadd.f32 0.0, %v2718
      %v2720 = vpop.f32.mrb[0].mxu0
      %2721 = vmatprep.mubr.bf16.mxu0 0
      %2722 = vmatmul.mubr.bf16.gmra.mrb[0].mxu0 %v2623
      %v2723 = vpop.f32.mrb[0].mxu0
      %v2724 = vadd.f32 0.0, %v2723
      %v2725 = vpop.f32.mrb[0].mxu0
      %v2726 = vpop.f32.mrb[0].mxu0
      %v2727 = vadd.f32 0.0, %v2726
      %v2728 = vpop.f32.mrb[0].mxu0
      %2729 = vmatprep.mubr.bf16.mxu0 0
      %2730 = vmatmul.mubr.bf16.gmra.mrb[0].mxu0 %v2626
      %v2731 = vpop.f32.mrb[0].mxu0
      %v2732 = vadd.f32 0.0, %v2731
      %v2733 = vpop.f32.mrb[0].mxu0
      %v2734 = vpop.f32.mrb[0].mxu0
      %v2735 = vadd.f32 0.0, %v2734
      %v2736 = vpop.f32.mrb[0].mxu0
      %2737 = vmatprep.mubr.bf16.mxu0 0
      %2738 = vmatmul.mubr.bf16.gmra.mrb[0].mxu0 %v2629
      %v2739 = vpop.f32.mrb[0].mxu0
      %v2740 = vadd.f32 0.0, %v2739
      %v2741 = vpop.f32.mrb[0].mxu0
      %v2742 = vpop.f32.mrb[0].mxu0
      %v2743 = vadd.f32 0.0, %v2742
      %v2744 = vpop.f32.mrb[0].mxu0
      %2745 = vmatprep.mubr.bf16.mxu0 0
      %2746 = vmatmul.mubr.bf16.gmra.mrb[0].mxu0 %v2632
      %v2747 = vpop.f32.mrb[0].mxu0
      %v2748 = vadd.f32 0.0, %v2747
      %v2749 = vpop.f32.mrb[0].mxu0
      %v2750 = vpop.f32.mrb[0].mxu0
      %v2751 = vadd.f32 0.0, %v2750
      %v2752 = vpop.f32.mrb[0].mxu0
      %2753 = vmatprep.mubr.bf16.mxu0 0
      %2754 = vmatmul.mubr.bf16.gmra.mrb[0].mxu0 %v2635
      %v2755 = vpop.f32.mrb[0].mxu0
      %v2756 = vadd.f32 0.0, %v2755
      %v2757 = vpop.f32.mrb[0].mxu0
      %v2758 = vpop.f32.mrb[0].mxu0
      %v2759 = vadd.f32 0.0, %v2758
      %v2760 = vpop.f32.mrb[0].mxu0
      %2761 = vmatprep.mubr.bf16.mxu0 0
      %2762 = vmatmul.mubr.bf16.gmra.mrb[0].mxu0 %v2638
      %v2763 = vpop.f32.mrb[0].mxu0
      %v2764 = vadd.f32 0.0, %v2763
      %v2765 = vpop.f32.mrb[0].mxu0
      %v2766 = vpop.f32.mrb[0].mxu0
      %v2767 = vadd.f32 0.0, %v2766
      %v2768 = vpop.f32.mrb[0].mxu0
      %2769 = vmatprep.mubr.bf16.mxu0 0
      %2770 = vmatmul.mubr.bf16.gmra.mrb[0].mxu0 %v2641
      %v2771 = vpop.f32.mrb[0].mxu0
      %v2772 = vadd.f32 0.0, %v2771
      %v2773 = vpop.f32.mrb[0].mxu0
      %v2774 = vpop.f32.mrb[0].mxu0
      %v2775 = vadd.f32 0.0, %v2774
      %v2776 = vpop.f32.mrb[0].mxu0
      %2777 = vmatprep.mubr.bf16.mxu0 0
      %2778 = vmatmul.mubr.bf16.gmra.mrb[0].mxu0 %v2644
      %v2779 = vpop.f32.mrb[0].mxu0
      %v2780 = vadd.f32 0.0, %v2779
      %v2781 = vpop.f32.mrb[0].mxu0
      %v2782 = vpop.f32.mrb[0].mxu0
      %v2783 = vadd.f32 0.0, %v2782
      %v2784 = vpop.f32.mrb[0].mxu0
      %2785 = vmatprep.mubr.bf16.mxu0 0
      %2786 = vmatmul.mubr.bf16.gmra.mrb[0].mxu0 %v2647
      %v2787 = vpop.f32.mrb[0].mxu0
      %v2788 = vadd.f32 0.0, %v2787
      %v2789 = vpop.f32.mrb[0].mxu0
      %v2790 = vpop.f32.mrb[0].mxu0
      %v2791 = vadd.f32 0.0, %v2790
      %v2792 = vpop.f32.mrb[0].mxu0
      %2793 = vmatprep.mubr.bf16.mxu0 0
      %2794 = vmatmul.mubr.bf16.gmra.mrb[0].mxu0 %v2650
      %v2795 = vpop.f32.mrb[0].mxu0
      %v2796 = vadd.f32 0.0, %v2795
      %v2797 = vpop.f32.mrb[0].mxu0
      %v2798 = vpop.f32.mrb[0].mxu0
      %v2799 = vadd.f32 0.0, %v2798
      %v2800 = vpop.f32.mrb[0].mxu0
      %2801 = vmatprep.mubr.bf16.mxu0 0
      %2802 = vmatmul.mubr.bf16.gmra.mrb[0].mxu0 %v2653
      %v2803 = vpop.f32.mrb[0].mxu0
      %v2804 = vadd.f32 0.0, %v2803
      %v2805 = vpop.f32.mrb[0].mxu0
      %v2806 = vpop.f32.mrb[0].mxu0
      %v2807 = vadd.f32 0.0, %v2806
      %v2808 = vpop.f32.mrb[0].mxu0
      %2809 = vmatprep.mubr.bf16.mxu0 0
      %2810 = vmatmul.mubr.bf16.gmra.mrb[0].mxu0 %v2656
      %v2811 = vpop.f32.mrb[0].mxu0
      %v2812 = vadd.f32 0.0, %v2811
      %v2813 = vpop.f32.mrb[0].mxu0
      %v2814 = vpop.f32.mrb[0].mxu0
      %v2815 = vadd.f32 0.0, %v2814
      %v2816 = vpop.f32.mrb[0].mxu0
      %2817 = vmatprep.mubr.bf16.mxu0 0
      %2818 = vmatmul.mubr.bf16.gmra.mrb[0].mxu0 %v2659
      %v2819 = vpop.f32.mrb[0].mxu0
      %v2820 = vadd.f32 0.0, %v2819
      %v2821 = vpop.f32.mrb[0].mxu0
      %v2822 = vpop.f32.mrb[0].mxu0
      %v2823 = vadd.f32 0.0, %v2822
      %v2824 = vpop.f32.mrb[0].mxu0
      %2825 = vmatprep.mubr.bf16.mxu0 0
      %2826 = vmatmul.mubr.bf16.gmra.mrb[0].mxu0 %v2662
      %v2827 = vpop.f32.mrb[0].mxu0
      %v2828 = vadd.f32 0.0, %v2827
      %v2829 = vpop.f32.mrb[0].mxu0
      %v2830 = vpop.f32.mrb[0].mxu0
      %v2831 = vadd.f32 0.0, %v2830
      %v2832 = vpop.f32.mrb[0].mxu0
      %2833 = vmatprep.mubr.bf16.mxu0 0
      %2834 = vmatmul.mubr.bf16.gmra.mrb[0].mxu0 %v2665
      %v2835 = vpop.f32.mrb[0].mxu0
      %v2836 = vadd.f32 0.0, %v2835
      %v2837 = vpop.f32.mrb[0].mxu0
      %v2838 = vpop.f32.mrb[0].mxu0
      %v2839 = vadd.f32 0.0, %v2838
      %v2840 = vpop.f32.mrb[0].mxu0
      %2841 = vmatprep.mubr.bf16.mxu0 0
      %2842 = vmatmul.mubr.bf16.gmra.mrb[0].mxu0 %v2668
      %v2843 = vpop.f32.mrb[0].mxu0
      %v2844 = vadd.f32 0.0, %v2843
      %v2845 = vpop.f32.mrb[0].mxu0
      %v2846 = vpop.f32.mrb[0].mxu0
      %v2847 = vadd.f32 0.0, %v2846
      %v2848 = vpop.f32.mrb[0].mxu0
      %2849 = vdwg.mxu0
      %v2850 = vadd.f32 %v2411, %v2708
      %v2851 = vadd.f32 %v2412, %v2711
      %v2852 = vadd.f32 %v2413, %v2716
      %v2853 = vadd.f32 %v2414, %v2719
      %v2854 = vadd.f32 %v2415, %v2724
      %v2855 = vadd.f32 %v2416, %v2727
      %v2856 = vadd.f32 %v2417, %v2732
      %v2857 = vadd.f32 %v2418, %v2735
      %v2858 = vadd.f32 %v2419, %v2740
      %v2859 = vadd.f32 %v2420, %v2743
      %v2860 = vadd.f32 %v2421, %v2748
      %v2861 = vadd.f32 %v2422, %v2751
      %v2862 = vadd.f32 %v2423, %v2756
      %v2863 = vadd.f32 %v2424, %v2759
      %v2864 = vadd.f32 %v2425, %v2764
      %v2865 = vadd.f32 %v2426, %v2767
      %v2866 = vadd.f32 %v2427, %v2772
      %v2867 = vadd.f32 %v2428, %v2775
      %v2868 = vadd.f32 %v2429, %v2780
      %v2869 = vadd.f32 %v2430, %v2783
      %v2870 = vadd.f32 %v2431, %v2788
      %v2871 = vadd.f32 %v2432, %v2791
      %v2872 = vadd.f32 %v2433, %v2796
      %v2873 = vadd.f32 %v2434, %v2799
      %v2874 = vadd.f32 %v2435, %v2804
      %v2875 = vadd.f32 %v2436, %v2807
      %v2876 = vadd.f32 %v2437, %v2812
      %v2877 = vadd.f32 %v2438, %v2815
      %v2878 = vadd.f32 %v2439, %v2820
      %v2879 = vadd.f32 %v2440, %v2823
      %v2880 = vadd.f32 %v2441, %v2828
      %v2881 = vadd.f32 %v2442, %v2831
      %v2882 = vadd.f32 %v2443, %v2836
      %v2883 = vadd.f32 %v2444, %v2839
      %v2884 = vadd.f32 %v2445, %v2844
      %v2885 = vadd.f32 %v2446, %v2847
      %v2886 = vld [vmem:[%s192 + $0xa0] sm:$0x7]
      %s2887 = scalar_lea.vmem %s1, 28
      %v2888 = vld [vmem:[%s2887] sm:$0xf]
      %v2890 = vunpack.c.l.b16 %v2886
      %v2891 = vpack.c.b16 %v2890, %v2890
      %vm2892 = vsmask.f32 5376
      %v2894 = vshrl.u32 %v2560, 16
      %v2896 = vrot.slane %v2894, 2
      %v2897 = vshll.u32 %v2560, 16
      %v2899 = vrot.slane %v2897, 3
      %v2900 = vor.u32 %v2896, %v2899
      %v2902 = vshrl.u32 %v2561, 16
      %v2904 = vrot.slane %v2902, 2
      %v2905 = vshll.u32 %v2561, 16
      %v2907 = vrot.slane %v2905, 3
      %v2908 = vor.u32 %v2904, %v2907
      %v2909 = vsel %vm2892, %v2900, %v2908
      %v2911 = vshrl.u32 %v2562, 16
      %v2913 = vrot.slane %v2911, 2
      %v2914 = vshll.u32 %v2562, 16
      %v2916 = vrot.slane %v2914, 3
      %v2917 = vor.u32 %v2913, %v2916
      %v2918 = vsel %vm2892, %v2908, %v2917
      %v2920 = vshrl.u32 %v2563, 16
      %v2922 = vrot.slane %v2920, 2
      %v2923 = vshll.u32 %v2563, 16
      %v2925 = vrot.slane %v2923, 3
      %v2926 = vor.u32 %v2922, %v2925
      %v2927 = vsel %vm2892, %v2917, %v2926
      %v2929 = vshrl.u32 %v2564, 16
      %v2931 = vrot.slane %v2929, 2
      %v2932 = vshll.u32 %v2564, 16
      %v2934 = vrot.slane %v2932, 3
      %v2935 = vor.u32 %v2931, %v2934
      %v2936 = vsel %vm2892, %v2926, %v2935
      %v2938 = vshrl.u32 %v2565, 16
      %v2940 = vrot.slane %v2938, 2
      %v2941 = vshll.u32 %v2565, 16
      %v2943 = vrot.slane %v2941, 3
      %v2944 = vor.u32 %v2940, %v2943
      %v2945 = vsel %vm2892, %v2935, %v2944
      %v2947 = vshrl.u32 %v2566, 16
      %v2949 = vrot.slane %v2947, 2
      %v2950 = vshll.u32 %v2566, 16
      %v2952 = vrot.slane %v2950, 3
      %v2953 = vor.u32 %v2949, %v2952
      %v2954 = vsel %vm2892, %v2944, %v2953
      %v2956 = vshrl.u32 %v2567, 16
      %v2958 = vrot.slane %v2956, 2
      %v2959 = vshll.u32 %v2567, 16
      %v2961 = vrot.slane %v2959, 3
      %v2962 = vor.u32 %v2958, %v2961
      %v2963 = vsel %vm2892, %v2953, %v2962
      %v2965 = vshrl.u32 %v2568, 16
      %v2967 = vrot.slane %v2965, 2
      %v2968 = vshll.u32 %v2568, 16
      %v2970 = vrot.slane %v2968, 3
      %v2971 = vor.u32 %v2967, %v2970
      %v2972 = vsel %vm2892, %v2962, %v2971
      %v2974 = vshrl.u32 %v2569, 16
      %v2976 = vrot.slane %v2974, 2
      %v2977 = vshll.u32 %v2569, 16
      %v2979 = vrot.slane %v2977, 3
      %v2980 = vor.u32 %v2976, %v2979
      %v2981 = vsel %vm2892, %v2971, %v2980
      %v2983 = vshrl.u32 %v2570, 16
      %v2985 = vrot.slane %v2983, 2
      %v2986 = vshll.u32 %v2570, 16
      %v2988 = vrot.slane %v2986, 3
      %v2989 = vor.u32 %v2985, %v2988
      %v2990 = vsel %vm2892, %v2980, %v2989
      %v2992 = vshrl.u32 %v2571, 16
      %v2994 = vrot.slane %v2992, 2
      %v2995 = vshll.u32 %v2571, 16
      %v2997 = vrot.slane %v2995, 3
      %v2998 = vor.u32 %v2994, %v2997
      %v2999 = vsel %vm2892, %v2989, %v2998
      %v3001 = vshrl.u32 %v2572, 16
      %v3003 = vrot.slane %v3001, 2
      %v3004 = vshll.u32 %v2572, 16
      %v3006 = vrot.slane %v3004, 3
      %v3007 = vor.u32 %v3003, %v3006
      %v3008 = vsel %vm2892, %v2998, %v3007
      %v3010 = vshrl.u32 %v2573, 16
      %v3012 = vrot.slane %v3010, 2
      %v3013 = vshll.u32 %v2573, 16
      %v3015 = vrot.slane %v3013, 3
      %v3016 = vor.u32 %v3012, %v3015
      %v3017 = vsel %vm2892, %v3007, %v3016
      %v3019 = vshrl.u32 %v2574, 16
      %v3021 = vrot.slane %v3019, 2
      %v3022 = vshll.u32 %v2574, 16
      %v3024 = vrot.slane %v3022, 3
      %v3025 = vor.u32 %v3021, %v3024
      %v3026 = vsel %vm2892, %v3016, %v3025
      %v3028 = vshrl.u32 %v2575, 16
      %v3030 = vrot.slane %v3028, 2
      %v3031 = vshll.u32 %v2575, 16
      %v3033 = vrot.slane %v3031, 3
      %v3034 = vor.u32 %v3030, %v3033
      %v3035 = vsel %vm2892, %v3025, %v3034
      %v3037 = vshrl.u32 %v2576, 16
      %v3039 = vrot.slane %v3037, 2
      %v3040 = vshll.u32 %v2576, 16
      %v3042 = vrot.slane %v3040, 3
      %v3043 = vor.u32 %v3039, %v3042
      %v3044 = vsel %vm2892, %v3034, %v3043
      %v3046 = vshrl.u32 %v2577, 16
      %v3048 = vrot.slane %v3046, 2
      %v3049 = vshll.u32 %v2577, 16
      %v3051 = vrot.slane %v3049, 3
      %v3052 = vor.u32 %v3048, %v3051
      %v3053 = vsel %vm2892, %v3043, %v3052
      %v3055 = vshrl.u32 %v2891, 16
      %v3057 = vrot.slane %v3055, 2
      %v3058 = vshll.u32 %v2891, 16
      %v3060 = vrot.slane %v3058, 3
      %v3061 = vor.u32 %v3057, %v3060
      %v3062 = vsel %vm2892, %v3052, %v3061
      %v3064 = vsel %vm481, %v2909, 0
      %v3067 = vsel %vm481, %v2918, 0
      %v3070 = vsel %vm481, %v2927, 0
      %v3073 = vsel %vm481, %v2936, 0
      %v3076 = vsel %vm481, %v2945, 0
      %v3079 = vsel %vm481, %v2954, 0
      %v3082 = vsel %vm481, %v2963, 0
      %v3085 = vsel %vm481, %v2972, 0
      %v3088 = vsel %vm481, %v2981, 0
      %v3091 = vsel %vm481, %v2990, 0
      %v3094 = vsel %vm481, %v2999, 0
      %v3097 = vsel %vm481, %v3008, 0
      %v3100 = vsel %vm481, %v3017, 0
      %v3103 = vsel %vm481, %v3026, 0
      %v3106 = vsel %vm481, %v3035, 0
      %v3109 = vsel %vm481, %v3044, 0
      %v3112 = vsel %vm481, %v3053, 0
      %v3115 = vsel %vm481, %v3062, 0
      %v3118 = vsel %vm536, %v2888, 0
      %3120 = vmatprep.subr.bf16.mxu0 0
      %3121 = vmatpush1.bf16.msra.mxu0 %v3118
      %3122 = vmatprep.subr.bf16.mxu0 0
      %3123 = vmatpush1.bf16.msra.mxu0 0
      %3124 = vmatprep.subr.bf16.mxu0 0
      %3125 = vmatpush1.bf16.msra.mxu0 0
      %3126 = vmatprep.subr.bf16.mxu0 0
      %3127 = vmatpush1.bf16.msra.mxu0 0
      %3128 = vmatprep.subr.bf16.mxu0 0
      %3129 = vmatpush1.bf16.msra.mxu0 0
      %3130 = vmatprep.subr.bf16.mxu0 0
      %3131 = vmatpush1.bf16.msra.mxu0 0
      %3132 = vmatprep.subr.bf16.mxu0 0
      %3133 = vmatpush1.bf16.msra.mxu0 0
      %3134 = vmatprep.subr.bf16.mxu0 0
      %3135 = vmatpush1.bf16.msra.mxu0 0
      %3136 = vmatprep.subr.bf16.mxu0 0
      %3137 = vmatpush1.bf16.msra.mxu0 0
      %3138 = vmatprep.subr.bf16.mxu0 0
      %3139 = vmatpush1.bf16.msra.mxu0 0
      %3140 = vmatprep.subr.bf16.mxu0 0
      %3141 = vmatpush1.bf16.msra.mxu0 0
      %3142 = vmatprep.subr.bf16.mxu0 0
      %3143 = vmatpush1.bf16.msra.mxu0 0
      %3144 = vmatprep.subr.bf16.mxu0 0
      %3145 = vmatpush1.bf16.msra.mxu0 0
      %3146 = vmatprep.subr.bf16.mxu0 0
      %3147 = vmatpush1.bf16.msra.mxu0 0
      %3148 = vmatprep.subr.bf16.mxu0 0
      %3149 = vmatpush1.bf16.msra.mxu0 0
      %3150 = vmatprep.subr.bf16.mxu0 0
      %3151 = vmatpush1.bf16.msra.mxu0 0
      %3152 = vmatprep.mubr.bf16.mxu0 0
      %3153 = vmatmul.mubr.bf16.gmra.mrb[0].mxu0 %v3064
      %v3154 = vpop.f32.mrb[0].mxu0
      %v3155 = vadd.f32 0.0, %v3154
      %v3156 = vpop.f32.mrb[0].mxu0
      %v3157 = vpop.f32.mrb[0].mxu0
      %v3158 = vadd.f32 0.0, %v3157
      %v3159 = vpop.f32.mrb[0].mxu0
      %3160 = vmatprep.mubr.bf16.mxu0 0
      %3161 = vmatmul.mubr.bf16.gmra.mrb[0].mxu0 %v3067
      %v3162 = vpop.f32.mrb[0].mxu0
      %v3163 = vadd.f32 0.0, %v3162
      %v3164 = vpop.f32.mrb[0].mxu0
      %v3165 = vpop.f32.mrb[0].mxu0
      %v3166 = vadd.f32 0.0, %v3165
      %v3167 = vpop.f32.mrb[0].mxu0
      %3168 = vmatprep.mubr.bf16.mxu0 0
      %3169 = vmatmul.mubr.bf16.gmra.mrb[0].mxu0 %v3070
      %v3170 = vpop.f32.mrb[0].mxu0
      %v3171 = vadd.f32 0.0, %v3170
      %v3172 = vpop.f32.mrb[0].mxu0
      %v3173 = vpop.f32.mrb[0].mxu0
      %v3174 = vadd.f32 0.0, %v3173
      %v3175 = vpop.f32.mrb[0].mxu0
      %3176 = vmatprep.mubr.bf16.mxu0 0
      %3177 = vmatmul.mubr.bf16.gmra.mrb[0].mxu0 %v3073
      %v3178 = vpop.f32.mrb[0].mxu0
      %v3179 = vadd.f32 0.0, %v3178
      %v3180 = vpop.f32.mrb[0].mxu0
      %v3181 = vpop.f32.mrb[0].mxu0
      %v3182 = vadd.f32 0.0, %v3181
      %v3183 = vpop.f32.mrb[0].mxu0
      %3184 = vmatprep.mubr.bf16.mxu0 0
      %3185 = vmatmul.mubr.bf16.gmra.mrb[0].mxu0 %v3076
      %v3186 = vpop.f32.mrb[0].mxu0
      %v3187 = vadd.f32 0.0, %v3186
      %v3188 = vpop.f32.mrb[0].mxu0
      %v3189 = vpop.f32.mrb[0].mxu0
      %v3190 = vadd.f32 0.0, %v3189
      %v3191 = vpop.f32.mrb[0].mxu0
      %3192 = vmatprep.mubr.bf16.mxu0 0
      %3193 = vmatmul.mubr.bf16.gmra.mrb[0].mxu0 %v3079
      %v3194 = vpop.f32.mrb[0].mxu0
      %v3195 = vadd.f32 0.0, %v3194
      %v3196 = vpop.f32.mrb[0].mxu0
      %v3197 = vpop.f32.mrb[0].mxu0
      %v3198 = vadd.f32 0.0, %v3197
      %v3199 = vpop.f32.mrb[0].mxu0
      %3200 = vmatprep.mubr.bf16.mxu0 0
      %3201 = vmatmul.mubr.bf16.gmra.mrb[0].mxu0 %v3082
      %v3202 = vpop.f32.mrb[0].mxu0
      %v3203 = vadd.f32 0.0, %v3202
      %v3204 = vpop.f32.mrb[0].mxu0
      %v3205 = vpop.f32.mrb[0].mxu0
      %v3206 = vadd.f32 0.0, %v3205
      %v3207 = vpop.f32.mrb[0].mxu0
      %3208 = vmatprep.mubr.bf16.mxu0 0
      %3209 = vmatmul.mubr.bf16.gmra.mrb[0].mxu0 %v3085
      %v3210 = vpop.f32.mrb[0].mxu0
      %v3211 = vadd.f32 0.0, %v3210
      %v3212 = vpop.f32.mrb[0].mxu0
      %v3213 = vpop.f32.mrb[0].mxu0
      %v3214 = vadd.f32 0.0, %v3213
      %v3215 = vpop.f32.mrb[0].mxu0
      %3216 = vmatprep.mubr.bf16.mxu0 0
      %3217 = vmatmul.mubr.bf16.gmra.mrb[0].mxu0 %v3088
      %v3218 = vpop.f32.mrb[0].mxu0
      %v3219 = vadd.f32 0.0, %v3218
      %v3220 = vpop.f32.mrb[0].mxu0
      %v3221 = vpop.f32.mrb[0].mxu0
      %v3222 = vadd.f32 0.0, %v3221
      %v3223 = vpop.f32.mrb[0].mxu0
      %3224 = vmatprep.mubr.bf16.mxu0 0
      %3225 = vmatmul.mubr.bf16.gmra.mrb[0].mxu0 %v3091
      %v3226 = vpop.f32.mrb[0].mxu0
      %v3227 = vadd.f32 0.0, %v3226
      %v3228 = vpop.f32.mrb[0].mxu0
      %v3229 = vpop.f32.mrb[0].mxu0
      %v3230 = vadd.f32 0.0, %v3229
      %v3231 = vpop.f32.mrb[0].mxu0
      %3232 = vmatprep.mubr.bf16.mxu0 0
      %3233 = vmatmul.mubr.bf16.gmra.mrb[0].mxu0 %v3094
      %v3234 = vpop.f32.mrb[0].mxu0
      %v3235 = vadd.f32 0.0, %v3234
      %v3236 = vpop.f32.mrb[0].mxu0
      %v3237 = vpop.f32.mrb[0].mxu0
      %v3238 = vadd.f32 0.0, %v3237
      %v3239 = vpop.f32.mrb[0].mxu0
      %3240 = vmatprep.mubr.bf16.mxu0 0
      %3241 = vmatmul.mubr.bf16.gmra.mrb[0].mxu0 %v3097
      %v3242 = vpop.f32.mrb[0].mxu0
      %v3243 = vadd.f32 0.0, %v3242
      %v3244 = vpop.f32.mrb[0].mxu0
      %v3245 = vpop.f32.mrb[0].mxu0
      %v3246 = vadd.f32 0.0, %v3245
      %v3247 = vpop.f32.mrb[0].mxu0
      %3248 = vmatprep.mubr.bf16.mxu0 0
      %3249 = vmatmul.mubr.bf16.gmra.mrb[0].mxu0 %v3100
      %v3250 = vpop.f32.mrb[0].mxu0
      %v3251 = vadd.f32 0.0, %v3250
      %v3252 = vpop.f32.mrb[0].mxu0
      %v3253 = vpop.f32.mrb[0].mxu0
      %v3254 = vadd.f32 0.0, %v3253
      %v3255 = vpop.f32.mrb[0].mxu0
      %3256 = vmatprep.mubr.bf16.mxu0 0
      %3257 = vmatmul.mubr.bf16.gmra.mrb[0].mxu0 %v3103
      %v3258 = vpop.f32.mrb[0].mxu0
      %v3259 = vadd.f32 0.0, %v3258
      %v3260 = vpop.f32.mrb[0].mxu0
      %v3261 = vpop.f32.mrb[0].mxu0
      %v3262 = vadd.f32 0.0, %v3261
      %v3263 = vpop.f32.mrb[0].mxu0
      %3264 = vmatprep.mubr.bf16.mxu0 0
      %3265 = vmatmul.mubr.bf16.gmra.mrb[0].mxu0 %v3106
      %v3266 = vpop.f32.mrb[0].mxu0
      %v3267 = vadd.f32 0.0, %v3266
      %v3268 = vpop.f32.mrb[0].mxu0
      %v3269 = vpop.f32.mrb[0].mxu0
      %v3270 = vadd.f32 0.0, %v3269
      %v3271 = vpop.f32.mrb[0].mxu0
      %3272 = vmatprep.mubr.bf16.mxu0 0
      %3273 = vmatmul.mubr.bf16.gmra.mrb[0].mxu0 %v3109
      %v3274 = vpop.f32.mrb[0].mxu0
      %v3275 = vadd.f32 0.0, %v3274
      %v3276 = vpop.f32.mrb[0].mxu0
      %v3277 = vpop.f32.mrb[0].mxu0
      %v3278 = vadd.f32 0.0, %v3277
      %v3279 = vpop.f32.mrb[0].mxu0
      %3280 = vmatprep.mubr.bf16.mxu0 0
      %3281 = vmatmul.mubr.bf16.gmra.mrb[0].mxu0 %v3112
      %v3282 = vpop.f32.mrb[0].mxu0
      %v3283 = vadd.f32 0.0, %v3282
      %v3284 = vpop.f32.mrb[0].mxu0
      %v3285 = vpop.f32.mrb[0].mxu0
      %v3286 = vadd.f32 0.0, %v3285
      %v3287 = vpop.f32.mrb[0].mxu0
      %3288 = vmatprep.mubr.bf16.mxu0 0
      %3289 = vmatmul.mubr.bf16.gmra.mrb[0].mxu0 %v3115
      %v3290 = vpop.f32.mrb[0].mxu0
      %v3291 = vadd.f32 0.0, %v3290
      %v3292 = vpop.f32.mrb[0].mxu0
      %v3293 = vpop.f32.mrb[0].mxu0
      %v3294 = vadd.f32 0.0, %v3293
      %v3295 = vpop.f32.mrb[0].mxu0
      %3296 = vdwg.mxu0
      %v3297 = vadd.f32 %v2850, %v3155
      %v3298 = vadd.f32 %v2851, %v3158
      %v3299 = vadd.f32 %v2852, %v3163
      %v3300 = vadd.f32 %v2853, %v3166
      %v3301 = vadd.f32 %v2854, %v3171
      %v3302 = vadd.f32 %v2855, %v3174
      %v3303 = vadd.f32 %v2856, %v3179
      %v3304 = vadd.f32 %v2857, %v3182
      %v3305 = vadd.f32 %v2858, %v3187
      %v3306 = vadd.f32 %v2859, %v3190
      %v3307 = vadd.f32 %v2860, %v3195
      %v3308 = vadd.f32 %v2861, %v3198
      %v3309 = vadd.f32 %v2862, %v3203
      %v3310 = vadd.f32 %v2863, %v3206
      %v3311 = vadd.f32 %v2864, %v3211
      %v3312 = vadd.f32 %v2865, %v3214
      %v3313 = vadd.f32 %v2866, %v3219
      %v3314 = vadd.f32 %v2867, %v3222
      %v3315 = vadd.f32 %v2868, %v3227
      %v3316 = vadd.f32 %v2869, %v3230
      %v3317 = vadd.f32 %v2870, %v3235
      %v3318 = vadd.f32 %v2871, %v3238
      %v3319 = vadd.f32 %v2872, %v3243
      %v3320 = vadd.f32 %v2873, %v3246
      %v3321 = vadd.f32 %v2874, %v3251
      %v3322 = vadd.f32 %v2875, %v3254
      %v3323 = vadd.f32 %v2876, %v3259
      %v3324 = vadd.f32 %v2877, %v3262
      %v3325 = vadd.f32 %v2878, %v3267
      %v3326 = vadd.f32 %v2879, %v3270
      %v3327 = vadd.f32 %v2880, %v3275
      %v3328 = vadd.f32 %v2881, %v3278
      %v3329 = vadd.f32 %v2882, %v3283
      %v3330 = vadd.f32 %v2883, %v3286
      %v3331 = vadd.f32 %v2884, %v3291
      %v3332 = vadd.f32 %v2885, %v3294
      %v3333 = vld [vmem:[%s192 + $0x10] sm:$0x8]
      %s3334 = scalar_lea.vmem %s1, 32
      %v3335 = vld [vmem:[%s3334] sm:$0xf]
      %v3337 = vunpack.c.l.b16 %v3333
      %v3338 = vpack.c.b16 %v2524, %v3337
      %vm3339 = vcmask 1044480
      %v3340 = vrot.slane %v3338, 3
      %v3341 = vrot.slane %v2561, 3
      %v3342 = vsel %vm3339, %v3340, %v3341
      %v3343 = vrot.slane %v2562, 3
      %v3344 = vsel %vm3339, %v3341, %v3343
      %v3345 = vrot.slane %v2563, 3
      %v3346 = vsel %vm3339, %v3343, %v3345
      %v3347 = vrot.slane %v2564, 3
      %v3348 = vsel %vm3339, %v3345, %v3347
      %v3349 = vrot.slane %v2565, 3
      %v3350 = vsel %vm3339, %v3347, %v3349
      %v3351 = vrot.slane %v2566, 3
      %v3352 = vsel %vm3339, %v3349, %v3351
      %v3353 = vrot.slane %v2567, 3
      %v3354 = vsel %vm3339, %v3351, %v3353
      %v3355 = vrot.slane %v2568, 3
      %v3356 = vsel %vm3339, %v3353, %v3355
      %v3357 = vrot.slane %v2569, 3
      %v3358 = vsel %vm3339, %v3355, %v3357
      %v3359 = vrot.slane %v2570, 3
      %v3360 = vsel %vm3339, %v3357, %v3359
      %v3361 = vrot.slane %v2571, 3
      %v3362 = vsel %vm3339, %v3359, %v3361
      %v3363 = vrot.slane %v2572, 3
      %v3364 = vsel %vm3339, %v3361, %v3363
      %v3365 = vrot.slane %v2573, 3
      %v3366 = vsel %vm3339, %v3363, %v3365
      %v3367 = vrot.slane %v2574, 3
      %v3368 = vsel %vm3339, %v3365, %v3367
      %v3369 = vrot.slane %v2575, 3
      %v3370 = vsel %vm3339, %v3367, %v3369
      %v3371 = vrot.slane %v2576, 3
      %v3372 = vsel %vm3339, %v3369, %v3371
      %v3373 = vrot.slane %v2577, 3
      %v3374 = vsel %vm3339, %v3371, %v3373
      %v3375 = vrot.slane %v2891, 3
      %v3376 = vsel %vm3339, %v3373, %v3375
      %v3378 = vsel %vm481, %v3342, 0
      %v3381 = vsel %vm481, %v3344, 0
      %v3384 = vsel %vm481, %v3346, 0
      %v3387 = vsel %vm481, %v3348, 0
      %v3390 = vsel %vm481, %v3350, 0
      %v3393 = vsel %vm481, %v3352, 0
      %v3396 = vsel %vm481, %v3354, 0
      %v3399 = vsel %vm481, %v3356, 0
      %v3402 = vsel %vm481, %v3358, 0
      %v3405 = vsel %vm481, %v3360, 0
      %v3408 = vsel %vm481, %v3362, 0
      %v3411 = vsel %vm481, %v3364, 0
      %v3414 = vsel %vm481, %v3366, 0
      %v3417 = vsel %vm481, %v3368, 0
      %v3420 = vsel %vm481, %v3370, 0
      %v3423 = vsel %vm481, %v3372, 0
      %v3426 = vsel %vm481, %v3374, 0
      %v3429 = vsel %vm481, %v3376, 0
      %v3432 = vsel %vm536, %v3335, 0
      %3434 = vmatprep.subr.bf16.mxu0 0
      %3435 = vmatpush1.bf16.msra.mxu0 %v3432
      %3436 = vmatprep.subr.bf16.mxu0 0
      %3437 = vmatpush1.bf16.msra.mxu0 0
      %3438 = vmatprep.subr.bf16.mxu0 0
      %3439 = vmatpush1.bf16.msra.mxu0 0
      %3440 = vmatprep.subr.bf16.mxu0 0
      %3441 = vmatpush1.bf16.msra.mxu0 0
      %3442 = vmatprep.subr.bf16.mxu0 0
      %3443 = vmatpush1.bf16.msra.mxu0 0
      %3444 = vmatprep.subr.bf16.mxu0 0
      %3445 = vmatpush1.bf16.msra.mxu0 0
      %3446 = vmatprep.subr.bf16.mxu0 0
      %3447 = vmatpush1.bf16.msra.mxu0 0
      %3448 = vmatprep.subr.bf16.mxu0 0
      %3449 = vmatpush1.bf16.msra.mxu0 0
      %3450 = vmatprep.subr.bf16.mxu0 0
      %3451 = vmatpush1.bf16.msra.mxu0 0
      %3452 = vmatprep.subr.bf16.mxu0 0
      %3453 = vmatpush1.bf16.msra.mxu0 0
      %3454 = vmatprep.subr.bf16.mxu0 0
      %3455 = vmatpush1.bf16.msra.mxu0 0
      %3456 = vmatprep.subr.bf16.mxu0 0
      %3457 = vmatpush1.bf16.msra.mxu0 0
      %3458 = vmatprep.subr.bf16.mxu0 0
      %3459 = vmatpush1.bf16.msra.mxu0 0
      %3460 = vmatprep.subr.bf16.mxu0 0
      %3461 = vmatpush1.bf16.msra.mxu0 0
      %3462 = vmatprep.subr.bf16.mxu0 0
      %3463 = vmatpush1.bf16.msra.mxu0 0
      %3464 = vmatprep.subr.bf16.mxu0 0
      %3465 = vmatpush1.bf16.msra.mxu0 0
      %3466 = vmatprep.mubr.bf16.mxu0 0
      %3467 = vmatmul.mubr.bf16.gmra.mrb[0].mxu0 %v3378
      %v3468 = vpop.f32.mrb[0].mxu0
      %v3469 = vadd.f32 0.0, %v3468
      %v3470 = vpop.f32.mrb[0].mxu0
      %v3471 = vpop.f32.mrb[0].mxu0
      %v3472 = vadd.f32 0.0, %v3471
      %v3473 = vpop.f32.mrb[0].mxu0
      %3474 = vmatprep.mubr.bf16.mxu0 0
      %3475 = vmatmul.mubr.bf16.gmra.mrb[0].mxu0 %v3381
      %v3476 = vpop.f32.mrb[0].mxu0
      %v3477 = vadd.f32 0.0, %v3476
      %v3478 = vpop.f32.mrb[0].mxu0
      %v3479 = vpop.f32.mrb[0].mxu0
      %v3480 = vadd.f32 0.0, %v3479
      %v3481 = vpop.f32.mrb[0].mxu0
      %3482 = vmatprep.mubr.bf16.mxu0 0
      %3483 = vmatmul.mubr.bf16.gmra.mrb[0].mxu0 %v3384
      %v3484 = vpop.f32.mrb[0].mxu0
      %v3485 = vadd.f32 0.0, %v3484
      %v3486 = vpop.f32.mrb[0].mxu0
      %v3487 = vpop.f32.mrb[0].mxu0
      %v3488 = vadd.f32 0.0, %v3487
      %v3489 = vpop.f32.mrb[0].mxu0
      %3490 = vmatprep.mubr.bf16.mxu0 0
      %3491 = vmatmul.mubr.bf16.gmra.mrb[0].mxu0 %v3387
      %v3492 = vpop.f32.mrb[0].mxu0
      %v3493 = vadd.f32 0.0, %v3492
      %v3494 = vpop.f32.mrb[0].mxu0
      %v3495 = vpop.f32.mrb[0].mxu0
      %v3496 = vadd.f32 0.0, %v3495
      %v3497 = vpop.f32.mrb[0].mxu0
      %3498 = vmatprep.mubr.bf16.mxu0 0
      %3499 = vmatmul.mubr.bf16.gmra.mrb[0].mxu0 %v3390
      %v3500 = vpop.f32.mrb[0].mxu0
      %v3501 = vadd.f32 0.0, %v3500
      %v3502 = vpop.f32.mrb[0].mxu0
      %v3503 = vpop.f32.mrb[0].mxu0
      %v3504 = vadd.f32 0.0, %v3503
      %v3505 = vpop.f32.mrb[0].mxu0
      %3506 = vmatprep.mubr.bf16.mxu0 0
      %3507 = vmatmul.mubr.bf16.gmra.mrb[0].mxu0 %v3393
      %v3508 = vpop.f32.mrb[0].mxu0
      %v3509 = vadd.f32 0.0, %v3508
      %v3510 = vpop.f32.mrb[0].mxu0
      %v3511 = vpop.f32.mrb[0].mxu0
      %v3512 = vadd.f32 0.0, %v3511
      %v3513 = vpop.f32.mrb[0].mxu0
      %3514 = vmatprep.mubr.bf16.mxu0 0
      %3515 = vmatmul.mubr.bf16.gmra.mrb[0].mxu0 %v3396
      %v3516 = vpop.f32.mrb[0].mxu0
      %v3517 = vadd.f32 0.0, %v3516
      %v3518 = vpop.f32.mrb[0].mxu0
      %v3519 = vpop.f32.mrb[0].mxu0
      %v3520 = vadd.f32 0.0, %v3519
      %v3521 = vpop.f32.mrb[0].mxu0
      %3522 = vmatprep.mubr.bf16.mxu0 0
      %3523 = vmatmul.mubr.bf16.gmra.mrb[0].mxu0 %v3399
      %v3524 = vpop.f32.mrb[0].mxu0
      %v3525 = vadd.f32 0.0, %v3524
      %v3526 = vpop.f32.mrb[0].mxu0
      %v3527 = vpop.f32.mrb[0].mxu0
      %v3528 = vadd.f32 0.0, %v3527
      %v3529 = vpop.f32.mrb[0].mxu0
      %3530 = vmatprep.mubr.bf16.mxu0 0
      %3531 = vmatmul.mubr.bf16.gmra.mrb[0].mxu0 %v3402
      %v3532 = vpop.f32.mrb[0].mxu0
      %v3533 = vadd.f32 0.0, %v3532
      %v3534 = vpop.f32.mrb[0].mxu0
      %v3535 = vpop.f32.mrb[0].mxu0
      %v3536 = vadd.f32 0.0, %v3535
      %v3537 = vpop.f32.mrb[0].mxu0
      %3538 = vmatprep.mubr.bf16.mxu0 0
      %3539 = vmatmul.mubr.bf16.gmra.mrb[0].mxu0 %v3405
      %v3540 = vpop.f32.mrb[0].mxu0
      %v3541 = vadd.f32 0.0, %v3540
      %v3542 = vpop.f32.mrb[0].mxu0
      %v3543 = vpop.f32.mrb[0].mxu0
      %v3544 = vadd.f32 0.0, %v3543
      %v3545 = vpop.f32.mrb[0].mxu0
      %3546 = vmatprep.mubr.bf16.mxu0 0
      %3547 = vmatmul.mubr.bf16.gmra.mrb[0].mxu0 %v3408
      %v3548 = vpop.f32.mrb[0].mxu0
      %v3549 = vadd.f32 0.0, %v3548
      %v3550 = vpop.f32.mrb[0].mxu0
      %v3551 = vpop.f32.mrb[0].mxu0
      %v3552 = vadd.f32 0.0, %v3551
      %v3553 = vpop.f32.mrb[0].mxu0
      %3554 = vmatprep.mubr.bf16.mxu0 0
      %3555 = vmatmul.mubr.bf16.gmra.mrb[0].mxu0 %v3411
      %v3556 = vpop.f32.mrb[0].mxu0
      %v3557 = vadd.f32 0.0, %v3556
      %v3558 = vpop.f32.mrb[0].mxu0
      %v3559 = vpop.f32.mrb[0].mxu0
      %v3560 = vadd.f32 0.0, %v3559
      %v3561 = vpop.f32.mrb[0].mxu0
      %3562 = vmatprep.mubr.bf16.mxu0 0
      %3563 = vmatmul.mubr.bf16.gmra.mrb[0].mxu0 %v3414
      %v3564 = vpop.f32.mrb[0].mxu0
      %v3565 = vadd.f32 0.0, %v3564
      %v3566 = vpop.f32.mrb[0].mxu0
      %v3567 = vpop.f32.mrb[0].mxu0
      %v3568 = vadd.f32 0.0, %v3567
      %v3569 = vpop.f32.mrb[0].mxu0
      %3570 = vmatprep.mubr.bf16.mxu0 0
      %3571 = vmatmul.mubr.bf16.gmra.mrb[0].mxu0 %v3417
      %v3572 = vpop.f32.mrb[0].mxu0
      %v3573 = vadd.f32 0.0, %v3572
      %v3574 = vpop.f32.mrb[0].mxu0
      %v3575 = vpop.f32.mrb[0].mxu0
      %v3576 = vadd.f32 0.0, %v3575
      %v3577 = vpop.f32.mrb[0].mxu0
      %3578 = vmatprep.mubr.bf16.mxu0 0
      %3579 = vmatmul.mubr.bf16.gmra.mrb[0].mxu0 %v3420
      %v3580 = vpop.f32.mrb[0].mxu0
      %v3581 = vadd.f32 0.0, %v3580
      %v3582 = vpop.f32.mrb[0].mxu0
      %v3583 = vpop.f32.mrb[0].mxu0
      %v3584 = vadd.f32 0.0, %v3583
      %v3585 = vpop.f32.mrb[0].mxu0
      %3586 = vmatprep.mubr.bf16.mxu0 0
      %3587 = vmatmul.mubr.bf16.gmra.mrb[0].mxu0 %v3423
      %v3588 = vpop.f32.mrb[0].mxu0
      %v3589 = vadd.f32 0.0, %v3588
      %v3590 = vpop.f32.mrb[0].mxu0
      %v3591 = vpop.f32.mrb[0].mxu0
      %v3592 = vadd.f32 0.0, %v3591
      %v3593 = vpop.f32.mrb[0].mxu0
      %3594 = vmatprep.mubr.bf16.mxu0 0
      %3595 = vmatmul.mubr.bf16.gmra.mrb[0].mxu0 %v3426
      %v3596 = vpop.f32.mrb[0].mxu0
      %v3597 = vadd.f32 0.0, %v3596
      %v3598 = vpop.f32.mrb[0].mxu0
      %v3599 = vpop.f32.mrb[0].mxu0
      %v3600 = vadd.f32 0.0, %v3599
      %v3601 = vpop.f32.mrb[0].mxu0
      %3602 = vmatprep.mubr.bf16.mxu0 0
      %3603 = vmatmul.mubr.bf16.gmra.mrb[0].mxu0 %v3429
      %v3604 = vpop.f32.mrb[0].mxu0
      %v3605 = vadd.f32 0.0, %v3604
      %v3606 = vpop.f32.mrb[0].mxu0
      %v3607 = vpop.f32.mrb[0].mxu0
      %v3608 = vadd.f32 0.0, %v3607
      %v3609 = vpop.f32.mrb[0].mxu0
      %3610 = vdwg.mxu0
      %v3611 = vadd.f32 %v3297, %v3469
      %v3612 = vadd.f32 %v3298, %v3472
      %v3613 = vadd.f32 %v3299, %v3477
      %v3614 = vadd.f32 %v3300, %v3480
      %v3615 = vadd.f32 %v3301, %v3485
      %v3616 = vadd.f32 %v3302, %v3488
      %v3617 = vadd.f32 %v3303, %v3493
      %v3618 = vadd.f32 %v3304, %v3496
      %v3619 = vadd.f32 %v3305, %v3501
      %v3620 = vadd.f32 %v3306, %v3504
      %v3621 = vadd.f32 %v3307, %v3509
      %v3622 = vadd.f32 %v3308, %v3512
      %v3623 = vadd.f32 %v3309, %v3517
      %v3624 = vadd.f32 %v3310, %v3520
      %v3625 = vadd.f32 %v3311, %v3525
      %v3626 = vadd.f32 %v3312, %v3528
      %v3627 = vadd.f32 %v3313, %v3533
      %v3628 = vadd.f32 %v3314, %v3536
      %v3629 = vadd.f32 %v3315, %v3541
      %v3630 = vadd.f32 %v3316, %v3544
      %v3631 = vadd.f32 %v3317, %v3549
      %v3632 = vadd.f32 %v3318, %v3552
      %v3633 = vadd.f32 %v3319, %v3557
      %v3634 = vadd.f32 %v3320, %v3560
      %v3635 = vadd.f32 %v3321, %v3565
      %v3636 = vadd.f32 %v3322, %v3568
      %v3637 = vadd.f32 %v3323, %v3573
      %v3638 = vadd.f32 %v3324, %v3576
      %v3639 = vadd.f32 %v3325, %v3581
      %v3640 = vadd.f32 %v3326, %v3584
      %v3641 = vadd.f32 %v3327, %v3589
      %v3642 = vadd.f32 %v3328, %v3592
      %v3643 = vadd.f32 %v3329, %v3597
      %v3644 = vadd.f32 %v3330, %v3600
      %v3645 = vadd.f32 %v3331, %v3605
      %v3646 = vadd.f32 %v3332, %v3608
      %v3647 = vld [vmem:[%s2] sm:$0x1]
      %v3649 = vlaneseq
      %v3650 = vshrl.u32 %v3649, 7
      %v3651 = vsub.s32 0, %v3650
      %v3652 = vrot.slane %v3647, %v3651
      %v3654 = vadd.f32 %v3611, %v3652
      %v3655 = vadd.f32 %v3612, %v3652
      %v3656 = vadd.f32 %v3613, %v3652
      %v3657 = vadd.f32 %v3614, %v3652
      %v3658 = vadd.f32 %v3615, %v3652
      %v3659 = vadd.f32 %v3616, %v3652
      %v3660 = vadd.f32 %v3617, %v3652
      %v3661 = vadd.f32 %v3618, %v3652
      %v3662 = vadd.f32 %v3619, %v3652
      %v3663 = vadd.f32 %v3620, %v3652
      %v3664 = vadd.f32 %v3621, %v3652
      %v3665 = vadd.f32 %v3622, %v3652
      %v3666 = vadd.f32 %v3623, %v3652
      %v3667 = vadd.f32 %v3624, %v3652
      %v3668 = vadd.f32 %v3625, %v3652
      %v3669 = vadd.f32 %v3626, %v3652
      %v3670 = vadd.f32 %v3627, %v3652
      %v3671 = vadd.f32 %v3628, %v3652
      %v3672 = vadd.f32 %v3629, %v3652
      %v3673 = vadd.f32 %v3630, %v3652
      %v3674 = vadd.f32 %v3631, %v3652
      %v3675 = vadd.f32 %v3632, %v3652
      %v3676 = vadd.f32 %v3633, %v3652
      %v3677 = vadd.f32 %v3634, %v3652
      %v3678 = vadd.f32 %v3635, %v3652
      %v3679 = vadd.f32 %v3636, %v3652
      %v3680 = vadd.f32 %v3637, %v3652
      %v3681 = vadd.f32 %v3638, %v3652
      %v3682 = vadd.f32 %v3639, %v3652
      %v3683 = vadd.f32 %v3640, %v3652
      %v3684 = vadd.f32 %v3641, %v3652
      %v3685 = vadd.f32 %v3642, %v3652
      %v3686 = vadd.f32 %v3643, %v3652
      %v3687 = vadd.f32 %v3644, %v3652
      %v3688 = vadd.f32 %v3645, %v3652
      %v3689 = vadd.f32 %v3646, %v3652
      %v3690 = vmax.f32 %v3654, 0.0
      %v3691 = vmax.f32 %v3655, 0.0
      %v3692 = vmax.f32 %v3656, 0.0
      %v3693 = vmax.f32 %v3657, 0.0
      %v3694 = vmax.f32 %v3658, 0.0
      %v3695 = vmax.f32 %v3659, 0.0
      %v3696 = vmax.f32 %v3660, 0.0
      %v3697 = vmax.f32 %v3661, 0.0
      %v3698 = vmax.f32 %v3662, 0.0
      %v3699 = vmax.f32 %v3663, 0.0
      %v3700 = vmax.f32 %v3664, 0.0
      %v3701 = vmax.f32 %v3665, 0.0
      %v3702 = vmax.f32 %v3666, 0.0
      %v3703 = vmax.f32 %v3667, 0.0
      %v3704 = vmax.f32 %v3668, 0.0
      %v3705 = vmax.f32 %v3669, 0.0
      %v3706 = vmax.f32 %v3670, 0.0
      %v3707 = vmax.f32 %v3671, 0.0
      %v3708 = vmax.f32 %v3672, 0.0
      %v3709 = vmax.f32 %v3673, 0.0
      %v3710 = vmax.f32 %v3674, 0.0
      %v3711 = vmax.f32 %v3675, 0.0
      %v3712 = vmax.f32 %v3676, 0.0
      %v3713 = vmax.f32 %v3677, 0.0
      %v3714 = vmax.f32 %v3678, 0.0
      %v3715 = vmax.f32 %v3679, 0.0
      %v3716 = vmax.f32 %v3680, 0.0
      %v3717 = vmax.f32 %v3681, 0.0
      %v3718 = vmax.f32 %v3682, 0.0
      %v3719 = vmax.f32 %v3683, 0.0
      %v3720 = vmax.f32 %v3684, 0.0
      %v3721 = vmax.f32 %v3685, 0.0
      %v3722 = vmax.f32 %v3686, 0.0
      %v3723 = vmax.f32 %v3687, 0.0
      %v3724 = vmax.f32 %v3688, 0.0
      %v3725 = vmax.f32 %v3689, 0.0
      %v3726 = vld [vmem:[%s3] sm:$0xff]
      %v3727 = vld [vmem:[%s3 + $0x8] sm:$0xff]
      %v3728 = vld [vmem:[%s3 + $0x10] sm:$0xff]
      %v3729 = vld [vmem:[%s3 + $0x18] sm:$0xff]
      %v3730 = vld [vmem:[%s3 + $0x20] sm:$0xff]
      %v3731 = vld [vmem:[%s3 + $0x28] sm:$0xff]
      %v3732 = vld [vmem:[%s3 + $0x30] sm:$0xff]
      %v3733 = vld [vmem:[%s3 + $0x38] sm:$0xff]
      %v3734 = vld [vmem:[%s3 + $0x40] sm:$0xff]
      %v3735 = vld [vmem:[%s3 + $0x48] sm:$0xff]
      %v3736 = vld [vmem:[%s3 + $0x50] sm:$0xff]
      %v3737 = vld [vmem:[%s3 + $0x58] sm:$0xff]
      %v3738 = vld [vmem:[%s3 + $0x60] sm:$0xff]
      %v3739 = vld [vmem:[%s3 + $0x68] sm:$0xff]
      %v3740 = vld [vmem:[%s3 + $0x70] sm:$0xff]
      %v3741 = vld [vmem:[%s3 + $0x78] sm:$0xff]
      %v3742 = vld [vmem:[%s3 + $0x80] sm:$0xff]
      %v3743 = vld [vmem:[%s3 + $0x88] sm:$0xff]
      %v3744 = vld [vmem:[%s3 + $0x90] sm:$0xff]
      %v3745 = vld [vmem:[%s3 + $0x98] sm:$0xff]
      %v3746 = vld [vmem:[%s3 + $0xa0] sm:$0xff]
      %v3747 = vld [vmem:[%s3 + $0xa8] sm:$0xff]
      %v3748 = vld [vmem:[%s3 + $0xb0] sm:$0xff]
      %v3749 = vld [vmem:[%s3 + $0xb8] sm:$0xff]
      %v3750 = vld [vmem:[%s3 + $0xc0] sm:$0xff]
      %v3751 = vld [vmem:[%s3 + $0xc8] sm:$0xff]
      %v3752 = vld [vmem:[%s3 + $0xd0] sm:$0xff]
      %v3753 = vld [vmem:[%s3 + $0xd8] sm:$0xff]
      %v3754 = vld [vmem:[%s3 + $0xe0] sm:$0xff]
      %v3755 = vld [vmem:[%s3 + $0xe8] sm:$0xff]
      %v3756 = vld [vmem:[%s3 + $0xf0] sm:$0xff]
      %v3757 = vld [vmem:[%s3 + $0xf8] sm:$0xff]
      %v3758 = vld [vmem:[%s3 + $0x100] sm:$0xff]
      %v3759 = vld [vmem:[%s3 + $0x108] sm:$0xff]
      %v3760 = vld [vmem:[%s3 + $0x110] sm:$0xff]
      %v3761 = vld [vmem:[%s3 + $0x118] sm:$0xff]
      %3763 = vset.pattern.permute.xlu0 0
      %3764 = vperm.xlu0 %3763, %v3726
      %v3765 = vpop.permute.xlu0 %3764
      %3768 = vset.pattern.permute.xlu0 0
      %3769 = vperm.xlu0 %3768, %v3727
      %v3770 = vpop.permute.xlu0 %3769
      %3773 = vset.pattern.permute.xlu0 0
      %3774 = vperm.xlu0 %3773, %v3728
      %v3775 = vpop.permute.xlu0 %3774
      %3778 = vset.pattern.permute.xlu0 0
      %3779 = vperm.xlu0 %3778, %v3729
      %v3780 = vpop.permute.xlu0 %3779
      %3783 = vset.pattern.permute.xlu0 0
      %3784 = vperm.xlu0 %3783, %v3730
      %v3785 = vpop.permute.xlu0 %3784
      %3788 = vset.pattern.permute.xlu0 0
      %3789 = vperm.xlu0 %3788, %v3731
      %v3790 = vpop.permute.xlu0 %3789
      %3793 = vset.pattern.permute.xlu0 0
      %3794 = vperm.xlu0 %3793, %v3732
      %v3795 = vpop.permute.xlu0 %3794
      %3798 = vset.pattern.permute.xlu0 0
      %3799 = vperm.xlu0 %3798, %v3733
      %v3800 = vpop.permute.xlu0 %3799
      %3803 = vset.pattern.permute.xlu0 0
      %3804 = vperm.xlu0 %3803, %v3734
      %v3805 = vpop.permute.xlu0 %3804
      %3808 = vset.pattern.permute.xlu0 0
      %3809 = vperm.xlu0 %3808, %v3735
      %v3810 = vpop.permute.xlu0 %3809
      %3813 = vset.pattern.permute.xlu0 0
      %3814 = vperm.xlu0 %3813, %v3736
      %v3815 = vpop.permute.xlu0 %3814
      %3818 = vset.pattern.permute.xlu0 0
      %3819 = vperm.xlu0 %3818, %v3737
      %v3820 = vpop.permute.xlu0 %3819
      %3823 = vset.pattern.permute.xlu0 0
      %3824 = vperm.xlu0 %3823, %v3738
      %v3825 = vpop.permute.xlu0 %3824
      %3828 = vset.pattern.permute.xlu0 0
      %3829 = vperm.xlu0 %3828, %v3739
      %v3830 = vpop.permute.xlu0 %3829
      %3833 = vset.pattern.permute.xlu0 0
      %3834 = vperm.xlu0 %3833, %v3740
      %v3835 = vpop.permute.xlu0 %3834
      %3838 = vset.pattern.permute.xlu0 0
      %3839 = vperm.xlu0 %3838, %v3741
      %v3840 = vpop.permute.xlu0 %3839
      %3843 = vset.pattern.permute.xlu0 0
      %3844 = vperm.xlu0 %3843, %v3742
      %v3845 = vpop.permute.xlu0 %3844
      %3848 = vset.pattern.permute.xlu0 0
      %3849 = vperm.xlu0 %3848, %v3743
      %v3850 = vpop.permute.xlu0 %3849
      %3853 = vset.pattern.permute.xlu0 0
      %3854 = vperm.xlu0 %3853, %v3744
      %v3855 = vpop.permute.xlu0 %3854
      %3858 = vset.pattern.permute.xlu0 0
      %3859 = vperm.xlu0 %3858, %v3745
      %v3860 = vpop.permute.xlu0 %3859
      %3863 = vset.pattern.permute.xlu0 0
      %3864 = vperm.xlu0 %3863, %v3746
      %v3865 = vpop.permute.xlu0 %3864
      %3868 = vset.pattern.permute.xlu0 0
      %3869 = vperm.xlu0 %3868, %v3747
      %v3870 = vpop.permute.xlu0 %3869
      %3873 = vset.pattern.permute.xlu0 0
      %3874 = vperm.xlu0 %3873, %v3748
      %v3875 = vpop.permute.xlu0 %3874
      %3878 = vset.pattern.permute.xlu0 0
      %3879 = vperm.xlu0 %3878, %v3749
      %v3880 = vpop.permute.xlu0 %3879
      %3883 = vset.pattern.permute.xlu0 0
      %3884 = vperm.xlu0 %3883, %v3750
      %v3885 = vpop.permute.xlu0 %3884
      %3888 = vset.pattern.permute.xlu0 0
      %3889 = vperm.xlu0 %3888, %v3751
      %v3890 = vpop.permute.xlu0 %3889
      %3893 = vset.pattern.permute.xlu0 0
      %3894 = vperm.xlu0 %3893, %v3752
      %v3895 = vpop.permute.xlu0 %3894
      %3898 = vset.pattern.permute.xlu0 0
      %3899 = vperm.xlu0 %3898, %v3753
      %v3900 = vpop.permute.xlu0 %3899
      %3903 = vset.pattern.permute.xlu0 0
      %3904 = vperm.xlu0 %3903, %v3754
      %v3905 = vpop.permute.xlu0 %3904
      %3908 = vset.pattern.permute.xlu0 0
      %3909 = vperm.xlu0 %3908, %v3755
      %v3910 = vpop.permute.xlu0 %3909
      %3913 = vset.pattern.permute.xlu0 0
      %3914 = vperm.xlu0 %3913, %v3756
      %v3915 = vpop.permute.xlu0 %3914
      %3918 = vset.pattern.permute.xlu0 0
      %3919 = vperm.xlu0 %3918, %v3757
      %v3920 = vpop.permute.xlu0 %3919
      %3923 = vset.pattern.permute.xlu0 0
      %3924 = vperm.xlu0 %3923, %v3758
      %v3925 = vpop.permute.xlu0 %3924
      %3928 = vset.pattern.permute.xlu0 0
      %3929 = vperm.xlu0 %3928, %v3759
      %v3930 = vpop.permute.xlu0 %3929
      %3933 = vset.pattern.permute.xlu0 0
      %3934 = vperm.xlu0 %3933, %v3760
      %v3935 = vpop.permute.xlu0 %3934
      %3938 = vset.pattern.permute.xlu0 0
      %3939 = vperm.xlu0 %3938, %v3761
      %v3940 = vpop.permute.xlu0 %3939
      %v3942 = vmul.f32 %v3690, %v3765
      %v3943 = vmul.f32 %v3691, %v3770
      %v3944 = vmul.f32 %v3692, %v3775
      %v3945 = vmul.f32 %v3693, %v3780
      %v3946 = vmul.f32 %v3694, %v3785
      %v3947 = vmul.f32 %v3695, %v3790
      %v3948 = vmul.f32 %v3696, %v3795
      %v3949 = vmul.f32 %v3697, %v3800
      %v3950 = vmul.f32 %v3698, %v3805
      %v3951 = vmul.f32 %v3699, %v3810
      %v3952 = vmul.f32 %v3700, %v3815
      %v3953 = vmul.f32 %v3701, %v3820
      %v3954 = vmul.f32 %v3702, %v3825
      %v3955 = vmul.f32 %v3703, %v3830
      %v3956 = vmul.f32 %v3704, %v3835
      %v3957 = vmul.f32 %v3705, %v3840
      %v3958 = vmul.f32 %v3706, %v3845
      %v3959 = vmul.f32 %v3707, %v3850
      %v3960 = vmul.f32 %v3708, %v3855
      %v3961 = vmul.f32 %v3709, %v3860
      %v3962 = vmul.f32 %v3710, %v3865
      %v3963 = vmul.f32 %v3711, %v3870
      %v3964 = vmul.f32 %v3712, %v3875
      %v3965 = vmul.f32 %v3713, %v3880
      %v3966 = vmul.f32 %v3714, %v3885
      %v3967 = vmul.f32 %v3715, %v3890
      %v3968 = vmul.f32 %v3716, %v3895
      %v3969 = vmul.f32 %v3717, %v3900
      %v3970 = vmul.f32 %v3718, %v3905
      %v3971 = vmul.f32 %v3719, %v3910
      %v3972 = vmul.f32 %v3720, %v3915
      %v3973 = vmul.f32 %v3721, %v3920
      %v3974 = vmul.f32 %v3722, %v3925
      %v3975 = vmul.f32 %v3723, %v3930
      %v3976 = vmul.f32 %v3724, %v3935
      %v3977 = vmul.f32 %v3725, %v3940
      %3978 = vst [vmem:[%s197] sm:$0xf] 0
      %3979 = vst [vmem:[%s197 + $0x4] sm:$0xf] 0
      %3980 = vst [vmem:[%s197 + $0x8] sm:$0xf] 0
      %3981 = vst [vmem:[%s197 + $0xc] sm:$0xf] 0
      %3982 = vst [vmem:[%s197 + $0x10] sm:$0xf] 0
      %3983 = vst [vmem:[%s197 + $0x14] sm:$0xf] 0
      %3984 = vst [vmem:[%s197 + $0x18] sm:$0xf] 0
      %3985 = vst [vmem:[%s197 + $0x1c] sm:$0xf] 0
      %3986 = vst [vmem:[%s197 + $0x20] sm:$0xf] 0
      %3987 = vst [vmem:[%s197 + $0x24] sm:$0xf] 0
      %3988 = vst [vmem:[%s197 + $0x28] sm:$0xf] 0
      %3989 = vst [vmem:[%s197 + $0x2c] sm:$0xf] 0
      %3990 = vst [vmem:[%s197 + $0x30] sm:$0xf] 0
      %3991 = vst [vmem:[%s197 + $0x34] sm:$0xf] 0
      %3992 = vst [vmem:[%s197 + $0x38] sm:$0xf] 0
      %3993 = vst [vmem:[%s197 + $0x3c] sm:$0xf] 0
      %3994 = vst [vmem:[%s197 + $0x40] sm:$0xf] 0
      %3995 = vst [vmem:[%s197 + $0x44] sm:$0xf] 0
      %3996 = vst [vmem:[%s197 + $0x48] sm:$0xf] 0
      %3997 = vst [vmem:[%s197 + $0x4c] sm:$0xf] 0
      %3998 = vst [vmem:[%s197 + $0x50] sm:$0xf] 0
      %3999 = vst [vmem:[%s197 + $0x54] sm:$0xf] 0
      %4000 = vst [vmem:[%s197 + $0x58] sm:$0xf] 0
      %4001 = vst [vmem:[%s197 + $0x5c] sm:$0xf] 0
      %4002 = vst [vmem:[%s197 + $0x60] sm:$0xf] 0
      %4003 = vst [vmem:[%s197 + $0x64] sm:$0xf] 0
      %4004 = vst [vmem:[%s197 + $0x68] sm:$0xf] 0
      %4005 = vst [vmem:[%s197 + $0x6c] sm:$0xf] 0
      %4006 = vst [vmem:[%s197 + $0x70] sm:$0xf] 0
      %4007 = vst [vmem:[%s197 + $0x74] sm:$0xf] 0
      %4008 = vst [vmem:[%s197 + $0x78] sm:$0xf] 0
      %4009 = vst [vmem:[%s197 + $0x7c] sm:$0xf] 0
      %4010 = vst [vmem:[%s197 + $0x80] sm:$0xf] 0
      %4011 = vst [vmem:[%s197 + $0x84] sm:$0xf] 0
      %4012 = vst [vmem:[%s197 + $0x88] sm:$0xf] 0
      %4013 = vst [vmem:[%s197 + $0x8c] sm:$0xf] 0
      %4014 = vst [vmem:[%s197 + $0x90] sm:$0xf] 0
      %4015 = vst [vmem:[%s197 + $0x94] sm:$0xf] 0
      %4016 = vst [vmem:[%s197 + $0x98] sm:$0xf] 0
      %4017 = vst [vmem:[%s197 + $0x9c] sm:$0xf] 0
      %4018 = vst [vmem:[%s197 + $0xa0] sm:$0xf] 0
      %v4019 = vpack.c.bf16 %v3943, %v3942
      %v4020 = vpack.c.bf16 %v3945, %v3944
      %v4021 = vpack.c.bf16 %v3947, %v3946
      %v4022 = vpack.c.bf16 %v3949, %v3948
      %v4023 = vpack.c.bf16 %v3951, %v3950
      %v4024 = vpack.c.bf16 %v3953, %v3952
      %v4025 = vpack.c.bf16 %v3955, %v3954
      %v4026 = vpack.c.bf16 %v3957, %v3956
      %v4027 = vpack.c.bf16 %v3959, %v3958
      %v4028 = vpack.c.bf16 %v3961, %v3960
      %v4029 = vpack.c.bf16 %v3963, %v3962
      %v4030 = vpack.c.bf16 %v3965, %v3964
      %v4031 = vpack.c.bf16 %v3967, %v3966
      %v4032 = vpack.c.bf16 %v3969, %v3968
      %v4033 = vpack.c.bf16 %v3971, %v3970
      %v4034 = vpack.c.bf16 %v3973, %v3972
      %v4035 = vpack.c.bf16 %v3975, %v3974
      %v4036 = vpack.c.bf16 %v3977, %v3976
      %v4055 = vunpack.c.l.b16 %v4019
      %v4056 = vunpack.c.h.b16 %v4019
      %v4057 = vunpack.c.l.b16 %v4020
      %v4058 = vunpack.c.h.b16 %v4020
      %v4059 = vunpack.c.l.b16 %v4021
      %v4060 = vunpack.c.h.b16 %v4021
      %v4061 = vunpack.c.l.b16 %v4022
      %v4062 = vunpack.c.h.b16 %v4022
      %v4063 = vunpack.c.l.b16 %v4023
      %v4064 = vunpack.c.h.b16 %v4023
      %v4065 = vunpack.c.l.b16 %v4024
      %v4066 = vunpack.c.h.b16 %v4024
      %v4067 = vunpack.c.l.b16 %v4025
      %v4068 = vunpack.c.h.b16 %v4025
      %v4069 = vunpack.c.l.b16 %v4026
      %v4070 = vunpack.c.h.b16 %v4026
      %v4071 = vunpack.c.l.b16 %v4027
      %v4072 = vunpack.c.h.b16 %v4027
      %v4073 = vunpack.c.l.b16 %v4028
      %v4074 = vunpack.c.h.b16 %v4028
      %v4075 = vunpack.c.l.b16 %v4029
      %v4076 = vunpack.c.h.b16 %v4029
      %v4077 = vunpack.c.l.b16 %v4030
      %v4078 = vunpack.c.h.b16 %v4030
      %v4079 = vunpack.c.l.b16 %v4031
      %v4080 = vunpack.c.h.b16 %v4031
      %v4081 = vunpack.c.l.b16 %v4032
      %v4082 = vunpack.c.h.b16 %v4032
      %v4083 = vunpack.c.l.b16 %v4033
      %v4084 = vunpack.c.h.b16 %v4033
      %v4085 = vunpack.c.l.b16 %v4034
      %v4086 = vunpack.c.h.b16 %v4034
      %v4087 = vunpack.c.l.b16 %v4035
      %v4088 = vunpack.c.h.b16 %v4035
      %v4089 = vunpack.c.l.b16 %v4036
      %v4090 = vunpack.c.h.b16 %v4036
      %v4091 = vpack.c.b16 %v4055, %v4055
      %v4092 = vpack.c.b16 %v4056, %v4056
      %v4093 = vpack.c.b16 %v4057, %v4057
      %v4094 = vpack.c.b16 %v4058, %v4058
      %v4095 = vpack.c.b16 %v4059, %v4059
      %v4096 = vpack.c.b16 %v4060, %v4060
      %v4097 = vpack.c.b16 %v4061, %v4061
      %v4098 = vpack.c.b16 %v4062, %v4062
      %v4099 = vpack.c.b16 %v4063, %v4063
      %v4100 = vpack.c.b16 %v4064, %v4064
      %v4101 = vpack.c.b16 %v4065, %v4065
      %v4102 = vpack.c.b16 %v4066, %v4066
      %v4103 = vpack.c.b16 %v4067, %v4067
      %v4104 = vpack.c.b16 %v4068, %v4068
      %v4105 = vpack.c.b16 %v4069, %v4069
      %v4106 = vpack.c.b16 %v4070, %v4070
      %v4107 = vpack.c.b16 %v4071, %v4071
      %v4108 = vpack.c.b16 %v4072, %v4072
      %v4109 = vpack.c.b16 %v4073, %v4073
      %v4110 = vpack.c.b16 %v4074, %v4074
      %v4111 = vpack.c.b16 %v4075, %v4075
      %v4112 = vpack.c.b16 %v4076, %v4076
      %v4113 = vpack.c.b16 %v4077, %v4077
      %v4114 = vpack.c.b16 %v4078, %v4078
      %v4115 = vpack.c.b16 %v4079, %v4079
      %v4116 = vpack.c.b16 %v4080, %v4080
      %v4117 = vpack.c.b16 %v4081, %v4081
      %v4118 = vpack.c.b16 %v4082, %v4082
      %v4119 = vpack.c.b16 %v4083, %v4083
      %v4120 = vpack.c.b16 %v4084, %v4084
      %v4121 = vpack.c.b16 %v4085, %v4085
      %v4122 = vpack.c.b16 %v4086, %v4086
      %v4123 = vpack.c.b16 %v4087, %v4087
      %v4124 = vpack.c.b16 %v4088, %v4088
      %v4125 = vpack.c.b16 %v4089, %v4089
      %v4126 = vpack.c.b16 %v4090, %v4090
      %vm4127 = vsmask.f32 1280
      %vm4128 = vsmask.f32 5392
      %vm4129 = vmor %vm4127, %vm4128
      %v4131 = vshrl.u32 %v4091, 16
      %v4133 = vrot.slane %v4131, 6
      %v4134 = vshll.u32 %v4091, 16
      %v4136 = vrot.slane %v4134, 7
      %v4137 = vor.u32 %v4133, %v4136
      %v4138 = vrot.slane %v4137, 4
      %v4140 = vshrl.u32 %v4092, 16
      %v4142 = vrot.slane %v4140, 6
      %v4143 = vshll.u32 %v4092, 16
      %v4145 = vrot.slane %v4143, 7
      %v4146 = vor.u32 %v4142, %v4145
      %v4147 = vsel %vm4129, %v4138, %v4146
      %v4148 = vrot.slane %v4146, 4
      %v4150 = vshrl.u32 %v4093, 16
      %v4152 = vrot.slane %v4150, 6
      %v4153 = vshll.u32 %v4093, 16
      %v4155 = vrot.slane %v4153, 7
      %v4156 = vor.u32 %v4152, %v4155
      %v4157 = vsel %vm4129, %v4148, %v4156
      %v4158 = vrot.slane %v4156, 4
      %v4160 = vshrl.u32 %v4094, 16
      %v4162 = vrot.slane %v4160, 6
      %v4163 = vshll.u32 %v4094, 16
      %v4165 = vrot.slane %v4163, 7
      %v4166 = vor.u32 %v4162, %v4165
      %v4167 = vsel %vm4129, %v4158, %v4166
      %v4168 = vrot.slane %v4166, 4
      %v4170 = vshrl.u32 %v4095, 16
      %v4172 = vrot.slane %v4170, 6
      %v4173 = vshll.u32 %v4095, 16
      %v4175 = vrot.slane %v4173, 7
      %v4176 = vor.u32 %v4172, %v4175
      %v4177 = vsel %vm4129, %v4168, %v4176
      %v4178 = vrot.slane %v4176, 4
      %v4180 = vshrl.u32 %v4096, 16
      %v4182 = vrot.slane %v4180, 6
      %v4183 = vshll.u32 %v4096, 16
      %v4185 = vrot.slane %v4183, 7
      %v4186 = vor.u32 %v4182, %v4185
      %v4187 = vsel %vm4129, %v4178, %v4186
      %v4188 = vrot.slane %v4186, 4
      %v4190 = vshrl.u32 %v4097, 16
      %v4192 = vrot.slane %v4190, 6
      %v4193 = vshll.u32 %v4097, 16
      %v4195 = vrot.slane %v4193, 7
      %v4196 = vor.u32 %v4192, %v4195
      %v4197 = vsel %vm4129, %v4188, %v4196
      %v4198 = vrot.slane %v4196, 4
      %v4200 = vshrl.u32 %v4098, 16
      %v4202 = vrot.slane %v4200, 6
      %v4203 = vshll.u32 %v4098, 16
      %v4205 = vrot.slane %v4203, 7
      %v4206 = vor.u32 %v4202, %v4205
      %v4207 = vsel %vm4129, %v4198, %v4206
      %v4208 = vrot.slane %v4206, 4
      %v4210 = vshrl.u32 %v4099, 16
      %v4212 = vrot.slane %v4210, 6
      %v4213 = vshll.u32 %v4099, 16
      %v4215 = vrot.slane %v4213, 7
      %v4216 = vor.u32 %v4212, %v4215
      %v4217 = vsel %vm4129, %v4208, %v4216
      %v4218 = vrot.slane %v4216, 4
      %v4220 = vshrl.u32 %v4100, 16
      %v4222 = vrot.slane %v4220, 6
      %v4223 = vshll.u32 %v4100, 16
      %v4225 = vrot.slane %v4223, 7
      %v4226 = vor.u32 %v4222, %v4225
      %v4227 = vsel %vm4129, %v4218, %v4226
      %v4228 = vrot.slane %v4226, 4
      %v4230 = vshrl.u32 %v4101, 16
      %v4232 = vrot.slane %v4230, 6
      %v4233 = vshll.u32 %v4101, 16
      %v4235 = vrot.slane %v4233, 7
      %v4236 = vor.u32 %v4232, %v4235
      %v4237 = vsel %vm4129, %v4228, %v4236
      %v4238 = vrot.slane %v4236, 4
      %v4240 = vshrl.u32 %v4102, 16
      %v4242 = vrot.slane %v4240, 6
      %v4243 = vshll.u32 %v4102, 16
      %v4245 = vrot.slane %v4243, 7
      %v4246 = vor.u32 %v4242, %v4245
      %v4247 = vsel %vm4129, %v4238, %v4246
      %v4248 = vrot.slane %v4246, 4
      %v4250 = vshrl.u32 %v4103, 16
      %v4252 = vrot.slane %v4250, 6
      %v4253 = vshll.u32 %v4103, 16
      %v4255 = vrot.slane %v4253, 7
      %v4256 = vor.u32 %v4252, %v4255
      %v4257 = vsel %vm4129, %v4248, %v4256
      %v4258 = vrot.slane %v4256, 4
      %v4260 = vshrl.u32 %v4104, 16
      %v4262 = vrot.slane %v4260, 6
      %v4263 = vshll.u32 %v4104, 16
      %v4265 = vrot.slane %v4263, 7
      %v4266 = vor.u32 %v4262, %v4265
      %v4267 = vsel %vm4129, %v4258, %v4266
      %v4268 = vrot.slane %v4266, 4
      %v4270 = vshrl.u32 %v4105, 16
      %v4272 = vrot.slane %v4270, 6
      %v4273 = vshll.u32 %v4105, 16
      %v4275 = vrot.slane %v4273, 7
      %v4276 = vor.u32 %v4272, %v4275
      %v4277 = vsel %vm4129, %v4268, %v4276
      %v4278 = vrot.slane %v4276, 4
      %v4280 = vshrl.u32 %v4106, 16
      %v4282 = vrot.slane %v4280, 6
      %v4283 = vshll.u32 %v4106, 16
      %v4285 = vrot.slane %v4283, 7
      %v4286 = vor.u32 %v4282, %v4285
      %v4287 = vsel %vm4129, %v4278, %v4286
      %v4288 = vrot.slane %v4286, 4
      %v4290 = vshrl.u32 %v4107, 16
      %v4292 = vrot.slane %v4290, 6
      %v4293 = vshll.u32 %v4107, 16
      %v4295 = vrot.slane %v4293, 7
      %v4296 = vor.u32 %v4292, %v4295
      %v4297 = vsel %vm4129, %v4288, %v4296
      %v4298 = vrot.slane %v4296, 4
      %v4300 = vshrl.u32 %v4108, 16
      %v4302 = vrot.slane %v4300, 6
      %v4303 = vshll.u32 %v4108, 16
      %v4305 = vrot.slane %v4303, 7
      %v4306 = vor.u32 %v4302, %v4305
      %v4307 = vsel %vm4129, %v4298, %v4306
      %v4308 = vrot.slane %v4306, 4
      %v4310 = vshrl.u32 %v4109, 16
      %v4312 = vrot.slane %v4310, 6
      %v4313 = vshll.u32 %v4109, 16
      %v4315 = vrot.slane %v4313, 7
      %v4316 = vor.u32 %v4312, %v4315
      %v4317 = vsel %vm4129, %v4308, %v4316
      %v4318 = vrot.slane %v4316, 4
      %v4320 = vshrl.u32 %v4110, 16
      %v4322 = vrot.slane %v4320, 6
      %v4323 = vshll.u32 %v4110, 16
      %v4325 = vrot.slane %v4323, 7
      %v4326 = vor.u32 %v4322, %v4325
      %v4327 = vsel %vm4129, %v4318, %v4326
      %v4328 = vrot.slane %v4326, 4
      %v4330 = vshrl.u32 %v4111, 16
      %v4332 = vrot.slane %v4330, 6
      %v4333 = vshll.u32 %v4111, 16
      %v4335 = vrot.slane %v4333, 7
      %v4336 = vor.u32 %v4332, %v4335
      %v4337 = vsel %vm4129, %v4328, %v4336
      %v4338 = vrot.slane %v4336, 4
      %v4340 = vshrl.u32 %v4112, 16
      %v4342 = vrot.slane %v4340, 6
      %v4343 = vshll.u32 %v4112, 16
      %v4345 = vrot.slane %v4343, 7
      %v4346 = vor.u32 %v4342, %v4345
      %v4347 = vsel %vm4129, %v4338, %v4346
      %v4348 = vrot.slane %v4346, 4
      %v4350 = vshrl.u32 %v4113, 16
      %v4352 = vrot.slane %v4350, 6
      %v4353 = vshll.u32 %v4113, 16
      %v4355 = vrot.slane %v4353, 7
      %v4356 = vor.u32 %v4352, %v4355
      %v4357 = vsel %vm4129, %v4348, %v4356
      %v4358 = vrot.slane %v4356, 4
      %v4360 = vshrl.u32 %v4114, 16
      %v4362 = vrot.slane %v4360, 6
      %v4363 = vshll.u32 %v4114, 16
      %v4365 = vrot.slane %v4363, 7
      %v4366 = vor.u32 %v4362, %v4365
      %v4367 = vsel %vm4129, %v4358, %v4366
      %v4368 = vrot.slane %v4366, 4
      %v4370 = vshrl.u32 %v4115, 16
      %v4372 = vrot.slane %v4370, 6
      %v4373 = vshll.u32 %v4115, 16
      %v4375 = vrot.slane %v4373, 7
      %v4376 = vor.u32 %v4372, %v4375
      %v4377 = vsel %vm4129, %v4368, %v4376
      %v4378 = vrot.slane %v4376, 4
      %v4380 = vshrl.u32 %v4116, 16
      %v4382 = vrot.slane %v4380, 6
      %v4383 = vshll.u32 %v4116, 16
      %v4385 = vrot.slane %v4383, 7
      %v4386 = vor.u32 %v4382, %v4385
      %v4387 = vsel %vm4129, %v4378, %v4386
      %v4388 = vrot.slane %v4386, 4
      %v4390 = vshrl.u32 %v4117, 16
      %v4392 = vrot.slane %v4390, 6
      %v4393 = vshll.u32 %v4117, 16
      %v4395 = vrot.slane %v4393, 7
      %v4396 = vor.u32 %v4392, %v4395
      %v4397 = vsel %vm4129, %v4388, %v4396
      %v4398 = vrot.slane %v4396, 4
      %v4400 = vshrl.u32 %v4118, 16
      %v4402 = vrot.slane %v4400, 6
      %v4403 = vshll.u32 %v4118, 16
      %v4405 = vrot.slane %v4403, 7
      %v4406 = vor.u32 %v4402, %v4405
      %v4407 = vsel %vm4129, %v4398, %v4406
      %v4408 = vrot.slane %v4406, 4
      %v4410 = vshrl.u32 %v4119, 16
      %v4412 = vrot.slane %v4410, 6
      %v4413 = vshll.u32 %v4119, 16
      %v4415 = vrot.slane %v4413, 7
      %v4416 = vor.u32 %v4412, %v4415
      %v4417 = vsel %vm4129, %v4408, %v4416
      %v4418 = vrot.slane %v4416, 4
      %v4420 = vshrl.u32 %v4120, 16
      %v4422 = vrot.slane %v4420, 6
      %v4423 = vshll.u32 %v4120, 16
      %v4425 = vrot.slane %v4423, 7
      %v4426 = vor.u32 %v4422, %v4425
      %v4427 = vsel %vm4129, %v4418, %v4426
      %v4428 = vrot.slane %v4426, 4
      %v4430 = vshrl.u32 %v4121, 16
      %v4432 = vrot.slane %v4430, 6
      %v4433 = vshll.u32 %v4121, 16
      %v4435 = vrot.slane %v4433, 7
      %v4436 = vor.u32 %v4432, %v4435
      %v4437 = vsel %vm4129, %v4428, %v4436
      %v4438 = vrot.slane %v4436, 4
      %v4440 = vshrl.u32 %v4122, 16
      %v4442 = vrot.slane %v4440, 6
      %v4443 = vshll.u32 %v4122, 16
      %v4445 = vrot.slane %v4443, 7
      %v4446 = vor.u32 %v4442, %v4445
      %v4447 = vsel %vm4129, %v4438, %v4446
      %v4448 = vrot.slane %v4446, 4
      %v4450 = vshrl.u32 %v4123, 16
      %v4452 = vrot.slane %v4450, 6
      %v4453 = vshll.u32 %v4123, 16
      %v4455 = vrot.slane %v4453, 7
      %v4456 = vor.u32 %v4452, %v4455
      %v4457 = vsel %vm4129, %v4448, %v4456
      %v4458 = vrot.slane %v4456, 4
      %v4460 = vshrl.u32 %v4124, 16
      %v4462 = vrot.slane %v4460, 6
      %v4463 = vshll.u32 %v4124, 16
      %v4465 = vrot.slane %v4463, 7
      %v4466 = vor.u32 %v4462, %v4465
      %v4467 = vsel %vm4129, %v4458, %v4466
      %v4468 = vrot.slane %v4466, 4
      %v4470 = vshrl.u32 %v4125, 16
      %v4472 = vrot.slane %v4470, 6
      %v4473 = vshll.u32 %v4125, 16
      %v4475 = vrot.slane %v4473, 7
      %v4476 = vor.u32 %v4472, %v4475
      %v4477 = vsel %vm4129, %v4468, %v4476
      %v4478 = vrot.slane %v4476, 4
      %v4480 = vshrl.u32 %v4126, 16
      %v4482 = vrot.slane %v4480, 6
      %v4483 = vshll.u32 %v4126, 16
      %v4485 = vrot.slane %v4483, 7
      %v4486 = vor.u32 %v4482, %v4485
      %v4487 = vsel %vm4129, %v4478, %v4486
      %v4488 = vrot.slane %v4486, 4
      %vm4526 = vcmask 1043457
      %vm4527 = vsmask.f32 7942
      %vm4528 = vmand %vm4526, %vm4527
      %v4529 = vld [vmem:[%s197 + $0x8] sm:$0xe]
      %v4530 = vsel %vm4528, %v4137, %v4529
      %4531 = vst [vmem:[%s197 + $0x8] sm:$0xe] %v4530
      %4532 = vst [vmem:[%s197 + $0xc] sm:$0xf] %v4147
      %4533 = vst [vmem:[%s197 + $0x10] sm:$0xf] %v4157
      %4534 = vst [vmem:[%s197 + $0x14] sm:$0xf] %v4167
      %4535 = vst [vmem:[%s197 + $0x18] sm:$0xf] %v4177
      %4536 = vst [vmem:[%s197 + $0x1c] sm:$0xf] %v4187
      %4537 = vst [vmem:[%s197 + $0x20] sm:$0xf] %v4197
      %4538 = vst [vmem:[%s197 + $0x24] sm:$0xf] %v4207
      %4539 = vst [vmem:[%s197 + $0x28] sm:$0xf] %v4217
      %4540 = vst [vmem:[%s197 + $0x2c] sm:$0xf] %v4227
      %4541 = vst [vmem:[%s197 + $0x30] sm:$0xf] %v4237
      %4542 = vst [vmem:[%s197 + $0x34] sm:$0xf] %v4247
      %4543 = vst [vmem:[%s197 + $0x38] sm:$0xf] %v4257
      %4544 = vst [vmem:[%s197 + $0x3c] sm:$0xf] %v4267
      %4545 = vst [vmem:[%s197 + $0x40] sm:$0xf] %v4277
      %4546 = vst [vmem:[%s197 + $0x44] sm:$0xf] %v4287
      %4547 = vst [vmem:[%s197 + $0x48] sm:$0xf] %v4297
      %4548 = vst [vmem:[%s197 + $0x4c] sm:$0xf] %v4307
      %4549 = vst [vmem:[%s197 + $0x50] sm:$0xf] %v4317
      %4550 = vst [vmem:[%s197 + $0x54] sm:$0xf] %v4327
      %4551 = vst [vmem:[%s197 + $0x58] sm:$0xf] %v4337
      %4552 = vst [vmem:[%s197 + $0x5c] sm:$0xf] %v4347
      %4553 = vst [vmem:[%s197 + $0x60] sm:$0xf] %v4357
      %4554 = vst [vmem:[%s197 + $0x64] sm:$0xf] %v4367
      %4555 = vst [vmem:[%s197 + $0x68] sm:$0xf] %v4377
      %4556 = vst [vmem:[%s197 + $0x6c] sm:$0xf] %v4387
      %4557 = vst [vmem:[%s197 + $0x70] sm:$0xf] %v4397
      %4558 = vst [vmem:[%s197 + $0x74] sm:$0xf] %v4407
      %4559 = vst [vmem:[%s197 + $0x78] sm:$0xf] %v4417
      %4560 = vst [vmem:[%s197 + $0x7c] sm:$0xf] %v4427
      %4561 = vst [vmem:[%s197 + $0x80] sm:$0xf] %v4437
      %4562 = vst [vmem:[%s197 + $0x84] sm:$0xf] %v4447
      %4563 = vst [vmem:[%s197 + $0x88] sm:$0xf] %v4457
      %4564 = vst [vmem:[%s197 + $0x8c] sm:$0xf] %v4467
      %4565 = vst [vmem:[%s197 + $0x90] sm:$0xf] %v4477
      %4566 = vst [vmem:[%s197 + $0x94] sm:$0xf] %v4487
      %vm4567 = vcmask 1041408
      %vm4568 = vmand %vm4567, %vm4127
      %v4569 = vld [vmem:[%s197 + $0x98] sm:$0x3]
      %v4570 = vsel %vm4568, %v4488, %v4569
      %4571 = vst [vmem:[%s197 + $0x98] sm:$0x3] %v4570
      %p4572 = scmp.lt.s32.totalorder %s15, 1
      %s4573 = scalar_select %p4572, %s15, 1
      %s4574 = smul.addr %s4573, 41
      %s4575 = smul.addr %s4574, 4
      %s4576 = scalar_lea.vmem %s4, %s4575
      // Predicated region
      $region37: #{center_predictor_forward.2} parent=35 // pred_check
        %p4577 = pneg %p122
      $region38: #{center_predictor_forward.2} parent=35 // pred_check_branch
        %4579 = sbr.rel (%p4577) target = $region40
      $region39: #{center_predictor_forward.2} parent=35 // pred_region
        _
      $region40: #{center_predictor_forward.2} parent=35 // pred_fallthru
        _
    $region36: #{center_predictor_forward.2} parent=5 // pred_fallthru
      _
    %p4580 = scmp.le.s32.totalorder 2, %s10
    // Predicated region
    $region41: #{center_predictor_forward.2} parent=5 // pred_check
      %p4581 = pneg %p4580
    $region42: #{center_predictor_forward.2} parent=5 // pred_check_branch
      %4583 = sbr.rel (%p4581) target = $region44
    $region43: #{center_predictor_forward.2} parent=5 // pred_region
      %s4584 = ssub.s32 %s10, 2
      // Predicated region
      $region45: #{center_predictor_forward.2} parent=43 // pred_check
        %p4585 = pneg %p128
      $region46: #{center_predictor_forward.2} parent=43 // pred_check_branch
        %4587 = sbr.rel (%p4585) target = $region48
      $region47: #{center_predictor_forward.2} parent=43 // pred_region
        %p4588 = scmp.lt.s32.totalorder %s16, 1
        %s4589 = scalar_select %p4588, %s16, 1
        %s4590 = smul.addr %s4589, 41
        %s4591 = smul.addr %s4590, 4
        %s4592 = scalar_lea.vmem %s4, %s4591
      $region48: #{center_predictor_forward.2} parent=43 // pred_fallthru
        _
    $region44: #{center_predictor_forward.2} parent=5 // pred_fallthru
      _
  $region6: #{center_predictor_forward.2} parent=0 // loop_footer
    %s14 = sadd.s32 1, %s10
  $region7: #{center_predictor_forward.2} parent=0 // loop_footer_branch
    %9 = sbr.rel target = $region3
  $region8: #{center_predictor_forward.2} parent=0 // loop_exit
    _

// kernel: center_predictor_forward.3
$region0: #{center_predictor_forward.3}
  #allocation0 [shape = 'u32[]', space=smem, size = 0x4, offset = 0x4, fixed_abs, tag = 'smem constant byte address 0x4 - core index']
  #allocation1 [shape = 'u32[144,128]{1,0:T(1,128)}', space=vmem, size = 0x12000, scoped, tag = 'internal scratch']
  %s0 = inlined_call_operand.vmem [shape: bf16[2,328,128], index: 0, kind: input, shape index: {}]
  %s1 = inlined_call_operand.vmem [shape: bf16[9,128,128], index: 1, kind: input, shape index: {}]
  %s2 = inlined_call_operand.vmem [shape: f32[1,128], index: 2, kind: input, shape index: {}]
  %s3 = inlined_call_operand.vmem [shape: bf16[128,128], index: 3, kind: input, shape index: {}]
  %s4 = inlined_call_operand.vmem [shape: f32[1,128], index: 4, kind: input, shape index: {}]
  %s5 = inlined_call_operand.vmem [shape: f32[2,288,128], index: 5, kind: output, shape index: {}]
  %s6 = sld [smem:[#allocation0]]
  $region53: #{center_predictor_forward.3} parent=0
    _
  %s8 = ssub.s32 1, %s6
  %s9 = scalar_select 0, %s8, %s6
  loop: start=0, step=1, limit=4
  $region2: #{center_predictor_forward.3} parent=0 // loop_pre_header
    _
  $region3: #{center_predictor_forward.3} parent=0 // loop_header
    %s11 = sphi 0, %s15
    %p12 = scmp.ge.s32.totalorder %s11, 4
    %s21 = sphi 0, %s23
    %s24 = sphi 0, %s21
    %s25 = sphi 0, %s24
    %s41 = sphi 0, %s25
    %s45 = sphi 0, %s45
    %s47 = sphi 0, %s45
    %s48 = sphi 0, %s47
    %s62 = sphi 0, %s48
    %s66 = sphi 0, %s66
    %s68 = sphi 0, %s66
    %s69 = sphi 0, %s68
    %s83 = sphi 0, %s69
    %s87 = sphi 0, %s87
    %s89 = sphi 0, %s87
    %s90 = sphi 0, %s89
    %s104 = sphi 0, %s90
    %s108 = sphi 0, %s108
    %s110 = sphi 0, %s108
    %s111 = sphi 0, %s110
    %s125 = sphi 0, %s111
    %s131 = sphi 0, %s133
    %s134 = sphi 0, %s131
    %s135 = sphi 0, %s134
    %s151 = sphi 0, %s135
  $region4: #{center_predictor_forward.3} parent=0 // loop_header_branch
    %14 = sbr.rel (%p12) target = $region8
  $region5: #{center_predictor_forward.3} parent=0 // loop_body
    %s16 = ssub.s32 %s11, 1
    %s17 = ssub.s32 %s11, 2
    %s18 = sadd.s32 %s11, 1
    %s19 = ssub.s32 %s11, %s18
    %p20 = scmp.eq.s32.totalorder %s19, 0
    %s22 = sadd.s32 %s21, 1
    %s23 = scalar_select %p20, %s21, %s22
    %p26 = pneg %p20
    %p27 = scmp.eq.s32.totalorder %s11, 1
    %p28 = por %p26, %p27
    %p29 = scmp.ne.s32.totalorder %s21, %s24
    %p30 = scmp.eq.s32.totalorder %s11, 0
    %p31 = por %p29, %p30
    %p32 = scmp.ne.s32.totalorder %s21, %s24
    %p33 = scmp.eq.s32.totalorder %s16, 1
    %p34 = por %p32, %p33
    %p35 = scmp.ne.s32.totalorder %s24, %s25
    %p36 = scmp.eq.s32.totalorder %s16, 0
    %p37 = por %p35, %p36
    %p38 = scmp.ne.s32.totalorder %s24, %s25
    %p39 = scmp.eq.s32.totalorder %s17, 1
    %p40 = por %p38, %p39
    %p42 = scmp.ne.s32.totalorder %s25, %s41
    %p43 = scmp.eq.s32.totalorder %s17, 0
    %p44 = por %p42, %p43
    %s46 = sadd.s32 %s45, 1
    %p49 = scmp.eq.s32.totalorder %s11, 1
    %p50 = scmp.ne.s32.totalorder %s45, %s47
    %p51 = scmp.eq.s32.totalorder %s11, 0
    %p52 = por %p50, %p51
    %p53 = scmp.ne.s32.totalorder %s45, %s47
    %p54 = scmp.eq.s32.totalorder %s16, 1
    %p55 = por %p53, %p54
    %p56 = scmp.ne.s32.totalorder %s47, %s48
    %p57 = scmp.eq.s32.totalorder %s16, 0
    %p58 = por %p56, %p57
    %p59 = scmp.ne.s32.totalorder %s47, %s48
    %p60 = scmp.eq.s32.totalorder %s17, 1
    %p61 = por %p59, %p60
    %p63 = scmp.ne.s32.totalorder %s48, %s62
    %p64 = scmp.eq.s32.totalorder %s17, 0
    %p65 = por %p63, %p64
    %s67 = sadd.s32 %s66, 1
    %p70 = scmp.eq.s32.totalorder %s11, 1
    %p71 = scmp.ne.s32.totalorder %s66, %s68
    %p72 = scmp.eq.s32.totalorder %s11, 0
    %p73 = por %p71, %p72
    %p74 = scmp.ne.s32.totalorder %s66, %s68
    %p75 = scmp.eq.s32.totalorder %s16, 1
    %p76 = por %p74, %p75
    %p77 = scmp.ne.s32.totalorder %s68, %s69
    %p78 = scmp.eq.s32.totalorder %s16, 0
    %p79 = por %p77, %p78
    %p80 = scmp.ne.s32.totalorder %s68, %s69
    %p81 = scmp.eq.s32.totalorder %s17, 1
    %p82 = por %p80, %p81
    %p84 = scmp.ne.s32.totalorder %s69, %s83
    %p85 = scmp.eq.s32.totalorder %s17, 0
    %p86 = por %p84, %p85
    %s88 = sadd.s32 %s87, 1
    %p91 = scmp.eq.s32.totalorder %s11, 1
    %p92 = scmp.ne.s32.totalorder %s87, %s89
    %p93 = scmp.eq.s32.totalorder %s11, 0
    %p94 = por %p92, %p93
    %p95 = scmp.ne.s32.totalorder %s87, %s89
    %p96 = scmp.eq.s32.totalorder %s16, 1
    %p97 = por %p95, %p96
    %p98 = scmp.ne.s32.totalorder %s89, %s90
    %p99 = scmp.eq.s32.totalorder %s16, 0
    %p100 = por %p98, %p99
    %p101 = scmp.ne.s32.totalorder %s89, %s90
    %p102 = scmp.eq.s32.totalorder %s17, 1
    %p103 = por %p101, %p102
    %p105 = scmp.ne.s32.totalorder %s90, %s104
    %p106 = scmp.eq.s32.totalorder %s17, 0
    %p107 = por %p105, %p106
    %s109 = sadd.s32 %s108, 1
    %p112 = scmp.eq.s32.totalorder %s11, 1
    %p113 = scmp.ne.s32.totalorder %s108, %s110
    %p114 = scmp.eq.s32.totalorder %s11, 0
    %p115 = por %p113, %p114
    %p116 = scmp.ne.s32.totalorder %s108, %s110
    %p117 = scmp.eq.s32.totalorder %s16, 1
    %p118 = por %p116, %p117
    %p119 = scmp.ne.s32.totalorder %s110, %s111
    %p120 = scmp.eq.s32.totalorder %s16, 0
    %p121 = por %p119, %p120
    %p122 = scmp.ne.s32.totalorder %s110, %s111
    %p123 = scmp.eq.s32.totalorder %s17, 1
    %p124 = por %p122, %p123
    %p126 = scmp.ne.s32.totalorder %s111, %s125
    %p127 = scmp.eq.s32.totalorder %s17, 0
    %p128 = por %p126, %p127
    %s129 = ssub.s32 %s11, %s18
    %p130 = scmp.eq.s32.totalorder %s129, 0
    %s132 = sadd.s32 %s131, 1
    %s133 = scalar_select %p130, %s131, %s132
    %p136 = pneg %p130
    %p137 = scmp.eq.s32.totalorder %s11, 1
    %p138 = por %p136, %p137
    %p139 = scmp.ne.s32.totalorder %s131, %s134
    %p140 = scmp.eq.s32.totalorder %s11, 0
    %p141 = por %p139, %p140
    %p142 = scmp.ne.s32.totalorder %s131, %s134
    %p143 = scmp.eq.s32.totalorder %s16, 1
    %p144 = por %p142, %p143
    %p145 = scmp.ne.s32.totalorder %s134, %s135
    %p146 = scmp.eq.s32.totalorder %s16, 0
    %p147 = por %p145, %p146
    %p148 = scmp.ne.s32.totalorder %s134, %s135
    %p149 = scmp.eq.s32.totalorder %s17, 1
    %p150 = por %p148, %p149
    %p152 = scmp.ne.s32.totalorder %s135, %s151
    %p153 = scmp.eq.s32.totalorder %s17, 0
    %p154 = por %p152, %p153
    %p155 = scmp.le.s32.totalorder 1, %s11
    %p156 = scmp.lt.s32.totalorder %s11, 3
    %p157 = pnand %p155, %p156
    %p158 = pneg %p157
    // Predicated region
    $region9: #{center_predictor_forward.3} parent=5 // pred_check
      _
    $region10: #{center_predictor_forward.3} parent=5 // pred_check_branch
      %160 = sbr.rel (%p157) target = $region12
    $region11: #{center_predictor_forward.3} parent=5 // pred_region
      %s161 = ssub.s32 %s11, 1
      // Predicated region
      $region13: #{center_predictor_forward.3} parent=11 // pred_check
        %p162 = pneg %p58
      $region14: #{center_predictor_forward.3} parent=11 // pred_check_branch
        %164 = sbr.rel (%p162) target = $region16
      $region15: #{center_predictor_forward.3} parent=11 // pred_region
        _
      $region16: #{center_predictor_forward.3} parent=11 // pred_fallthru
        _
      // Predicated region
      $region17: #{center_predictor_forward.3} parent=11 // pred_check
        %p165 = pneg %p79
      $region18: #{center_predictor_forward.3} parent=11 // pred_check_branch
        %167 = sbr.rel (%p165) target = $region20
      $region19: #{center_predictor_forward.3} parent=11 // pred_region
        _
      $region20: #{center_predictor_forward.3} parent=11 // pred_fallthru
        _
      // Predicated region
      $region21: #{center_predictor_forward.3} parent=11 // pred_check
        %p168 = pneg %p100
      $region22: #{center_predictor_forward.3} parent=11 // pred_check_branch
        %170 = sbr.rel (%p168) target = $region24
      $region23: #{center_predictor_forward.3} parent=11 // pred_region
        _
      $region24: #{center_predictor_forward.3} parent=11 // pred_fallthru
        _
      // Predicated region
      $region25: #{center_predictor_forward.3} parent=11 // pred_check
        %p171 = pneg %p121
      $region26: #{center_predictor_forward.3} parent=11 // pred_check_branch
        %173 = sbr.rel (%p171) target = $region28
      $region27: #{center_predictor_forward.3} parent=11 // pred_region
        _
      $region28: #{center_predictor_forward.3} parent=11 // pred_fallthru
        _
    $region12: #{center_predictor_forward.3} parent=5 // pred_fallthru
      _
    %p174 = scmp.lt.s32.totalorder %s11, 2
    // Predicated region
    $region29: #{center_predictor_forward.3} parent=5 // pred_check
      %p175 = pneg %p174
    $region30: #{center_predictor_forward.3} parent=5 // pred_check_branch
      %177 = sbr.rel (%p175) target = $region32
    $region31: #{center_predictor_forward.3} parent=5 // pred_region
      // Predicated region
      $region33: #{center_predictor_forward.3} parent=31 // pred_check
        %p178 = pneg %p31
      $region34: #{center_predictor_forward.3} parent=31 // pred_check_branch
        %180 = sbr.rel (%p178) target = $region36
      $region35: #{center_predictor_forward.3} parent=31 // pred_region
        %p181 = scmp.lt.s32.totalorder %s11, 1
        %s182 = scalar_select %p181, %s11, 1
        %s183 = smul.addr %s182, 41
        %s184 = smul.addr %s183, 4
        %s185 = scalar_lea.vmem %s0, %s184
      $region36: #{center_predictor_forward.3} parent=31 // pred_fallthru
        _
    $region32: #{center_predictor_forward.3} parent=5 // pred_fallthru
      _
    %p186 = scmp.le.s32.totalorder 1, %s11
    %p187 = scmp.lt.s32.totalorder %s11, 3
    %p188 = pnand %p186, %p187
    %p189 = pneg %p188
    // Predicated region
    $region37: #{center_predictor_forward.3} parent=5 // pred_check
      _
    $region38: #{center_predictor_forward.3} parent=5 // pred_check_branch
      %191 = sbr.rel (%p188) target = $region40
    $region39: #{center_predictor_forward.3} parent=5 // pred_region
      %s192 = ssub.s32 %s11, 1
      %p193 = scmp.lt.s32.totalorder %s16, 1
      %s194 = scalar_select %p193, %s16, 1
      %s195 = smul.addr %s194, 41
      %s196 = smul.addr %s195, 4
      %s197 = scalar_lea.vmem %s0, %s196
      %p198 = pneg %p37
      %p199 = pneg %p34
      %p200 = pneg %p58
      %p201 = pneg %p55
      %p202 = pneg %p79
      %p203 = pneg %p76
      %p204 = pneg %p100
      %p205 = pneg %p97
      %p206 = pneg %p121
      %p207 = pneg %p118
      %p208 = pneg %p147
      %p209 = pneg %p144
      %p210 = scmp.lt.s32.totalorder %s16, 1
      %s211 = scalar_select %p210, %s16, 1
      %s212 = smul.addr %s211, 36
      %s213 = smul.addr %s212, 8
      %s214 = scalar_lea.vmem %s5, %s213
      %p215 = scmp.lt.s32.totalorder %s16, 1
      %s216 = scalar_select %p215, %s16, 1
      %s217 = smul.addr %s216, 41
      %s218 = smul.addr %s217, 4
      %s219 = scalar_lea.vmem %s0, %s218
      %p220 = scmp.lt.s32.totalorder %s16, 1
      %s221 = scalar_select %p220, %s16, 1
      %s222 = smul.addr %s221, 36
      %s223 = smul.addr %s222, 8
      %s224 = scalar_lea.vmem %s5, %s223
      %v226 = vld [vmem:[%s219] sm:$0xf]
      %v227 = vld [vmem:[%s219 + $0x4] sm:$0xf]
      %v228 = vld [vmem:[%s219 + $0x8] sm:$0xf]
      %v229 = vld [vmem:[%s219 + $0xc] sm:$0xf]
      %v230 = vld [vmem:[%s219 + $0x10] sm:$0xf]
      %v231 = vld [vmem:[%s219 + $0x14] sm:$0xf]
      %v232 = vld [vmem:[%s219 + $0x18] sm:$0xf]
      %v233 = vld [vmem:[%s219 + $0x1c] sm:$0xf]
      %v234 = vld [vmem:[%s219 + $0x20] sm:$0xf]
      %v235 = vld [vmem:[%s219 + $0x24] sm:$0xf]
      %v236 = vld [vmem:[%s219 + $0x28] sm:$0xf]
      %v237 = vld [vmem:[%s219 + $0x2c] sm:$0xf]
      %v238 = vld [vmem:[%s219 + $0x30] sm:$0xf]
      %v239 = vld [vmem:[%s219 + $0x34] sm:$0xf]
      %v240 = vld [vmem:[%s219 + $0x38] sm:$0xf]
      %v241 = vld [vmem:[%s219 + $0x3c] sm:$0xf]
      %v242 = vld [vmem:[%s219 + $0x40] sm:$0xf]
      %v243 = vld [vmem:[%s219 + $0x44] sm:$0xf]
      %v244 = vld [vmem:[%s219 + $0x48] sm:$0xf]
      %v245 = vld [vmem:[%s219 + $0x4c] sm:$0xf]
      %v246 = vld [vmem:[%s219 + $0x50] sm:$0xf]
      %v247 = vld [vmem:[%s219 + $0x54] sm:$0xf]
      %v248 = vld [vmem:[%s219 + $0x58] sm:$0xf]
      %v249 = vld [vmem:[%s219 + $0x5c] sm:$0xf]
      %v250 = vld [vmem:[%s219 + $0x60] sm:$0xf]
      %v251 = vld [vmem:[%s219 + $0x64] sm:$0xf]
      %v252 = vld [vmem:[%s219 + $0x68] sm:$0xf]
      %v253 = vld [vmem:[%s219 + $0x6c] sm:$0xf]
      %v254 = vld [vmem:[%s219 + $0x70] sm:$0xf]
      %v255 = vld [vmem:[%s219 + $0x74] sm:$0xf]
      %v256 = vld [vmem:[%s219 + $0x78] sm:$0xf]
      %v257 = vld [vmem:[%s219 + $0x7c] sm:$0xf]
      %v258 = vld [vmem:[%s219 + $0x80] sm:$0xf]
      %v259 = vld [vmem:[%s219 + $0x84] sm:$0xf]
      %v260 = vld [vmem:[%s219 + $0x88] sm:$0xf]
      %v261 = vld [vmem:[%s219 + $0x8c] sm:$0xf]
      %v262 = vld [vmem:[%s1] sm:$0xf]
      %v263 = vld [vmem:[%s1 + $0x4] sm:$0xf]
      %v264 = vld [vmem:[%s1 + $0x8] sm:$0xf]
      %v265 = vld [vmem:[%s1 + $0xc] sm:$0xf]
      %v266 = vld [vmem:[%s1 + $0x10] sm:$0xf]
      %v267 = vld [vmem:[%s1 + $0x14] sm:$0xf]
      %v268 = vld [vmem:[%s1 + $0x18] sm:$0xf]
      %v269 = vld [vmem:[%s1 + $0x1c] sm:$0xf]
      %v270 = vld [vmem:[%s1 + $0x20] sm:$0xf]
      %v271 = vld [vmem:[%s1 + $0x24] sm:$0xf]
      %v272 = vld [vmem:[%s1 + $0x28] sm:$0xf]
      %v273 = vld [vmem:[%s1 + $0x2c] sm:$0xf]
      %v274 = vld [vmem:[%s1 + $0x30] sm:$0xf]
      %v275 = vld [vmem:[%s1 + $0x34] sm:$0xf]
      %v276 = vld [vmem:[%s1 + $0x38] sm:$0xf]
      %v277 = vld [vmem:[%s1 + $0x3c] sm:$0xf]
      %v278 = vld [vmem:[%s219 + $0x90] sm:$0x1]
      %s279 = scalar_lea.vmem %s1, 64
      %v280 = vld [vmem:[%s279] sm:$0xf]
      %v281 = vld [vmem:[%s279 + $0x4] sm:$0xf]
      %v282 = vld [vmem:[%s279 + $0x8] sm:$0xf]
      %v283 = vld [vmem:[%s279 + $0xc] sm:$0xf]
      %v284 = vld [vmem:[%s279 + $0x10] sm:$0xf]
      %v285 = vld [vmem:[%s279 + $0x14] sm:$0xf]
      %v286 = vld [vmem:[%s279 + $0x18] sm:$0xf]
      %v287 = vld [vmem:[%s279 + $0x1c] sm:$0xf]
      %v288 = vld [vmem:[%s279 + $0x20] sm:$0xf]
      %v289 = vld [vmem:[%s279 + $0x24] sm:$0xf]
      %v290 = vld [vmem:[%s279 + $0x28] sm:$0xf]
      %v291 = vld [vmem:[%s279 + $0x2c] sm:$0xf]
      %v292 = vld [vmem:[%s279 + $0x30] sm:$0xf]
      %v293 = vld [vmem:[%s279 + $0x34] sm:$0xf]
      %v294 = vld [vmem:[%s279 + $0x38] sm:$0xf]
      %v295 = vld [vmem:[%s279 + $0x3c] sm:$0xf]
      %v333 = vunpack.c.l.b16 %v226
      %v334 = vunpack.c.l.b16 %v227
      %v335 = vunpack.c.l.b16 %v228
      %v336 = vunpack.c.l.b16 %v229
      %v337 = vunpack.c.l.b16 %v230
      %v338 = vunpack.c.l.b16 %v231
      %v339 = vunpack.c.l.b16 %v232
      %v340 = vunpack.c.l.b16 %v233
      %v341 = vunpack.c.l.b16 %v234
      %v342 = vunpack.c.l.b16 %v235
      %v343 = vunpack.c.l.b16 %v236
      %v344 = vunpack.c.l.b16 %v237
      %v345 = vunpack.c.l.b16 %v238
      %v346 = vunpack.c.l.b16 %v239
      %v347 = vunpack.c.l.b16 %v240
      %v348 = vunpack.c.l.b16 %v241
      %v349 = vunpack.c.l.b16 %v242
      %v350 = vunpack.c.l.b16 %v243
      %v351 = vunpack.c.l.b16 %v244
      %v352 = vunpack.c.l.b16 %v245
      %v353 = vunpack.c.l.b16 %v246
      %v354 = vunpack.c.l.b16 %v247
      %v355 = vunpack.c.l.b16 %v248
      %v356 = vunpack.c.l.b16 %v249
      %v357 = vunpack.c.l.b16 %v250
      %v358 = vunpack.c.l.b16 %v251
      %v359 = vunpack.c.l.b16 %v252
      %v360 = vunpack.c.l.b16 %v253
      %v361 = vunpack.c.l.b16 %v254
      %v362 = vunpack.c.l.b16 %v255
      %v363 = vunpack.c.l.b16 %v256
      %v364 = vunpack.c.l.b16 %v257
      %v365 = vunpack.c.l.b16 %v258
      %v366 = vunpack.c.l.b16 %v259
      %v367 = vunpack.c.l.b16 %v260
      %v368 = vunpack.c.l.b16 %v261
      %v369 = vunpack.c.l.b16 %v278
      %v370 = vpack.c.b16 %v334, %v333
      %v371 = vpack.c.b16 %v336, %v335
      %v372 = vpack.c.b16 %v338, %v337
      %v373 = vpack.c.b16 %v340, %v339
      %v374 = vpack.c.b16 %v342, %v341
      %v375 = vpack.c.b16 %v344, %v343
      %v376 = vpack.c.b16 %v346, %v345
      %v377 = vpack.c.b16 %v348, %v347
      %v378 = vpack.c.b16 %v350, %v349
      %v379 = vpack.c.b16 %v352, %v351
      %v380 = vpack.c.b16 %v354, %v353
      %v381 = vpack.c.b16 %v356, %v355
      %v382 = vpack.c.b16 %v358, %v357
      %v383 = vpack.c.b16 %v360, %v359
      %v384 = vpack.c.b16 %v362, %v361
      %v385 = vpack.c.b16 %v364, %v363
      %v386 = vpack.c.b16 %v366, %v365
      %v387 = vpack.c.b16 %v368, %v367
      %v388 = vpack.c.b16 %v369, %v369
      %vm389 = vsmask.f32 7424
      %v391 = vshrl.u32 %v370, 16
      %v393 = vshll.u32 %v370, 16
      %v395 = vrot.slane %v393, 1
      %v396 = vor.u32 %v391, %v395
      %v398 = vshll.u32 %v371, 16
      %v400 = vrot.slane %v398, 1
      %v401 = vsel %vm389, %v396, %v400
      %v402 = vshrl.u32 %v371, 16
      %v404 = vor.u32 %v402, %v400
      %v406 = vshll.u32 %v372, 16
      %v408 = vrot.slane %v406, 1
      %v409 = vsel %vm389, %v404, %v408
      %v410 = vshrl.u32 %v372, 16
      %v412 = vor.u32 %v410, %v408
      %v414 = vshll.u32 %v373, 16
      %v416 = vrot.slane %v414, 1
      %v417 = vsel %vm389, %v412, %v416
      %v418 = vshrl.u32 %v373, 16
      %v420 = vor.u32 %v418, %v416
      %v422 = vshll.u32 %v374, 16
      %v424 = vrot.slane %v422, 1
      %v425 = vsel %vm389, %v420, %v424
      %v426 = vshrl.u32 %v374, 16
      %v428 = vor.u32 %v426, %v424
      %v430 = vshll.u32 %v375, 16
      %v432 = vrot.slane %v430, 1
      %v433 = vsel %vm389, %v428, %v432
      %v434 = vshrl.u32 %v375, 16
      %v436 = vor.u32 %v434, %v432
      %v438 = vshll.u32 %v376, 16
      %v440 = vrot.slane %v438, 1
      %v441 = vsel %vm389, %v436, %v440
      %v442 = vshrl.u32 %v376, 16
      %v444 = vor.u32 %v442, %v440
      %v446 = vshll.u32 %v377, 16
      %v448 = vrot.slane %v446, 1
      %v449 = vsel %vm389, %v444, %v448
      %v450 = vshrl.u32 %v377, 16
      %v452 = vor.u32 %v450, %v448
      %v454 = vshll.u32 %v378, 16
      %v456 = vrot.slane %v454, 1
      %v457 = vsel %vm389, %v452, %v456
      %v458 = vshrl.u32 %v378, 16
      %v460 = vor.u32 %v458, %v456
      %v462 = vshll.u32 %v379, 16
      %v464 = vrot.slane %v462, 1
      %v465 = vsel %vm389, %v460, %v464
      %v466 = vshrl.u32 %v379, 16
      %v468 = vor.u32 %v466, %v464
      %v470 = vshll.u32 %v380, 16
      %v472 = vrot.slane %v470, 1
      %v473 = vsel %vm389, %v468, %v472
      %v474 = vshrl.u32 %v380, 16
      %v476 = vor.u32 %v474, %v472
      %v478 = vshll.u32 %v381, 16
      %v480 = vrot.slane %v478, 1
      %v481 = vsel %vm389, %v476, %v480
      %v482 = vshrl.u32 %v381, 16
      %v484 = vor.u32 %v482, %v480
      %v486 = vshll.u32 %v382, 16
      %v488 = vrot.slane %v486, 1
      %v489 = vsel %vm389, %v484, %v488
      %v490 = vshrl.u32 %v382, 16
      %v492 = vor.u32 %v490, %v488
      %v494 = vshll.u32 %v383, 16
      %v496 = vrot.slane %v494, 1
      %v497 = vsel %vm389, %v492, %v496
      %v498 = vshrl.u32 %v383, 16
      %v500 = vor.u32 %v498, %v496
      %v502 = vshll.u32 %v384, 16
      %v504 = vrot.slane %v502, 1
      %v505 = vsel %vm389, %v500, %v504
      %v506 = vshrl.u32 %v384, 16
      %v508 = vor.u32 %v506, %v504
      %v510 = vshll.u32 %v385, 16
      %v512 = vrot.slane %v510, 1
      %v513 = vsel %vm389, %v508, %v512
      %v514 = vshrl.u32 %v385, 16
      %v516 = vor.u32 %v514, %v512
      %v518 = vshll.u32 %v386, 16
      %v520 = vrot.slane %v518, 1
      %v521 = vsel %vm389, %v516, %v520
      %v522 = vshrl.u32 %v386, 16
      %v524 = vor.u32 %v522, %v520
      %v526 = vshll.u32 %v387, 16
      %v528 = vrot.slane %v526, 1
      %v529 = vsel %vm389, %v524, %v528
      %v530 = vshrl.u32 %v387, 16
      %v532 = vor.u32 %v530, %v528
      %v534 = vshll.u32 %v388, 16
      %v536 = vrot.slane %v534, 1
      %v537 = vsel %vm389, %v532, %v536
      %v572 = vunpack.c.l.b16 %v280
      %v573 = vunpack.c.l.b16 %v281
      %v574 = vunpack.c.l.b16 %v282
      %v575 = vunpack.c.l.b16 %v283
      %v576 = vunpack.c.l.b16 %v284
      %v577 = vunpack.c.l.b16 %v285
      %v578 = vunpack.c.l.b16 %v286
      %v579 = vunpack.c.l.b16 %v287
      %v580 = vunpack.c.l.b16 %v288
      %v581 = vunpack.c.l.b16 %v289
      %v582 = vunpack.c.l.b16 %v290
      %v583 = vunpack.c.l.b16 %v291
      %v584 = vunpack.c.l.b16 %v292
      %v585 = vunpack.c.l.b16 %v293
      %v586 = vunpack.c.l.b16 %v294
      %v587 = vunpack.c.l.b16 %v295
      %v588 = vpack.c.b16 %v573, %v572
      %v589 = vpack.c.b16 %v575, %v574
      %v590 = vpack.c.b16 %v577, %v576
      %v591 = vpack.c.b16 %v579, %v578
      %v592 = vpack.c.b16 %v581, %v580
      %v593 = vpack.c.b16 %v583, %v582
      %v594 = vpack.c.b16 %v585, %v584
      %v595 = vpack.c.b16 %v587, %v586
      %604 = vmatprep.subr.bf16.mxu0 0
      %605 = vmatpush1.bf16.msra.mxu0 %v588
      %606 = vmatprep.subr.bf16.mxu0 0
      %607 = vmatpush1.bf16.msra.mxu0 %v589
      %608 = vmatprep.subr.bf16.mxu0 0
      %609 = vmatpush1.bf16.msra.mxu0 %v590
      %610 = vmatprep.subr.bf16.mxu0 0
      %611 = vmatpush1.bf16.msra.mxu0 %v591
      %612 = vmatprep.subr.bf16.mxu0 0
      %613 = vmatpush1.bf16.msra.mxu0 %v592
      %614 = vmatprep.subr.bf16.mxu0 0
      %615 = vmatpush1.bf16.msra.mxu0 %v593
      %616 = vmatprep.subr.bf16.mxu0 0
      %617 = vmatpush1.bf16.msra.mxu0 %v594
      %618 = vmatprep.subr.bf16.mxu0 0
      %619 = vmatpush1.bf16.msra.mxu0 %v595
      %620 = vmatprep.subr.bf16.mxu0 0
      %621 = vmatpush1.bf16.msra.mxu0 0
      %622 = vmatprep.subr.bf16.mxu0 0
      %623 = vmatpush1.bf16.msra.mxu0 0
      %624 = vmatprep.subr.bf16.mxu0 0
      %625 = vmatpush1.bf16.msra.mxu0 0
      %626 = vmatprep.subr.bf16.mxu0 0
      %627 = vmatpush1.bf16.msra.mxu0 0
      %628 = vmatprep.subr.bf16.mxu0 0
      %629 = vmatpush1.bf16.msra.mxu0 0
      %630 = vmatprep.subr.bf16.mxu0 0
      %631 = vmatpush1.bf16.msra.mxu0 0
      %632 = vmatprep.subr.bf16.mxu0 0
      %633 = vmatpush1.bf16.msra.mxu0 0
      %634 = vmatprep.subr.bf16.mxu0 0
      %635 = vmatpush1.bf16.msra.mxu0 0
      %636 = vmatprep.mubr.bf16.mxu0 0
      %637 = vmatmul.mubr.bf16.gmra.mrb[0].mxu0 %v401
      %v638 = vpop.f32.mrb[0].mxu0
      %v639 = vadd.f32 0.0, %v638
      %v640 = vpop.f32.mrb[0].mxu0
      %v641 = vpop.f32.mrb[0].mxu0
      %v642 = vadd.f32 0.0, %v641
      %v643 = vpop.f32.mrb[0].mxu0
      %644 = vmatprep.mubr.bf16.mxu0 0
      %645 = vmatmul.mubr.bf16.gmra.mrb[0].mxu0 %v409
      %v646 = vpop.f32.mrb[0].mxu0
      %v647 = vadd.f32 0.0, %v646
      %v648 = vpop.f32.mrb[0].mxu0
      %v649 = vpop.f32.mrb[0].mxu0
      %v650 = vadd.f32 0.0, %v649
      %v651 = vpop.f32.mrb[0].mxu0
      %652 = vmatprep.mubr.bf16.mxu0 0
      %653 = vmatmul.mubr.bf16.gmra.mrb[0].mxu0 %v417
      %v654 = vpop.f32.mrb[0].mxu0
      %v655 = vadd.f32 0.0, %v654
      %v656 = vpop.f32.mrb[0].mxu0
      %v657 = vpop.f32.mrb[0].mxu0
      %v658 = vadd.f32 0.0, %v657
      %v659 = vpop.f32.mrb[0].mxu0
      %660 = vmatprep.mubr.bf16.mxu0 0
      %661 = vmatmul.mubr.bf16.gmra.mrb[0].mxu0 %v425
      %v662 = vpop.f32.mrb[0].mxu0
      %v663 = vadd.f32 0.0, %v662
      %v664 = vpop.f32.mrb[0].mxu0
      %v665 = vpop.f32.mrb[0].mxu0
      %v666 = vadd.f32 0.0, %v665
      %v667 = vpop.f32.mrb[0].mxu0
      %668 = vmatprep.mubr.bf16.mxu0 0
      %669 = vmatmul.mubr.bf16.gmra.mrb[0].mxu0 %v433
      %v670 = vpop.f32.mrb[0].mxu0
      %v671 = vadd.f32 0.0, %v670
      %v672 = vpop.f32.mrb[0].mxu0
      %v673 = vpop.f32.mrb[0].mxu0
      %v674 = vadd.f32 0.0, %v673
      %v675 = vpop.f32.mrb[0].mxu0
      %676 = vmatprep.mubr.bf16.mxu0 0
      %677 = vmatmul.mubr.bf16.gmra.mrb[0].mxu0 %v441
      %v678 = vpop.f32.mrb[0].mxu0
      %v679 = vadd.f32 0.0, %v678
      %v680 = vpop.f32.mrb[0].mxu0
      %v681 = vpop.f32.mrb[0].mxu0
      %v682 = vadd.f32 0.0, %v681
      %v683 = vpop.f32.mrb[0].mxu0
      %684 = vmatprep.mubr.bf16.mxu0 0
      %685 = vmatmul.mubr.bf16.gmra.mrb[0].mxu0 %v449
      %v686 = vpop.f32.mrb[0].mxu0
      %v687 = vadd.f32 0.0, %v686
      %v688 = vpop.f32.mrb[0].mxu0
      %v689 = vpop.f32.mrb[0].mxu0
      %v690 = vadd.f32 0.0, %v689
      %v691 = vpop.f32.mrb[0].mxu0
      %692 = vmatprep.mubr.bf16.mxu0 0
      %693 = vmatmul.mubr.bf16.gmra.mrb[0].mxu0 %v457
      %v694 = vpop.f32.mrb[0].mxu0
      %v695 = vadd.f32 0.0, %v694
      %v696 = vpop.f32.mrb[0].mxu0
      %v697 = vpop.f32.mrb[0].mxu0
      %v698 = vadd.f32 0.0, %v697
      %v699 = vpop.f32.mrb[0].mxu0
      %700 = vmatprep.mubr.bf16.mxu0 0
      %701 = vmatmul.mubr.bf16.gmra.mrb[0].mxu0 %v465
      %v702 = vpop.f32.mrb[0].mxu0
      %v703 = vadd.f32 0.0, %v702
      %v704 = vpop.f32.mrb[0].mxu0
      %v705 = vpop.f32.mrb[0].mxu0
      %v706 = vadd.f32 0.0, %v705
      %v707 = vpop.f32.mrb[0].mxu0
      %708 = vmatprep.mubr.bf16.mxu0 0
      %709 = vmatmul.mubr.bf16.gmra.mrb[0].mxu0 %v473
      %v710 = vpop.f32.mrb[0].mxu0
      %v711 = vadd.f32 0.0, %v710
      %v712 = vpop.f32.mrb[0].mxu0
      %v713 = vpop.f32.mrb[0].mxu0
      %v714 = vadd.f32 0.0, %v713
      %v715 = vpop.f32.mrb[0].mxu0
      %716 = vmatprep.mubr.bf16.mxu0 0
      %717 = vmatmul.mubr.bf16.gmra.mrb[0].mxu0 %v481
      %v718 = vpop.f32.mrb[0].mxu0
      %v719 = vadd.f32 0.0, %v718
      %v720 = vpop.f32.mrb[0].mxu0
      %v721 = vpop.f32.mrb[0].mxu0
      %v722 = vadd.f32 0.0, %v721
      %v723 = vpop.f32.mrb[0].mxu0
      %724 = vmatprep.mubr.bf16.mxu0 0
      %725 = vmatmul.mubr.bf16.gmra.mrb[0].mxu0 %v489
      %v726 = vpop.f32.mrb[0].mxu0
      %v727 = vadd.f32 0.0, %v726
      %v728 = vpop.f32.mrb[0].mxu0
      %v729 = vpop.f32.mrb[0].mxu0
      %v730 = vadd.f32 0.0, %v729
      %v731 = vpop.f32.mrb[0].mxu0
      %732 = vmatprep.mubr.bf16.mxu0 0
      %733 = vmatmul.mubr.bf16.gmra.mrb[0].mxu0 %v497
      %v734 = vpop.f32.mrb[0].mxu0
      %v735 = vadd.f32 0.0, %v734
      %v736 = vpop.f32.mrb[0].mxu0
      %v737 = vpop.f32.mrb[0].mxu0
      %v738 = vadd.f32 0.0, %v737
      %v739 = vpop.f32.mrb[0].mxu0
      %740 = vmatprep.mubr.bf16.mxu0 0
      %741 = vmatmul.mubr.bf16.gmra.mrb[0].mxu0 %v505
      %v742 = vpop.f32.mrb[0].mxu0
      %v743 = vadd.f32 0.0, %v742
      %v744 = vpop.f32.mrb[0].mxu0
      %v745 = vpop.f32.mrb[0].mxu0
      %v746 = vadd.f32 0.0, %v745
      %v747 = vpop.f32.mrb[0].mxu0
      %748 = vmatprep.mubr.bf16.mxu0 0
      %749 = vmatmul.mubr.bf16.gmra.mrb[0].mxu0 %v513
      %v750 = vpop.f32.mrb[0].mxu0
      %v751 = vadd.f32 0.0, %v750
      %v752 = vpop.f32.mrb[0].mxu0
      %v753 = vpop.f32.mrb[0].mxu0
      %v754 = vadd.f32 0.0, %v753
      %v755 = vpop.f32.mrb[0].mxu0
      %756 = vmatprep.mubr.bf16.mxu0 0
      %757 = vmatmul.mubr.bf16.gmra.mrb[0].mxu0 %v521
      %v758 = vpop.f32.mrb[0].mxu0
      %v759 = vadd.f32 0.0, %v758
      %v760 = vpop.f32.mrb[0].mxu0
      %v761 = vpop.f32.mrb[0].mxu0
      %v762 = vadd.f32 0.0, %v761
      %v763 = vpop.f32.mrb[0].mxu0
      %764 = vmatprep.mubr.bf16.mxu0 0
      %765 = vmatmul.mubr.bf16.gmra.mrb[0].mxu0 %v529
      %v766 = vpop.f32.mrb[0].mxu0
      %v767 = vadd.f32 0.0, %v766
      %v768 = vpop.f32.mrb[0].mxu0
      %v769 = vpop.f32.mrb[0].mxu0
      %v770 = vadd.f32 0.0, %v769
      %v771 = vpop.f32.mrb[0].mxu0
      %772 = vmatprep.mubr.bf16.mxu0 0
      %773 = vmatmul.mubr.bf16.gmra.mrb[0].mxu0 %v537
      %v774 = vpop.f32.mrb[0].mxu0
      %v775 = vadd.f32 0.0, %v774
      %v776 = vpop.f32.mrb[0].mxu0
      %v777 = vpop.f32.mrb[0].mxu0
      %v778 = vadd.f32 0.0, %v777
      %v779 = vpop.f32.mrb[0].mxu0
      %780 = vdwg.mxu0
      %v815 = vunpack.c.l.b16 %v262
      %v816 = vunpack.c.l.b16 %v263
      %v817 = vunpack.c.l.b16 %v264
      %v818 = vunpack.c.l.b16 %v265
      %v819 = vunpack.c.l.b16 %v266
      %v820 = vunpack.c.l.b16 %v267
      %v821 = vunpack.c.l.b16 %v268
      %v822 = vunpack.c.l.b16 %v269
      %v823 = vunpack.c.l.b16 %v270
      %v824 = vunpack.c.l.b16 %v271
      %v825 = vunpack.c.l.b16 %v272
      %v826 = vunpack.c.l.b16 %v273
      %v827 = vunpack.c.l.b16 %v274
      %v828 = vunpack.c.l.b16 %v275
      %v829 = vunpack.c.l.b16 %v276
      %v830 = vunpack.c.l.b16 %v277
      %v831 = vpack.c.b16 %v816, %v815
      %v832 = vpack.c.b16 %v818, %v817
      %v833 = vpack.c.b16 %v820, %v819
      %v834 = vpack.c.b16 %v822, %v821
      %v835 = vpack.c.b16 %v824, %v823
      %v836 = vpack.c.b16 %v826, %v825
      %v837 = vpack.c.b16 %v828, %v827
      %v838 = vpack.c.b16 %v830, %v829
      %847 = vmatprep.subr.bf16.mxu0 0
      %848 = vmatpush1.bf16.msra.mxu0 %v831
      %849 = vmatprep.subr.bf16.mxu0 0
      %850 = vmatpush1.bf16.msra.mxu0 %v832
      %851 = vmatprep.subr.bf16.mxu0 0
      %852 = vmatpush1.bf16.msra.mxu0 %v833
      %853 = vmatprep.subr.bf16.mxu0 0
      %854 = vmatpush1.bf16.msra.mxu0 %v834
      %855 = vmatprep.subr.bf16.mxu0 0
      %856 = vmatpush1.bf16.msra.mxu0 %v835
      %857 = vmatprep.subr.bf16.mxu0 0
      %858 = vmatpush1.bf16.msra.mxu0 %v836
      %859 = vmatprep.subr.bf16.mxu0 0
      %860 = vmatpush1.bf16.msra.mxu0 %v837
      %861 = vmatprep.subr.bf16.mxu0 0
      %862 = vmatpush1.bf16.msra.mxu0 %v838
      %863 = vmatprep.subr.bf16.mxu0 0
      %864 = vmatpush1.bf16.msra.mxu0 0
      %865 = vmatprep.subr.bf16.mxu0 0
      %866 = vmatpush1.bf16.msra.mxu0 0
      %867 = vmatprep.subr.bf16.mxu0 0
      %868 = vmatpush1.bf16.msra.mxu0 0
      %869 = vmatprep.subr.bf16.mxu0 0
      %870 = vmatpush1.bf16.msra.mxu0 0
      %871 = vmatprep.subr.bf16.mxu0 0
      %872 = vmatpush1.bf16.msra.mxu0 0
      %873 = vmatprep.subr.bf16.mxu0 0
      %874 = vmatpush1.bf16.msra.mxu0 0
      %875 = vmatprep.subr.bf16.mxu0 0
      %876 = vmatpush1.bf16.msra.mxu0 0
      %877 = vmatprep.subr.bf16.mxu0 0
      %878 = vmatpush1.bf16.msra.mxu0 0
      %879 = vmatprep.mubr.bf16.mxu0 0
      %880 = vmatmul.mubr.bf16.gmra.mrb[0].mxu0 %v370
      %v881 = vpop.f32.mrb[0].mxu0
      %v882 = vadd.f32 %v639, %v881
      %v883 = vpop.f32.mrb[0].mxu0
      %v884 = vpop.f32.mrb[0].mxu0
      %v885 = vadd.f32 %v642, %v884
      %v886 = vpop.f32.mrb[0].mxu0
      %887 = vmatprep.mubr.bf16.mxu0 0
      %888 = vmatmul.mubr.bf16.gmra.mrb[0].mxu0 %v371
      %v889 = vpop.f32.mrb[0].mxu0
      %v890 = vadd.f32 %v647, %v889
      %v891 = vpop.f32.mrb[0].mxu0
      %v892 = vpop.f32.mrb[0].mxu0
      %v893 = vadd.f32 %v650, %v892
      %v894 = vpop.f32.mrb[0].mxu0
      %895 = vmatprep.mubr.bf16.mxu0 0
      %896 = vmatmul.mubr.bf16.gmra.mrb[0].mxu0 %v372
      %v897 = vpop.f32.mrb[0].mxu0
      %v898 = vadd.f32 %v655, %v897
      %v899 = vpop.f32.mrb[0].mxu0
      %v900 = vpop.f32.mrb[0].mxu0
      %v901 = vadd.f32 %v658, %v900
      %v902 = vpop.f32.mrb[0].mxu0
      %903 = vmatprep.mubr.bf16.mxu0 0
      %904 = vmatmul.mubr.bf16.gmra.mrb[0].mxu0 %v373
      %v905 = vpop.f32.mrb[0].mxu0
      %v906 = vadd.f32 %v663, %v905
      %v907 = vpop.f32.mrb[0].mxu0
      %v908 = vpop.f32.mrb[0].mxu0
      %v909 = vadd.f32 %v666, %v908
      %v910 = vpop.f32.mrb[0].mxu0
      %911 = vmatprep.mubr.bf16.mxu0 0
      %912 = vmatmul.mubr.bf16.gmra.mrb[0].mxu0 %v374
      %v913 = vpop.f32.mrb[0].mxu0
      %v914 = vadd.f32 %v671, %v913
      %v915 = vpop.f32.mrb[0].mxu0
      %v916 = vpop.f32.mrb[0].mxu0
      %v917 = vadd.f32 %v674, %v916
      %v918 = vpop.f32.mrb[0].mxu0
      %919 = vmatprep.mubr.bf16.mxu0 0
      %920 = vmatmul.mubr.bf16.gmra.mrb[0].mxu0 %v375
      %v921 = vpop.f32.mrb[0].mxu0
      %v922 = vadd.f32 %v679, %v921
      %v923 = vpop.f32.mrb[0].mxu0
      %v924 = vpop.f32.mrb[0].mxu0
      %v925 = vadd.f32 %v682, %v924
      %v926 = vpop.f32.mrb[0].mxu0
      %927 = vmatprep.mubr.bf16.mxu0 0
      %928 = vmatmul.mubr.bf16.gmra.mrb[0].mxu0 %v376
      %v929 = vpop.f32.mrb[0].mxu0
      %v930 = vadd.f32 %v687, %v929
      %v931 = vpop.f32.mrb[0].mxu0
      %v932 = vpop.f32.mrb[0].mxu0
      %v933 = vadd.f32 %v690, %v932
      %v934 = vpop.f32.mrb[0].mxu0
      %935 = vmatprep.mubr.bf16.mxu0 0
      %936 = vmatmul.mubr.bf16.gmra.mrb[0].mxu0 %v377
      %v937 = vpop.f32.mrb[0].mxu0
      %v938 = vadd.f32 %v695, %v937
      %v939 = vpop.f32.mrb[0].mxu0
      %v940 = vpop.f32.mrb[0].mxu0
      %v941 = vadd.f32 %v698, %v940
      %v942 = vpop.f32.mrb[0].mxu0
      %943 = vmatprep.mubr.bf16.mxu0 0
      %944 = vmatmul.mubr.bf16.gmra.mrb[0].mxu0 %v378
      %v945 = vpop.f32.mrb[0].mxu0
      %v946 = vadd.f32 %v703, %v945
      %v947 = vpop.f32.mrb[0].mxu0
      %v948 = vpop.f32.mrb[0].mxu0
      %v949 = vadd.f32 %v706, %v948
      %v950 = vpop.f32.mrb[0].mxu0
      %951 = vmatprep.mubr.bf16.mxu0 0
      %952 = vmatmul.mubr.bf16.gmra.mrb[0].mxu0 %v379
      %v953 = vpop.f32.mrb[0].mxu0
      %v954 = vadd.f32 %v711, %v953
      %v955 = vpop.f32.mrb[0].mxu0
      %v956 = vpop.f32.mrb[0].mxu0
      %v957 = vadd.f32 %v714, %v956
      %v958 = vpop.f32.mrb[0].mxu0
      %959 = vmatprep.mubr.bf16.mxu0 0
      %960 = vmatmul.mubr.bf16.gmra.mrb[0].mxu0 %v380
      %v961 = vpop.f32.mrb[0].mxu0
      %v962 = vadd.f32 %v719, %v961
      %v963 = vpop.f32.mrb[0].mxu0
      %v964 = vpop.f32.mrb[0].mxu0
      %v965 = vadd.f32 %v722, %v964
      %v966 = vpop.f32.mrb[0].mxu0
      %967 = vmatprep.mubr.bf16.mxu0 0
      %968 = vmatmul.mubr.bf16.gmra.mrb[0].mxu0 %v381
      %v969 = vpop.f32.mrb[0].mxu0
      %v970 = vadd.f32 %v727, %v969
      %v971 = vpop.f32.mrb[0].mxu0
      %v972 = vpop.f32.mrb[0].mxu0
      %v973 = vadd.f32 %v730, %v972
      %v974 = vpop.f32.mrb[0].mxu0
      %975 = vmatprep.mubr.bf16.mxu0 0
      %976 = vmatmul.mubr.bf16.gmra.mrb[0].mxu0 %v382
      %v977 = vpop.f32.mrb[0].mxu0
      %v978 = vadd.f32 %v735, %v977
      %v979 = vpop.f32.mrb[0].mxu0
      %v980 = vpop.f32.mrb[0].mxu0
      %v981 = vadd.f32 %v738, %v980
      %v982 = vpop.f32.mrb[0].mxu0
      %983 = vmatprep.mubr.bf16.mxu0 0
      %984 = vmatmul.mubr.bf16.gmra.mrb[0].mxu0 %v383
      %v985 = vpop.f32.mrb[0].mxu0
      %v986 = vadd.f32 %v743, %v985
      %v987 = vpop.f32.mrb[0].mxu0
      %v988 = vpop.f32.mrb[0].mxu0
      %v989 = vadd.f32 %v746, %v988
      %v990 = vpop.f32.mrb[0].mxu0
      %991 = vmatprep.mubr.bf16.mxu0 0
      %992 = vmatmul.mubr.bf16.gmra.mrb[0].mxu0 %v384
      %v993 = vpop.f32.mrb[0].mxu0
      %v994 = vadd.f32 %v751, %v993
      %v995 = vpop.f32.mrb[0].mxu0
      %v996 = vpop.f32.mrb[0].mxu0
      %v997 = vadd.f32 %v754, %v996
      %v998 = vpop.f32.mrb[0].mxu0
      %999 = vmatprep.mubr.bf16.mxu0 0
      %1000 = vmatmul.mubr.bf16.gmra.mrb[0].mxu0 %v385
      %v1001 = vpop.f32.mrb[0].mxu0
      %v1002 = vadd.f32 %v759, %v1001
      %v1003 = vpop.f32.mrb[0].mxu0
      %v1004 = vpop.f32.mrb[0].mxu0
      %v1005 = vadd.f32 %v762, %v1004
      %v1006 = vpop.f32.mrb[0].mxu0
      %1007 = vmatprep.mubr.bf16.mxu0 0
      %1008 = vmatmul.mubr.bf16.gmra.mrb[0].mxu0 %v386
      %v1009 = vpop.f32.mrb[0].mxu0
      %v1010 = vadd.f32 %v767, %v1009
      %v1011 = vpop.f32.mrb[0].mxu0
      %v1012 = vpop.f32.mrb[0].mxu0
      %v1013 = vadd.f32 %v770, %v1012
      %v1014 = vpop.f32.mrb[0].mxu0
      %1015 = vmatprep.mubr.bf16.mxu0 0
      %1016 = vmatmul.mubr.bf16.gmra.mrb[0].mxu0 %v387
      %v1017 = vpop.f32.mrb[0].mxu0
      %v1018 = vadd.f32 %v775, %v1017
      %v1019 = vpop.f32.mrb[0].mxu0
      %v1020 = vpop.f32.mrb[0].mxu0
      %v1021 = vadd.f32 %v778, %v1020
      %v1022 = vpop.f32.mrb[0].mxu0
      %1023 = vdwg.mxu0
      %v1024 = vld [vmem:[%s219] sm:$0xe]
      %s1025 = scalar_lea.vmem %s1, 128
      %v1026 = vld [vmem:[%s1025] sm:$0xf]
      %v1027 = vld [vmem:[%s1025 + $0x4] sm:$0xf]
      %v1028 = vld [vmem:[%s1025 + $0x8] sm:$0xf]
      %v1029 = vld [vmem:[%s1025 + $0xc] sm:$0xf]
      %v1030 = vld [vmem:[%s1025 + $0x10] sm:$0xf]
      %v1031 = vld [vmem:[%s1025 + $0x14] sm:$0xf]
      %v1032 = vld [vmem:[%s1025 + $0x18] sm:$0xf]
      %v1033 = vld [vmem:[%s1025 + $0x1c] sm:$0xf]
      %v1034 = vld [vmem:[%s1025 + $0x20] sm:$0xf]
      %v1035 = vld [vmem:[%s1025 + $0x24] sm:$0xf]
      %v1036 = vld [vmem:[%s1025 + $0x28] sm:$0xf]
      %v1037 = vld [vmem:[%s1025 + $0x2c] sm:$0xf]
      %v1038 = vld [vmem:[%s1025 + $0x30] sm:$0xf]
      %v1039 = vld [vmem:[%s1025 + $0x34] sm:$0xf]
      %v1040 = vld [vmem:[%s1025 + $0x38] sm:$0xf]
      %v1041 = vld [vmem:[%s1025 + $0x3c] sm:$0xf]
      %v1043 = vunpack.c.l.b16 %v1024
      %v1044 = vpack.c.b16 %v334, %v1043
      %vm1045 = vcmask 1046528
      %v1046 = vrot.slane %v1044, 1
      %v1047 = vrot.slane %v371, 1
      %v1048 = vsel %vm1045, %v1046, %v1047
      %v1049 = vrot.slane %v372, 1
      %v1050 = vsel %vm1045, %v1047, %v1049
      %v1051 = vrot.slane %v373, 1
      %v1052 = vsel %vm1045, %v1049, %v1051
      %v1053 = vrot.slane %v374, 1
      %v1054 = vsel %vm1045, %v1051, %v1053
      %v1055 = vrot.slane %v375, 1
      %v1056 = vsel %vm1045, %v1053, %v1055
      %v1057 = vrot.slane %v376, 1
      %v1058 = vsel %vm1045, %v1055, %v1057
      %v1059 = vrot.slane %v377, 1
      %v1060 = vsel %vm1045, %v1057, %v1059
      %v1061 = vrot.slane %v378, 1
      %v1062 = vsel %vm1045, %v1059, %v1061
      %v1063 = vrot.slane %v379, 1
      %v1064 = vsel %vm1045, %v1061, %v1063
      %v1065 = vrot.slane %v380, 1
      %v1066 = vsel %vm1045, %v1063, %v1065
      %v1067 = vrot.slane %v381, 1
      %v1068 = vsel %vm1045, %v1065, %v1067
      %v1069 = vrot.slane %v382, 1
      %v1070 = vsel %vm1045, %v1067, %v1069
      %v1071 = vrot.slane %v383, 1
      %v1072 = vsel %vm1045, %v1069, %v1071
      %v1073 = vrot.slane %v384, 1
      %v1074 = vsel %vm1045, %v1071, %v1073
      %v1075 = vrot.slane %v385, 1
      %v1076 = vsel %vm1045, %v1073, %v1075
      %v1077 = vrot.slane %v386, 1
      %v1078 = vsel %vm1045, %v1075, %v1077
      %v1079 = vrot.slane %v387, 1
      %v1080 = vsel %vm1045, %v1077, %v1079
      %v1081 = vrot.slane %v388, 1
      %v1082 = vsel %vm1045, %v1079, %v1081
      %v1117 = vunpack.c.l.b16 %v1026
      %v1118 = vunpack.c.l.b16 %v1027
      %v1119 = vunpack.c.l.b16 %v1028
      %v1120 = vunpack.c.l.b16 %v1029
      %v1121 = vunpack.c.l.b16 %v1030
      %v1122 = vunpack.c.l.b16 %v1031
      %v1123 = vunpack.c.l.b16 %v1032
      %v1124 = vunpack.c.l.b16 %v1033
      %v1125 = vunpack.c.l.b16 %v1034
      %v1126 = vunpack.c.l.b16 %v1035
      %v1127 = vunpack.c.l.b16 %v1036
      %v1128 = vunpack.c.l.b16 %v1037
      %v1129 = vunpack.c.l.b16 %v1038
      %v1130 = vunpack.c.l.b16 %v1039
      %v1131 = vunpack.c.l.b16 %v1040
      %v1132 = vunpack.c.l.b16 %v1041
      %v1133 = vpack.c.b16 %v1118, %v1117
      %v1134 = vpack.c.b16 %v1120, %v1119
      %v1135 = vpack.c.b16 %v1122, %v1121
      %v1136 = vpack.c.b16 %v1124, %v1123
      %v1137 = vpack.c.b16 %v1126, %v1125
      %v1138 = vpack.c.b16 %v1128, %v1127
      %v1139 = vpack.c.b16 %v1130, %v1129
      %v1140 = vpack.c.b16 %v1132, %v1131
      %1149 = vmatprep.subr.bf16.mxu0 0
      %1150 = vmatpush1.bf16.msra.mxu0 %v1133
      %1151 = vmatprep.subr.bf16.mxu0 0
      %1152 = vmatpush1.bf16.msra.mxu0 %v1134
      %1153 = vmatprep.subr.bf16.mxu0 0
      %1154 = vmatpush1.bf16.msra.mxu0 %v1135
      %1155 = vmatprep.subr.bf16.mxu0 0
      %1156 = vmatpush1.bf16.msra.mxu0 %v1136
      %1157 = vmatprep.subr.bf16.mxu0 0
      %1158 = vmatpush1.bf16.msra.mxu0 %v1137
      %1159 = vmatprep.subr.bf16.mxu0 0
      %1160 = vmatpush1.bf16.msra.mxu0 %v1138
      %1161 = vmatprep.subr.bf16.mxu0 0
      %1162 = vmatpush1.bf16.msra.mxu0 %v1139
      %1163 = vmatprep.subr.bf16.mxu0 0
      %1164 = vmatpush1.bf16.msra.mxu0 %v1140
      %1165 = vmatprep.subr.bf16.mxu0 0
      %1166 = vmatpush1.bf16.msra.mxu0 0
      %1167 = vmatprep.subr.bf16.mxu0 0
      %1168 = vmatpush1.bf16.msra.mxu0 0
      %1169 = vmatprep.subr.bf16.mxu0 0
      %1170 = vmatpush1.bf16.msra.mxu0 0
      %1171 = vmatprep.subr.bf16.mxu0 0
      %1172 = vmatpush1.bf16.msra.mxu0 0
      %1173 = vmatprep.subr.bf16.mxu0 0
      %1174 = vmatpush1.bf16.msra.mxu0 0
      %1175 = vmatprep.subr.bf16.mxu0 0
      %1176 = vmatpush1.bf16.msra.mxu0 0
      %1177 = vmatprep.subr.bf16.mxu0 0
      %1178 = vmatpush1.bf16.msra.mxu0 0
      %1179 = vmatprep.subr.bf16.mxu0 0
      %1180 = vmatpush1.bf16.msra.mxu0 0
      %1181 = vmatprep.mubr.bf16.mxu0 0
      %1182 = vmatmul.mubr.bf16.gmra.mrb[0].mxu0 %v1048
      %v1183 = vpop.f32.mrb[0].mxu0
      %v1184 = vadd.f32 0.0, %v1183
      %v1185 = vpop.f32.mrb[0].mxu0
      %v1186 = vpop.f32.mrb[0].mxu0
      %v1187 = vadd.f32 0.0, %v1186
      %v1188 = vpop.f32.mrb[0].mxu0
      %1189 = vmatprep.mubr.bf16.mxu0 0
      %1190 = vmatmul.mubr.bf16.gmra.mrb[0].mxu0 %v1050
      %v1191 = vpop.f32.mrb[0].mxu0
      %v1192 = vadd.f32 0.0, %v1191
      %v1193 = vpop.f32.mrb[0].mxu0
      %v1194 = vpop.f32.mrb[0].mxu0
      %v1195 = vadd.f32 0.0, %v1194
      %v1196 = vpop.f32.mrb[0].mxu0
      %1197 = vmatprep.mubr.bf16.mxu0 0
      %1198 = vmatmul.mubr.bf16.gmra.mrb[0].mxu0 %v1052
      %v1199 = vpop.f32.mrb[0].mxu0
      %v1200 = vadd.f32 0.0, %v1199
      %v1201 = vpop.f32.mrb[0].mxu0
      %v1202 = vpop.f32.mrb[0].mxu0
      %v1203 = vadd.f32 0.0, %v1202
      %v1204 = vpop.f32.mrb[0].mxu0
      %1205 = vmatprep.mubr.bf16.mxu0 0
      %1206 = vmatmul.mubr.bf16.gmra.mrb[0].mxu0 %v1054
      %v1207 = vpop.f32.mrb[0].mxu0
      %v1208 = vadd.f32 0.0, %v1207
      %v1209 = vpop.f32.mrb[0].mxu0
      %v1210 = vpop.f32.mrb[0].mxu0
      %v1211 = vadd.f32 0.0, %v1210
      %v1212 = vpop.f32.mrb[0].mxu0
      %1213 = vmatprep.mubr.bf16.mxu0 0
      %1214 = vmatmul.mubr.bf16.gmra.mrb[0].mxu0 %v1056
      %v1215 = vpop.f32.mrb[0].mxu0
      %v1216 = vadd.f32 0.0, %v1215
      %v1217 = vpop.f32.mrb[0].mxu0
      %v1218 = vpop.f32.mrb[0].mxu0
      %v1219 = vadd.f32 0.0, %v1218
      %v1220 = vpop.f32.mrb[0].mxu0
      %1221 = vmatprep.mubr.bf16.mxu0 0
      %1222 = vmatmul.mubr.bf16.gmra.mrb[0].mxu0 %v1058
      %v1223 = vpop.f32.mrb[0].mxu0
      %v1224 = vadd.f32 0.0, %v1223
      %v1225 = vpop.f32.mrb[0].mxu0
      %v1226 = vpop.f32.mrb[0].mxu0
      %v1227 = vadd.f32 0.0, %v1226
      %v1228 = vpop.f32.mrb[0].mxu0
      %1229 = vmatprep.mubr.bf16.mxu0 0
      %1230 = vmatmul.mubr.bf16.gmra.mrb[0].mxu0 %v1060
      %v1231 = vpop.f32.mrb[0].mxu0
      %v1232 = vadd.f32 0.0, %v1231
      %v1233 = vpop.f32.mrb[0].mxu0
      %v1234 = vpop.f32.mrb[0].mxu0
      %v1235 = vadd.f32 0.0, %v1234
      %v1236 = vpop.f32.mrb[0].mxu0
      %1237 = vmatprep.mubr.bf16.mxu0 0
      %1238 = vmatmul.mubr.bf16.gmra.mrb[0].mxu0 %v1062
      %v1239 = vpop.f32.mrb[0].mxu0
      %v1240 = vadd.f32 0.0, %v1239
      %v1241 = vpop.f32.mrb[0].mxu0
      %v1242 = vpop.f32.mrb[0].mxu0
      %v1243 = vadd.f32 0.0, %v1242
      %v1244 = vpop.f32.mrb[0].mxu0
      %1245 = vmatprep.mubr.bf16.mxu0 0
      %1246 = vmatmul.mubr.bf16.gmra.mrb[0].mxu0 %v1064
      %v1247 = vpop.f32.mrb[0].mxu0
      %v1248 = vadd.f32 0.0, %v1247
      %v1249 = vpop.f32.mrb[0].mxu0
      %v1250 = vpop.f32.mrb[0].mxu0
      %v1251 = vadd.f32 0.0, %v1250
      %v1252 = vpop.f32.mrb[0].mxu0
      %1253 = vmatprep.mubr.bf16.mxu0 0
      %1254 = vmatmul.mubr.bf16.gmra.mrb[0].mxu0 %v1066
      %v1255 = vpop.f32.mrb[0].mxu0
      %v1256 = vadd.f32 0.0, %v1255
      %v1257 = vpop.f32.mrb[0].mxu0
      %v1258 = vpop.f32.mrb[0].mxu0
      %v1259 = vadd.f32 0.0, %v1258
      %v1260 = vpop.f32.mrb[0].mxu0
      %1261 = vmatprep.mubr.bf16.mxu0 0
      %1262 = vmatmul.mubr.bf16.gmra.mrb[0].mxu0 %v1068
      %v1263 = vpop.f32.mrb[0].mxu0
      %v1264 = vadd.f32 0.0, %v1263
      %v1265 = vpop.f32.mrb[0].mxu0
      %v1266 = vpop.f32.mrb[0].mxu0
      %v1267 = vadd.f32 0.0, %v1266
      %v1268 = vpop.f32.mrb[0].mxu0
      %1269 = vmatprep.mubr.bf16.mxu0 0
      %1270 = vmatmul.mubr.bf16.gmra.mrb[0].mxu0 %v1070
      %v1271 = vpop.f32.mrb[0].mxu0
      %v1272 = vadd.f32 0.0, %v1271
      %v1273 = vpop.f32.mrb[0].mxu0
      %v1274 = vpop.f32.mrb[0].mxu0
      %v1275 = vadd.f32 0.0, %v1274
      %v1276 = vpop.f32.mrb[0].mxu0
      %1277 = vmatprep.mubr.bf16.mxu0 0
      %1278 = vmatmul.mubr.bf16.gmra.mrb[0].mxu0 %v1072
      %v1279 = vpop.f32.mrb[0].mxu0
      %v1280 = vadd.f32 0.0, %v1279
      %v1281 = vpop.f32.mrb[0].mxu0
      %v1282 = vpop.f32.mrb[0].mxu0
      %v1283 = vadd.f32 0.0, %v1282
      %v1284 = vpop.f32.mrb[0].mxu0
      %1285 = vmatprep.mubr.bf16.mxu0 0
      %1286 = vmatmul.mubr.bf16.gmra.mrb[0].mxu0 %v1074
      %v1287 = vpop.f32.mrb[0].mxu0
      %v1288 = vadd.f32 0.0, %v1287
      %v1289 = vpop.f32.mrb[0].mxu0
      %v1290 = vpop.f32.mrb[0].mxu0
      %v1291 = vadd.f32 0.0, %v1290
      %v1292 = vpop.f32.mrb[0].mxu0
      %1293 = vmatprep.mubr.bf16.mxu0 0
      %1294 = vmatmul.mubr.bf16.gmra.mrb[0].mxu0 %v1076
      %v1295 = vpop.f32.mrb[0].mxu0
      %v1296 = vadd.f32 0.0, %v1295
      %v1297 = vpop.f32.mrb[0].mxu0
      %v1298 = vpop.f32.mrb[0].mxu0
      %v1299 = vadd.f32 0.0, %v1298
      %v1300 = vpop.f32.mrb[0].mxu0
      %1301 = vmatprep.mubr.bf16.mxu0 0
      %1302 = vmatmul.mubr.bf16.gmra.mrb[0].mxu0 %v1078
      %v1303 = vpop.f32.mrb[0].mxu0
      %v1304 = vadd.f32 0.0, %v1303
      %v1305 = vpop.f32.mrb[0].mxu0
      %v1306 = vpop.f32.mrb[0].mxu0
      %v1307 = vadd.f32 0.0, %v1306
      %v1308 = vpop.f32.mrb[0].mxu0
      %1309 = vmatprep.mubr.bf16.mxu0 0
      %1310 = vmatmul.mubr.bf16.gmra.mrb[0].mxu0 %v1080
      %v1311 = vpop.f32.mrb[0].mxu0
      %v1312 = vadd.f32 0.0, %v1311
      %v1313 = vpop.f32.mrb[0].mxu0
      %v1314 = vpop.f32.mrb[0].mxu0
      %v1315 = vadd.f32 0.0, %v1314
      %v1316 = vpop.f32.mrb[0].mxu0
      %1317 = vmatprep.mubr.bf16.mxu0 0
      %1318 = vmatmul.mubr.bf16.gmra.mrb[0].mxu0 %v1082
      %v1319 = vpop.f32.mrb[0].mxu0
      %v1320 = vadd.f32 0.0, %v1319
      %v1321 = vpop.f32.mrb[0].mxu0
      %v1322 = vpop.f32.mrb[0].mxu0
      %v1323 = vadd.f32 0.0, %v1322
      %v1324 = vpop.f32.mrb[0].mxu0
      %1325 = vdwg.mxu0
      %v1326 = vadd.f32 %v882, %v1184
      %v1327 = vadd.f32 %v885, %v1187
      %v1328 = vadd.f32 %v890, %v1192
      %v1329 = vadd.f32 %v893, %v1195
      %v1330 = vadd.f32 %v898, %v1200
      %v1331 = vadd.f32 %v901, %v1203
      %v1332 = vadd.f32 %v906, %v1208
      %v1333 = vadd.f32 %v909, %v1211
      %v1334 = vadd.f32 %v914, %v1216
      %v1335 = vadd.f32 %v917, %v1219
      %v1336 = vadd.f32 %v922, %v1224
      %v1337 = vadd.f32 %v925, %v1227
      %v1338 = vadd.f32 %v930, %v1232
      %v1339 = vadd.f32 %v933, %v1235
      %v1340 = vadd.f32 %v938, %v1240
      %v1341 = vadd.f32 %v941, %v1243
      %v1342 = vadd.f32 %v946, %v1248
      %v1343 = vadd.f32 %v949, %v1251
      %v1344 = vadd.f32 %v954, %v1256
      %v1345 = vadd.f32 %v957, %v1259
      %v1346 = vadd.f32 %v962, %v1264
      %v1347 = vadd.f32 %v965, %v1267
      %v1348 = vadd.f32 %v970, %v1272
      %v1349 = vadd.f32 %v973, %v1275
      %v1350 = vadd.f32 %v978, %v1280
      %v1351 = vadd.f32 %v981, %v1283
      %v1352 = vadd.f32 %v986, %v1288
      %v1353 = vadd.f32 %v989, %v1291
      %v1354 = vadd.f32 %v994, %v1296
      %v1355 = vadd.f32 %v997, %v1299
      %v1356 = vadd.f32 %v1002, %v1304
      %v1357 = vadd.f32 %v1005, %v1307
      %v1358 = vadd.f32 %v1010, %v1312
      %v1359 = vadd.f32 %v1013, %v1315
      %v1360 = vadd.f32 %v1018, %v1320
      %v1361 = vadd.f32 %v1021, %v1323
      %v1362 = vld [vmem:[%s219 + $0x8] sm:$0xe]
      %v1363 = vld [vmem:[%s219 + $0xc] sm:$0xf]
      %v1364 = vld [vmem:[%s219 + $0x10] sm:$0xf]
      %v1365 = vld [vmem:[%s219 + $0x14] sm:$0xf]
      %v1366 = vld [vmem:[%s219 + $0x18] sm:$0xf]
      %v1367 = vld [vmem:[%s219 + $0x1c] sm:$0xf]
      %v1368 = vld [vmem:[%s219 + $0x20] sm:$0xf]
      %v1369 = vld [vmem:[%s219 + $0x24] sm:$0xf]
      %v1370 = vld [vmem:[%s219 + $0x28] sm:$0xf]
      %v1371 = vld [vmem:[%s219 + $0x2c] sm:$0xf]
      %v1372 = vld [vmem:[%s219 + $0x30] sm:$0xf]
      %v1373 = vld [vmem:[%s219 + $0x34] sm:$0xf]
      %v1374 = vld [vmem:[%s219 + $0x38] sm:$0xf]
      %v1375 = vld [vmem:[%s219 + $0x3c] sm:$0xf]
      %v1376 = vld [vmem:[%s219 + $0x40] sm:$0xf]
      %v1377 = vld [vmem:[%s219 + $0x44] sm:$0xf]
      %v1378 = vld [vmem:[%s219 + $0x48] sm:$0xf]
      %v1379 = vld [vmem:[%s219 + $0x4c] sm:$0xf]
      %v1380 = vld [vmem:[%s219 + $0x50] sm:$0xf]
      %v1381 = vld [vmem:[%s219 + $0x54] sm:$0xf]
      %v1382 = vld [vmem:[%s219 + $0x58] sm:$0xf]
      %v1383 = vld [vmem:[%s219 + $0x5c] sm:$0xf]
      %v1384 = vld [vmem:[%s219 + $0x60] sm:$0xf]
      %v1385 = vld [vmem:[%s219 + $0x64] sm:$0xf]
      %v1386 = vld [vmem:[%s219 + $0x68] sm:$0xf]
      %v1387 = vld [vmem:[%s219 + $0x6c] sm:$0xf]
      %v1388 = vld [vmem:[%s219 + $0x70] sm:$0xf]
      %v1389 = vld [vmem:[%s219 + $0x74] sm:$0xf]
      %v1390 = vld [vmem:[%s219 + $0x78] sm:$0xf]
      %v1391 = vld [vmem:[%s219 + $0x7c] sm:$0xf]
      %v1392 = vld [vmem:[%s219 + $0x80] sm:$0xf]
      %v1393 = vld [vmem:[%s219 + $0x84] sm:$0xf]
      %v1394 = vld [vmem:[%s219 + $0x88] sm:$0xf]
      %v1395 = vld [vmem:[%s219 + $0x8c] sm:$0xf]
      %v1396 = vld [vmem:[%s219 + $0x90] sm:$0xf]
      %v1397 = vld [vmem:[%s219 + $0x94] sm:$0xf]
      %v1398 = vld [vmem:[%s219 + $0x98] sm:$0x1]
      %s1399 = scalar_lea.vmem %s1, 192
      %v1400 = vld [vmem:[%s1399] sm:$0xf]
      %v1401 = vld [vmem:[%s1399 + $0x4] sm:$0xf]
      %v1402 = vld [vmem:[%s1399 + $0x8] sm:$0xf]
      %v1403 = vld [vmem:[%s1399 + $0xc] sm:$0xf]
      %v1404 = vld [vmem:[%s1399 + $0x10] sm:$0xf]
      %v1405 = vld [vmem:[%s1399 + $0x14] sm:$0xf]
      %v1406 = vld [vmem:[%s1399 + $0x18] sm:$0xf]
      %v1407 = vld [vmem:[%s1399 + $0x1c] sm:$0xf]
      %v1408 = vld [vmem:[%s1399 + $0x20] sm:$0xf]
      %v1409 = vld [vmem:[%s1399 + $0x24] sm:$0xf]
      %v1410 = vld [vmem:[%s1399 + $0x28] sm:$0xf]
      %v1411 = vld [vmem:[%s1399 + $0x2c] sm:$0xf]
      %v1412 = vld [vmem:[%s1399 + $0x30] sm:$0xf]
      %v1413 = vld [vmem:[%s1399 + $0x34] sm:$0xf]
      %v1414 = vld [vmem:[%s1399 + $0x38] sm:$0xf]
      %v1415 = vld [vmem:[%s1399 + $0x3c] sm:$0xf]
      %v1453 = vunpack.c.l.b16 %v1362
      %v1454 = vunpack.c.l.b16 %v1363
      %v1455 = vunpack.c.l.b16 %v1364
      %v1456 = vunpack.c.l.b16 %v1365
      %v1457 = vunpack.c.l.b16 %v1366
      %v1458 = vunpack.c.l.b16 %v1367
      %v1459 = vunpack.c.l.b16 %v1368
      %v1460 = vunpack.c.l.b16 %v1369
      %v1461 = vunpack.c.l.b16 %v1370
      %v1462 = vunpack.c.l.b16 %v1371
      %v1463 = vunpack.c.l.b16 %v1372
      %v1464 = vunpack.c.l.b16 %v1373
      %v1465 = vunpack.c.l.b16 %v1374
      %v1466 = vunpack.c.l.b16 %v1375
      %v1467 = vunpack.c.l.b16 %v1376
      %v1468 = vunpack.c.l.b16 %v1377
      %v1469 = vunpack.c.l.b16 %v1378
      %v1470 = vunpack.c.l.b16 %v1379
      %v1471 = vunpack.c.l.b16 %v1380
      %v1472 = vunpack.c.l.b16 %v1381
      %v1473 = vunpack.c.l.b16 %v1382
      %v1474 = vunpack.c.l.b16 %v1383
      %v1475 = vunpack.c.l.b16 %v1384
      %v1476 = vunpack.c.l.b16 %v1385
      %v1477 = vunpack.c.l.b16 %v1386
      %v1478 = vunpack.c.l.b16 %v1387
      %v1479 = vunpack.c.l.b16 %v1388
      %v1480 = vunpack.c.l.b16 %v1389
      %v1481 = vunpack.c.l.b16 %v1390
      %v1482 = vunpack.c.l.b16 %v1391
      %v1483 = vunpack.c.l.b16 %v1392
      %v1484 = vunpack.c.l.b16 %v1393
      %v1485 = vunpack.c.l.b16 %v1394
      %v1486 = vunpack.c.l.b16 %v1395
      %v1487 = vunpack.c.l.b16 %v1396
      %v1488 = vunpack.c.l.b16 %v1397
      %v1489 = vunpack.c.l.b16 %v1398
      %v1490 = vpack.c.b16 %v1454, %v1453
      %v1491 = vpack.c.b16 %v1456, %v1455
      %v1492 = vpack.c.b16 %v1458, %v1457
      %v1493 = vpack.c.b16 %v1460, %v1459
      %v1494 = vpack.c.b16 %v1462, %v1461
      %v1495 = vpack.c.b16 %v1464, %v1463
      %v1496 = vpack.c.b16 %v1466, %v1465
      %v1497 = vpack.c.b16 %v1468, %v1467
      %v1498 = vpack.c.b16 %v1470, %v1469
      %v1499 = vpack.c.b16 %v1472, %v1471
      %v1500 = vpack.c.b16 %v1474, %v1473
      %v1501 = vpack.c.b16 %v1476, %v1475
      %v1502 = vpack.c.b16 %v1478, %v1477
      %v1503 = vpack.c.b16 %v1480, %v1479
      %v1504 = vpack.c.b16 %v1482, %v1481
      %v1505 = vpack.c.b16 %v1484, %v1483
      %v1506 = vpack.c.b16 %v1486, %v1485
      %v1507 = vpack.c.b16 %v1488, %v1487
      %v1508 = vpack.c.b16 %v1489, %v1489
      %v1509 = vrot.slane %v1490, 1
      %v1510 = vrot.slane %v1491, 1
      %v1511 = vsel %vm1045, %v1509, %v1510
      %v1512 = vrot.slane %v1492, 1
      %v1513 = vsel %vm1045, %v1510, %v1512
      %v1514 = vrot.slane %v1493, 1
      %v1515 = vsel %vm1045, %v1512, %v1514
      %v1516 = vrot.slane %v1494, 1
      %v1517 = vsel %vm1045, %v1514, %v1516
      %v1518 = vrot.slane %v1495, 1
      %v1519 = vsel %vm1045, %v1516, %v1518
      %v1520 = vrot.slane %v1496, 1
      %v1521 = vsel %vm1045, %v1518, %v1520
      %v1522 = vrot.slane %v1497, 1
      %v1523 = vsel %vm1045, %v1520, %v1522
      %v1524 = vrot.slane %v1498, 1
      %v1525 = vsel %vm1045, %v1522, %v1524
      %v1526 = vrot.slane %v1499, 1
      %v1527 = vsel %vm1045, %v1524, %v1526
      %v1528 = vrot.slane %v1500, 1
      %v1529 = vsel %vm1045, %v1526, %v1528
      %v1530 = vrot.slane %v1501, 1
      %v1531 = vsel %vm1045, %v1528, %v1530
      %v1532 = vrot.slane %v1502, 1
      %v1533 = vsel %vm1045, %v1530, %v1532
      %v1534 = vrot.slane %v1503, 1
      %v1535 = vsel %vm1045, %v1532, %v1534
      %v1536 = vrot.slane %v1504, 1
      %v1537 = vsel %vm1045, %v1534, %v1536
      %v1538 = vrot.slane %v1505, 1
      %v1539 = vsel %vm1045, %v1536, %v1538
      %v1540 = vrot.slane %v1506, 1
      %v1541 = vsel %vm1045, %v1538, %v1540
      %v1542 = vrot.slane %v1507, 1
      %v1543 = vsel %vm1045, %v1540, %v1542
      %v1544 = vrot.slane %v1508, 1
      %v1545 = vsel %vm1045, %v1542, %v1544
      %v1580 = vunpack.c.l.b16 %v1400
      %v1581 = vunpack.c.l.b16 %v1401
      %v1582 = vunpack.c.l.b16 %v1402
      %v1583 = vunpack.c.l.b16 %v1403
      %v1584 = vunpack.c.l.b16 %v1404
      %v1585 = vunpack.c.l.b16 %v1405
      %v1586 = vunpack.c.l.b16 %v1406
      %v1587 = vunpack.c.l.b16 %v1407
      %v1588 = vunpack.c.l.b16 %v1408
      %v1589 = vunpack.c.l.b16 %v1409
      %v1590 = vunpack.c.l.b16 %v1410
      %v1591 = vunpack.c.l.b16 %v1411
      %v1592 = vunpack.c.l.b16 %v1412
      %v1593 = vunpack.c.l.b16 %v1413
      %v1594 = vunpack.c.l.b16 %v1414
      %v1595 = vunpack.c.l.b16 %v1415
      %v1596 = vpack.c.b16 %v1581, %v1580
      %v1597 = vpack.c.b16 %v1583, %v1582
      %v1598 = vpack.c.b16 %v1585, %v1584
      %v1599 = vpack.c.b16 %v1587, %v1586
      %v1600 = vpack.c.b16 %v1589, %v1588
      %v1601 = vpack.c.b16 %v1591, %v1590
      %v1602 = vpack.c.b16 %v1593, %v1592
      %v1603 = vpack.c.b16 %v1595, %v1594
      %1612 = vmatprep.subr.bf16.mxu0 0
      %1613 = vmatpush1.bf16.msra.mxu0 %v1596
      %1614 = vmatprep.subr.bf16.mxu0 0
      %1615 = vmatpush1.bf16.msra.mxu0 %v1597
      %1616 = vmatprep.subr.bf16.mxu0 0
      %1617 = vmatpush1.bf16.msra.mxu0 %v1598
      %1618 = vmatprep.subr.bf16.mxu0 0
      %1619 = vmatpush1.bf16.msra.mxu0 %v1599
      %1620 = vmatprep.subr.bf16.mxu0 0
      %1621 = vmatpush1.bf16.msra.mxu0 %v1600
      %1622 = vmatprep.subr.bf16.mxu0 0
      %1623 = vmatpush1.bf16.msra.mxu0 %v1601
      %1624 = vmatprep.subr.bf16.mxu0 0
      %1625 = vmatpush1.bf16.msra.mxu0 %v1602
      %1626 = vmatprep.subr.bf16.mxu0 0
      %1627 = vmatpush1.bf16.msra.mxu0 %v1603
      %1628 = vmatprep.subr.bf16.mxu0 0
      %1629 = vmatpush1.bf16.msra.mxu0 0
      %1630 = vmatprep.subr.bf16.mxu0 0
      %1631 = vmatpush1.bf16.msra.mxu0 0
      %1632 = vmatprep.subr.bf16.mxu0 0
      %1633 = vmatpush1.bf16.msra.mxu0 0
      %1634 = vmatprep.subr.bf16.mxu0 0
      %1635 = vmatpush1.bf16.msra.mxu0 0
      %1636 = vmatprep.subr.bf16.mxu0 0
      %1637 = vmatpush1.bf16.msra.mxu0 0
      %1638 = vmatprep.subr.bf16.mxu0 0
      %1639 = vmatpush1.bf16.msra.mxu0 0
      %1640 = vmatprep.subr.bf16.mxu0 0
      %1641 = vmatpush1.bf16.msra.mxu0 0
      %1642 = vmatprep.subr.bf16.mxu0 0
      %1643 = vmatpush1.bf16.msra.mxu0 0
      %1644 = vmatprep.mubr.bf16.mxu0 0
      %1645 = vmatmul.mubr.bf16.gmra.mrb[0].mxu0 %v1511
      %v1646 = vpop.f32.mrb[0].mxu0
      %v1647 = vadd.f32 0.0, %v1646
      %v1648 = vpop.f32.mrb[0].mxu0
      %v1649 = vpop.f32.mrb[0].mxu0
      %v1650 = vadd.f32 0.0, %v1649
      %v1651 = vpop.f32.mrb[0].mxu0
      %1652 = vmatprep.mubr.bf16.mxu0 0
      %1653 = vmatmul.mubr.bf16.gmra.mrb[0].mxu0 %v1513
      %v1654 = vpop.f32.mrb[0].mxu0
      %v1655 = vadd.f32 0.0, %v1654
      %v1656 = vpop.f32.mrb[0].mxu0
      %v1657 = vpop.f32.mrb[0].mxu0
      %v1658 = vadd.f32 0.0, %v1657
      %v1659 = vpop.f32.mrb[0].mxu0
      %1660 = vmatprep.mubr.bf16.mxu0 0
      %1661 = vmatmul.mubr.bf16.gmra.mrb[0].mxu0 %v1515
      %v1662 = vpop.f32.mrb[0].mxu0
      %v1663 = vadd.f32 0.0, %v1662
      %v1664 = vpop.f32.mrb[0].mxu0
      %v1665 = vpop.f32.mrb[0].mxu0
      %v1666 = vadd.f32 0.0, %v1665
      %v1667 = vpop.f32.mrb[0].mxu0
      %1668 = vmatprep.mubr.bf16.mxu0 0
      %1669 = vmatmul.mubr.bf16.gmra.mrb[0].mxu0 %v1517
      %v1670 = vpop.f32.mrb[0].mxu0
      %v1671 = vadd.f32 0.0, %v1670
      %v1672 = vpop.f32.mrb[0].mxu0
      %v1673 = vpop.f32.mrb[0].mxu0
      %v1674 = vadd.f32 0.0, %v1673
      %v1675 = vpop.f32.mrb[0].mxu0
      %1676 = vmatprep.mubr.bf16.mxu0 0
      %1677 = vmatmul.mubr.bf16.gmra.mrb[0].mxu0 %v1519
      %v1678 = vpop.f32.mrb[0].mxu0
      %v1679 = vadd.f32 0.0, %v1678
      %v1680 = vpop.f32.mrb[0].mxu0
      %v1681 = vpop.f32.mrb[0].mxu0
      %v1682 = vadd.f32 0.0, %v1681
      %v1683 = vpop.f32.mrb[0].mxu0
      %1684 = vmatprep.mubr.bf16.mxu0 0
      %1685 = vmatmul.mubr.bf16.gmra.mrb[0].mxu0 %v1521
      %v1686 = vpop.f32.mrb[0].mxu0
      %v1687 = vadd.f32 0.0, %v1686
      %v1688 = vpop.f32.mrb[0].mxu0
      %v1689 = vpop.f32.mrb[0].mxu0
      %v1690 = vadd.f32 0.0, %v1689
      %v1691 = vpop.f32.mrb[0].mxu0
      %1692 = vmatprep.mubr.bf16.mxu0 0
      %1693 = vmatmul.mubr.bf16.gmra.mrb[0].mxu0 %v1523
      %v1694 = vpop.f32.mrb[0].mxu0
      %v1695 = vadd.f32 0.0, %v1694
      %v1696 = vpop.f32.mrb[0].mxu0
      %v1697 = vpop.f32.mrb[0].mxu0
      %v1698 = vadd.f32 0.0, %v1697
      %v1699 = vpop.f32.mrb[0].mxu0
      %1700 = vmatprep.mubr.bf16.mxu0 0
      %1701 = vmatmul.mubr.bf16.gmra.mrb[0].mxu0 %v1525
      %v1702 = vpop.f32.mrb[0].mxu0
      %v1703 = vadd.f32 0.0, %v1702
      %v1704 = vpop.f32.mrb[0].mxu0
      %v1705 = vpop.f32.mrb[0].mxu0
      %v1706 = vadd.f32 0.0, %v1705
      %v1707 = vpop.f32.mrb[0].mxu0
      %1708 = vmatprep.mubr.bf16.mxu0 0
      %1709 = vmatmul.mubr.bf16.gmra.mrb[0].mxu0 %v1527
      %v1710 = vpop.f32.mrb[0].mxu0
      %v1711 = vadd.f32 0.0, %v1710
      %v1712 = vpop.f32.mrb[0].mxu0
      %v1713 = vpop.f32.mrb[0].mxu0
      %v1714 = vadd.f32 0.0, %v1713
      %v1715 = vpop.f32.mrb[0].mxu0
      %1716 = vmatprep.mubr.bf16.mxu0 0
      %1717 = vmatmul.mubr.bf16.gmra.mrb[0].mxu0 %v1529
      %v1718 = vpop.f32.mrb[0].mxu0
      %v1719 = vadd.f32 0.0, %v1718
      %v1720 = vpop.f32.mrb[0].mxu0
      %v1721 = vpop.f32.mrb[0].mxu0
      %v1722 = vadd.f32 0.0, %v1721
      %v1723 = vpop.f32.mrb[0].mxu0
      %1724 = vmatprep.mubr.bf16.mxu0 0
      %1725 = vmatmul.mubr.bf16.gmra.mrb[0].mxu0 %v1531
      %v1726 = vpop.f32.mrb[0].mxu0
      %v1727 = vadd.f32 0.0, %v1726
      %v1728 = vpop.f32.mrb[0].mxu0
      %v1729 = vpop.f32.mrb[0].mxu0
      %v1730 = vadd.f32 0.0, %v1729
      %v1731 = vpop.f32.mrb[0].mxu0
      %1732 = vmatprep.mubr.bf16.mxu0 0
      %1733 = vmatmul.mubr.bf16.gmra.mrb[0].mxu0 %v1533
      %v1734 = vpop.f32.mrb[0].mxu0
      %v1735 = vadd.f32 0.0, %v1734
      %v1736 = vpop.f32.mrb[0].mxu0
      %v1737 = vpop.f32.mrb[0].mxu0
      %v1738 = vadd.f32 0.0, %v1737
      %v1739 = vpop.f32.mrb[0].mxu0
      %1740 = vmatprep.mubr.bf16.mxu0 0
      %1741 = vmatmul.mubr.bf16.gmra.mrb[0].mxu0 %v1535
      %v1742 = vpop.f32.mrb[0].mxu0
      %v1743 = vadd.f32 0.0, %v1742
      %v1744 = vpop.f32.mrb[0].mxu0
      %v1745 = vpop.f32.mrb[0].mxu0
      %v1746 = vadd.f32 0.0, %v1745
      %v1747 = vpop.f32.mrb[0].mxu0
      %1748 = vmatprep.mubr.bf16.mxu0 0
      %1749 = vmatmul.mubr.bf16.gmra.mrb[0].mxu0 %v1537
      %v1750 = vpop.f32.mrb[0].mxu0
      %v1751 = vadd.f32 0.0, %v1750
      %v1752 = vpop.f32.mrb[0].mxu0
      %v1753 = vpop.f32.mrb[0].mxu0
      %v1754 = vadd.f32 0.0, %v1753
      %v1755 = vpop.f32.mrb[0].mxu0
      %1756 = vmatprep.mubr.bf16.mxu0 0
      %1757 = vmatmul.mubr.bf16.gmra.mrb[0].mxu0 %v1539
      %v1758 = vpop.f32.mrb[0].mxu0
      %v1759 = vadd.f32 0.0, %v1758
      %v1760 = vpop.f32.mrb[0].mxu0
      %v1761 = vpop.f32.mrb[0].mxu0
      %v1762 = vadd.f32 0.0, %v1761
      %v1763 = vpop.f32.mrb[0].mxu0
      %1764 = vmatprep.mubr.bf16.mxu0 0
      %1765 = vmatmul.mubr.bf16.gmra.mrb[0].mxu0 %v1541
      %v1766 = vpop.f32.mrb[0].mxu0
      %v1767 = vadd.f32 0.0, %v1766
      %v1768 = vpop.f32.mrb[0].mxu0
      %v1769 = vpop.f32.mrb[0].mxu0
      %v1770 = vadd.f32 0.0, %v1769
      %v1771 = vpop.f32.mrb[0].mxu0
      %1772 = vmatprep.mubr.bf16.mxu0 0
      %1773 = vmatmul.mubr.bf16.gmra.mrb[0].mxu0 %v1543
      %v1774 = vpop.f32.mrb[0].mxu0
      %v1775 = vadd.f32 0.0, %v1774
      %v1776 = vpop.f32.mrb[0].mxu0
      %v1777 = vpop.f32.mrb[0].mxu0
      %v1778 = vadd.f32 0.0, %v1777
      %v1779 = vpop.f32.mrb[0].mxu0
      %1780 = vmatprep.mubr.bf16.mxu0 0
      %1781 = vmatmul.mubr.bf16.gmra.mrb[0].mxu0 %v1545
      %v1782 = vpop.f32.mrb[0].mxu0
      %v1783 = vadd.f32 0.0, %v1782
      %v1784 = vpop.f32.mrb[0].mxu0
      %v1785 = vpop.f32.mrb[0].mxu0
      %v1786 = vadd.f32 0.0, %v1785
      %v1787 = vpop.f32.mrb[0].mxu0
      %1788 = vdwg.mxu0
      %v1789 = vadd.f32 %v1326, %v1647
      %v1790 = vadd.f32 %v1327, %v1650
      %v1791 = vadd.f32 %v1328, %v1655
      %v1792 = vadd.f32 %v1329, %v1658
      %v1793 = vadd.f32 %v1330, %v1663
      %v1794 = vadd.f32 %v1331, %v1666
      %v1795 = vadd.f32 %v1332, %v1671
      %v1796 = vadd.f32 %v1333, %v1674
      %v1797 = vadd.f32 %v1334, %v1679
      %v1798 = vadd.f32 %v1335, %v1682
      %v1799 = vadd.f32 %v1336, %v1687
      %v1800 = vadd.f32 %v1337, %v1690
      %v1801 = vadd.f32 %v1338, %v1695
      %v1802 = vadd.f32 %v1339, %v1698
      %v1803 = vadd.f32 %v1340, %v1703
      %v1804 = vadd.f32 %v1341, %v1706
      %v1805 = vadd.f32 %v1342, %v1711
      %v1806 = vadd.f32 %v1343, %v1714
      %v1807 = vadd.f32 %v1344, %v1719
      %v1808 = vadd.f32 %v1345, %v1722
      %v1809 = vadd.f32 %v1346, %v1727
      %v1810 = vadd.f32 %v1347, %v1730
      %v1811 = vadd.f32 %v1348, %v1735
      %v1812 = vadd.f32 %v1349, %v1738
      %v1813 = vadd.f32 %v1350, %v1743
      %v1814 = vadd.f32 %v1351, %v1746
      %v1815 = vadd.f32 %v1352, %v1751
      %v1816 = vadd.f32 %v1353, %v1754
      %v1817 = vadd.f32 %v1354, %v1759
      %v1818 = vadd.f32 %v1355, %v1762
      %v1819 = vadd.f32 %v1356, %v1767
      %v1820 = vadd.f32 %v1357, %v1770
      %v1821 = vadd.f32 %v1358, %v1775
      %v1822 = vadd.f32 %v1359, %v1778
      %v1823 = vadd.f32 %v1360, %v1783
      %v1824 = vadd.f32 %v1361, %v1786
      %v1825 = vld [vmem:[%s219 + $0x98] sm:$0x3]
      %s1826 = scalar_lea.vmem %s1, 256
      %v1827 = vld [vmem:[%s1826] sm:$0xf]
      %v1828 = vld [vmem:[%s1826 + $0x4] sm:$0xf]
      %v1829 = vld [vmem:[%s1826 + $0x8] sm:$0xf]
      %v1830 = vld [vmem:[%s1826 + $0xc] sm:$0xf]
      %v1831 = vld [vmem:[%s1826 + $0x10] sm:$0xf]
      %v1832 = vld [vmem:[%s1826 + $0x14] sm:$0xf]
      %v1833 = vld [vmem:[%s1826 + $0x18] sm:$0xf]
      %v1834 = vld [vmem:[%s1826 + $0x1c] sm:$0xf]
      %v1835 = vld [vmem:[%s1826 + $0x20] sm:$0xf]
      %v1836 = vld [vmem:[%s1826 + $0x24] sm:$0xf]
      %v1837 = vld [vmem:[%s1826 + $0x28] sm:$0xf]
      %v1838 = vld [vmem:[%s1826 + $0x2c] sm:$0xf]
      %v1839 = vld [vmem:[%s1826 + $0x30] sm:$0xf]
      %v1840 = vld [vmem:[%s1826 + $0x34] sm:$0xf]
      %v1841 = vld [vmem:[%s1826 + $0x38] sm:$0xf]
      %v1842 = vld [vmem:[%s1826 + $0x3c] sm:$0xf]
      %v1844 = vunpack.c.l.b16 %v1825
      %v1845 = vpack.c.b16 %v1844, %v1844
      %vm1846 = vsmask.f32 6400
      %v1848 = vshrl.u32 %v1490, 16
      %v1850 = vrot.slane %v1848, 1
      %v1851 = vshll.u32 %v1490, 16
      %v1853 = vrot.slane %v1851, 2
      %v1854 = vor.u32 %v1850, %v1853
      %v1856 = vshrl.u32 %v1491, 16
      %v1858 = vrot.slane %v1856, 1
      %v1859 = vshll.u32 %v1491, 16
      %v1861 = vrot.slane %v1859, 2
      %v1862 = vor.u32 %v1858, %v1861
      %v1863 = vsel %vm1846, %v1854, %v1862
      %v1865 = vshrl.u32 %v1492, 16
      %v1867 = vrot.slane %v1865, 1
      %v1868 = vshll.u32 %v1492, 16
      %v1870 = vrot.slane %v1868, 2
      %v1871 = vor.u32 %v1867, %v1870
      %v1872 = vsel %vm1846, %v1862, %v1871
      %v1874 = vshrl.u32 %v1493, 16
      %v1876 = vrot.slane %v1874, 1
      %v1877 = vshll.u32 %v1493, 16
      %v1879 = vrot.slane %v1877, 2
      %v1880 = vor.u32 %v1876, %v1879
      %v1881 = vsel %vm1846, %v1871, %v1880
      %v1883 = vshrl.u32 %v1494, 16
      %v1885 = vrot.slane %v1883, 1
      %v1886 = vshll.u32 %v1494, 16
      %v1888 = vrot.slane %v1886, 2
      %v1889 = vor.u32 %v1885, %v1888
      %v1890 = vsel %vm1846, %v1880, %v1889
      %v1892 = vshrl.u32 %v1495, 16
      %v1894 = vrot.slane %v1892, 1
      %v1895 = vshll.u32 %v1495, 16
      %v1897 = vrot.slane %v1895, 2
      %v1898 = vor.u32 %v1894, %v1897
      %v1899 = vsel %vm1846, %v1889, %v1898
      %v1901 = vshrl.u32 %v1496, 16
      %v1903 = vrot.slane %v1901, 1
      %v1904 = vshll.u32 %v1496, 16
      %v1906 = vrot.slane %v1904, 2
      %v1907 = vor.u32 %v1903, %v1906
      %v1908 = vsel %vm1846, %v1898, %v1907
      %v1910 = vshrl.u32 %v1497, 16
      %v1912 = vrot.slane %v1910, 1
      %v1913 = vshll.u32 %v1497, 16
      %v1915 = vrot.slane %v1913, 2
      %v1916 = vor.u32 %v1912, %v1915
      %v1917 = vsel %vm1846, %v1907, %v1916
      %v1919 = vshrl.u32 %v1498, 16
      %v1921 = vrot.slane %v1919, 1
      %v1922 = vshll.u32 %v1498, 16
      %v1924 = vrot.slane %v1922, 2
      %v1925 = vor.u32 %v1921, %v1924
      %v1926 = vsel %vm1846, %v1916, %v1925
      %v1928 = vshrl.u32 %v1499, 16
      %v1930 = vrot.slane %v1928, 1
      %v1931 = vshll.u32 %v1499, 16
      %v1933 = vrot.slane %v1931, 2
      %v1934 = vor.u32 %v1930, %v1933
      %v1935 = vsel %vm1846, %v1925, %v1934
      %v1937 = vshrl.u32 %v1500, 16
      %v1939 = vrot.slane %v1937, 1
      %v1940 = vshll.u32 %v1500, 16
      %v1942 = vrot.slane %v1940, 2
      %v1943 = vor.u32 %v1939, %v1942
      %v1944 = vsel %vm1846, %v1934, %v1943
      %v1946 = vshrl.u32 %v1501, 16
      %v1948 = vrot.slane %v1946, 1
      %v1949 = vshll.u32 %v1501, 16
      %v1951 = vrot.slane %v1949, 2
      %v1952 = vor.u32 %v1948, %v1951
      %v1953 = vsel %vm1846, %v1943, %v1952
      %v1955 = vshrl.u32 %v1502, 16
      %v1957 = vrot.slane %v1955, 1
      %v1958 = vshll.u32 %v1502, 16
      %v1960 = vrot.slane %v1958, 2
      %v1961 = vor.u32 %v1957, %v1960
      %v1962 = vsel %vm1846, %v1952, %v1961
      %v1964 = vshrl.u32 %v1503, 16
      %v1966 = vrot.slane %v1964, 1
      %v1967 = vshll.u32 %v1503, 16
      %v1969 = vrot.slane %v1967, 2
      %v1970 = vor.u32 %v1966, %v1969
      %v1971 = vsel %vm1846, %v1961, %v1970
      %v1973 = vshrl.u32 %v1504, 16
      %v1975 = vrot.slane %v1973, 1
      %v1976 = vshll.u32 %v1504, 16
      %v1978 = vrot.slane %v1976, 2
      %v1979 = vor.u32 %v1975, %v1978
      %v1980 = vsel %vm1846, %v1970, %v1979
      %v1982 = vshrl.u32 %v1505, 16
      %v1984 = vrot.slane %v1982, 1
      %v1985 = vshll.u32 %v1505, 16
      %v1987 = vrot.slane %v1985, 2
      %v1988 = vor.u32 %v1984, %v1987
      %v1989 = vsel %vm1846, %v1979, %v1988
      %v1991 = vshrl.u32 %v1506, 16
      %v1993 = vrot.slane %v1991, 1
      %v1994 = vshll.u32 %v1506, 16
      %v1996 = vrot.slane %v1994, 2
      %v1997 = vor.u32 %v1993, %v1996
      %v1998 = vsel %vm1846, %v1988, %v1997
      %v2000 = vshrl.u32 %v1507, 16
      %v2002 = vrot.slane %v2000, 1
      %v2003 = vshll.u32 %v1507, 16
      %v2005 = vrot.slane %v2003, 2
      %v2006 = vor.u32 %v2002, %v2005
      %v2007 = vsel %vm1846, %v1997, %v2006
      %v2009 = vshrl.u32 %v1845, 16
      %v2011 = vrot.slane %v2009, 1
      %v2012 = vshll.u32 %v1845, 16
      %v2014 = vrot.slane %v2012, 2
      %v2015 = vor.u32 %v2011, %v2014
      %v2016 = vsel %vm1846, %v2006, %v2015
      %v2051 = vunpack.c.l.b16 %v1827
      %v2052 = vunpack.c.l.b16 %v1828
      %v2053 = vunpack.c.l.b16 %v1829
      %v2054 = vunpack.c.l.b16 %v1830
      %v2055 = vunpack.c.l.b16 %v1831
      %v2056 = vunpack.c.l.b16 %v1832
      %v2057 = vunpack.c.l.b16 %v1833
      %v2058 = vunpack.c.l.b16 %v1834
      %v2059 = vunpack.c.l.b16 %v1835
      %v2060 = vunpack.c.l.b16 %v1836
      %v2061 = vunpack.c.l.b16 %v1837
      %v2062 = vunpack.c.l.b16 %v1838
      %v2063 = vunpack.c.l.b16 %v1839
      %v2064 = vunpack.c.l.b16 %v1840
      %v2065 = vunpack.c.l.b16 %v1841
      %v2066 = vunpack.c.l.b16 %v1842
      %v2067 = vpack.c.b16 %v2052, %v2051
      %v2068 = vpack.c.b16 %v2054, %v2053
      %v2069 = vpack.c.b16 %v2056, %v2055
      %v2070 = vpack.c.b16 %v2058, %v2057
      %v2071 = vpack.c.b16 %v2060, %v2059
      %v2072 = vpack.c.b16 %v2062, %v2061
      %v2073 = vpack.c.b16 %v2064, %v2063
      %v2074 = vpack.c.b16 %v2066, %v2065
      %2083 = vmatprep.subr.bf16.mxu0 0
      %2084 = vmatpush1.bf16.msra.mxu0 %v2067
      %2085 = vmatprep.subr.bf16.mxu0 0
      %2086 = vmatpush1.bf16.msra.mxu0 %v2068
      %2087 = vmatprep.subr.bf16.mxu0 0
      %2088 = vmatpush1.bf16.msra.mxu0 %v2069
      %2089 = vmatprep.subr.bf16.mxu0 0
      %2090 = vmatpush1.bf16.msra.mxu0 %v2070
      %2091 = vmatprep.subr.bf16.mxu0 0
      %2092 = vmatpush1.bf16.msra.mxu0 %v2071
      %2093 = vmatprep.subr.bf16.mxu0 0
      %2094 = vmatpush1.bf16.msra.mxu0 %v2072
      %2095 = vmatprep.subr.bf16.mxu0 0
      %2096 = vmatpush1.bf16.msra.mxu0 %v2073
      %2097 = vmatprep.subr.bf16.mxu0 0
      %2098 = vmatpush1.bf16.msra.mxu0 %v2074
      %2099 = vmatprep.subr.bf16.mxu0 0
      %2100 = vmatpush1.bf16.msra.mxu0 0
      %2101 = vmatprep.subr.bf16.mxu0 0
      %2102 = vmatpush1.bf16.msra.mxu0 0
      %2103 = vmatprep.subr.bf16.mxu0 0
      %2104 = vmatpush1.bf16.msra.mxu0 0
      %2105 = vmatprep.subr.bf16.mxu0 0
      %2106 = vmatpush1.bf16.msra.mxu0 0
      %2107 = vmatprep.subr.bf16.mxu0 0
      %2108 = vmatpush1.bf16.msra.mxu0 0
      %2109 = vmatprep.subr.bf16.mxu0 0
      %2110 = vmatpush1.bf16.msra.mxu0 0
      %2111 = vmatprep.subr.bf16.mxu0 0
      %2112 = vmatpush1.bf16.msra.mxu0 0
      %2113 = vmatprep.subr.bf16.mxu0 0
      %2114 = vmatpush1.bf16.msra.mxu0 0
      %2115 = vmatprep.mubr.bf16.mxu0 0
      %2116 = vmatmul.mubr.bf16.gmra.mrb[0].mxu0 %v1863
      %v2117 = vpop.f32.mrb[0].mxu0
      %v2118 = vadd.f32 0.0, %v2117
      %v2119 = vpop.f32.mrb[0].mxu0
      %v2120 = vpop.f32.mrb[0].mxu0
      %v2121 = vadd.f32 0.0, %v2120
      %v2122 = vpop.f32.mrb[0].mxu0
      %2123 = vmatprep.mubr.bf16.mxu0 0
      %2124 = vmatmul.mubr.bf16.gmra.mrb[0].mxu0 %v1872
      %v2125 = vpop.f32.mrb[0].mxu0
      %v2126 = vadd.f32 0.0, %v2125
      %v2127 = vpop.f32.mrb[0].mxu0
      %v2128 = vpop.f32.mrb[0].mxu0
      %v2129 = vadd.f32 0.0, %v2128
      %v2130 = vpop.f32.mrb[0].mxu0
      %2131 = vmatprep.mubr.bf16.mxu0 0
      %2132 = vmatmul.mubr.bf16.gmra.mrb[0].mxu0 %v1881
      %v2133 = vpop.f32.mrb[0].mxu0
      %v2134 = vadd.f32 0.0, %v2133
      %v2135 = vpop.f32.mrb[0].mxu0
      %v2136 = vpop.f32.mrb[0].mxu0
      %v2137 = vadd.f32 0.0, %v2136
      %v2138 = vpop.f32.mrb[0].mxu0
      %2139 = vmatprep.mubr.bf16.mxu0 0
      %2140 = vmatmul.mubr.bf16.gmra.mrb[0].mxu0 %v1890
      %v2141 = vpop.f32.mrb[0].mxu0
      %v2142 = vadd.f32 0.0, %v2141
      %v2143 = vpop.f32.mrb[0].mxu0
      %v2144 = vpop.f32.mrb[0].mxu0
      %v2145 = vadd.f32 0.0, %v2144
      %v2146 = vpop.f32.mrb[0].mxu0
      %2147 = vmatprep.mubr.bf16.mxu0 0
      %2148 = vmatmul.mubr.bf16.gmra.mrb[0].mxu0 %v1899
      %v2149 = vpop.f32.mrb[0].mxu0
      %v2150 = vadd.f32 0.0, %v2149
      %v2151 = vpop.f32.mrb[0].mxu0
      %v2152 = vpop.f32.mrb[0].mxu0
      %v2153 = vadd.f32 0.0, %v2152
      %v2154 = vpop.f32.mrb[0].mxu0
      %2155 = vmatprep.mubr.bf16.mxu0 0
      %2156 = vmatmul.mubr.bf16.gmra.mrb[0].mxu0 %v1908
      %v2157 = vpop.f32.mrb[0].mxu0
      %v2158 = vadd.f32 0.0, %v2157
      %v2159 = vpop.f32.mrb[0].mxu0
      %v2160 = vpop.f32.mrb[0].mxu0
      %v2161 = vadd.f32 0.0, %v2160
      %v2162 = vpop.f32.mrb[0].mxu0
      %2163 = vmatprep.mubr.bf16.mxu0 0
      %2164 = vmatmul.mubr.bf16.gmra.mrb[0].mxu0 %v1917
      %v2165 = vpop.f32.mrb[0].mxu0
      %v2166 = vadd.f32 0.0, %v2165
      %v2167 = vpop.f32.mrb[0].mxu0
      %v2168 = vpop.f32.mrb[0].mxu0
      %v2169 = vadd.f32 0.0, %v2168
      %v2170 = vpop.f32.mrb[0].mxu0
      %2171 = vmatprep.mubr.bf16.mxu0 0
      %2172 = vmatmul.mubr.bf16.gmra.mrb[0].mxu0 %v1926
      %v2173 = vpop.f32.mrb[0].mxu0
      %v2174 = vadd.f32 0.0, %v2173
      %v2175 = vpop.f32.mrb[0].mxu0
      %v2176 = vpop.f32.mrb[0].mxu0
      %v2177 = vadd.f32 0.0, %v2176
      %v2178 = vpop.f32.mrb[0].mxu0
      %2179 = vmatprep.mubr.bf16.mxu0 0
      %2180 = vmatmul.mubr.bf16.gmra.mrb[0].mxu0 %v1935
      %v2181 = vpop.f32.mrb[0].mxu0
      %v2182 = vadd.f32 0.0, %v2181
      %v2183 = vpop.f32.mrb[0].mxu0
      %v2184 = vpop.f32.mrb[0].mxu0
      %v2185 = vadd.f32 0.0, %v2184
      %v2186 = vpop.f32.mrb[0].mxu0
      %2187 = vmatprep.mubr.bf16.mxu0 0
      %2188 = vmatmul.mubr.bf16.gmra.mrb[0].mxu0 %v1944
      %v2189 = vpop.f32.mrb[0].mxu0
      %v2190 = vadd.f32 0.0, %v2189
      %v2191 = vpop.f32.mrb[0].mxu0
      %v2192 = vpop.f32.mrb[0].mxu0
      %v2193 = vadd.f32 0.0, %v2192
      %v2194 = vpop.f32.mrb[0].mxu0
      %2195 = vmatprep.mubr.bf16.mxu0 0
      %2196 = vmatmul.mubr.bf16.gmra.mrb[0].mxu0 %v1953
      %v2197 = vpop.f32.mrb[0].mxu0
      %v2198 = vadd.f32 0.0, %v2197
      %v2199 = vpop.f32.mrb[0].mxu0
      %v2200 = vpop.f32.mrb[0].mxu0
      %v2201 = vadd.f32 0.0, %v2200
      %v2202 = vpop.f32.mrb[0].mxu0
      %2203 = vmatprep.mubr.bf16.mxu0 0
      %2204 = vmatmul.mubr.bf16.gmra.mrb[0].mxu0 %v1962
      %v2205 = vpop.f32.mrb[0].mxu0
      %v2206 = vadd.f32 0.0, %v2205
      %v2207 = vpop.f32.mrb[0].mxu0
      %v2208 = vpop.f32.mrb[0].mxu0
      %v2209 = vadd.f32 0.0, %v2208
      %v2210 = vpop.f32.mrb[0].mxu0
      %2211 = vmatprep.mubr.bf16.mxu0 0
      %2212 = vmatmul.mubr.bf16.gmra.mrb[0].mxu0 %v1971
      %v2213 = vpop.f32.mrb[0].mxu0
      %v2214 = vadd.f32 0.0, %v2213
      %v2215 = vpop.f32.mrb[0].mxu0
      %v2216 = vpop.f32.mrb[0].mxu0
      %v2217 = vadd.f32 0.0, %v2216
      %v2218 = vpop.f32.mrb[0].mxu0
      %2219 = vmatprep.mubr.bf16.mxu0 0
      %2220 = vmatmul.mubr.bf16.gmra.mrb[0].mxu0 %v1980
      %v2221 = vpop.f32.mrb[0].mxu0
      %v2222 = vadd.f32 0.0, %v2221
      %v2223 = vpop.f32.mrb[0].mxu0
      %v2224 = vpop.f32.mrb[0].mxu0
      %v2225 = vadd.f32 0.0, %v2224
      %v2226 = vpop.f32.mrb[0].mxu0
      %2227 = vmatprep.mubr.bf16.mxu0 0
      %2228 = vmatmul.mubr.bf16.gmra.mrb[0].mxu0 %v1989
      %v2229 = vpop.f32.mrb[0].mxu0
      %v2230 = vadd.f32 0.0, %v2229
      %v2231 = vpop.f32.mrb[0].mxu0
      %v2232 = vpop.f32.mrb[0].mxu0
      %v2233 = vadd.f32 0.0, %v2232
      %v2234 = vpop.f32.mrb[0].mxu0
      %2235 = vmatprep.mubr.bf16.mxu0 0
      %2236 = vmatmul.mubr.bf16.gmra.mrb[0].mxu0 %v1998
      %v2237 = vpop.f32.mrb[0].mxu0
      %v2238 = vadd.f32 0.0, %v2237
      %v2239 = vpop.f32.mrb[0].mxu0
      %v2240 = vpop.f32.mrb[0].mxu0
      %v2241 = vadd.f32 0.0, %v2240
      %v2242 = vpop.f32.mrb[0].mxu0
      %2243 = vmatprep.mubr.bf16.mxu0 0
      %2244 = vmatmul.mubr.bf16.gmra.mrb[0].mxu0 %v2007
      %v2245 = vpop.f32.mrb[0].mxu0
      %v2246 = vadd.f32 0.0, %v2245
      %v2247 = vpop.f32.mrb[0].mxu0
      %v2248 = vpop.f32.mrb[0].mxu0
      %v2249 = vadd.f32 0.0, %v2248
      %v2250 = vpop.f32.mrb[0].mxu0
      %2251 = vmatprep.mubr.bf16.mxu0 0
      %2252 = vmatmul.mubr.bf16.gmra.mrb[0].mxu0 %v2016
      %v2253 = vpop.f32.mrb[0].mxu0
      %v2254 = vadd.f32 0.0, %v2253
      %v2255 = vpop.f32.mrb[0].mxu0
      %v2256 = vpop.f32.mrb[0].mxu0
      %v2257 = vadd.f32 0.0, %v2256
      %v2258 = vpop.f32.mrb[0].mxu0
      %2259 = vdwg.mxu0
      %v2260 = vadd.f32 %v1789, %v2118
      %v2261 = vadd.f32 %v1790, %v2121
      %v2262 = vadd.f32 %v1791, %v2126
      %v2263 = vadd.f32 %v1792, %v2129
      %v2264 = vadd.f32 %v1793, %v2134
      %v2265 = vadd.f32 %v1794, %v2137
      %v2266 = vadd.f32 %v1795, %v2142
      %v2267 = vadd.f32 %v1796, %v2145
      %v2268 = vadd.f32 %v1797, %v2150
      %v2269 = vadd.f32 %v1798, %v2153
      %v2270 = vadd.f32 %v1799, %v2158
      %v2271 = vadd.f32 %v1800, %v2161
      %v2272 = vadd.f32 %v1801, %v2166
      %v2273 = vadd.f32 %v1802, %v2169
      %v2274 = vadd.f32 %v1803, %v2174
      %v2275 = vadd.f32 %v1804, %v2177
      %v2276 = vadd.f32 %v1805, %v2182
      %v2277 = vadd.f32 %v1806, %v2185
      %v2278 = vadd.f32 %v1807, %v2190
      %v2279 = vadd.f32 %v1808, %v2193
      %v2280 = vadd.f32 %v1809, %v2198
      %v2281 = vadd.f32 %v1810, %v2201
      %v2282 = vadd.f32 %v1811, %v2206
      %v2283 = vadd.f32 %v1812, %v2209
      %v2284 = vadd.f32 %v1813, %v2214
      %v2285 = vadd.f32 %v1814, %v2217
      %v2286 = vadd.f32 %v1815, %v2222
      %v2287 = vadd.f32 %v1816, %v2225
      %v2288 = vadd.f32 %v1817, %v2230
      %v2289 = vadd.f32 %v1818, %v2233
      %v2290 = vadd.f32 %v1819, %v2238
      %v2291 = vadd.f32 %v1820, %v2241
      %v2292 = vadd.f32 %v1821, %v2246
      %v2293 = vadd.f32 %v1822, %v2249
      %v2294 = vadd.f32 %v1823, %v2254
      %v2295 = vadd.f32 %v1824, %v2257
      %v2296 = vld [vmem:[%s219 + $0x8] sm:$0xc]
      %s2297 = scalar_lea.vmem %s1, 320
      %v2298 = vld [vmem:[%s2297] sm:$0xf]
      %v2299 = vld [vmem:[%s2297 + $0x4] sm:$0xf]
      %v2300 = vld [vmem:[%s2297 + $0x8] sm:$0xf]
      %v2301 = vld [vmem:[%s2297 + $0xc] sm:$0xf]
      %v2302 = vld [vmem:[%s2297 + $0x10] sm:$0xf]
      %v2303 = vld [vmem:[%s2297 + $0x14] sm:$0xf]
      %v2304 = vld [vmem:[%s2297 + $0x18] sm:$0xf]
      %v2305 = vld [vmem:[%s2297 + $0x1c] sm:$0xf]
      %v2306 = vld [vmem:[%s2297 + $0x20] sm:$0xf]
      %v2307 = vld [vmem:[%s2297 + $0x24] sm:$0xf]
      %v2308 = vld [vmem:[%s2297 + $0x28] sm:$0xf]
      %v2309 = vld [vmem:[%s2297 + $0x2c] sm:$0xf]
      %v2310 = vld [vmem:[%s2297 + $0x30] sm:$0xf]
      %v2311 = vld [vmem:[%s2297 + $0x34] sm:$0xf]
      %v2312 = vld [vmem:[%s2297 + $0x38] sm:$0xf]
      %v2313 = vld [vmem:[%s2297 + $0x3c] sm:$0xf]
      %v2315 = vunpack.c.l.b16 %v2296
      %v2316 = vpack.c.b16 %v1454, %v2315
      %vm2317 = vcmask 1045504
      %v2318 = vrot.slane %v2316, 2
      %v2319 = vrot.slane %v1491, 2
      %v2320 = vsel %vm2317, %v2318, %v2319
      %v2321 = vrot.slane %v1492, 2
      %v2322 = vsel %vm2317, %v2319, %v2321
      %v2323 = vrot.slane %v1493, 2
      %v2324 = vsel %vm2317, %v2321, %v2323
      %v2325 = vrot.slane %v1494, 2
      %v2326 = vsel %vm2317, %v2323, %v2325
      %v2327 = vrot.slane %v1495, 2
      %v2328 = vsel %vm2317, %v2325, %v2327
      %v2329 = vrot.slane %v1496, 2
      %v2330 = vsel %vm2317, %v2327, %v2329
      %v2331 = vrot.slane %v1497, 2
      %v2332 = vsel %vm2317, %v2329, %v2331
      %v2333 = vrot.slane %v1498, 2
      %v2334 = vsel %vm2317, %v2331, %v2333
      %v2335 = vrot.slane %v1499, 2
      %v2336 = vsel %vm2317, %v2333, %v2335
      %v2337 = vrot.slane %v1500, 2
      %v2338 = vsel %vm2317, %v2335, %v2337
      %v2339 = vrot.slane %v1501, 2
      %v2340 = vsel %vm2317, %v2337, %v2339
      %v2341 = vrot.slane %v1502, 2
      %v2342 = vsel %vm2317, %v2339, %v2341
      %v2343 = vrot.slane %v1503, 2
      %v2344 = vsel %vm2317, %v2341, %v2343
      %v2345 = vrot.slane %v1504, 2
      %v2346 = vsel %vm2317, %v2343, %v2345
      %v2347 = vrot.slane %v1505, 2
      %v2348 = vsel %vm2317, %v2345, %v2347
      %v2349 = vrot.slane %v1506, 2
      %v2350 = vsel %vm2317, %v2347, %v2349
      %v2351 = vrot.slane %v1507, 2
      %v2352 = vsel %vm2317, %v2349, %v2351
      %v2353 = vrot.slane %v1845, 2
      %v2354 = vsel %vm2317, %v2351, %v2353
      %v2389 = vunpack.c.l.b16 %v2298
      %v2390 = vunpack.c.l.b16 %v2299
      %v2391 = vunpack.c.l.b16 %v2300
      %v2392 = vunpack.c.l.b16 %v2301
      %v2393 = vunpack.c.l.b16 %v2302
      %v2394 = vunpack.c.l.b16 %v2303
      %v2395 = vunpack.c.l.b16 %v2304
      %v2396 = vunpack.c.l.b16 %v2305
      %v2397 = vunpack.c.l.b16 %v2306
      %v2398 = vunpack.c.l.b16 %v2307
      %v2399 = vunpack.c.l.b16 %v2308
      %v2400 = vunpack.c.l.b16 %v2309
      %v2401 = vunpack.c.l.b16 %v2310
      %v2402 = vunpack.c.l.b16 %v2311
      %v2403 = vunpack.c.l.b16 %v2312
      %v2404 = vunpack.c.l.b16 %v2313
      %v2405 = vpack.c.b16 %v2390, %v2389
      %v2406 = vpack.c.b16 %v2392, %v2391
      %v2407 = vpack.c.b16 %v2394, %v2393
      %v2408 = vpack.c.b16 %v2396, %v2395
      %v2409 = vpack.c.b16 %v2398, %v2397
      %v2410 = vpack.c.b16 %v2400, %v2399
      %v2411 = vpack.c.b16 %v2402, %v2401
      %v2412 = vpack.c.b16 %v2404, %v2403
      %2421 = vmatprep.subr.bf16.mxu0 0
      %2422 = vmatpush1.bf16.msra.mxu0 %v2405
      %2423 = vmatprep.subr.bf16.mxu0 0
      %2424 = vmatpush1.bf16.msra.mxu0 %v2406
      %2425 = vmatprep.subr.bf16.mxu0 0
      %2426 = vmatpush1.bf16.msra.mxu0 %v2407
      %2427 = vmatprep.subr.bf16.mxu0 0
      %2428 = vmatpush1.bf16.msra.mxu0 %v2408
      %2429 = vmatprep.subr.bf16.mxu0 0
      %2430 = vmatpush1.bf16.msra.mxu0 %v2409
      %2431 = vmatprep.subr.bf16.mxu0 0
      %2432 = vmatpush1.bf16.msra.mxu0 %v2410
      %2433 = vmatprep.subr.bf16.mxu0 0
      %2434 = vmatpush1.bf16.msra.mxu0 %v2411
      %2435 = vmatprep.subr.bf16.mxu0 0
      %2436 = vmatpush1.bf16.msra.mxu0 %v2412
      %2437 = vmatprep.subr.bf16.mxu0 0
      %2438 = vmatpush1.bf16.msra.mxu0 0
      %2439 = vmatprep.subr.bf16.mxu0 0
      %2440 = vmatpush1.bf16.msra.mxu0 0
      %2441 = vmatprep.subr.bf16.mxu0 0
      %2442 = vmatpush1.bf16.msra.mxu0 0
      %2443 = vmatprep.subr.bf16.mxu0 0
      %2444 = vmatpush1.bf16.msra.mxu0 0
      %2445 = vmatprep.subr.bf16.mxu0 0
      %2446 = vmatpush1.bf16.msra.mxu0 0
      %2447 = vmatprep.subr.bf16.mxu0 0
      %2448 = vmatpush1.bf16.msra.mxu0 0
      %2449 = vmatprep.subr.bf16.mxu0 0
      %2450 = vmatpush1.bf16.msra.mxu0 0
      %2451 = vmatprep.subr.bf16.mxu0 0
      %2452 = vmatpush1.bf16.msra.mxu0 0
      %2453 = vmatprep.mubr.bf16.mxu0 0
      %2454 = vmatmul.mubr.bf16.gmra.mrb[0].mxu0 %v2320
      %v2455 = vpop.f32.mrb[0].mxu0
      %v2456 = vadd.f32 0.0, %v2455
      %v2457 = vpop.f32.mrb[0].mxu0
      %v2458 = vpop.f32.mrb[0].mxu0
      %v2459 = vadd.f32 0.0, %v2458
      %v2460 = vpop.f32.mrb[0].mxu0
      %2461 = vmatprep.mubr.bf16.mxu0 0
      %2462 = vmatmul.mubr.bf16.gmra.mrb[0].mxu0 %v2322
      %v2463 = vpop.f32.mrb[0].mxu0
      %v2464 = vadd.f32 0.0, %v2463
      %v2465 = vpop.f32.mrb[0].mxu0
      %v2466 = vpop.f32.mrb[0].mxu0
      %v2467 = vadd.f32 0.0, %v2466
      %v2468 = vpop.f32.mrb[0].mxu0
      %2469 = vmatprep.mubr.bf16.mxu0 0
      %2470 = vmatmul.mubr.bf16.gmra.mrb[0].mxu0 %v2324
      %v2471 = vpop.f32.mrb[0].mxu0
      %v2472 = vadd.f32 0.0, %v2471
      %v2473 = vpop.f32.mrb[0].mxu0
      %v2474 = vpop.f32.mrb[0].mxu0
      %v2475 = vadd.f32 0.0, %v2474
      %v2476 = vpop.f32.mrb[0].mxu0
      %2477 = vmatprep.mubr.bf16.mxu0 0
      %2478 = vmatmul.mubr.bf16.gmra.mrb[0].mxu0 %v2326
      %v2479 = vpop.f32.mrb[0].mxu0
      %v2480 = vadd.f32 0.0, %v2479
      %v2481 = vpop.f32.mrb[0].mxu0
      %v2482 = vpop.f32.mrb[0].mxu0
      %v2483 = vadd.f32 0.0, %v2482
      %v2484 = vpop.f32.mrb[0].mxu0
      %2485 = vmatprep.mubr.bf16.mxu0 0
      %2486 = vmatmul.mubr.bf16.gmra.mrb[0].mxu0 %v2328
      %v2487 = vpop.f32.mrb[0].mxu0
      %v2488 = vadd.f32 0.0, %v2487
      %v2489 = vpop.f32.mrb[0].mxu0
      %v2490 = vpop.f32.mrb[0].mxu0
      %v2491 = vadd.f32 0.0, %v2490
      %v2492 = vpop.f32.mrb[0].mxu0
      %2493 = vmatprep.mubr.bf16.mxu0 0
      %2494 = vmatmul.mubr.bf16.gmra.mrb[0].mxu0 %v2330
      %v2495 = vpop.f32.mrb[0].mxu0
      %v2496 = vadd.f32 0.0, %v2495
      %v2497 = vpop.f32.mrb[0].mxu0
      %v2498 = vpop.f32.mrb[0].mxu0
      %v2499 = vadd.f32 0.0, %v2498
      %v2500 = vpop.f32.mrb[0].mxu0
      %2501 = vmatprep.mubr.bf16.mxu0 0
      %2502 = vmatmul.mubr.bf16.gmra.mrb[0].mxu0 %v2332
      %v2503 = vpop.f32.mrb[0].mxu0
      %v2504 = vadd.f32 0.0, %v2503
      %v2505 = vpop.f32.mrb[0].mxu0
      %v2506 = vpop.f32.mrb[0].mxu0
      %v2507 = vadd.f32 0.0, %v2506
      %v2508 = vpop.f32.mrb[0].mxu0
      %2509 = vmatprep.mubr.bf16.mxu0 0
      %2510 = vmatmul.mubr.bf16.gmra.mrb[0].mxu0 %v2334
      %v2511 = vpop.f32.mrb[0].mxu0
      %v2512 = vadd.f32 0.0, %v2511
      %v2513 = vpop.f32.mrb[0].mxu0
      %v2514 = vpop.f32.mrb[0].mxu0
      %v2515 = vadd.f32 0.0, %v2514
      %v2516 = vpop.f32.mrb[0].mxu0
      %2517 = vmatprep.mubr.bf16.mxu0 0
      %2518 = vmatmul.mubr.bf16.gmra.mrb[0].mxu0 %v2336
      %v2519 = vpop.f32.mrb[0].mxu0
      %v2520 = vadd.f32 0.0, %v2519
      %v2521 = vpop.f32.mrb[0].mxu0
      %v2522 = vpop.f32.mrb[0].mxu0
      %v2523 = vadd.f32 0.0, %v2522
      %v2524 = vpop.f32.mrb[0].mxu0
      %2525 = vmatprep.mubr.bf16.mxu0 0
      %2526 = vmatmul.mubr.bf16.gmra.mrb[0].mxu0 %v2338
      %v2527 = vpop.f32.mrb[0].mxu0
      %v2528 = vadd.f32 0.0, %v2527
      %v2529 = vpop.f32.mrb[0].mxu0
      %v2530 = vpop.f32.mrb[0].mxu0
      %v2531 = vadd.f32 0.0, %v2530
      %v2532 = vpop.f32.mrb[0].mxu0
      %2533 = vmatprep.mubr.bf16.mxu0 0
      %2534 = vmatmul.mubr.bf16.gmra.mrb[0].mxu0 %v2340
      %v2535 = vpop.f32.mrb[0].mxu0
      %v2536 = vadd.f32 0.0, %v2535
      %v2537 = vpop.f32.mrb[0].mxu0
      %v2538 = vpop.f32.mrb[0].mxu0
      %v2539 = vadd.f32 0.0, %v2538
      %v2540 = vpop.f32.mrb[0].mxu0
      %2541 = vmatprep.mubr.bf16.mxu0 0
      %2542 = vmatmul.mubr.bf16.gmra.mrb[0].mxu0 %v2342
      %v2543 = vpop.f32.mrb[0].mxu0
      %v2544 = vadd.f32 0.0, %v2543
      %v2545 = vpop.f32.mrb[0].mxu0
      %v2546 = vpop.f32.mrb[0].mxu0
      %v2547 = vadd.f32 0.0, %v2546
      %v2548 = vpop.f32.mrb[0].mxu0
      %2549 = vmatprep.mubr.bf16.mxu0 0
      %2550 = vmatmul.mubr.bf16.gmra.mrb[0].mxu0 %v2344
      %v2551 = vpop.f32.mrb[0].mxu0
      %v2552 = vadd.f32 0.0, %v2551
      %v2553 = vpop.f32.mrb[0].mxu0
      %v2554 = vpop.f32.mrb[0].mxu0
      %v2555 = vadd.f32 0.0, %v2554
      %v2556 = vpop.f32.mrb[0].mxu0
      %2557 = vmatprep.mubr.bf16.mxu0 0
      %2558 = vmatmul.mubr.bf16.gmra.mrb[0].mxu0 %v2346
      %v2559 = vpop.f32.mrb[0].mxu0
      %v2560 = vadd.f32 0.0, %v2559
      %v2561 = vpop.f32.mrb[0].mxu0
      %v2562 = vpop.f32.mrb[0].mxu0
      %v2563 = vadd.f32 0.0, %v2562
      %v2564 = vpop.f32.mrb[0].mxu0
      %2565 = vmatprep.mubr.bf16.mxu0 0
      %2566 = vmatmul.mubr.bf16.gmra.mrb[0].mxu0 %v2348
      %v2567 = vpop.f32.mrb[0].mxu0
      %v2568 = vadd.f32 0.0, %v2567
      %v2569 = vpop.f32.mrb[0].mxu0
      %v2570 = vpop.f32.mrb[0].mxu0
      %v2571 = vadd.f32 0.0, %v2570
      %v2572 = vpop.f32.mrb[0].mxu0
      %2573 = vmatprep.mubr.bf16.mxu0 0
      %2574 = vmatmul.mubr.bf16.gmra.mrb[0].mxu0 %v2350
      %v2575 = vpop.f32.mrb[0].mxu0
      %v2576 = vadd.f32 0.0, %v2575
      %v2577 = vpop.f32.mrb[0].mxu0
      %v2578 = vpop.f32.mrb[0].mxu0
      %v2579 = vadd.f32 0.0, %v2578
      %v2580 = vpop.f32.mrb[0].mxu0
      %2581 = vmatprep.mubr.bf16.mxu0 0
      %2582 = vmatmul.mubr.bf16.gmra.mrb[0].mxu0 %v2352
      %v2583 = vpop.f32.mrb[0].mxu0
      %v2584 = vadd.f32 0.0, %v2583
      %v2585 = vpop.f32.mrb[0].mxu0
      %v2586 = vpop.f32.mrb[0].mxu0
      %v2587 = vadd.f32 0.0, %v2586
      %v2588 = vpop.f32.mrb[0].mxu0
      %2589 = vmatprep.mubr.bf16.mxu0 0
      %2590 = vmatmul.mubr.bf16.gmra.mrb[0].mxu0 %v2354
      %v2591 = vpop.f32.mrb[0].mxu0
      %v2592 = vadd.f32 0.0, %v2591
      %v2593 = vpop.f32.mrb[0].mxu0
      %v2594 = vpop.f32.mrb[0].mxu0
      %v2595 = vadd.f32 0.0, %v2594
      %v2596 = vpop.f32.mrb[0].mxu0
      %2597 = vdwg.mxu0
      %v2598 = vadd.f32 %v2260, %v2456
      %v2599 = vadd.f32 %v2261, %v2459
      %v2600 = vadd.f32 %v2262, %v2464
      %v2601 = vadd.f32 %v2263, %v2467
      %v2602 = vadd.f32 %v2264, %v2472
      %v2603 = vadd.f32 %v2265, %v2475
      %v2604 = vadd.f32 %v2266, %v2480
      %v2605 = vadd.f32 %v2267, %v2483
      %v2606 = vadd.f32 %v2268, %v2488
      %v2607 = vadd.f32 %v2269, %v2491
      %v2608 = vadd.f32 %v2270, %v2496
      %v2609 = vadd.f32 %v2271, %v2499
      %v2610 = vadd.f32 %v2272, %v2504
      %v2611 = vadd.f32 %v2273, %v2507
      %v2612 = vadd.f32 %v2274, %v2512
      %v2613 = vadd.f32 %v2275, %v2515
      %v2614 = vadd.f32 %v2276, %v2520
      %v2615 = vadd.f32 %v2277, %v2523
      %v2616 = vadd.f32 %v2278, %v2528
      %v2617 = vadd.f32 %v2279, %v2531
      %v2618 = vadd.f32 %v2280, %v2536
      %v2619 = vadd.f32 %v2281, %v2539
      %v2620 = vadd.f32 %v2282, %v2544
      %v2621 = vadd.f32 %v2283, %v2547
      %v2622 = vadd.f32 %v2284, %v2552
      %v2623 = vadd.f32 %v2285, %v2555
      %v2624 = vadd.f32 %v2286, %v2560
      %v2625 = vadd.f32 %v2287, %v2563
      %v2626 = vadd.f32 %v2288, %v2568
      %v2627 = vadd.f32 %v2289, %v2571
      %v2628 = vadd.f32 %v2290, %v2576
      %v2629 = vadd.f32 %v2291, %v2579
      %v2630 = vadd.f32 %v2292, %v2584
      %v2631 = vadd.f32 %v2293, %v2587
      %v2632 = vadd.f32 %v2294, %v2592
      %v2633 = vadd.f32 %v2295, %v2595
      %v2634 = vld [vmem:[%s219 + $0x10] sm:$0xc]
      %v2635 = vld [vmem:[%s219 + $0x14] sm:$0xf]
      %v2636 = vld [vmem:[%s219 + $0x18] sm:$0xf]
      %v2637 = vld [vmem:[%s219 + $0x1c] sm:$0xf]
      %v2638 = vld [vmem:[%s219 + $0x20] sm:$0xf]
      %v2639 = vld [vmem:[%s219 + $0x24] sm:$0xf]
      %v2640 = vld [vmem:[%s219 + $0x28] sm:$0xf]
      %v2641 = vld [vmem:[%s219 + $0x2c] sm:$0xf]
      %v2642 = vld [vmem:[%s219 + $0x30] sm:$0xf]
      %v2643 = vld [vmem:[%s219 + $0x34] sm:$0xf]
      %v2644 = vld [vmem:[%s219 + $0x38] sm:$0xf]
      %v2645 = vld [vmem:[%s219 + $0x3c] sm:$0xf]
      %v2646 = vld [vmem:[%s219 + $0x40] sm:$0xf]
      %v2647 = vld [vmem:[%s219 + $0x44] sm:$0xf]
      %v2648 = vld [vmem:[%s219 + $0x48] sm:$0xf]
      %v2649 = vld [vmem:[%s219 + $0x4c] sm:$0xf]
      %v2650 = vld [vmem:[%s219 + $0x50] sm:$0xf]
      %v2651 = vld [vmem:[%s219 + $0x54] sm:$0xf]
      %v2652 = vld [vmem:[%s219 + $0x58] sm:$0xf]
      %v2653 = vld [vmem:[%s219 + $0x5c] sm:$0xf]
      %v2654 = vld [vmem:[%s219 + $0x60] sm:$0xf]
      %v2655 = vld [vmem:[%s219 + $0x64] sm:$0xf]
      %v2656 = vld [vmem:[%s219 + $0x68] sm:$0xf]
      %v2657 = vld [vmem:[%s219 + $0x6c] sm:$0xf]
      %v2658 = vld [vmem:[%s219 + $0x70] sm:$0xf]
      %v2659 = vld [vmem:[%s219 + $0x74] sm:$0xf]
      %v2660 = vld [vmem:[%s219 + $0x78] sm:$0xf]
      %v2661 = vld [vmem:[%s219 + $0x7c] sm:$0xf]
      %v2662 = vld [vmem:[%s219 + $0x80] sm:$0xf]
      %v2663 = vld [vmem:[%s219 + $0x84] sm:$0xf]
      %v2664 = vld [vmem:[%s219 + $0x88] sm:$0xf]
      %v2665 = vld [vmem:[%s219 + $0x8c] sm:$0xf]
      %v2666 = vld [vmem:[%s219 + $0x90] sm:$0xf]
      %v2667 = vld [vmem:[%s219 + $0x94] sm:$0xf]
      %v2668 = vld [vmem:[%s219 + $0x98] sm:$0xf]
      %v2669 = vld [vmem:[%s219 + $0x9c] sm:$0xf]
      %v2670 = vld [vmem:[%s219 + $0xa0] sm:$0x3]
      %s2671 = scalar_lea.vmem %s1, 384
      %v2672 = vld [vmem:[%s2671] sm:$0xf]
      %v2673 = vld [vmem:[%s2671 + $0x4] sm:$0xf]
      %v2674 = vld [vmem:[%s2671 + $0x8] sm:$0xf]
      %v2675 = vld [vmem:[%s2671 + $0xc] sm:$0xf]
      %v2676 = vld [vmem:[%s2671 + $0x10] sm:$0xf]
      %v2677 = vld [vmem:[%s2671 + $0x14] sm:$0xf]
      %v2678 = vld [vmem:[%s2671 + $0x18] sm:$0xf]
      %v2679 = vld [vmem:[%s2671 + $0x1c] sm:$0xf]
      %v2680 = vld [vmem:[%s2671 + $0x20] sm:$0xf]
      %v2681 = vld [vmem:[%s2671 + $0x24] sm:$0xf]
      %v2682 = vld [vmem:[%s2671 + $0x28] sm:$0xf]
      %v2683 = vld [vmem:[%s2671 + $0x2c] sm:$0xf]
      %v2684 = vld [vmem:[%s2671 + $0x30] sm:$0xf]
      %v2685 = vld [vmem:[%s2671 + $0x34] sm:$0xf]
      %v2686 = vld [vmem:[%s2671 + $0x38] sm:$0xf]
      %v2687 = vld [vmem:[%s2671 + $0x3c] sm:$0xf]
      %v2725 = vunpack.c.l.b16 %v2634
      %v2726 = vunpack.c.l.b16 %v2635
      %v2727 = vunpack.c.l.b16 %v2636
      %v2728 = vunpack.c.l.b16 %v2637
      %v2729 = vunpack.c.l.b16 %v2638
      %v2730 = vunpack.c.l.b16 %v2639
      %v2731 = vunpack.c.l.b16 %v2640
      %v2732 = vunpack.c.l.b16 %v2641
      %v2733 = vunpack.c.l.b16 %v2642
      %v2734 = vunpack.c.l.b16 %v2643
      %v2735 = vunpack.c.l.b16 %v2644
      %v2736 = vunpack.c.l.b16 %v2645
      %v2737 = vunpack.c.l.b16 %v2646
      %v2738 = vunpack.c.l.b16 %v2647
      %v2739 = vunpack.c.l.b16 %v2648
      %v2740 = vunpack.c.l.b16 %v2649
      %v2741 = vunpack.c.l.b16 %v2650
      %v2742 = vunpack.c.l.b16 %v2651
      %v2743 = vunpack.c.l.b16 %v2652
      %v2744 = vunpack.c.l.b16 %v2653
      %v2745 = vunpack.c.l.b16 %v2654
      %v2746 = vunpack.c.l.b16 %v2655
      %v2747 = vunpack.c.l.b16 %v2656
      %v2748 = vunpack.c.l.b16 %v2657
      %v2749 = vunpack.c.l.b16 %v2658
      %v2750 = vunpack.c.l.b16 %v2659
      %v2751 = vunpack.c.l.b16 %v2660
      %v2752 = vunpack.c.l.b16 %v2661
      %v2753 = vunpack.c.l.b16 %v2662
      %v2754 = vunpack.c.l.b16 %v2663
      %v2755 = vunpack.c.l.b16 %v2664
      %v2756 = vunpack.c.l.b16 %v2665
      %v2757 = vunpack.c.l.b16 %v2666
      %v2758 = vunpack.c.l.b16 %v2667
      %v2759 = vunpack.c.l.b16 %v2668
      %v2760 = vunpack.c.l.b16 %v2669
      %v2761 = vunpack.c.l.b16 %v2670
      %v2762 = vpack.c.b16 %v2726, %v2725
      %v2763 = vpack.c.b16 %v2728, %v2727
      %v2764 = vpack.c.b16 %v2730, %v2729
      %v2765 = vpack.c.b16 %v2732, %v2731
      %v2766 = vpack.c.b16 %v2734, %v2733
      %v2767 = vpack.c.b16 %v2736, %v2735
      %v2768 = vpack.c.b16 %v2738, %v2737
      %v2769 = vpack.c.b16 %v2740, %v2739
      %v2770 = vpack.c.b16 %v2742, %v2741
      %v2771 = vpack.c.b16 %v2744, %v2743
      %v2772 = vpack.c.b16 %v2746, %v2745
      %v2773 = vpack.c.b16 %v2748, %v2747
      %v2774 = vpack.c.b16 %v2750, %v2749
      %v2775 = vpack.c.b16 %v2752, %v2751
      %v2776 = vpack.c.b16 %v2754, %v2753
      %v2777 = vpack.c.b16 %v2756, %v2755
      %v2778 = vpack.c.b16 %v2758, %v2757
      %v2779 = vpack.c.b16 %v2760, %v2759
      %v2780 = vpack.c.b16 %v2761, %v2761
      %v2781 = vrot.slane %v2762, 2
      %v2782 = vrot.slane %v2763, 2
      %v2783 = vsel %vm2317, %v2781, %v2782
      %v2784 = vrot.slane %v2764, 2
      %v2785 = vsel %vm2317, %v2782, %v2784
      %v2786 = vrot.slane %v2765, 2
      %v2787 = vsel %vm2317, %v2784, %v2786
      %v2788 = vrot.slane %v2766, 2
      %v2789 = vsel %vm2317, %v2786, %v2788
      %v2790 = vrot.slane %v2767, 2
      %v2791 = vsel %vm2317, %v2788, %v2790
      %v2792 = vrot.slane %v2768, 2
      %v2793 = vsel %vm2317, %v2790, %v2792
      %v2794 = vrot.slane %v2769, 2
      %v2795 = vsel %vm2317, %v2792, %v2794
      %v2796 = vrot.slane %v2770, 2
      %v2797 = vsel %vm2317, %v2794, %v2796
      %v2798 = vrot.slane %v2771, 2
      %v2799 = vsel %vm2317, %v2796, %v2798
      %v2800 = vrot.slane %v2772, 2
      %v2801 = vsel %vm2317, %v2798, %v2800
      %v2802 = vrot.slane %v2773, 2
      %v2803 = vsel %vm2317, %v2800, %v2802
      %v2804 = vrot.slane %v2774, 2
      %v2805 = vsel %vm2317, %v2802, %v2804
      %v2806 = vrot.slane %v2775, 2
      %v2807 = vsel %vm2317, %v2804, %v2806
      %v2808 = vrot.slane %v2776, 2
      %v2809 = vsel %vm2317, %v2806, %v2808
      %v2810 = vrot.slane %v2777, 2
      %v2811 = vsel %vm2317, %v2808, %v2810
      %v2812 = vrot.slane %v2778, 2
      %v2813 = vsel %vm2317, %v2810, %v2812
      %v2814 = vrot.slane %v2779, 2
      %v2815 = vsel %vm2317, %v2812, %v2814
      %v2816 = vrot.slane %v2780, 2
      %v2817 = vsel %vm2317, %v2814, %v2816
      %v2852 = vunpack.c.l.b16 %v2672
      %v2853 = vunpack.c.l.b16 %v2673
      %v2854 = vunpack.c.l.b16 %v2674
      %v2855 = vunpack.c.l.b16 %v2675
      %v2856 = vunpack.c.l.b16 %v2676
      %v2857 = vunpack.c.l.b16 %v2677
      %v2858 = vunpack.c.l.b16 %v2678
      %v2859 = vunpack.c.l.b16 %v2679
      %v2860 = vunpack.c.l.b16 %v2680
      %v2861 = vunpack.c.l.b16 %v2681
      %v2862 = vunpack.c.l.b16 %v2682
      %v2863 = vunpack.c.l.b16 %v2683
      %v2864 = vunpack.c.l.b16 %v2684
      %v2865 = vunpack.c.l.b16 %v2685
      %v2866 = vunpack.c.l.b16 %v2686
      %v2867 = vunpack.c.l.b16 %v2687
      %v2868 = vpack.c.b16 %v2853, %v2852
      %v2869 = vpack.c.b16 %v2855, %v2854
      %v2870 = vpack.c.b16 %v2857, %v2856
      %v2871 = vpack.c.b16 %v2859, %v2858
      %v2872 = vpack.c.b16 %v2861, %v2860
      %v2873 = vpack.c.b16 %v2863, %v2862
      %v2874 = vpack.c.b16 %v2865, %v2864
      %v2875 = vpack.c.b16 %v2867, %v2866
      %2884 = vmatprep.subr.bf16.mxu0 0
      %2885 = vmatpush1.bf16.msra.mxu0 %v2868
      %2886 = vmatprep.subr.bf16.mxu0 0
      %2887 = vmatpush1.bf16.msra.mxu0 %v2869
      %2888 = vmatprep.subr.bf16.mxu0 0
      %2889 = vmatpush1.bf16.msra.mxu0 %v2870
      %2890 = vmatprep.subr.bf16.mxu0 0
      %2891 = vmatpush1.bf16.msra.mxu0 %v2871
      %2892 = vmatprep.subr.bf16.mxu0 0
      %2893 = vmatpush1.bf16.msra.mxu0 %v2872
      %2894 = vmatprep.subr.bf16.mxu0 0
      %2895 = vmatpush1.bf16.msra.mxu0 %v2873
      %2896 = vmatprep.subr.bf16.mxu0 0
      %2897 = vmatpush1.bf16.msra.mxu0 %v2874
      %2898 = vmatprep.subr.bf16.mxu0 0
      %2899 = vmatpush1.bf16.msra.mxu0 %v2875
      %2900 = vmatprep.subr.bf16.mxu0 0
      %2901 = vmatpush1.bf16.msra.mxu0 0
      %2902 = vmatprep.subr.bf16.mxu0 0
      %2903 = vmatpush1.bf16.msra.mxu0 0
      %2904 = vmatprep.subr.bf16.mxu0 0
      %2905 = vmatpush1.bf16.msra.mxu0 0
      %2906 = vmatprep.subr.bf16.mxu0 0
      %2907 = vmatpush1.bf16.msra.mxu0 0
      %2908 = vmatprep.subr.bf16.mxu0 0
      %2909 = vmatpush1.bf16.msra.mxu0 0
      %2910 = vmatprep.subr.bf16.mxu0 0
      %2911 = vmatpush1.bf16.msra.mxu0 0
      %2912 = vmatprep.subr.bf16.mxu0 0
      %2913 = vmatpush1.bf16.msra.mxu0 0
      %2914 = vmatprep.subr.bf16.mxu0 0
      %2915 = vmatpush1.bf16.msra.mxu0 0
      %2916 = vmatprep.mubr.bf16.mxu0 0
      %2917 = vmatmul.mubr.bf16.gmra.mrb[0].mxu0 %v2783
      %v2918 = vpop.f32.mrb[0].mxu0
      %v2919 = vadd.f32 0.0, %v2918
      %v2920 = vpop.f32.mrb[0].mxu0
      %v2921 = vpop.f32.mrb[0].mxu0
      %v2922 = vadd.f32 0.0, %v2921
      %v2923 = vpop.f32.mrb[0].mxu0
      %2924 = vmatprep.mubr.bf16.mxu0 0
      %2925 = vmatmul.mubr.bf16.gmra.mrb[0].mxu0 %v2785
      %v2926 = vpop.f32.mrb[0].mxu0
      %v2927 = vadd.f32 0.0, %v2926
      %v2928 = vpop.f32.mrb[0].mxu0
      %v2929 = vpop.f32.mrb[0].mxu0
      %v2930 = vadd.f32 0.0, %v2929
      %v2931 = vpop.f32.mrb[0].mxu0
      %2932 = vmatprep.mubr.bf16.mxu0 0
      %2933 = vmatmul.mubr.bf16.gmra.mrb[0].mxu0 %v2787
      %v2934 = vpop.f32.mrb[0].mxu0
      %v2935 = vadd.f32 0.0, %v2934
      %v2936 = vpop.f32.mrb[0].mxu0
      %v2937 = vpop.f32.mrb[0].mxu0
      %v2938 = vadd.f32 0.0, %v2937
      %v2939 = vpop.f32.mrb[0].mxu0
      %2940 = vmatprep.mubr.bf16.mxu0 0
      %2941 = vmatmul.mubr.bf16.gmra.mrb[0].mxu0 %v2789
      %v2942 = vpop.f32.mrb[0].mxu0
      %v2943 = vadd.f32 0.0, %v2942
      %v2944 = vpop.f32.mrb[0].mxu0
      %v2945 = vpop.f32.mrb[0].mxu0
      %v2946 = vadd.f32 0.0, %v2945
      %v2947 = vpop.f32.mrb[0].mxu0
      %2948 = vmatprep.mubr.bf16.mxu0 0
      %2949 = vmatmul.mubr.bf16.gmra.mrb[0].mxu0 %v2791
      %v2950 = vpop.f32.mrb[0].mxu0
      %v2951 = vadd.f32 0.0, %v2950
      %v2952 = vpop.f32.mrb[0].mxu0
      %v2953 = vpop.f32.mrb[0].mxu0
      %v2954 = vadd.f32 0.0, %v2953
      %v2955 = vpop.f32.mrb[0].mxu0
      %2956 = vmatprep.mubr.bf16.mxu0 0
      %2957 = vmatmul.mubr.bf16.gmra.mrb[0].mxu0 %v2793
      %v2958 = vpop.f32.mrb[0].mxu0
      %v2959 = vadd.f32 0.0, %v2958
      %v2960 = vpop.f32.mrb[0].mxu0
      %v2961 = vpop.f32.mrb[0].mxu0
      %v2962 = vadd.f32 0.0, %v2961
      %v2963 = vpop.f32.mrb[0].mxu0
      %2964 = vmatprep.mubr.bf16.mxu0 0
      %2965 = vmatmul.mubr.bf16.gmra.mrb[0].mxu0 %v2795
      %v2966 = vpop.f32.mrb[0].mxu0
      %v2967 = vadd.f32 0.0, %v2966
      %v2968 = vpop.f32.mrb[0].mxu0
      %v2969 = vpop.f32.mrb[0].mxu0
      %v2970 = vadd.f32 0.0, %v2969
      %v2971 = vpop.f32.mrb[0].mxu0
      %2972 = vmatprep.mubr.bf16.mxu0 0
      %2973 = vmatmul.mubr.bf16.gmra.mrb[0].mxu0 %v2797
      %v2974 = vpop.f32.mrb[0].mxu0
      %v2975 = vadd.f32 0.0, %v2974
      %v2976 = vpop.f32.mrb[0].mxu0
      %v2977 = vpop.f32.mrb[0].mxu0
      %v2978 = vadd.f32 0.0, %v2977
      %v2979 = vpop.f32.mrb[0].mxu0
      %2980 = vmatprep.mubr.bf16.mxu0 0
      %2981 = vmatmul.mubr.bf16.gmra.mrb[0].mxu0 %v2799
      %v2982 = vpop.f32.mrb[0].mxu0
      %v2983 = vadd.f32 0.0, %v2982
      %v2984 = vpop.f32.mrb[0].mxu0
      %v2985 = vpop.f32.mrb[0].mxu0
      %v2986 = vadd.f32 0.0, %v2985
      %v2987 = vpop.f32.mrb[0].mxu0
      %2988 = vmatprep.mubr.bf16.mxu0 0
      %2989 = vmatmul.mubr.bf16.gmra.mrb[0].mxu0 %v2801
      %v2990 = vpop.f32.mrb[0].mxu0
      %v2991 = vadd.f32 0.0, %v2990
      %v2992 = vpop.f32.mrb[0].mxu0
      %v2993 = vpop.f32.mrb[0].mxu0
      %v2994 = vadd.f32 0.0, %v2993
      %v2995 = vpop.f32.mrb[0].mxu0
      %2996 = vmatprep.mubr.bf16.mxu0 0
      %2997 = vmatmul.mubr.bf16.gmra.mrb[0].mxu0 %v2803
      %v2998 = vpop.f32.mrb[0].mxu0
      %v2999 = vadd.f32 0.0, %v2998
      %v3000 = vpop.f32.mrb[0].mxu0
      %v3001 = vpop.f32.mrb[0].mxu0
      %v3002 = vadd.f32 0.0, %v3001
      %v3003 = vpop.f32.mrb[0].mxu0
      %3004 = vmatprep.mubr.bf16.mxu0 0
      %3005 = vmatmul.mubr.bf16.gmra.mrb[0].mxu0 %v2805
      %v3006 = vpop.f32.mrb[0].mxu0
      %v3007 = vadd.f32 0.0, %v3006
      %v3008 = vpop.f32.mrb[0].mxu0
      %v3009 = vpop.f32.mrb[0].mxu0
      %v3010 = vadd.f32 0.0, %v3009
      %v3011 = vpop.f32.mrb[0].mxu0
      %3012 = vmatprep.mubr.bf16.mxu0 0
      %3013 = vmatmul.mubr.bf16.gmra.mrb[0].mxu0 %v2807
      %v3014 = vpop.f32.mrb[0].mxu0
      %v3015 = vadd.f32 0.0, %v3014
      %v3016 = vpop.f32.mrb[0].mxu0
      %v3017 = vpop.f32.mrb[0].mxu0
      %v3018 = vadd.f32 0.0, %v3017
      %v3019 = vpop.f32.mrb[0].mxu0
      %3020 = vmatprep.mubr.bf16.mxu0 0
      %3021 = vmatmul.mubr.bf16.gmra.mrb[0].mxu0 %v2809
      %v3022 = vpop.f32.mrb[0].mxu0
      %v3023 = vadd.f32 0.0, %v3022
      %v3024 = vpop.f32.mrb[0].mxu0
      %v3025 = vpop.f32.mrb[0].mxu0
      %v3026 = vadd.f32 0.0, %v3025
      %v3027 = vpop.f32.mrb[0].mxu0
      %3028 = vmatprep.mubr.bf16.mxu0 0
      %3029 = vmatmul.mubr.bf16.gmra.mrb[0].mxu0 %v2811
      %v3030 = vpop.f32.mrb[0].mxu0
      %v3031 = vadd.f32 0.0, %v3030
      %v3032 = vpop.f32.mrb[0].mxu0
      %v3033 = vpop.f32.mrb[0].mxu0
      %v3034 = vadd.f32 0.0, %v3033
      %v3035 = vpop.f32.mrb[0].mxu0
      %3036 = vmatprep.mubr.bf16.mxu0 0
      %3037 = vmatmul.mubr.bf16.gmra.mrb[0].mxu0 %v2813
      %v3038 = vpop.f32.mrb[0].mxu0
      %v3039 = vadd.f32 0.0, %v3038
      %v3040 = vpop.f32.mrb[0].mxu0
      %v3041 = vpop.f32.mrb[0].mxu0
      %v3042 = vadd.f32 0.0, %v3041
      %v3043 = vpop.f32.mrb[0].mxu0
      %3044 = vmatprep.mubr.bf16.mxu0 0
      %3045 = vmatmul.mubr.bf16.gmra.mrb[0].mxu0 %v2815
      %v3046 = vpop.f32.mrb[0].mxu0
      %v3047 = vadd.f32 0.0, %v3046
      %v3048 = vpop.f32.mrb[0].mxu0
      %v3049 = vpop.f32.mrb[0].mxu0
      %v3050 = vadd.f32 0.0, %v3049
      %v3051 = vpop.f32.mrb[0].mxu0
      %3052 = vmatprep.mubr.bf16.mxu0 0
      %3053 = vmatmul.mubr.bf16.gmra.mrb[0].mxu0 %v2817
      %v3054 = vpop.f32.mrb[0].mxu0
      %v3055 = vadd.f32 0.0, %v3054
      %v3056 = vpop.f32.mrb[0].mxu0
      %v3057 = vpop.f32.mrb[0].mxu0
      %v3058 = vadd.f32 0.0, %v3057
      %v3059 = vpop.f32.mrb[0].mxu0
      %3060 = vdwg.mxu0
      %v3061 = vadd.f32 %v2598, %v2919
      %v3062 = vadd.f32 %v2599, %v2922
      %v3063 = vadd.f32 %v2600, %v2927
      %v3064 = vadd.f32 %v2601, %v2930
      %v3065 = vadd.f32 %v2602, %v2935
      %v3066 = vadd.f32 %v2603, %v2938
      %v3067 = vadd.f32 %v2604, %v2943
      %v3068 = vadd.f32 %v2605, %v2946
      %v3069 = vadd.f32 %v2606, %v2951
      %v3070 = vadd.f32 %v2607, %v2954
      %v3071 = vadd.f32 %v2608, %v2959
      %v3072 = vadd.f32 %v2609, %v2962
      %v3073 = vadd.f32 %v2610, %v2967
      %v3074 = vadd.f32 %v2611, %v2970
      %v3075 = vadd.f32 %v2612, %v2975
      %v3076 = vadd.f32 %v2613, %v2978
      %v3077 = vadd.f32 %v2614, %v2983
      %v3078 = vadd.f32 %v2615, %v2986
      %v3079 = vadd.f32 %v2616, %v2991
      %v3080 = vadd.f32 %v2617, %v2994
      %v3081 = vadd.f32 %v2618, %v2999
      %v3082 = vadd.f32 %v2619, %v3002
      %v3083 = vadd.f32 %v2620, %v3007
      %v3084 = vadd.f32 %v2621, %v3010
      %v3085 = vadd.f32 %v2622, %v3015
      %v3086 = vadd.f32 %v2623, %v3018
      %v3087 = vadd.f32 %v2624, %v3023
      %v3088 = vadd.f32 %v2625, %v3026
      %v3089 = vadd.f32 %v2626, %v3031
      %v3090 = vadd.f32 %v2627, %v3034
      %v3091 = vadd.f32 %v2628, %v3039
      %v3092 = vadd.f32 %v2629, %v3042
      %v3093 = vadd.f32 %v2630, %v3047
      %v3094 = vadd.f32 %v2631, %v3050
      %v3095 = vadd.f32 %v2632, %v3055
      %v3096 = vadd.f32 %v2633, %v3058
      %v3097 = vld [vmem:[%s219 + $0xa0] sm:$0x7]
      %s3098 = scalar_lea.vmem %s1, 448
      %v3099 = vld [vmem:[%s3098] sm:$0xf]
      %v3100 = vld [vmem:[%s3098 + $0x4] sm:$0xf]
      %v3101 = vld [vmem:[%s3098 + $0x8] sm:$0xf]
      %v3102 = vld [vmem:[%s3098 + $0xc] sm:$0xf]
      %v3103 = vld [vmem:[%s3098 + $0x10] sm:$0xf]
      %v3104 = vld [vmem:[%s3098 + $0x14] sm:$0xf]
      %v3105 = vld [vmem:[%s3098 + $0x18] sm:$0xf]
      %v3106 = vld [vmem:[%s3098 + $0x1c] sm:$0xf]
      %v3107 = vld [vmem:[%s3098 + $0x20] sm:$0xf]
      %v3108 = vld [vmem:[%s3098 + $0x24] sm:$0xf]
      %v3109 = vld [vmem:[%s3098 + $0x28] sm:$0xf]
      %v3110 = vld [vmem:[%s3098 + $0x2c] sm:$0xf]
      %v3111 = vld [vmem:[%s3098 + $0x30] sm:$0xf]
      %v3112 = vld [vmem:[%s3098 + $0x34] sm:$0xf]
      %v3113 = vld [vmem:[%s3098 + $0x38] sm:$0xf]
      %v3114 = vld [vmem:[%s3098 + $0x3c] sm:$0xf]
      %v3116 = vunpack.c.l.b16 %v3097
      %v3117 = vpack.c.b16 %v3116, %v3116
      %vm3118 = vsmask.f32 5376
      %v3120 = vshrl.u32 %v2762, 16
      %v3122 = vrot.slane %v3120, 2
      %v3123 = vshll.u32 %v2762, 16
      %v3125 = vrot.slane %v3123, 3
      %v3126 = vor.u32 %v3122, %v3125
      %v3128 = vshrl.u32 %v2763, 16
      %v3130 = vrot.slane %v3128, 2
      %v3131 = vshll.u32 %v2763, 16
      %v3133 = vrot.slane %v3131, 3
      %v3134 = vor.u32 %v3130, %v3133
      %v3135 = vsel %vm3118, %v3126, %v3134
      %v3137 = vshrl.u32 %v2764, 16
      %v3139 = vrot.slane %v3137, 2
      %v3140 = vshll.u32 %v2764, 16
      %v3142 = vrot.slane %v3140, 3
      %v3143 = vor.u32 %v3139, %v3142
      %v3144 = vsel %vm3118, %v3134, %v3143
      %v3146 = vshrl.u32 %v2765, 16
      %v3148 = vrot.slane %v3146, 2
      %v3149 = vshll.u32 %v2765, 16
      %v3151 = vrot.slane %v3149, 3
      %v3152 = vor.u32 %v3148, %v3151
      %v3153 = vsel %vm3118, %v3143, %v3152
      %v3155 = vshrl.u32 %v2766, 16
      %v3157 = vrot.slane %v3155, 2
      %v3158 = vshll.u32 %v2766, 16
      %v3160 = vrot.slane %v3158, 3
      %v3161 = vor.u32 %v3157, %v3160
      %v3162 = vsel %vm3118, %v3152, %v3161
      %v3164 = vshrl.u32 %v2767, 16
      %v3166 = vrot.slane %v3164, 2
      %v3167 = vshll.u32 %v2767, 16
      %v3169 = vrot.slane %v3167, 3
      %v3170 = vor.u32 %v3166, %v3169
      %v3171 = vsel %vm3118, %v3161, %v3170
      %v3173 = vshrl.u32 %v2768, 16
      %v3175 = vrot.slane %v3173, 2
      %v3176 = vshll.u32 %v2768, 16
      %v3178 = vrot.slane %v3176, 3
      %v3179 = vor.u32 %v3175, %v3178
      %v3180 = vsel %vm3118, %v3170, %v3179
      %v3182 = vshrl.u32 %v2769, 16
      %v3184 = vrot.slane %v3182, 2
      %v3185 = vshll.u32 %v2769, 16
      %v3187 = vrot.slane %v3185, 3
      %v3188 = vor.u32 %v3184, %v3187
      %v3189 = vsel %vm3118, %v3179, %v3188
      %v3191 = vshrl.u32 %v2770, 16
      %v3193 = vrot.slane %v3191, 2
      %v3194 = vshll.u32 %v2770, 16
      %v3196 = vrot.slane %v3194, 3
      %v3197 = vor.u32 %v3193, %v3196
      %v3198 = vsel %vm3118, %v3188, %v3197
      %v3200 = vshrl.u32 %v2771, 16
      %v3202 = vrot.slane %v3200, 2
      %v3203 = vshll.u32 %v2771, 16
      %v3205 = vrot.slane %v3203, 3
      %v3206 = vor.u32 %v3202, %v3205
      %v3207 = vsel %vm3118, %v3197, %v3206
      %v3209 = vshrl.u32 %v2772, 16
      %v3211 = vrot.slane %v3209, 2
      %v3212 = vshll.u32 %v2772, 16
      %v3214 = vrot.slane %v3212, 3
      %v3215 = vor.u32 %v3211, %v3214
      %v3216 = vsel %vm3118, %v3206, %v3215
      %v3218 = vshrl.u32 %v2773, 16
      %v3220 = vrot.slane %v3218, 2
      %v3221 = vshll.u32 %v2773, 16
      %v3223 = vrot.slane %v3221, 3
      %v3224 = vor.u32 %v3220, %v3223
      %v3225 = vsel %vm3118, %v3215, %v3224
      %v3227 = vshrl.u32 %v2774, 16
      %v3229 = vrot.slane %v3227, 2
      %v3230 = vshll.u32 %v2774, 16
      %v3232 = vrot.slane %v3230, 3
      %v3233 = vor.u32 %v3229, %v3232
      %v3234 = vsel %vm3118, %v3224, %v3233
      %v3236 = vshrl.u32 %v2775, 16
      %v3238 = vrot.slane %v3236, 2
      %v3239 = vshll.u32 %v2775, 16
      %v3241 = vrot.slane %v3239, 3
      %v3242 = vor.u32 %v3238, %v3241
      %v3243 = vsel %vm3118, %v3233, %v3242
      %v3245 = vshrl.u32 %v2776, 16
      %v3247 = vrot.slane %v3245, 2
      %v3248 = vshll.u32 %v2776, 16
      %v3250 = vrot.slane %v3248, 3
      %v3251 = vor.u32 %v3247, %v3250
      %v3252 = vsel %vm3118, %v3242, %v3251
      %v3254 = vshrl.u32 %v2777, 16
      %v3256 = vrot.slane %v3254, 2
      %v3257 = vshll.u32 %v2777, 16
      %v3259 = vrot.slane %v3257, 3
      %v3260 = vor.u32 %v3256, %v3259
      %v3261 = vsel %vm3118, %v3251, %v3260
      %v3263 = vshrl.u32 %v2778, 16
      %v3265 = vrot.slane %v3263, 2
      %v3266 = vshll.u32 %v2778, 16
      %v3268 = vrot.slane %v3266, 3
      %v3269 = vor.u32 %v3265, %v3268
      %v3270 = vsel %vm3118, %v3260, %v3269
      %v3272 = vshrl.u32 %v2779, 16
      %v3274 = vrot.slane %v3272, 2
      %v3275 = vshll.u32 %v2779, 16
      %v3277 = vrot.slane %v3275, 3
      %v3278 = vor.u32 %v3274, %v3277
      %v3279 = vsel %vm3118, %v3269, %v3278
      %v3281 = vshrl.u32 %v3117, 16
      %v3283 = vrot.slane %v3281, 2
      %v3284 = vshll.u32 %v3117, 16
      %v3286 = vrot.slane %v3284, 3
      %v3287 = vor.u32 %v3283, %v3286
      %v3288 = vsel %vm3118, %v3278, %v3287
      %v3323 = vunpack.c.l.b16 %v3099
      %v3324 = vunpack.c.l.b16 %v3100
      %v3325 = vunpack.c.l.b16 %v3101
      %v3326 = vunpack.c.l.b16 %v3102
      %v3327 = vunpack.c.l.b16 %v3103
      %v3328 = vunpack.c.l.b16 %v3104
      %v3329 = vunpack.c.l.b16 %v3105
      %v3330 = vunpack.c.l.b16 %v3106
      %v3331 = vunpack.c.l.b16 %v3107
      %v3332 = vunpack.c.l.b16 %v3108
      %v3333 = vunpack.c.l.b16 %v3109
      %v3334 = vunpack.c.l.b16 %v3110
      %v3335 = vunpack.c.l.b16 %v3111
      %v3336 = vunpack.c.l.b16 %v3112
      %v3337 = vunpack.c.l.b16 %v3113
      %v3338 = vunpack.c.l.b16 %v3114
      %v3339 = vpack.c.b16 %v3324, %v3323
      %v3340 = vpack.c.b16 %v3326, %v3325
      %v3341 = vpack.c.b16 %v3328, %v3327
      %v3342 = vpack.c.b16 %v3330, %v3329
      %v3343 = vpack.c.b16 %v3332, %v3331
      %v3344 = vpack.c.b16 %v3334, %v3333
      %v3345 = vpack.c.b16 %v3336, %v3335
      %v3346 = vpack.c.b16 %v3338, %v3337
      %3355 = vmatprep.subr.bf16.mxu0 0
      %3356 = vmatpush1.bf16.msra.mxu0 %v3339
      %3357 = vmatprep.subr.bf16.mxu0 0
      %3358 = vmatpush1.bf16.msra.mxu0 %v3340
      %3359 = vmatprep.subr.bf16.mxu0 0
      %3360 = vmatpush1.bf16.msra.mxu0 %v3341
      %3361 = vmatprep.subr.bf16.mxu0 0
      %3362 = vmatpush1.bf16.msra.mxu0 %v3342
      %3363 = vmatprep.subr.bf16.mxu0 0
      %3364 = vmatpush1.bf16.msra.mxu0 %v3343
      %3365 = vmatprep.subr.bf16.mxu0 0
      %3366 = vmatpush1.bf16.msra.mxu0 %v3344
      %3367 = vmatprep.subr.bf16.mxu0 0
      %3368 = vmatpush1.bf16.msra.mxu0 %v3345
      %3369 = vmatprep.subr.bf16.mxu0 0
      %3370 = vmatpush1.bf16.msra.mxu0 %v3346
      %3371 = vmatprep.subr.bf16.mxu0 0
      %3372 = vmatpush1.bf16.msra.mxu0 0
      %3373 = vmatprep.subr.bf16.mxu0 0
      %3374 = vmatpush1.bf16.msra.mxu0 0
      %3375 = vmatprep.subr.bf16.mxu0 0
      %3376 = vmatpush1.bf16.msra.mxu0 0
      %3377 = vmatprep.subr.bf16.mxu0 0
      %3378 = vmatpush1.bf16.msra.mxu0 0
      %3379 = vmatprep.subr.bf16.mxu0 0
      %3380 = vmatpush1.bf16.msra.mxu0 0
      %3381 = vmatprep.subr.bf16.mxu0 0
      %3382 = vmatpush1.bf16.msra.mxu0 0
      %3383 = vmatprep.subr.bf16.mxu0 0
      %3384 = vmatpush1.bf16.msra.mxu0 0
      %3385 = vmatprep.subr.bf16.mxu0 0
      %3386 = vmatpush1.bf16.msra.mxu0 0
      %3387 = vmatprep.mubr.bf16.mxu0 0
      %3388 = vmatmul.mubr.bf16.gmra.mrb[0].mxu0 %v3135
      %v3389 = vpop.f32.mrb[0].mxu0
      %v3390 = vadd.f32 0.0, %v3389
      %v3391 = vpop.f32.mrb[0].mxu0
      %v3392 = vpop.f32.mrb[0].mxu0
      %v3393 = vadd.f32 0.0, %v3392
      %v3394 = vpop.f32.mrb[0].mxu0
      %3395 = vmatprep.mubr.bf16.mxu0 0
      %3396 = vmatmul.mubr.bf16.gmra.mrb[0].mxu0 %v3144
      %v3397 = vpop.f32.mrb[0].mxu0
      %v3398 = vadd.f32 0.0, %v3397
      %v3399 = vpop.f32.mrb[0].mxu0
      %v3400 = vpop.f32.mrb[0].mxu0
      %v3401 = vadd.f32 0.0, %v3400
      %v3402 = vpop.f32.mrb[0].mxu0
      %3403 = vmatprep.mubr.bf16.mxu0 0
      %3404 = vmatmul.mubr.bf16.gmra.mrb[0].mxu0 %v3153
      %v3405 = vpop.f32.mrb[0].mxu0
      %v3406 = vadd.f32 0.0, %v3405
      %v3407 = vpop.f32.mrb[0].mxu0
      %v3408 = vpop.f32.mrb[0].mxu0
      %v3409 = vadd.f32 0.0, %v3408
      %v3410 = vpop.f32.mrb[0].mxu0
      %3411 = vmatprep.mubr.bf16.mxu0 0
      %3412 = vmatmul.mubr.bf16.gmra.mrb[0].mxu0 %v3162
      %v3413 = vpop.f32.mrb[0].mxu0
      %v3414 = vadd.f32 0.0, %v3413
      %v3415 = vpop.f32.mrb[0].mxu0
      %v3416 = vpop.f32.mrb[0].mxu0
      %v3417 = vadd.f32 0.0, %v3416
      %v3418 = vpop.f32.mrb[0].mxu0
      %3419 = vmatprep.mubr.bf16.mxu0 0
      %3420 = vmatmul.mubr.bf16.gmra.mrb[0].mxu0 %v3171
      %v3421 = vpop.f32.mrb[0].mxu0
      %v3422 = vadd.f32 0.0, %v3421
      %v3423 = vpop.f32.mrb[0].mxu0
      %v3424 = vpop.f32.mrb[0].mxu0
      %v3425 = vadd.f32 0.0, %v3424
      %v3426 = vpop.f32.mrb[0].mxu0
      %3427 = vmatprep.mubr.bf16.mxu0 0
      %3428 = vmatmul.mubr.bf16.gmra.mrb[0].mxu0 %v3180
      %v3429 = vpop.f32.mrb[0].mxu0
      %v3430 = vadd.f32 0.0, %v3429
      %v3431 = vpop.f32.mrb[0].mxu0
      %v3432 = vpop.f32.mrb[0].mxu0
      %v3433 = vadd.f32 0.0, %v3432
      %v3434 = vpop.f32.mrb[0].mxu0
      %3435 = vmatprep.mubr.bf16.mxu0 0
      %3436 = vmatmul.mubr.bf16.gmra.mrb[0].mxu0 %v3189
      %v3437 = vpop.f32.mrb[0].mxu0
      %v3438 = vadd.f32 0.0, %v3437
      %v3439 = vpop.f32.mrb[0].mxu0
      %v3440 = vpop.f32.mrb[0].mxu0
      %v3441 = vadd.f32 0.0, %v3440
      %v3442 = vpop.f32.mrb[0].mxu0
      %3443 = vmatprep.mubr.bf16.mxu0 0
      %3444 = vmatmul.mubr.bf16.gmra.mrb[0].mxu0 %v3198
      %v3445 = vpop.f32.mrb[0].mxu0
      %v3446 = vadd.f32 0.0, %v3445
      %v3447 = vpop.f32.mrb[0].mxu0
      %v3448 = vpop.f32.mrb[0].mxu0
      %v3449 = vadd.f32 0.0, %v3448
      %v3450 = vpop.f32.mrb[0].mxu0
      %3451 = vmatprep.mubr.bf16.mxu0 0
      %3452 = vmatmul.mubr.bf16.gmra.mrb[0].mxu0 %v3207
      %v3453 = vpop.f32.mrb[0].mxu0
      %v3454 = vadd.f32 0.0, %v3453
      %v3455 = vpop.f32.mrb[0].mxu0
      %v3456 = vpop.f32.mrb[0].mxu0
      %v3457 = vadd.f32 0.0, %v3456
      %v3458 = vpop.f32.mrb[0].mxu0
      %3459 = vmatprep.mubr.bf16.mxu0 0
      %3460 = vmatmul.mubr.bf16.gmra.mrb[0].mxu0 %v3216
      %v3461 = vpop.f32.mrb[0].mxu0
      %v3462 = vadd.f32 0.0, %v3461
      %v3463 = vpop.f32.mrb[0].mxu0
      %v3464 = vpop.f32.mrb[0].mxu0
      %v3465 = vadd.f32 0.0, %v3464
      %v3466 = vpop.f32.mrb[0].mxu0
      %3467 = vmatprep.mubr.bf16.mxu0 0
      %3468 = vmatmul.mubr.bf16.gmra.mrb[0].mxu0 %v3225
      %v3469 = vpop.f32.mrb[0].mxu0
      %v3470 = vadd.f32 0.0, %v3469
      %v3471 = vpop.f32.mrb[0].mxu0
      %v3472 = vpop.f32.mrb[0].mxu0
      %v3473 = vadd.f32 0.0, %v3472
      %v3474 = vpop.f32.mrb[0].mxu0
      %3475 = vmatprep.mubr.bf16.mxu0 0
      %3476 = vmatmul.mubr.bf16.gmra.mrb[0].mxu0 %v3234
      %v3477 = vpop.f32.mrb[0].mxu0
      %v3478 = vadd.f32 0.0, %v3477
      %v3479 = vpop.f32.mrb[0].mxu0
      %v3480 = vpop.f32.mrb[0].mxu0
      %v3481 = vadd.f32 0.0, %v3480
      %v3482 = vpop.f32.mrb[0].mxu0
      %3483 = vmatprep.mubr.bf16.mxu0 0
      %3484 = vmatmul.mubr.bf16.gmra.mrb[0].mxu0 %v3243
      %v3485 = vpop.f32.mrb[0].mxu0
      %v3486 = vadd.f32 0.0, %v3485
      %v3487 = vpop.f32.mrb[0].mxu0
      %v3488 = vpop.f32.mrb[0].mxu0
      %v3489 = vadd.f32 0.0, %v3488
      %v3490 = vpop.f32.mrb[0].mxu0
      %3491 = vmatprep.mubr.bf16.mxu0 0
      %3492 = vmatmul.mubr.bf16.gmra.mrb[0].mxu0 %v3252
      %v3493 = vpop.f32.mrb[0].mxu0
      %v3494 = vadd.f32 0.0, %v3493
      %v3495 = vpop.f32.mrb[0].mxu0
      %v3496 = vpop.f32.mrb[0].mxu0
      %v3497 = vadd.f32 0.0, %v3496
      %v3498 = vpop.f32.mrb[0].mxu0
      %3499 = vmatprep.mubr.bf16.mxu0 0
      %3500 = vmatmul.mubr.bf16.gmra.mrb[0].mxu0 %v3261
      %v3501 = vpop.f32.mrb[0].mxu0
      %v3502 = vadd.f32 0.0, %v3501
      %v3503 = vpop.f32.mrb[0].mxu0
      %v3504 = vpop.f32.mrb[0].mxu0
      %v3505 = vadd.f32 0.0, %v3504
      %v3506 = vpop.f32.mrb[0].mxu0
      %3507 = vmatprep.mubr.bf16.mxu0 0
      %3508 = vmatmul.mubr.bf16.gmra.mrb[0].mxu0 %v3270
      %v3509 = vpop.f32.mrb[0].mxu0
      %v3510 = vadd.f32 0.0, %v3509
      %v3511 = vpop.f32.mrb[0].mxu0
      %v3512 = vpop.f32.mrb[0].mxu0
      %v3513 = vadd.f32 0.0, %v3512
      %v3514 = vpop.f32.mrb[0].mxu0
      %3515 = vmatprep.mubr.bf16.mxu0 0
      %3516 = vmatmul.mubr.bf16.gmra.mrb[0].mxu0 %v3279
      %v3517 = vpop.f32.mrb[0].mxu0
      %v3518 = vadd.f32 0.0, %v3517
      %v3519 = vpop.f32.mrb[0].mxu0
      %v3520 = vpop.f32.mrb[0].mxu0
      %v3521 = vadd.f32 0.0, %v3520
      %v3522 = vpop.f32.mrb[0].mxu0
      %3523 = vmatprep.mubr.bf16.mxu0 0
      %3524 = vmatmul.mubr.bf16.gmra.mrb[0].mxu0 %v3288
      %v3525 = vpop.f32.mrb[0].mxu0
      %v3526 = vadd.f32 0.0, %v3525
      %v3527 = vpop.f32.mrb[0].mxu0
      %v3528 = vpop.f32.mrb[0].mxu0
      %v3529 = vadd.f32 0.0, %v3528
      %v3530 = vpop.f32.mrb[0].mxu0
      %3531 = vdwg.mxu0
      %v3532 = vadd.f32 %v3061, %v3390
      %v3533 = vadd.f32 %v3062, %v3393
      %v3534 = vadd.f32 %v3063, %v3398
      %v3535 = vadd.f32 %v3064, %v3401
      %v3536 = vadd.f32 %v3065, %v3406
      %v3537 = vadd.f32 %v3066, %v3409
      %v3538 = vadd.f32 %v3067, %v3414
      %v3539 = vadd.f32 %v3068, %v3417
      %v3540 = vadd.f32 %v3069, %v3422
      %v3541 = vadd.f32 %v3070, %v3425
      %v3542 = vadd.f32 %v3071, %v3430
      %v3543 = vadd.f32 %v3072, %v3433
      %v3544 = vadd.f32 %v3073, %v3438
      %v3545 = vadd.f32 %v3074, %v3441
      %v3546 = vadd.f32 %v3075, %v3446
      %v3547 = vadd.f32 %v3076, %v3449
      %v3548 = vadd.f32 %v3077, %v3454
      %v3549 = vadd.f32 %v3078, %v3457
      %v3550 = vadd.f32 %v3079, %v3462
      %v3551 = vadd.f32 %v3080, %v3465
      %v3552 = vadd.f32 %v3081, %v3470
      %v3553 = vadd.f32 %v3082, %v3473
      %v3554 = vadd.f32 %v3083, %v3478
      %v3555 = vadd.f32 %v3084, %v3481
      %v3556 = vadd.f32 %v3085, %v3486
      %v3557 = vadd.f32 %v3086, %v3489
      %v3558 = vadd.f32 %v3087, %v3494
      %v3559 = vadd.f32 %v3088, %v3497
      %v3560 = vadd.f32 %v3089, %v3502
      %v3561 = vadd.f32 %v3090, %v3505
      %v3562 = vadd.f32 %v3091, %v3510
      %v3563 = vadd.f32 %v3092, %v3513
      %v3564 = vadd.f32 %v3093, %v3518
      %v3565 = vadd.f32 %v3094, %v3521
      %v3566 = vadd.f32 %v3095, %v3526
      %v3567 = vadd.f32 %v3096, %v3529
      %v3568 = vld [vmem:[%s219 + $0x10] sm:$0x8]
      %s3569 = scalar_lea.vmem %s1, 512
      %v3570 = vld [vmem:[%s3569] sm:$0xf]
      %v3571 = vld [vmem:[%s3569 + $0x4] sm:$0xf]
      %v3572 = vld [vmem:[%s3569 + $0x8] sm:$0xf]
      %v3573 = vld [vmem:[%s3569 + $0xc] sm:$0xf]
      %v3574 = vld [vmem:[%s3569 + $0x10] sm:$0xf]
      %v3575 = vld [vmem:[%s3569 + $0x14] sm:$0xf]
      %v3576 = vld [vmem:[%s3569 + $0x18] sm:$0xf]
      %v3577 = vld [vmem:[%s3569 + $0x1c] sm:$0xf]
      %v3578 = vld [vmem:[%s3569 + $0x20] sm:$0xf]
      %v3579 = vld [vmem:[%s3569 + $0x24] sm:$0xf]
      %v3580 = vld [vmem:[%s3569 + $0x28] sm:$0xf]
      %v3581 = vld [vmem:[%s3569 + $0x2c] sm:$0xf]
      %v3582 = vld [vmem:[%s3569 + $0x30] sm:$0xf]
      %v3583 = vld [vmem:[%s3569 + $0x34] sm:$0xf]
      %v3584 = vld [vmem:[%s3569 + $0x38] sm:$0xf]
      %v3585 = vld [vmem:[%s3569 + $0x3c] sm:$0xf]
      %v3587 = vunpack.c.l.b16 %v3568
      %v3588 = vpack.c.b16 %v2726, %v3587
      %vm3589 = vcmask 1044480
      %v3590 = vrot.slane %v3588, 3
      %v3591 = vrot.slane %v2763, 3
      %v3592 = vsel %vm3589, %v3590, %v3591
      %v3593 = vrot.slane %v2764, 3
      %v3594 = vsel %vm3589, %v3591, %v3593
      %v3595 = vrot.slane %v2765, 3
      %v3596 = vsel %vm3589, %v3593, %v3595
      %v3597 = vrot.slane %v2766, 3
      %v3598 = vsel %vm3589, %v3595, %v3597
      %v3599 = vrot.slane %v2767, 3
      %v3600 = vsel %vm3589, %v3597, %v3599
      %v3601 = vrot.slane %v2768, 3
      %v3602 = vsel %vm3589, %v3599, %v3601
      %v3603 = vrot.slane %v2769, 3
      %v3604 = vsel %vm3589, %v3601, %v3603
      %v3605 = vrot.slane %v2770, 3
      %v3606 = vsel %vm3589, %v3603, %v3605
      %v3607 = vrot.slane %v2771, 3
      %v3608 = vsel %vm3589, %v3605, %v3607
      %v3609 = vrot.slane %v2772, 3
      %v3610 = vsel %vm3589, %v3607, %v3609
      %v3611 = vrot.slane %v2773, 3
      %v3612 = vsel %vm3589, %v3609, %v3611
      %v3613 = vrot.slane %v2774, 3
      %v3614 = vsel %vm3589, %v3611, %v3613
      %v3615 = vrot.slane %v2775, 3
      %v3616 = vsel %vm3589, %v3613, %v3615
      %v3617 = vrot.slane %v2776, 3
      %v3618 = vsel %vm3589, %v3615, %v3617
      %v3619 = vrot.slane %v2777, 3
      %v3620 = vsel %vm3589, %v3617, %v3619
      %v3621 = vrot.slane %v2778, 3
      %v3622 = vsel %vm3589, %v3619, %v3621
      %v3623 = vrot.slane %v2779, 3
      %v3624 = vsel %vm3589, %v3621, %v3623
      %v3625 = vrot.slane %v3117, 3
      %v3626 = vsel %vm3589, %v3623, %v3625
      %v3661 = vunpack.c.l.b16 %v3570
      %v3662 = vunpack.c.l.b16 %v3571
      %v3663 = vunpack.c.l.b16 %v3572
      %v3664 = vunpack.c.l.b16 %v3573
      %v3665 = vunpack.c.l.b16 %v3574
      %v3666 = vunpack.c.l.b16 %v3575
      %v3667 = vunpack.c.l.b16 %v3576
      %v3668 = vunpack.c.l.b16 %v3577
      %v3669 = vunpack.c.l.b16 %v3578
      %v3670 = vunpack.c.l.b16 %v3579
      %v3671 = vunpack.c.l.b16 %v3580
      %v3672 = vunpack.c.l.b16 %v3581
      %v3673 = vunpack.c.l.b16 %v3582
      %v3674 = vunpack.c.l.b16 %v3583
      %v3675 = vunpack.c.l.b16 %v3584
      %v3676 = vunpack.c.l.b16 %v3585
      %v3677 = vpack.c.b16 %v3662, %v3661
      %v3678 = vpack.c.b16 %v3664, %v3663
      %v3679 = vpack.c.b16 %v3666, %v3665
      %v3680 = vpack.c.b16 %v3668, %v3667
      %v3681 = vpack.c.b16 %v3670, %v3669
      %v3682 = vpack.c.b16 %v3672, %v3671
      %v3683 = vpack.c.b16 %v3674, %v3673
      %v3684 = vpack.c.b16 %v3676, %v3675
      %3693 = vmatprep.subr.bf16.mxu0 0
      %3694 = vmatpush1.bf16.msra.mxu0 %v3677
      %3695 = vmatprep.subr.bf16.mxu0 0
      %3696 = vmatpush1.bf16.msra.mxu0 %v3678
      %3697 = vmatprep.subr.bf16.mxu0 0
      %3698 = vmatpush1.bf16.msra.mxu0 %v3679
      %3699 = vmatprep.subr.bf16.mxu0 0
      %3700 = vmatpush1.bf16.msra.mxu0 %v3680
      %3701 = vmatprep.subr.bf16.mxu0 0
      %3702 = vmatpush1.bf16.msra.mxu0 %v3681
      %3703 = vmatprep.subr.bf16.mxu0 0
      %3704 = vmatpush1.bf16.msra.mxu0 %v3682
      %3705 = vmatprep.subr.bf16.mxu0 0
      %3706 = vmatpush1.bf16.msra.mxu0 %v3683
      %3707 = vmatprep.subr.bf16.mxu0 0
      %3708 = vmatpush1.bf16.msra.mxu0 %v3684
      %3709 = vmatprep.subr.bf16.mxu0 0
      %3710 = vmatpush1.bf16.msra.mxu0 0
      %3711 = vmatprep.subr.bf16.mxu0 0
      %3712 = vmatpush1.bf16.msra.mxu0 0
      %3713 = vmatprep.subr.bf16.mxu0 0
      %3714 = vmatpush1.bf16.msra.mxu0 0
      %3715 = vmatprep.subr.bf16.mxu0 0
      %3716 = vmatpush1.bf16.msra.mxu0 0
      %3717 = vmatprep.subr.bf16.mxu0 0
      %3718 = vmatpush1.bf16.msra.mxu0 0
      %3719 = vmatprep.subr.bf16.mxu0 0
      %3720 = vmatpush1.bf16.msra.mxu0 0
      %3721 = vmatprep.subr.bf16.mxu0 0
      %3722 = vmatpush1.bf16.msra.mxu0 0
      %3723 = vmatprep.subr.bf16.mxu0 0
      %3724 = vmatpush1.bf16.msra.mxu0 0
      %3725 = vmatprep.mubr.bf16.mxu0 0
      %3726 = vmatmul.mubr.bf16.gmra.mrb[0].mxu0 %v3592
      %v3727 = vpop.f32.mrb[0].mxu0
      %v3728 = vadd.f32 0.0, %v3727
      %v3729 = vpop.f32.mrb[0].mxu0
      %v3730 = vpop.f32.mrb[0].mxu0
      %v3731 = vadd.f32 0.0, %v3730
      %v3732 = vpop.f32.mrb[0].mxu0
      %3733 = vmatprep.mubr.bf16.mxu0 0
      %3734 = vmatmul.mubr.bf16.gmra.mrb[0].mxu0 %v3594
      %v3735 = vpop.f32.mrb[0].mxu0
      %v3736 = vadd.f32 0.0, %v3735
      %v3737 = vpop.f32.mrb[0].mxu0
      %v3738 = vpop.f32.mrb[0].mxu0
      %v3739 = vadd.f32 0.0, %v3738
      %v3740 = vpop.f32.mrb[0].mxu0
      %3741 = vmatprep.mubr.bf16.mxu0 0
      %3742 = vmatmul.mubr.bf16.gmra.mrb[0].mxu0 %v3596
      %v3743 = vpop.f32.mrb[0].mxu0
      %v3744 = vadd.f32 0.0, %v3743
      %v3745 = vpop.f32.mrb[0].mxu0
      %v3746 = vpop.f32.mrb[0].mxu0
      %v3747 = vadd.f32 0.0, %v3746
      %v3748 = vpop.f32.mrb[0].mxu0
      %3749 = vmatprep.mubr.bf16.mxu0 0
      %3750 = vmatmul.mubr.bf16.gmra.mrb[0].mxu0 %v3598
      %v3751 = vpop.f32.mrb[0].mxu0
      %v3752 = vadd.f32 0.0, %v3751
      %v3753 = vpop.f32.mrb[0].mxu0
      %v3754 = vpop.f32.mrb[0].mxu0
      %v3755 = vadd.f32 0.0, %v3754
      %v3756 = vpop.f32.mrb[0].mxu0
      %3757 = vmatprep.mubr.bf16.mxu0 0
      %3758 = vmatmul.mubr.bf16.gmra.mrb[0].mxu0 %v3600
      %v3759 = vpop.f32.mrb[0].mxu0
      %v3760 = vadd.f32 0.0, %v3759
      %v3761 = vpop.f32.mrb[0].mxu0
      %v3762 = vpop.f32.mrb[0].mxu0
      %v3763 = vadd.f32 0.0, %v3762
      %v3764 = vpop.f32.mrb[0].mxu0
      %3765 = vmatprep.mubr.bf16.mxu0 0
      %3766 = vmatmul.mubr.bf16.gmra.mrb[0].mxu0 %v3602
      %v3767 = vpop.f32.mrb[0].mxu0
      %v3768 = vadd.f32 0.0, %v3767
      %v3769 = vpop.f32.mrb[0].mxu0
      %v3770 = vpop.f32.mrb[0].mxu0
      %v3771 = vadd.f32 0.0, %v3770
      %v3772 = vpop.f32.mrb[0].mxu0
      %3773 = vmatprep.mubr.bf16.mxu0 0
      %3774 = vmatmul.mubr.bf16.gmra.mrb[0].mxu0 %v3604
      %v3775 = vpop.f32.mrb[0].mxu0
      %v3776 = vadd.f32 0.0, %v3775
      %v3777 = vpop.f32.mrb[0].mxu0
      %v3778 = vpop.f32.mrb[0].mxu0
      %v3779 = vadd.f32 0.0, %v3778
      %v3780 = vpop.f32.mrb[0].mxu0
      %3781 = vmatprep.mubr.bf16.mxu0 0
      %3782 = vmatmul.mubr.bf16.gmra.mrb[0].mxu0 %v3606
      %v3783 = vpop.f32.mrb[0].mxu0
      %v3784 = vadd.f32 0.0, %v3783
      %v3785 = vpop.f32.mrb[0].mxu0
      %v3786 = vpop.f32.mrb[0].mxu0
      %v3787 = vadd.f32 0.0, %v3786
      %v3788 = vpop.f32.mrb[0].mxu0
      %3789 = vmatprep.mubr.bf16.mxu0 0
      %3790 = vmatmul.mubr.bf16.gmra.mrb[0].mxu0 %v3608
      %v3791 = vpop.f32.mrb[0].mxu0
      %v3792 = vadd.f32 0.0, %v3791
      %v3793 = vpop.f32.mrb[0].mxu0
      %v3794 = vpop.f32.mrb[0].mxu0
      %v3795 = vadd.f32 0.0, %v3794
      %v3796 = vpop.f32.mrb[0].mxu0
      %3797 = vmatprep.mubr.bf16.mxu0 0
      %3798 = vmatmul.mubr.bf16.gmra.mrb[0].mxu0 %v3610
      %v3799 = vpop.f32.mrb[0].mxu0
      %v3800 = vadd.f32 0.0, %v3799
      %v3801 = vpop.f32.mrb[0].mxu0
      %v3802 = vpop.f32.mrb[0].mxu0
      %v3803 = vadd.f32 0.0, %v3802
      %v3804 = vpop.f32.mrb[0].mxu0
      %3805 = vmatprep.mubr.bf16.mxu0 0
      %3806 = vmatmul.mubr.bf16.gmra.mrb[0].mxu0 %v3612
      %v3807 = vpop.f32.mrb[0].mxu0
      %v3808 = vadd.f32 0.0, %v3807
      %v3809 = vpop.f32.mrb[0].mxu0
      %v3810 = vpop.f32.mrb[0].mxu0
      %v3811 = vadd.f32 0.0, %v3810
      %v3812 = vpop.f32.mrb[0].mxu0
      %3813 = vmatprep.mubr.bf16.mxu0 0
      %3814 = vmatmul.mubr.bf16.gmra.mrb[0].mxu0 %v3614
      %v3815 = vpop.f32.mrb[0].mxu0
      %v3816 = vadd.f32 0.0, %v3815
      %v3817 = vpop.f32.mrb[0].mxu0
      %v3818 = vpop.f32.mrb[0].mxu0
      %v3819 = vadd.f32 0.0, %v3818
      %v3820 = vpop.f32.mrb[0].mxu0
      %3821 = vmatprep.mubr.bf16.mxu0 0
      %3822 = vmatmul.mubr.bf16.gmra.mrb[0].mxu0 %v3616
      %v3823 = vpop.f32.mrb[0].mxu0
      %v3824 = vadd.f32 0.0, %v3823
      %v3825 = vpop.f32.mrb[0].mxu0
      %v3826 = vpop.f32.mrb[0].mxu0
      %v3827 = vadd.f32 0.0, %v3826
      %v3828 = vpop.f32.mrb[0].mxu0
      %3829 = vmatprep.mubr.bf16.mxu0 0
      %3830 = vmatmul.mubr.bf16.gmra.mrb[0].mxu0 %v3618
      %v3831 = vpop.f32.mrb[0].mxu0
      %v3832 = vadd.f32 0.0, %v3831
      %v3833 = vpop.f32.mrb[0].mxu0
      %v3834 = vpop.f32.mrb[0].mxu0
      %v3835 = vadd.f32 0.0, %v3834
      %v3836 = vpop.f32.mrb[0].mxu0
      %3837 = vmatprep.mubr.bf16.mxu0 0
      %3838 = vmatmul.mubr.bf16.gmra.mrb[0].mxu0 %v3620
      %v3839 = vpop.f32.mrb[0].mxu0
      %v3840 = vadd.f32 0.0, %v3839
      %v3841 = vpop.f32.mrb[0].mxu0
      %v3842 = vpop.f32.mrb[0].mxu0
      %v3843 = vadd.f32 0.0, %v3842
      %v3844 = vpop.f32.mrb[0].mxu0
      %3845 = vmatprep.mubr.bf16.mxu0 0
      %3846 = vmatmul.mubr.bf16.gmra.mrb[0].mxu0 %v3622
      %v3847 = vpop.f32.mrb[0].mxu0
      %v3848 = vadd.f32 0.0, %v3847
      %v3849 = vpop.f32.mrb[0].mxu0
      %v3850 = vpop.f32.mrb[0].mxu0
      %v3851 = vadd.f32 0.0, %v3850
      %v3852 = vpop.f32.mrb[0].mxu0
      %3853 = vmatprep.mubr.bf16.mxu0 0
      %3854 = vmatmul.mubr.bf16.gmra.mrb[0].mxu0 %v3624
      %v3855 = vpop.f32.mrb[0].mxu0
      %v3856 = vadd.f32 0.0, %v3855
      %v3857 = vpop.f32.mrb[0].mxu0
      %v3858 = vpop.f32.mrb[0].mxu0
      %v3859 = vadd.f32 0.0, %v3858
      %v3860 = vpop.f32.mrb[0].mxu0
      %3861 = vmatprep.mubr.bf16.mxu0 0
      %3862 = vmatmul.mubr.bf16.gmra.mrb[0].mxu0 %v3626
      %v3863 = vpop.f32.mrb[0].mxu0
      %v3864 = vadd.f32 0.0, %v3863
      %v3865 = vpop.f32.mrb[0].mxu0
      %v3866 = vpop.f32.mrb[0].mxu0
      %v3867 = vadd.f32 0.0, %v3866
      %v3868 = vpop.f32.mrb[0].mxu0
      %3869 = vdwg.mxu0
      %v3870 = vadd.f32 %v3532, %v3728
      %v3871 = vadd.f32 %v3533, %v3731
      %v3872 = vadd.f32 %v3534, %v3736
      %v3873 = vadd.f32 %v3535, %v3739
      %v3874 = vadd.f32 %v3536, %v3744
      %v3875 = vadd.f32 %v3537, %v3747
      %v3876 = vadd.f32 %v3538, %v3752
      %v3877 = vadd.f32 %v3539, %v3755
      %v3878 = vadd.f32 %v3540, %v3760
      %v3879 = vadd.f32 %v3541, %v3763
      %v3880 = vadd.f32 %v3542, %v3768
      %v3881 = vadd.f32 %v3543, %v3771
      %v3882 = vadd.f32 %v3544, %v3776
      %v3883 = vadd.f32 %v3545, %v3779
      %v3884 = vadd.f32 %v3546, %v3784
      %v3885 = vadd.f32 %v3547, %v3787
      %v3886 = vadd.f32 %v3548, %v3792
      %v3887 = vadd.f32 %v3549, %v3795
      %v3888 = vadd.f32 %v3550, %v3800
      %v3889 = vadd.f32 %v3551, %v3803
      %v3890 = vadd.f32 %v3552, %v3808
      %v3891 = vadd.f32 %v3553, %v3811
      %v3892 = vadd.f32 %v3554, %v3816
      %v3893 = vadd.f32 %v3555, %v3819
      %v3894 = vadd.f32 %v3556, %v3824
      %v3895 = vadd.f32 %v3557, %v3827
      %v3896 = vadd.f32 %v3558, %v3832
      %v3897 = vadd.f32 %v3559, %v3835
      %v3898 = vadd.f32 %v3560, %v3840
      %v3899 = vadd.f32 %v3561, %v3843
      %v3900 = vadd.f32 %v3562, %v3848
      %v3901 = vadd.f32 %v3563, %v3851
      %v3902 = vadd.f32 %v3564, %v3856
      %v3903 = vadd.f32 %v3565, %v3859
      %v3904 = vadd.f32 %v3566, %v3864
      %v3905 = vadd.f32 %v3567, %v3867
      %v3906 = vld [vmem:[%s2] sm:$0x1]
      %v3908 = vlaneseq
      %v3909 = vshrl.u32 %v3908, 7
      %v3910 = vsub.s32 0, %v3909
      %v3911 = vrot.slane %v3906, %v3910
      %v3913 = vadd.f32 %v3870, %v3911
      %v3914 = vadd.f32 %v3871, %v3911
      %v3915 = vadd.f32 %v3872, %v3911
      %v3916 = vadd.f32 %v3873, %v3911
      %v3917 = vadd.f32 %v3874, %v3911
      %v3918 = vadd.f32 %v3875, %v3911
      %v3919 = vadd.f32 %v3876, %v3911
      %v3920 = vadd.f32 %v3877, %v3911
      %v3921 = vadd.f32 %v3878, %v3911
      %v3922 = vadd.f32 %v3879, %v3911
      %v3923 = vadd.f32 %v3880, %v3911
      %v3924 = vadd.f32 %v3881, %v3911
      %v3925 = vadd.f32 %v3882, %v3911
      %v3926 = vadd.f32 %v3883, %v3911
      %v3927 = vadd.f32 %v3884, %v3911
      %v3928 = vadd.f32 %v3885, %v3911
      %v3929 = vadd.f32 %v3886, %v3911
      %v3930 = vadd.f32 %v3887, %v3911
      %v3931 = vadd.f32 %v3888, %v3911
      %v3932 = vadd.f32 %v3889, %v3911
      %v3933 = vadd.f32 %v3890, %v3911
      %v3934 = vadd.f32 %v3891, %v3911
      %v3935 = vadd.f32 %v3892, %v3911
      %v3936 = vadd.f32 %v3893, %v3911
      %v3937 = vadd.f32 %v3894, %v3911
      %v3938 = vadd.f32 %v3895, %v3911
      %v3939 = vadd.f32 %v3896, %v3911
      %v3940 = vadd.f32 %v3897, %v3911
      %v3941 = vadd.f32 %v3898, %v3911
      %v3942 = vadd.f32 %v3899, %v3911
      %v3943 = vadd.f32 %v3900, %v3911
      %v3944 = vadd.f32 %v3901, %v3911
      %v3945 = vadd.f32 %v3902, %v3911
      %v3946 = vadd.f32 %v3903, %v3911
      %v3947 = vadd.f32 %v3904, %v3911
      %v3948 = vadd.f32 %v3905, %v3911
      %v3949 = vmax.f32 %v3913, 0.0
      %v3950 = vmax.f32 %v3914, 0.0
      %v3951 = vmax.f32 %v3915, 0.0
      %v3952 = vmax.f32 %v3916, 0.0
      %v3953 = vmax.f32 %v3917, 0.0
      %v3954 = vmax.f32 %v3918, 0.0
      %v3955 = vmax.f32 %v3919, 0.0
      %v3956 = vmax.f32 %v3920, 0.0
      %v3957 = vmax.f32 %v3921, 0.0
      %v3958 = vmax.f32 %v3922, 0.0
      %v3959 = vmax.f32 %v3923, 0.0
      %v3960 = vmax.f32 %v3924, 0.0
      %v3961 = vmax.f32 %v3925, 0.0
      %v3962 = vmax.f32 %v3926, 0.0
      %v3963 = vmax.f32 %v3927, 0.0
      %v3964 = vmax.f32 %v3928, 0.0
      %v3965 = vmax.f32 %v3929, 0.0
      %v3966 = vmax.f32 %v3930, 0.0
      %v3967 = vmax.f32 %v3931, 0.0
      %v3968 = vmax.f32 %v3932, 0.0
      %v3969 = vmax.f32 %v3933, 0.0
      %v3970 = vmax.f32 %v3934, 0.0
      %v3971 = vmax.f32 %v3935, 0.0
      %v3972 = vmax.f32 %v3936, 0.0
      %v3973 = vmax.f32 %v3937, 0.0
      %v3974 = vmax.f32 %v3938, 0.0
      %v3975 = vmax.f32 %v3939, 0.0
      %v3976 = vmax.f32 %v3940, 0.0
      %v3977 = vmax.f32 %v3941, 0.0
      %v3978 = vmax.f32 %v3942, 0.0
      %v3979 = vmax.f32 %v3943, 0.0
      %v3980 = vmax.f32 %v3944, 0.0
      %v3981 = vmax.f32 %v3945, 0.0
      %v3982 = vmax.f32 %v3946, 0.0
      %v3983 = vmax.f32 %v3947, 0.0
      %v3984 = vmax.f32 %v3948, 0.0
      %v3985 = vpack.c.bf16 %v3950, %v3949
      %v3986 = vpack.c.bf16 %v3952, %v3951
      %v3987 = vpack.c.bf16 %v3954, %v3953
      %v3988 = vpack.c.bf16 %v3956, %v3955
      %v3989 = vpack.c.bf16 %v3958, %v3957
      %v3990 = vpack.c.bf16 %v3960, %v3959
      %v3991 = vpack.c.bf16 %v3962, %v3961
      %v3992 = vpack.c.bf16 %v3964, %v3963
      %v3993 = vpack.c.bf16 %v3966, %v3965
      %v3994 = vpack.c.bf16 %v3968, %v3967
      %v3995 = vpack.c.bf16 %v3970, %v3969
      %v3996 = vpack.c.bf16 %v3972, %v3971
      %v3997 = vpack.c.bf16 %v3974, %v3973
      %v3998 = vpack.c.bf16 %v3976, %v3975
      %v3999 = vpack.c.bf16 %v3978, %v3977
      %v4000 = vpack.c.bf16 %v3980, %v3979
      %v4001 = vpack.c.bf16 %v3982, %v3981
      %v4002 = vpack.c.bf16 %v3984, %v3983
      %v4003 = vld [vmem:[%s3] sm:$0xf]
      %v4004 = vld [vmem:[%s3 + $0x4] sm:$0xf]
      %v4005 = vld [vmem:[%s3 + $0x8] sm:$0xf]
      %v4006 = vld [vmem:[%s3 + $0xc] sm:$0xf]
      %v4007 = vld [vmem:[%s3 + $0x10] sm:$0xf]
      %v4008 = vld [vmem:[%s3 + $0x14] sm:$0xf]
      %v4009 = vld [vmem:[%s3 + $0x18] sm:$0xf]
      %v4010 = vld [vmem:[%s3 + $0x1c] sm:$0xf]
      %v4011 = vld [vmem:[%s3 + $0x20] sm:$0xf]
      %v4012 = vld [vmem:[%s3 + $0x24] sm:$0xf]
      %v4013 = vld [vmem:[%s3 + $0x28] sm:$0xf]
      %v4014 = vld [vmem:[%s3 + $0x2c] sm:$0xf]
      %v4015 = vld [vmem:[%s3 + $0x30] sm:$0xf]
      %v4016 = vld [vmem:[%s3 + $0x34] sm:$0xf]
      %v4017 = vld [vmem:[%s3 + $0x38] sm:$0xf]
      %v4018 = vld [vmem:[%s3 + $0x3c] sm:$0xf]
      %v4019 = vld [vmem:[%s4] sm:$0x1]
      %v4021 = vlaneseq
      %v4022 = vshrl.u32 %v4021, 7
      %v4023 = vsub.s32 0, %v4022
      %v4024 = vrot.slane %v4019, %v4023
      %v4042 = vunpack.c.l.b16 %v4003
      %v4043 = vunpack.c.l.b16 %v4004
      %v4044 = vunpack.c.l.b16 %v4005
      %v4045 = vunpack.c.l.b16 %v4006
      %v4046 = vunpack.c.l.b16 %v4007
      %v4047 = vunpack.c.l.b16 %v4008
      %v4048 = vunpack.c.l.b16 %v4009
      %v4049 = vunpack.c.l.b16 %v4010
      %v4050 = vunpack.c.l.b16 %v4011
      %v4051 = vunpack.c.l.b16 %v4012
      %v4052 = vunpack.c.l.b16 %v4013
      %v4053 = vunpack.c.l.b16 %v4014
      %v4054 = vunpack.c.l.b16 %v4015
      %v4055 = vunpack.c.l.b16 %v4016
      %v4056 = vunpack.c.l.b16 %v4017
      %v4057 = vunpack.c.l.b16 %v4018
      %v4058 = vpack.c.b16 %v4043, %v4042
      %v4059 = vpack.c.b16 %v4045, %v4044
      %v4060 = vpack.c.b16 %v4047, %v4046
      %v4061 = vpack.c.b16 %v4049, %v4048
      %v4062 = vpack.c.b16 %v4051, %v4050
      %v4063 = vpack.c.b16 %v4053, %v4052
      %v4064 = vpack.c.b16 %v4055, %v4054
      %v4065 = vpack.c.b16 %v4057, %v4056
      %4074 = vmatprep.subr.bf16.mxu0 0
      %4075 = vmatpush1.bf16.msra.mxu0 %v4058
      %4076 = vmatprep.subr.bf16.mxu0 0
      %4077 = vmatpush1.bf16.msra.mxu0 %v4059
      %4078 = vmatprep.subr.bf16.mxu0 0
      %4079 = vmatpush1.bf16.msra.mxu0 %v4060
      %4080 = vmatprep.subr.bf16.mxu0 0
      %4081 = vmatpush1.bf16.msra.mxu0 %v4061
      %4082 = vmatprep.subr.bf16.mxu0 0
      %4083 = vmatpush1.bf16.msra.mxu0 %v4062
      %4084 = vmatprep.subr.bf16.mxu0 0
      %4085 = vmatpush1.bf16.msra.mxu0 %v4063
      %4086 = vmatprep.subr.bf16.mxu0 0
      %4087 = vmatpush1.bf16.msra.mxu0 %v4064
      %4088 = vmatprep.subr.bf16.mxu0 0
      %4089 = vmatpush1.bf16.msra.mxu0 %v4065
      %4090 = vmatprep.subr.bf16.mxu0 0
      %4091 = vmatpush1.bf16.msra.mxu0 0
      %4092 = vmatprep.subr.bf16.mxu0 0
      %4093 = vmatpush1.bf16.msra.mxu0 0
      %4094 = vmatprep.subr.bf16.mxu0 0
      %4095 = vmatpush1.bf16.msra.mxu0 0
      %4096 = vmatprep.subr.bf16.mxu0 0
      %4097 = vmatpush1.bf16.msra.mxu0 0
      %4098 = vmatprep.subr.bf16.mxu0 0
      %4099 = vmatpush1.bf16.msra.mxu0 0
      %4100 = vmatprep.subr.bf16.mxu0 0
      %4101 = vmatpush1.bf16.msra.mxu0 0
      %4102 = vmatprep.subr.bf16.mxu0 0
      %4103 = vmatpush1.bf16.msra.mxu0 0
      %4104 = vmatprep.subr.bf16.mxu0 0
      %4105 = vmatpush1.bf16.msra.mxu0 0
      %4106 = vmatprep.mubr.bf16.mxu0 0
      %4107 = vmatmul.mubr.bf16.gmra.mrb[0].mxu0 %v3985
      %v4108 = vpop.f32.mrb[0].mxu0
      %v4109 = vadd.f32 %v4024, %v4108
      %v4110 = vpop.f32.mrb[0].mxu0
      %v4111 = vpop.f32.mrb[0].mxu0
      %v4112 = vadd.f32 %v4024, %v4111
      %v4113 = vpop.f32.mrb[0].mxu0
      %4114 = vmatprep.mubr.bf16.mxu0 0
      %4115 = vmatmul.mubr.bf16.gmra.mrb[0].mxu0 %v3986
      %v4116 = vpop.f32.mrb[0].mxu0
      %v4117 = vadd.f32 %v4024, %v4116
      %v4118 = vpop.f32.mrb[0].mxu0
      %v4119 = vpop.f32.mrb[0].mxu0
      %v4120 = vadd.f32 %v4024, %v4119
      %v4121 = vpop.f32.mrb[0].mxu0
      %4122 = vmatprep.mubr.bf16.mxu0 0
      %4123 = vmatmul.mubr.bf16.gmra.mrb[0].mxu0 %v3987
      %v4124 = vpop.f32.mrb[0].mxu0
      %v4125 = vadd.f32 %v4024, %v4124
      %v4126 = vpop.f32.mrb[0].mxu0
      %v4127 = vpop.f32.mrb[0].mxu0
      %v4128 = vadd.f32 %v4024, %v4127
      %v4129 = vpop.f32.mrb[0].mxu0
      %4130 = vmatprep.mubr.bf16.mxu0 0
      %4131 = vmatmul.mubr.bf16.gmra.mrb[0].mxu0 %v3988
      %v4132 = vpop.f32.mrb[0].mxu0
      %v4133 = vadd.f32 %v4024, %v4132
      %v4134 = vpop.f32.mrb[0].mxu0
      %v4135 = vpop.f32.mrb[0].mxu0
      %v4136 = vadd.f32 %v4024, %v4135
      %v4137 = vpop.f32.mrb[0].mxu0
      %4138 = vmatprep.mubr.bf16.mxu0 0
      %4139 = vmatmul.mubr.bf16.gmra.mrb[0].mxu0 %v3989
      %v4140 = vpop.f32.mrb[0].mxu0
      %v4141 = vadd.f32 %v4024, %v4140
      %v4142 = vpop.f32.mrb[0].mxu0
      %v4143 = vpop.f32.mrb[0].mxu0
      %v4144 = vadd.f32 %v4024, %v4143
      %v4145 = vpop.f32.mrb[0].mxu0
      %4146 = vmatprep.mubr.bf16.mxu0 0
      %4147 = vmatmul.mubr.bf16.gmra.mrb[0].mxu0 %v3990
      %v4148 = vpop.f32.mrb[0].mxu0
      %v4149 = vadd.f32 %v4024, %v4148
      %v4150 = vpop.f32.mrb[0].mxu0
      %v4151 = vpop.f32.mrb[0].mxu0
      %v4152 = vadd.f32 %v4024, %v4151
      %v4153 = vpop.f32.mrb[0].mxu0
      %4154 = vmatprep.mubr.bf16.mxu0 0
      %4155 = vmatmul.mubr.bf16.gmra.mrb[0].mxu0 %v3991
      %v4156 = vpop.f32.mrb[0].mxu0
      %v4157 = vadd.f32 %v4024, %v4156
      %v4158 = vpop.f32.mrb[0].mxu0
      %v4159 = vpop.f32.mrb[0].mxu0
      %v4160 = vadd.f32 %v4024, %v4159
      %v4161 = vpop.f32.mrb[0].mxu0
      %4162 = vmatprep.mubr.bf16.mxu0 0
      %4163 = vmatmul.mubr.bf16.gmra.mrb[0].mxu0 %v3992
      %v4164 = vpop.f32.mrb[0].mxu0
      %v4165 = vadd.f32 %v4024, %v4164
      %v4166 = vpop.f32.mrb[0].mxu0
      %v4167 = vpop.f32.mrb[0].mxu0
      %v4168 = vadd.f32 %v4024, %v4167
      %v4169 = vpop.f32.mrb[0].mxu0
      %4170 = vmatprep.mubr.bf16.mxu0 0
      %4171 = vmatmul.mubr.bf16.gmra.mrb[0].mxu0 %v3993
      %v4172 = vpop.f32.mrb[0].mxu0
      %v4173 = vadd.f32 %v4024, %v4172
      %v4174 = vpop.f32.mrb[0].mxu0
      %v4175 = vpop.f32.mrb[0].mxu0
      %v4176 = vadd.f32 %v4024, %v4175
      %v4177 = vpop.f32.mrb[0].mxu0
      %4178 = vmatprep.mubr.bf16.mxu0 0
      %4179 = vmatmul.mubr.bf16.gmra.mrb[0].mxu0 %v3994
      %v4180 = vpop.f32.mrb[0].mxu0
      %v4181 = vadd.f32 %v4024, %v4180
      %v4182 = vpop.f32.mrb[0].mxu0
      %v4183 = vpop.f32.mrb[0].mxu0
      %v4184 = vadd.f32 %v4024, %v4183
      %v4185 = vpop.f32.mrb[0].mxu0
      %4186 = vmatprep.mubr.bf16.mxu0 0
      %4187 = vmatmul.mubr.bf16.gmra.mrb[0].mxu0 %v3995
      %v4188 = vpop.f32.mrb[0].mxu0
      %v4189 = vadd.f32 %v4024, %v4188
      %v4190 = vpop.f32.mrb[0].mxu0
      %v4191 = vpop.f32.mrb[0].mxu0
      %v4192 = vadd.f32 %v4024, %v4191
      %v4193 = vpop.f32.mrb[0].mxu0
      %4194 = vmatprep.mubr.bf16.mxu0 0
      %4195 = vmatmul.mubr.bf16.gmra.mrb[0].mxu0 %v3996
      %v4196 = vpop.f32.mrb[0].mxu0
      %v4197 = vadd.f32 %v4024, %v4196
      %v4198 = vpop.f32.mrb[0].mxu0
      %v4199 = vpop.f32.mrb[0].mxu0
      %v4200 = vadd.f32 %v4024, %v4199
      %v4201 = vpop.f32.mrb[0].mxu0
      %4202 = vmatprep.mubr.bf16.mxu0 0
      %4203 = vmatmul.mubr.bf16.gmra.mrb[0].mxu0 %v3997
      %v4204 = vpop.f32.mrb[0].mxu0
      %v4205 = vadd.f32 %v4024, %v4204
      %v4206 = vpop.f32.mrb[0].mxu0
      %v4207 = vpop.f32.mrb[0].mxu0
      %v4208 = vadd.f32 %v4024, %v4207
      %v4209 = vpop.f32.mrb[0].mxu0
      %4210 = vmatprep.mubr.bf16.mxu0 0
      %4211 = vmatmul.mubr.bf16.gmra.mrb[0].mxu0 %v3998
      %v4212 = vpop.f32.mrb[0].mxu0
      %v4213 = vadd.f32 %v4024, %v4212
      %v4214 = vpop.f32.mrb[0].mxu0
      %v4215 = vpop.f32.mrb[0].mxu0
      %v4216 = vadd.f32 %v4024, %v4215
      %v4217 = vpop.f32.mrb[0].mxu0
      %4218 = vmatprep.mubr.bf16.mxu0 0
      %4219 = vmatmul.mubr.bf16.gmra.mrb[0].mxu0 %v3999
      %v4220 = vpop.f32.mrb[0].mxu0
      %v4221 = vadd.f32 %v4024, %v4220
      %v4222 = vpop.f32.mrb[0].mxu0
      %v4223 = vpop.f32.mrb[0].mxu0
      %v4224 = vadd.f32 %v4024, %v4223
      %v4225 = vpop.f32.mrb[0].mxu0
      %4226 = vmatprep.mubr.bf16.mxu0 0
      %4227 = vmatmul.mubr.bf16.gmra.mrb[0].mxu0 %v4000
      %v4228 = vpop.f32.mrb[0].mxu0
      %v4229 = vadd.f32 %v4024, %v4228
      %v4230 = vpop.f32.mrb[0].mxu0
      %v4231 = vpop.f32.mrb[0].mxu0
      %v4232 = vadd.f32 %v4024, %v4231
      %v4233 = vpop.f32.mrb[0].mxu0
      %4234 = vmatprep.mubr.bf16.mxu0 0
      %4235 = vmatmul.mubr.bf16.gmra.mrb[0].mxu0 %v4001
      %v4236 = vpop.f32.mrb[0].mxu0
      %v4237 = vadd.f32 %v4024, %v4236
      %v4238 = vpop.f32.mrb[0].mxu0
      %v4239 = vpop.f32.mrb[0].mxu0
      %v4240 = vadd.f32 %v4024, %v4239
      %v4241 = vpop.f32.mrb[0].mxu0
      %4242 = vmatprep.mubr.bf16.mxu0 0
      %4243 = vmatmul.mubr.bf16.gmra.mrb[0].mxu0 %v4002
      %v4244 = vpop.f32.mrb[0].mxu0
      %v4245 = vadd.f32 %v4024, %v4244
      %v4246 = vpop.f32.mrb[0].mxu0
      %v4247 = vpop.f32.mrb[0].mxu0
      %v4248 = vadd.f32 %v4024, %v4247
      %v4249 = vpop.f32.mrb[0].mxu0
      %4250 = vdwg.mxu0
      %v4251 = vmul.f32 %v4109, 0.5
      %v4252 = vmul.f32 %v4112, 0.5
      %v4253 = vmul.f32 %v4117, 0.5
      %v4254 = vmul.f32 %v4120, 0.5
      %v4255 = vmul.f32 %v4125, 0.5
      %v4256 = vmul.f32 %v4128, 0.5
      %v4257 = vmul.f32 %v4133, 0.5
      %v4258 = vmul.f32 %v4136, 0.5
      %v4259 = vmul.f32 %v4141, 0.5
      %v4260 = vmul.f32 %v4144, 0.5
      %v4261 = vmul.f32 %v4149, 0.5
      %v4262 = vmul.f32 %v4152, 0.5
      %v4263 = vmul.f32 %v4157, 0.5
      %v4264 = vmul.f32 %v4160, 0.5
      %v4265 = vmul.f32 %v4165, 0.5
      %v4266 = vmul.f32 %v4168, 0.5
      %v4267 = vmul.f32 %v4173, 0.5
      %v4268 = vmul.f32 %v4176, 0.5
      %v4269 = vmul.f32 %v4181, 0.5
      %v4270 = vmul.f32 %v4184, 0.5
      %v4271 = vmul.f32 %v4189, 0.5
      %v4272 = vmul.f32 %v4192, 0.5
      %v4273 = vmul.f32 %v4197, 0.5
      %v4274 = vmul.f32 %v4200, 0.5
      %v4275 = vmul.f32 %v4205, 0.5
      %v4276 = vmul.f32 %v4208, 0.5
      %v4277 = vmul.f32 %v4213, 0.5
      %v4278 = vmul.f32 %v4216, 0.5
      %v4279 = vmul.f32 %v4221, 0.5
      %v4280 = vmul.f32 %v4224, 0.5
      %v4281 = vmul.f32 %v4229, 0.5
      %v4282 = vmul.f32 %v4232, 0.5
      %v4283 = vmul.f32 %v4237, 0.5
      %v4284 = vmul.f32 %v4240, 0.5
      %v4285 = vmul.f32 %v4245, 0.5
      %v4286 = vmul.f32 %v4248, 0.5
      %v4287 = vtanh.pop %v4251
      %v4288 = vtanh.pop %v4252
      %v4289 = vtanh.pop %v4253
      %v4290 = vtanh.pop %v4254
      %v4291 = vtanh.pop %v4255
      %v4292 = vtanh.pop %v4256
      %v4293 = vtanh.pop %v4257
      %v4294 = vtanh.pop %v4258
      %v4295 = vtanh.pop %v4259
      %v4296 = vtanh.pop %v4260
      %v4297 = vtanh.pop %v4261
      %v4298 = vtanh.pop %v4262
      %v4299 = vtanh.pop %v4263
      %v4300 = vtanh.pop %v4264
      %v4301 = vtanh.pop %v4265
      %v4302 = vtanh.pop %v4266
      %v4303 = vtanh.pop %v4267
      %v4304 = vtanh.pop %v4268
      %v4305 = vtanh.pop %v4269
      %v4306 = vtanh.pop %v4270
      %v4307 = vtanh.pop %v4271
      %v4308 = vtanh.pop %v4272
      %v4309 = vtanh.pop %v4273
      %v4310 = vtanh.pop %v4274
      %v4311 = vtanh.pop %v4275
      %v4312 = vtanh.pop %v4276
      %v4313 = vtanh.pop %v4277
      %v4314 = vtanh.pop %v4278
      %v4315 = vtanh.pop %v4279
      %v4316 = vtanh.pop %v4280
      %v4317 = vtanh.pop %v4281
      %v4318 = vtanh.pop %v4282
      %v4319 = vtanh.pop %v4283
      %v4320 = vtanh.pop %v4284
      %v4321 = vtanh.pop %v4285
      %v4322 = vtanh.pop %v4286
      %v4323 = vadd.f32 %v4287, 1.0
      %v4324 = vadd.f32 %v4288, 1.0
      %v4325 = vadd.f32 %v4289, 1.0
      %v4326 = vadd.f32 %v4290, 1.0
      %v4327 = vadd.f32 %v4291, 1.0
      %v4328 = vadd.f32 %v4292, 1.0
      %v4329 = vadd.f32 %v4293, 1.0
      %v4330 = vadd.f32 %v4294, 1.0
      %v4331 = vadd.f32 %v4295, 1.0
      %v4332 = vadd.f32 %v4296, 1.0
      %v4333 = vadd.f32 %v4297, 1.0
      %v4334 = vadd.f32 %v4298, 1.0
      %v4335 = vadd.f32 %v4299, 1.0
      %v4336 = vadd.f32 %v4300, 1.0
      %v4337 = vadd.f32 %v4301, 1.0
      %v4338 = vadd.f32 %v4302, 1.0
      %v4339 = vadd.f32 %v4303, 1.0
      %v4340 = vadd.f32 %v4304, 1.0
      %v4341 = vadd.f32 %v4305, 1.0
      %v4342 = vadd.f32 %v4306, 1.0
      %v4343 = vadd.f32 %v4307, 1.0
      %v4344 = vadd.f32 %v4308, 1.0
      %v4345 = vadd.f32 %v4309, 1.0
      %v4346 = vadd.f32 %v4310, 1.0
      %v4347 = vadd.f32 %v4311, 1.0
      %v4348 = vadd.f32 %v4312, 1.0
      %v4349 = vadd.f32 %v4313, 1.0
      %v4350 = vadd.f32 %v4314, 1.0
      %v4351 = vadd.f32 %v4315, 1.0
      %v4352 = vadd.f32 %v4316, 1.0
      %v4353 = vadd.f32 %v4317, 1.0
      %v4354 = vadd.f32 %v4318, 1.0
      %v4355 = vadd.f32 %v4319, 1.0
      %v4356 = vadd.f32 %v4320, 1.0
      %v4357 = vadd.f32 %v4321, 1.0
      %v4358 = vadd.f32 %v4322, 1.0
      %v4359 = vmul.f32 %v4323, 0.5
      %v4360 = vmul.f32 %v4324, 0.5
      %v4361 = vmul.f32 %v4325, 0.5
      %v4362 = vmul.f32 %v4326, 0.5
      %v4363 = vmul.f32 %v4327, 0.5
      %v4364 = vmul.f32 %v4328, 0.5
      %v4365 = vmul.f32 %v4329, 0.5
      %v4366 = vmul.f32 %v4330, 0.5
      %v4367 = vmul.f32 %v4331, 0.5
      %v4368 = vmul.f32 %v4332, 0.5
      %v4369 = vmul.f32 %v4333, 0.5
      %v4370 = vmul.f32 %v4334, 0.5
      %v4371 = vmul.f32 %v4335, 0.5
      %v4372 = vmul.f32 %v4336, 0.5
      %v4373 = vmul.f32 %v4337, 0.5
      %v4374 = vmul.f32 %v4338, 0.5
      %v4375 = vmul.f32 %v4339, 0.5
      %v4376 = vmul.f32 %v4340, 0.5
      %v4377 = vmul.f32 %v4341, 0.5
      %v4378 = vmul.f32 %v4342, 0.5
      %v4379 = vmul.f32 %v4343, 0.5
      %v4380 = vmul.f32 %v4344, 0.5
      %v4381 = vmul.f32 %v4345, 0.5
      %v4382 = vmul.f32 %v4346, 0.5
      %v4383 = vmul.f32 %v4347, 0.5
      %v4384 = vmul.f32 %v4348, 0.5
      %v4385 = vmul.f32 %v4349, 0.5
      %v4386 = vmul.f32 %v4350, 0.5
      %v4387 = vmul.f32 %v4351, 0.5
      %v4388 = vmul.f32 %v4352, 0.5
      %v4389 = vmul.f32 %v4353, 0.5
      %v4390 = vmul.f32 %v4354, 0.5
      %v4391 = vmul.f32 %v4355, 0.5
      %v4392 = vmul.f32 %v4356, 0.5
      %v4393 = vmul.f32 %v4357, 0.5
      %v4394 = vmul.f32 %v4358, 0.5
      %v4395 = vmax.f32 %v4359, 0.0001
      %v4396 = vmax.f32 %v4360, 0.0001
      %v4397 = vmax.f32 %v4361, 0.0001
      %v4398 = vmax.f32 %v4362, 0.0001
      %v4399 = vmax.f32 %v4363, 0.0001
      %v4400 = vmax.f32 %v4364, 0.0001
      %v4401 = vmax.f32 %v4365, 0.0001
      %v4402 = vmax.f32 %v4366, 0.0001
      %v4403 = vmax.f32 %v4367, 0.0001
      %v4404 = vmax.f32 %v4368, 0.0001
      %v4405 = vmax.f32 %v4369, 0.0001
      %v4406 = vmax.f32 %v4370, 0.0001
      %v4407 = vmax.f32 %v4371, 0.0001
      %v4408 = vmax.f32 %v4372, 0.0001
      %v4409 = vmax.f32 %v4373, 0.0001
      %v4410 = vmax.f32 %v4374, 0.0001
      %v4411 = vmax.f32 %v4375, 0.0001
      %v4412 = vmax.f32 %v4376, 0.0001
      %v4413 = vmax.f32 %v4377, 0.0001
      %v4414 = vmax.f32 %v4378, 0.0001
      %v4415 = vmax.f32 %v4379, 0.0001
      %v4416 = vmax.f32 %v4380, 0.0001
      %v4417 = vmax.f32 %v4381, 0.0001
      %v4418 = vmax.f32 %v4382, 0.0001
      %v4419 = vmax.f32 %v4383, 0.0001
      %v4420 = vmax.f32 %v4384, 0.0001
      %v4421 = vmax.f32 %v4385, 0.0001
      %v4422 = vmax.f32 %v4386, 0.0001
      %v4423 = vmax.f32 %v4387, 0.0001
      %v4424 = vmax.f32 %v4388, 0.0001
      %v4425 = vmax.f32 %v4389, 0.0001
      %v4426 = vmax.f32 %v4390, 0.0001
      %v4427 = vmax.f32 %v4391, 0.0001
      %v4428 = vmax.f32 %v4392, 0.0001
      %v4429 = vmax.f32 %v4393, 0.0001
      %v4430 = vmax.f32 %v4394, 0.0001
      %v4431 = vmin.f32 %v4395, 0.9999
      %v4432 = vmin.f32 %v4396, 0.9999
      %v4433 = vmin.f32 %v4397, 0.9999
      %v4434 = vmin.f32 %v4398, 0.9999
      %v4435 = vmin.f32 %v4399, 0.9999
      %v4436 = vmin.f32 %v4400, 0.9999
      %v4437 = vmin.f32 %v4401, 0.9999
      %v4438 = vmin.f32 %v4402, 0.9999
      %v4439 = vmin.f32 %v4403, 0.9999
      %v4440 = vmin.f32 %v4404, 0.9999
      %v4441 = vmin.f32 %v4405, 0.9999
      %v4442 = vmin.f32 %v4406, 0.9999
      %v4443 = vmin.f32 %v4407, 0.9999
      %v4444 = vmin.f32 %v4408, 0.9999
      %v4445 = vmin.f32 %v4409, 0.9999
      %v4446 = vmin.f32 %v4410, 0.9999
      %v4447 = vmin.f32 %v4411, 0.9999
      %v4448 = vmin.f32 %v4412, 0.9999
      %v4449 = vmin.f32 %v4413, 0.9999
      %v4450 = vmin.f32 %v4414, 0.9999
      %v4451 = vmin.f32 %v4415, 0.9999
      %v4452 = vmin.f32 %v4416, 0.9999
      %v4453 = vmin.f32 %v4417, 0.9999
      %v4454 = vmin.f32 %v4418, 0.9999
      %v4455 = vmin.f32 %v4419, 0.9999
      %v4456 = vmin.f32 %v4420, 0.9999
      %v4457 = vmin.f32 %v4421, 0.9999
      %v4458 = vmin.f32 %v4422, 0.9999
      %v4459 = vmin.f32 %v4423, 0.9999
      %v4460 = vmin.f32 %v4424, 0.9999
      %v4461 = vmin.f32 %v4425, 0.9999
      %v4462 = vmin.f32 %v4426, 0.9999
      %v4463 = vmin.f32 %v4427, 0.9999
      %v4464 = vmin.f32 %v4428, 0.9999
      %v4465 = vmin.f32 %v4429, 0.9999
      %v4466 = vmin.f32 %v4430, 0.9999
      %v4467 = vlaneseq
      %v4468 = vand.u32 %v4467, 127
      %vm4469 = vcmp.eq.s32.totalorder %v4468, 0
      %vm4470 = vcmp.ge.s32.totalorder %v4468, 3
      %vm4471 = vcmp.lt.s32.totalorder %v4468, 5
      %vm4472 = vmand %vm4470, %vm4471
      %vm4473 = vmor %vm4469, %vm4472
      %v4474 = vsel %vm4473, 1, 0
      %v4475 = vcvt.s32.f32 %v4474
      %v4476 = vmul.f32 %v4431, %v4475
      %v4477 = vmul.f32 %v4432, %v4475
      %v4478 = vmul.f32 %v4433, %v4475
      %v4479 = vmul.f32 %v4434, %v4475
      %v4480 = vmul.f32 %v4435, %v4475
      %v4481 = vmul.f32 %v4436, %v4475
      %v4482 = vmul.f32 %v4437, %v4475
      %v4483 = vmul.f32 %v4438, %v4475
      %v4484 = vmul.f32 %v4439, %v4475
      %v4485 = vmul.f32 %v4440, %v4475
      %v4486 = vmul.f32 %v4441, %v4475
      %v4487 = vmul.f32 %v4442, %v4475
      %v4488 = vmul.f32 %v4443, %v4475
      %v4489 = vmul.f32 %v4444, %v4475
      %v4490 = vmul.f32 %v4445, %v4475
      %v4491 = vmul.f32 %v4446, %v4475
      %v4492 = vmul.f32 %v4447, %v4475
      %v4493 = vmul.f32 %v4448, %v4475
      %v4494 = vmul.f32 %v4449, %v4475
      %v4495 = vmul.f32 %v4450, %v4475
      %v4496 = vmul.f32 %v4451, %v4475
      %v4497 = vmul.f32 %v4452, %v4475
      %v4498 = vmul.f32 %v4453, %v4475
      %v4499 = vmul.f32 %v4454, %v4475
      %v4500 = vmul.f32 %v4455, %v4475
      %v4501 = vmul.f32 %v4456, %v4475
      %v4502 = vmul.f32 %v4457, %v4475
      %v4503 = vmul.f32 %v4458, %v4475
      %v4504 = vmul.f32 %v4459, %v4475
      %v4505 = vmul.f32 %v4460, %v4475
      %v4506 = vmul.f32 %v4461, %v4475
      %v4507 = vmul.f32 %v4462, %v4475
      %v4508 = vmul.f32 %v4463, %v4475
      %v4509 = vmul.f32 %v4464, %v4475
      %v4510 = vmul.f32 %v4465, %v4475
      %v4511 = vmul.f32 %v4466, %v4475
      %v4512 = vsub.f32 1.0, %v4475
      %v4513 = vmul.f32 %v4109, %v4512
      %v4514 = vmul.f32 %v4112, %v4512
      %v4515 = vmul.f32 %v4117, %v4512
      %v4516 = vmul.f32 %v4120, %v4512
      %v4517 = vmul.f32 %v4125, %v4512
      %v4518 = vmul.f32 %v4128, %v4512
      %v4519 = vmul.f32 %v4133, %v4512
      %v4520 = vmul.f32 %v4136, %v4512
      %v4521 = vmul.f32 %v4141, %v4512
      %v4522 = vmul.f32 %v4144, %v4512
      %v4523 = vmul.f32 %v4149, %v4512
      %v4524 = vmul.f32 %v4152, %v4512
      %v4525 = vmul.f32 %v4157, %v4512
      %v4526 = vmul.f32 %v4160, %v4512
      %v4527 = vmul.f32 %v4165, %v4512
      %v4528 = vmul.f32 %v4168, %v4512
      %v4529 = vmul.f32 %v4173, %v4512
      %v4530 = vmul.f32 %v4176, %v4512
      %v4531 = vmul.f32 %v4181, %v4512
      %v4532 = vmul.f32 %v4184, %v4512
      %v4533 = vmul.f32 %v4189, %v4512
      %v4534 = vmul.f32 %v4192, %v4512
      %v4535 = vmul.f32 %v4197, %v4512
      %v4536 = vmul.f32 %v4200, %v4512
      %v4537 = vmul.f32 %v4205, %v4512
      %v4538 = vmul.f32 %v4208, %v4512
      %v4539 = vmul.f32 %v4213, %v4512
      %v4540 = vmul.f32 %v4216, %v4512
      %v4541 = vmul.f32 %v4221, %v4512
      %v4542 = vmul.f32 %v4224, %v4512
      %v4543 = vmul.f32 %v4229, %v4512
      %v4544 = vmul.f32 %v4232, %v4512
      %v4545 = vmul.f32 %v4237, %v4512
      %v4546 = vmul.f32 %v4240, %v4512
      %v4547 = vmul.f32 %v4245, %v4512
      %v4548 = vmul.f32 %v4248, %v4512
      %v4549 = vadd.f32 %v4476, %v4513
      %v4550 = vadd.f32 %v4477, %v4514
      %v4551 = vadd.f32 %v4478, %v4515
      %v4552 = vadd.f32 %v4479, %v4516
      %v4553 = vadd.f32 %v4480, %v4517
      %v4554 = vadd.f32 %v4481, %v4518
      %v4555 = vadd.f32 %v4482, %v4519
      %v4556 = vadd.f32 %v4483, %v4520
      %v4557 = vadd.f32 %v4484, %v4521
      %v4558 = vadd.f32 %v4485, %v4522
      %v4559 = vadd.f32 %v4486, %v4523
      %v4560 = vadd.f32 %v4487, %v4524
      %v4561 = vadd.f32 %v4488, %v4525
      %v4562 = vadd.f32 %v4489, %v4526
      %v4563 = vadd.f32 %v4490, %v4527
      %v4564 = vadd.f32 %v4491, %v4528
      %v4565 = vadd.f32 %v4492, %v4529
      %v4566 = vadd.f32 %v4493, %v4530
      %v4567 = vadd.f32 %v4494, %v4531
      %v4568 = vadd.f32 %v4495, %v4532
      %v4569 = vadd.f32 %v4496, %v4533
      %v4570 = vadd.f32 %v4497, %v4534
      %v4571 = vadd.f32 %v4498, %v4535
      %v4572 = vadd.f32 %v4499, %v4536
      %v4573 = vadd.f32 %v4500, %v4537
      %v4574 = vadd.f32 %v4501, %v4538
      %v4575 = vadd.f32 %v4502, %v4539
      %v4576 = vadd.f32 %v4503, %v4540
      %v4577 = vadd.f32 %v4504, %v4541
      %v4578 = vadd.f32 %v4505, %v4542
      %v4579 = vadd.f32 %v4506, %v4543
      %v4580 = vadd.f32 %v4507, %v4544
      %v4581 = vadd.f32 %v4508, %v4545
      %v4582 = vadd.f32 %v4509, %v4546
      %v4583 = vadd.f32 %v4510, %v4547
      %v4584 = vadd.f32 %v4511, %v4548
      %4585 = vst [vmem:[%s224] sm:$0xff] %v4549
      %4586 = vst [vmem:[%s224 + $0x8] sm:$0xff] %v4550
      %4587 = vst [vmem:[%s224 + $0x10] sm:$0xff] %v4551
      %4588 = vst [vmem:[%s224 + $0x18] sm:$0xff] %v4552
      %4589 = vst [vmem:[%s224 + $0x20] sm:$0xff] %v4553
      %4590 = vst [vmem:[%s224 + $0x28] sm:$0xff] %v4554
      %4591 = vst [vmem:[%s224 + $0x30] sm:$0xff] %v4555
      %4592 = vst [vmem:[%s224 + $0x38] sm:$0xff] %v4556
      %4593 = vst [vmem:[%s224 + $0x40] sm:$0xff] %v4557
      %4594 = vst [vmem:[%s224 + $0x48] sm:$0xff] %v4558
      %4595 = vst [vmem:[%s224 + $0x50] sm:$0xff] %v4559
      %4596 = vst [vmem:[%s224 + $0x58] sm:$0xff] %v4560
      %4597 = vst [vmem:[%s224 + $0x60] sm:$0xff] %v4561
      %4598 = vst [vmem:[%s224 + $0x68] sm:$0xff] %v4562
      %4599 = vst [vmem:[%s224 + $0x70] sm:$0xff] %v4563
      %4600 = vst [vmem:[%s224 + $0x78] sm:$0xff] %v4564
      %4601 = vst [vmem:[%s224 + $0x80] sm:$0xff] %v4565
      %4602 = vst [vmem:[%s224 + $0x88] sm:$0xff] %v4566
      %4603 = vst [vmem:[%s224 + $0x90] sm:$0xff] %v4567
      %4604 = vst [vmem:[%s224 + $0x98] sm:$0xff] %v4568
      %4605 = vst [vmem:[%s224 + $0xa0] sm:$0xff] %v4569
      %4606 = vst [vmem:[%s224 + $0xa8] sm:$0xff] %v4570
      %4607 = vst [vmem:[%s224 + $0xb0] sm:$0xff] %v4571
      %4608 = vst [vmem:[%s224 + $0xb8] sm:$0xff] %v4572
      %4609 = vst [vmem:[%s224 + $0xc0] sm:$0xff] %v4573
      %4610 = vst [vmem:[%s224 + $0xc8] sm:$0xff] %v4574
      %4611 = vst [vmem:[%s224 + $0xd0] sm:$0xff] %v4575
      %4612 = vst [vmem:[%s224 + $0xd8] sm:$0xff] %v4576
      %4613 = vst [vmem:[%s224 + $0xe0] sm:$0xff] %v4577
      %4614 = vst [vmem:[%s224 + $0xe8] sm:$0xff] %v4578
      %4615 = vst [vmem:[%s224 + $0xf0] sm:$0xff] %v4579
      %4616 = vst [vmem:[%s224 + $0xf8] sm:$0xff] %v4580
      %4617 = vst [vmem:[%s224 + $0x100] sm:$0xff] %v4581
      %4618 = vst [vmem:[%s224 + $0x108] sm:$0xff] %v4582
      %4619 = vst [vmem:[%s224 + $0x110] sm:$0xff] %v4583
      %4620 = vst [vmem:[%s224 + $0x118] sm:$0xff] %v4584
      %p4621 = scmp.lt.s32.totalorder %s16, 1
      %s4622 = scalar_select %p4621, %s16, 1
      %s4623 = smul.addr %s4622, 36
      %s4624 = smul.addr %s4623, 8
      %s4625 = scalar_lea.vmem %s5, %s4624
      // Predicated region
      $region41: #{center_predictor_forward.3} parent=39 // pred_check
        %p4626 = pneg %p144
      $region42: #{center_predictor_forward.3} parent=39 // pred_check_branch
        %4628 = sbr.rel (%p4626) target = $region44
      $region43: #{center_predictor_forward.3} parent=39 // pred_region
        _
      $region44: #{center_predictor_forward.3} parent=39 // pred_fallthru
        _
    $region40: #{center_predictor_forward.3} parent=5 // pred_fallthru
      _
    %p4629 = scmp.le.s32.totalorder 2, %s11
    // Predicated region
    $region45: #{center_predictor_forward.3} parent=5 // pred_check
      %p4630 = pneg %p4629
    $region46: #{center_predictor_forward.3} parent=5 // pred_check_branch
      %4632 = sbr.rel (%p4630) target = $region48
    $region47: #{center_predictor_forward.3} parent=5 // pred_region
      %s4633 = ssub.s32 %s11, 2
      // Predicated region
      $region49: #{center_predictor_forward.3} parent=47 // pred_check
        %p4634 = pneg %p150
      $region50: #{center_predictor_forward.3} parent=47 // pred_check_branch
        %4636 = sbr.rel (%p4634) target = $region52
      $region51: #{center_predictor_forward.3} parent=47 // pred_region
        %p4637 = scmp.lt.s32.totalorder %s17, 1
        %s4638 = scalar_select %p4637, %s17, 1
        %s4639 = smul.addr %s4638, 36
        %s4640 = smul.addr %s4639, 8
        %s4641 = scalar_lea.vmem %s5, %s4640
      $region52: #{center_predictor_forward.3} parent=47 // pred_fallthru
        _
    $region48: #{center_predictor_forward.3} parent=5 // pred_fallthru
      _
  $region6: #{center_predictor_forward.3} parent=0 // loop_footer
    %s15 = sadd.s32 1, %s11
  $region7: #{center_predictor_forward.3} parent=0 // loop_footer_branch
    %10 = sbr.rel target = $region3
  $region8: #{center_predictor_forward.3} parent=0 // loop_exit
    _

</llo_original>
